<compile_context>
chip_gen: v6e
topology: v6e:2x2x1
jax: 0.10.0
libtpu: 0.0.40
codegen_flags: <defaults>
</compile_context>

<pallas_src>
import functools

import jax
import jax.numpy as jnp
from jax import lax
from jax.experimental import pallas as pl
from jax.experimental.pallas import tpu as pltpu


def _round_up(v, m):
    return ((v + m - 1) // m) * m


def _valid_taps(r, H, W):
    """All 3x3 taps (center included) whose shifted window overlaps the image.

    Ordered kw-major so the kernel can hoist one W-shifted slab per kw.
    """
    taps = []
    for kw in range(3):
        if abs((kw - 1) * r) >= W:
            continue
        for kh in range(3):
            if abs((kh - 1) * r) >= H:
                continue
            taps.append((kh, kw))
    return tuple(taps)


def _aspp_kernel(*refs, H, W, Cin, Cr, plans, pad_h, pad_w, n_off):
    """One batch element per grid step.

    refs = (x_ref,            (1, H, W, Cin) bf16 unpadded image
            wc_ref,           (Cin, n_wc*Cr) bf16  [w1 | center-only taps]
            *woff_refs,       (ntaps*Cin, Cr) bf16 per im2col rate
            wimg_ref,         (Cin, Cr) bf16 image-pooling 1x1 weight
            scales_ref,       (2+nrates, Cr) f32 folded BN scale
            biases_ref,       (2+nrates, Cr) f32 folded BN bias
            out_ref,          (1, H, W, (2+nrates)*Cr) bf16
            xpad_sc,          (H+2*pad_h, W+2*pad_w, Cin) bf16 VMEM scratch
            [patch_sc])       (H*W, max_taps*Cin) bf16 VMEM scratch (im2col)
    """
    x_ref = refs[0]
    wc_ref = refs[1]
    woff_refs = refs[2:2 + n_off]
    wimg_ref = refs[2 + n_off]
    scales_ref = refs[3 + n_off]
    biases_ref = refs[4 + n_off]
    out_ref = refs[5 + n_off]
    xpad_sc = refs[6 + n_off]
    patch_sc = refs[7 + n_off] if n_off else None

    Hp = H + 2 * pad_h
    Wp = W + 2 * pad_w

    def bn_relu(y, idx):                      # f32 epilogue, bf16 only at store
        s = scales_ref[idx:idx + 1, :]
        b = biases_ref[idx:idx + 1, :]
        return jnp.maximum(y * s + b, 0.0)

    x = x_ref[0]                              # (H, W, Cin) bf16
    x_flat = x.reshape(H * W, Cin)

    # Zero only the halo strips (interior is fully overwritten each step).
    if pad_h:
        xpad_sc[0:pad_h, :, :] = jnp.zeros((pad_h, Wp, Cin), xpad_sc.dtype)
        xpad_sc[pad_h + H:Hp, :, :] = jnp.zeros((pad_h, Wp, Cin), xpad_sc.dtype)
    if pad_w:
        xpad_sc[pad_h:pad_h + H, 0:pad_w, :] = jnp.zeros(
            (H, pad_w, Cin), xpad_sc.dtype)
        xpad_sc[pad_h:pad_h + H, pad_w + W:Wp, :] = jnp.zeros(
            (H, pad_w, Cin), xpad_sc.dtype)
    xpad_sc[pad_h:pad_h + H, pad_w:pad_w + W, :] = x

    # ---- branch 0: image pooling -> 1x1 conv -> BN -> ReLU -> broadcast ----
    pooled = jnp.mean(x_flat.astype(jnp.float32), axis=0, keepdims=True)
    img = jnp.dot(pooled.astype(jnp.bfloat16), wimg_ref[...],
                  preferred_element_type=jnp.float32)
    img = bn_relu(img, 0)                     # (1, Cr)
    out_ref[0, :, :, 0:Cr] = jnp.broadcast_to(
        img.reshape(1, 1, Cr), (H, W, Cr)).astype(out_ref.dtype)

    # ---- fused 1x1 branch + center taps of center-only dilated branches ----
    center = jnp.dot(x_flat, wc_ref[...], preferred_element_type=jnp.float32)

    # branch 1: 1x1 conv -> BN -> ReLU
    out_ref[0, :, :, Cr:2 * Cr] = bn_relu(center[:, 0:Cr], 1).reshape(
        H, W, Cr).astype(out_ref.dtype)

    # ---- branches 2..: dilated 3x3 convs ----
    for bi, plan in enumerate(plans):
        if plan[0] == "center":
            slot = plan[1]
            y = center[:, slot * Cr:(slot + 1) * Cr]
        else:
            _, off_idx, r, taps = plan
            vr = r if r < H else 0            # vertical reach actually used
            prev_kw = None
            slab = None
            for ti, (kh, kw) in enumerate(taps):          # kw-major order
                if kw != prev_kw:                         # hoist sublane shift
                    w0 = pad_w + (kw - 1) * r
                    slab = xpad_sc[pad_h - vr:pad_h + vr + H, w0:w0 + W, :]
                    prev_kw = kw
                h0 = (kh - 1) * r + vr        # cheap leading-axis slice
                patch_sc[:, ti * Cin:(ti + 1) * Cin] = (
                    slab[h0:h0 + H].reshape(H * W, Cin))
            nt = len(taps)
            y = jnp.dot(patch_sc[:, 0:nt * Cin], woff_refs[off_idx][...],
                        preferred_element_type=jnp.float32)
        c0 = (2 + bi) * Cr
        out_ref[0, :, :, c0:c0 + Cr] = bn_relu(y, 2 + bi).reshape(
            H, W, Cr).astype(out_ref.dtype)


def aspp_forward_nhwc(x_nhwc, params, rates=(6, 12, 18)):
    """Pallas ASPP forward, NHWC end-to-end (no layout transposes).

    x_nhwc: (N, H, W, Cin) -> (N, H, W, (2+R)*Cr) bf16.
    """
    x = x_nhwc.astype(jnp.bfloat16)
    N, H, W, Cin = x.shape
    w1, w3, wimg = params["w1"], params["w3"], params["wimg"]
    Cr = w1.shape[-1]
    nrates = len(rates)
    Cout = (2 + nrates) * Cr

    # Static per-rate plan: rates whose only surviving tap is the center go
    # through the fused [w1 | centers] matmul; rates with surviving off taps
    # get a full im2col matmul (center folded in -> K ~ 9*Cin).
    plans = []
    wc_parts = [w1]
    w_offs = []
    for bi, r in enumerate(rates):
        taps = _valid_taps(r, H, W)
        if len(taps) == 1:                    # only the center tap survives
            plans.append(("center", len(wc_parts)))
            wc_parts.append(w3[bi, 1, 1])
        else:
            plans.append(("off", len(w_offs), r, taps))
            w_offs.append(jnp.concatenate(
                [w3[bi, kh, kw] for kh, kw in taps], axis=0).astype(jnp.bfloat16))
    wc = jnp.concatenate(wc_parts, axis=-1).astype(jnp.bfloat16)
    wimg_bf = wimg.astype(jnp.bfloat16)
    n_off = len(w_offs)
    max_taps = max((len(p[3]) for p in plans if p[0] == "off"), default=0)

    # Halo only as wide as a rate that actually reaches back into the image;
    # pad_w rounded to the bf16 sublane tile so the center store is aligned.
    pad_h = max([r for r in rates if r < H], default=0)
    pad_w = max([r for r in rates if r < W], default=0)
    pad_w = _round_up(pad_w, 16) if pad_w else 0
    Hp, Wp = H + 2 * pad_h, W + 2 * pad_w

    kernel = functools.partial(
        _aspp_kernel, H=H, W=W, Cin=Cin, Cr=Cr, plans=tuple(plans),
        pad_h=pad_h, pad_w=pad_w, n_off=n_off)

    in_specs = [pl.BlockSpec((1, H, W, Cin), lambda n: (n, 0, 0, 0)),
                pl.BlockSpec(wc.shape, lambda n: (0, 0))]
    in_specs += [pl.BlockSpec(w.shape, lambda n: (0, 0)) for w in w_offs]
    in_specs += [pl.BlockSpec(wimg_bf.shape, lambda n: (0, 0)),
                 pl.BlockSpec(params["scales"].shape, lambda n: (0, 0)),
                 pl.BlockSpec(params["biases"].shape, lambda n: (0, 0))]

    scratch_shapes = [pltpu.VMEM((Hp, Wp, Cin), jnp.bfloat16)]
    if n_off:
        scratch_shapes.append(pltpu.VMEM((H * W, max_taps * Cin), jnp.bfloat16))

    out_nhwc = pl.pallas_call(
        kernel,
        out_shape=jax.ShapeDtypeStruct((N, H, W, Cout), jnp.bfloat16),
        grid_spec=pltpu.PrefetchScalarGridSpec(
            num_scalar_prefetch=0,
            grid=(N,),
            in_specs=in_specs,
            out_specs=pl.BlockSpec((1, H, W, Cout), lambda n: (n, 0, 0, 0)),
            scratch_shapes=scratch_shapes,
        ),
        compiler_params=pltpu.CompilerParams(
            dimension_semantics=("parallel",),
            # Static footprint (double-buffered blocks + scratch) is ~6-7 MiB
            # at these shapes; 16 MiB leaves comfortable headroom for compiler
            # temporaries while staying well under the scoped default.
            vmem_limit_bytes=16 * 1024 * 1024),
    )(x, wc, *w_offs, wimg_bf, params["scales"], params["biases"])

    return out_nhwc


def aspp_forward(x_nchw, params, rates=(6, 12, 18)):
    """NCHW (PyTorch-convention) compatibility wrapper.

    Prefer aspp_forward_nhwc end-to-end: these transposes are full HBM round
    trips outside the kernel and exist only for layout parity with the module.
    """
    y = aspp_forward_nhwc(jnp.transpose(x_nchw, (0, 2, 3, 1)), params, rates)
    return jnp.transpose(y, (0, 3, 1, 2))


def aspp_reference_nhwc(x_nhwc, params, rates=(6, 12, 18)):
    """Pure-JAX reference with matching (bf16-in, f32-accumulate) numerics."""
    x = x_nhwc.astype(jnp.bfloat16)
    N, H, W, Cin = x.shape
    Cr = params["w1"].shape[-1]

    def bn_relu(y, idx):
        return jnp.maximum(
            y * params["scales"][idx] + params["biases"][idx], 0.0)

    pooled = jnp.mean(x.astype(jnp.float32), axis=(1, 2))          # (N, Cin)
    img = jnp.dot(pooled.astype(jnp.bfloat16),
                  params["wimg"].astype(jnp.bfloat16),
                  preferred_element_type=jnp.float32)
    img = bn_relu(img, 0)
    outs = [jnp.broadcast_to(img[:, None, None, :], (N, H, W, Cr))]

    outs.append(bn_relu(jnp.einsum("nhwc,cd->nhwd", x,
                                   params["w1"].astype(jnp.bfloat16),
                                   preferred_element_type=jnp.float32), 1))

    for bi, r in enumerate(rates):
        y = lax.conv_general_dilated(
            x, params["w3"][bi].astype(jnp.bfloat16), window_strides=(1, 1),
            padding=[(r, r), (r, r)], rhs_dilation=(r, r),
            dimension_numbers=("NHWC", "HWIO", "NHWC"),
            preferred_element_type=jnp.float32)
        outs.append(bn_relu(y, 2 + bi))

    return jnp.concatenate(outs, axis=-1)                          # f32


def make_params(key, in_dim, reduction_dim=256):
    """Deterministic synthetic weights; BN folded into per-channel scale/bias."""
    ks = jax.random.split(key, 8)
    cr = reduction_dim
    w1 = jax.random.normal(ks[0], (in_dim, cr), jnp.float32) / jnp.sqrt(in_dim)
    w3 = jax.random.normal(ks[1], (3, 3, 3, in_dim, cr), jnp.float32) \
        / jnp.sqrt(9.0 * in_dim)
    wimg = jax.random.normal(ks[2], (in_dim, cr), jnp.float32) / jnp.sqrt(in_dim)

    gamma = 1.0 + 0.1 * jax.random.normal(ks[3], (5, cr), jnp.float32)
    beta = 0.1 * jax.random.normal(ks[4], (5, cr), jnp.float32)
    rmean = 0.1 * jax.random.normal(ks[5], (5, cr), jnp.float32)
    rvar = jax.random.uniform(ks[6], (5, cr), jnp.float32, 0.5, 1.5)
    eps = 1e-5
    scales = gamma / jnp.sqrt(rvar + eps)
    biases = beta - rmean * scales

    return {"w1": w1, "w3": w3, "wimg": wimg,
            "scales": scales, "biases": biases}


if __name__ == "__main__":
    # Small shapes consistent with the module: in_dim=128, reduction_dim=256,
    # output_stride=16 -> rates (6, 12, 18).
    N, Cin, H, W = 2, 128, 16, 16
    rates = (6, 12, 18)

    key = jax.random.PRNGKey(0)
    kx, kp = jax.random.split(key)
    x_nhwc = jax.random.normal(kx, (N, H, W, Cin), jnp.float32)
    params = make_params(kp, Cin, reduction_dim=256)

    # NHWC path (no wrapper transposes; kernel output is bf16).
    out = jax.block_until_ready(aspp_forward_nhwc(x_nhwc, params, rates))
    ref = jax.block_until_ready(aspp_reference_nhwc(x_nhwc, params, rates))
    assert out.shape == (N, H, W, 5 * 256), out.shape
    assert out.dtype == jnp.bfloat16, out.dtype
    out_f32 = out.astype(jnp.float32)
    err = float(jnp.max(jnp.abs(out_f32 - ref)))
    # bf16 output cast + accumulation-order differences -> ~1e-2 tolerance.
    assert jnp.allclose(out_f32, ref, rtol=2e-2, atol=2e-2), err

    # NCHW (PyTorch-convention) wrapper parity check.
    out_nchw = jax.block_until_ready(
        aspp_forward(jnp.transpose(x_nhwc, (0, 3, 1, 2)), params, rates))
    assert out_nchw.shape == (N, 5 * 256, H, W), out_nchw.shape

    print("KERNEL_OK")
</pallas_src>

<mosaic_0001>
module attributes {stable_mosaic.version = 11 : i64} {
  func.func @_aspp_kernel(%arg0: i32, %arg1: memref<1x16x16x128xbf16, #tpu.memory_space<vmem>>, %arg2: memref<128x512xbf16, #tpu.memory_space<vmem>>, %arg3: memref<1152x256xbf16, #tpu.memory_space<vmem>>, %arg4: memref<1152x256xbf16, #tpu.memory_space<vmem>>, %arg5: memref<128x256xbf16, #tpu.memory_space<vmem>>, %arg6: memref<5x256xf32, #tpu.memory_space<vmem>>, %arg7: memref<5x256xf32, #tpu.memory_space<vmem>>, %arg8: memref<1x16x16x1280xbf16, #tpu.memory_space<vmem>>, %arg9: memref<40x48x128xbf16, #tpu.memory_space<vmem>>, %arg10: memref<256x1152xbf16, #tpu.memory_space<vmem>>) attributes {dimension_semantics = [#tpu.dimension_semantics<parallel>], iteration_bounds = array<i64: 2>, scalar_prefetch = 0 : i64, scratch_operands = 2 : i64, tpu.core_type = #tpu.core_type<tc>, window_params = [{transform_indices = @transform_0, window_bounds = array<i64: 1, 16, 16, 128>}, {pipeline_mode = #tpu.pipeline_mode<synchronous>, transform_indices = @transform_1, window_bounds = array<i64: 128, 512>}, {pipeline_mode = #tpu.pipeline_mode<synchronous>, transform_indices = @transform_2, window_bounds = array<i64: 1152, 256>}, {pipeline_mode = #tpu.pipeline_mode<synchronous>, transform_indices = @transform_3, window_bounds = array<i64: 1152, 256>}, {pipeline_mode = #tpu.pipeline_mode<synchronous>, transform_indices = @transform_4, window_bounds = array<i64: 128, 256>}, {pipeline_mode = #tpu.pipeline_mode<synchronous>, transform_indices = @transform_5, window_bounds = array<i64: 5, 256>}, {pipeline_mode = #tpu.pipeline_mode<synchronous>, transform_indices = @transform_6, window_bounds = array<i64: 5, 256>}, {transform_indices = @transform_7, window_bounds = array<i64: 1, 16, 16, 1280>}]} {
    %c0 = arith.constant 0 : index
    %c0_0 = arith.constant 0 : index
    %c0_1 = arith.constant 0 : index
    %c0_2 = arith.constant 0 : index
    %0 = vector.load %arg1[%c0, %c0_0, %c0_1, %c0_2] : memref<1x16x16x128xbf16, #tpu.memory_space<vmem>>, vector<1x16x16x128xbf16>
    %1 = vector.shape_cast %0 : vector<1x16x16x128xbf16> to vector<16x16x128xbf16>
    %2 = vector.shape_cast %1 : vector<16x16x128xbf16> to vector<256x128xbf16>
    %cst = arith.constant 0.000000e+00 : bf16
    %3 = vector.broadcast %cst : bf16 to vector<12x48x128xbf16>
    %c0_3 = arith.constant 0 : index
    %c0_4 = arith.constant 0 : index
    %c0_5 = arith.constant 0 : index
    %4 = vector.load %arg9[%c0_3, %c0_4, %c0_5] : memref<40x48x128xbf16, #tpu.memory_space<vmem>>, vector<12x48x128xbf16>
    tpu.vector_store %arg9[%c0_3, %c0_4, %c0_5], %3 {strides = array<i32>} : memref<40x48x128xbf16, #tpu.memory_space<vmem>>, vector<12x48x128xbf16>,
    %cst_6 = arith.constant 0.000000e+00 : bf16
    %5 = vector.broadcast %cst_6 : bf16 to vector<12x48x128xbf16>
    %c28 = arith.constant 28 : index
    %c0_7 = arith.constant 0 : index
    %c0_8 = arith.constant 0 : index
    %6 = vector.load %arg9[%c28, %c0_7, %c0_8] : memref<40x48x128xbf16, #tpu.memory_space<vmem>>, vector<12x48x128xbf16>
    tpu.vector_store %arg9[%c28, %c0_7, %c0_8], %5 {strides = array<i32>} : memref<40x48x128xbf16, #tpu.memory_space<vmem>>, vector<12x48x128xbf16>,
    %cst_9 = arith.constant 0.000000e+00 : bf16
    %7 = vector.broadcast %cst_9 : bf16 to vector<16x16x128xbf16>
    %c12 = arith.constant 12 : index
    %c0_10 = arith.constant 0 : index
    %c0_11 = arith.constant 0 : index
    %8 = vector.load %arg9[%c12, %c0_10, %c0_11] : memref<40x48x128xbf16, #tpu.memory_space<vmem>>, vector<16x16x128xbf16>
    tpu.vector_store %arg9[%c12, %c0_10, %c0_11], %7 {strides = array<i32>} : memref<40x48x128xbf16, #tpu.memory_space<vmem>>, vector<16x16x128xbf16>,
    %cst_12 = arith.constant 0.000000e+00 : bf16
    %9 = vector.broadcast %cst_12 : bf16 to vector<16x16x128xbf16>
    %c12_13 = arith.constant 12 : index
    %c32 = arith.constant 32 : index
    %c0_14 = arith.constant 0 : index
    %10 = vector.load %arg9[%c12_13, %c32, %c0_14] : memref<40x48x128xbf16, #tpu.memory_space<vmem>>, vector<16x16x128xbf16>
    tpu.vector_store %arg9[%c12_13, %c32, %c0_14], %9 {strides = array<i32>} : memref<40x48x128xbf16, #tpu.memory_space<vmem>>, vector<16x16x128xbf16>,
    %c12_15 = arith.constant 12 : index
    %c16 = arith.constant 16 : index
    %c0_16 = arith.constant 0 : index
    %11 = vector.load %arg9[%c12_15, %c16, %c0_16] : memref<40x48x128xbf16, #tpu.memory_space<vmem>>, vector<16x16x128xbf16>
    tpu.vector_store %arg9[%c12_15, %c16, %c0_16], %1 {strides = array<i32>} : memref<40x48x128xbf16, #tpu.memory_space<vmem>>, vector<16x16x128xbf16>,
    %12 = arith.extf %2 : vector<256x128xbf16> to vector<256x128xf32>
    %cst_17 = arith.constant dense<0.000000e+00> : vector<128xf32>
    %13 = vector.multi_reduction <add>, %12, %cst_17 [0] : vector<256x128xf32> to vector<128xf32>
    %14 = vector.shape_cast %13 : vector<128xf32> to vector<1x128xf32>
    %cst_18 = arith.constant 2.560000e+02 : f32
    %15 = vector.broadcast %cst_18 : f32 to vector<1x128xf32>
    %16 = arith.divf %14, %15 : vector<1x128xf32>
    %17 = arith.truncf %16 : vector<1x128xf32> to vector<1x128xbf16>
    %c0_19 = arith.constant 0 : index
    %c0_20 = arith.constant 0 : index
    %18 = vector.load %arg5[%c0_19, %c0_20] : memref<128x256xbf16, #tpu.memory_space<vmem>>, vector<128x256xbf16>
    %cst_21 = arith.constant dense<0.000000e+00> : vector<1x256xf32>
    %19 = tpu.matmul %17, %18, %cst_21 {dimension_numbers = #tpu.dot_dimension_numbers<[1], [0], [0], [1], [0, 0, 1, 1], [], []>} : vector<1x128xbf16>, vector<128x256xbf16>, vector<1x256xf32> -> vector<1x256xf32>
    %c0_22 = arith.constant 0 : index
    %c0_23 = arith.constant 0 : index
    %20 = vector.load %arg6[%c0_22, %c0_23] : memref<5x256xf32, #tpu.memory_space<vmem>>, vector<1x256xf32>
    %c0_24 = arith.constant 0 : index
    %c0_25 = arith.constant 0 : index
    %21 = vector.load %arg7[%c0_24, %c0_25] : memref<5x256xf32, #tpu.memory_space<vmem>>, vector<1x256xf32>
    %22 = arith.mulf %19, %20 : vector<1x256xf32>
    %23 = arith.addf %22, %21 : vector<1x256xf32>
    %cst_26 = arith.constant 0.000000e+00 : f32
    %24 = vector.broadcast %cst_26 : f32 to vector<1x256xf32>
    %25 = arith.maximumf %23, %24 : vector<1x256xf32>
    %26 = vector.shape_cast %25 : vector<1x256xf32> to vector<1x1x256xf32>
    %27 = vector.shape_cast %26 : vector<1x1x256xf32> to vector<1x1x256xf32>
    %28 = vector.broadcast %27 : vector<1x1x256xf32> to vector<16x16x256xf32>
    %29 = arith.truncf %28 : vector<16x16x256xf32> to vector<16x16x256xbf16>
    %c0_27 = arith.constant 0 : index
    %c0_28 = arith.constant 0 : index
    %c0_29 = arith.constant 0 : index
    %c0_30 = arith.constant 0 : index
    %30 = vector.load %arg8[%c0_27, %c0_28, %c0_29, %c0_30] : memref<1x16x16x1280xbf16, #tpu.memory_space<vmem>>, vector<1x16x16x256xbf16>
    %31 = vector.shape_cast %30 : vector<1x16x16x256xbf16> to vector<16x16x256xbf16>
    %32 = vector.shape_cast %29 : vector<16x16x256xbf16> to vector<1x16x16x256xbf16>
    tpu.vector_store %arg8[%c0_27, %c0_28, %c0_29, %c0_30], %32 {strides = array<i32>} : memref<1x16x16x1280xbf16, #tpu.memory_space<vmem>>, vector<1x16x16x256xbf16>,
    %c0_31 = arith.constant 0 : index
    %c0_32 = arith.constant 0 : index
    %33 = vector.load %arg2[%c0_31, %c0_32] : memref<128x512xbf16, #tpu.memory_space<vmem>>, vector<128x512xbf16>
    %cst_33 = arith.constant dense<0.000000e+00> : vector<256x512xf32>
    %34 = tpu.matmul %2, %33, %cst_33 {dimension_numbers = #tpu.dot_dimension_numbers<[1], [0], [0], [1], [0, 0, 1, 1], [], []>} : vector<256x128xbf16>, vector<128x512xbf16>, vector<256x512xf32> -> vector<256x512xf32>
    %35 = vector.extract_strided_slice %34 {offsets = [0, 0], sizes = [256, 256], strides = [1, 1]} : vector<256x512xf32> to vector<256x256xf32>
    %c1 = arith.constant 1 : index
    %c0_34 = arith.constant 0 : index
    %36 = vector.load %arg6[%c1, %c0_34] : memref<5x256xf32, #tpu.memory_space<vmem>>, vector<1x256xf32>
    %c1_35 = arith.constant 1 : index
    %c0_36 = arith.constant 0 : index
    %37 = vector.load %arg7[%c1_35, %c0_36] : memref<5x256xf32, #tpu.memory_space<vmem>>, vector<1x256xf32>
    %38 = vector.broadcast %36 : vector<1x256xf32> to vector<256x256xf32>
    %39 = arith.mulf %35, %38 : vector<256x256xf32>
    %40 = vector.broadcast %37 : vector<1x256xf32> to vector<256x256xf32>
    %41 = arith.addf %39, %40 : vector<256x256xf32>
    %cst_37 = arith.constant 0.000000e+00 : f32
    %42 = vector.broadcast %cst_37 : f32 to vector<256x256xf32>
    %43 = arith.maximumf %41, %42 : vector<256x256xf32>
    %44 = vector.shape_cast %43 : vector<256x256xf32> to vector<16x16x256xf32>
    %45 = arith.truncf %44 : vector<16x16x256xf32> to vector<16x16x256xbf16>
    %c0_38 = arith.constant 0 : index
    %c0_39 = arith.constant 0 : index
    %c0_40 = arith.constant 0 : index
    %c256 = arith.constant 256 : index
    %46 = vector.load %arg8[%c0_38, %c0_39, %c0_40, %c256] : memref<1x16x16x1280xbf16, #tpu.memory_space<vmem>>, vector<1x16x16x256xbf16>
    %47 = vector.shape_cast %46 : vector<1x16x16x256xbf16> to vector<16x16x256xbf16>
    %48 = vector.shape_cast %45 : vector<16x16x256xbf16> to vector<1x16x16x256xbf16>
    tpu.vector_store %arg8[%c0_38, %c0_39, %c0_40, %c256], %48 {strides = array<i32>} : memref<1x16x16x1280xbf16, #tpu.memory_space<vmem>>, vector<1x16x16x256xbf16>,
    %c6 = arith.constant 6 : index
    %c10 = arith.constant 10 : index
    %c0_41 = arith.constant 0 : index
    %49 = vector.load %arg9[%c6, %c10, %c0_41] : memref<40x48x128xbf16, #tpu.memory_space<vmem>>, vector<28x16x128xbf16>
    %50 = vector.extract_strided_slice %49 {offsets = [0, 0, 0], sizes = [16, 16, 128], strides = [1, 1, 1]} : vector<28x16x128xbf16> to vector<16x16x128xbf16>
    %51 = vector.shape_cast %50 : vector<16x16x128xbf16> to vector<256x128xbf16>
    %c0_42 = arith.constant 0 : index
    %c0_43 = arith.constant 0 : index
    %52 = vector.load %arg10[%c0_42, %c0_43] : memref<256x1152xbf16, #tpu.memory_space<vmem>>, vector<256x128xbf16>
    tpu.vector_store %arg10[%c0_42, %c0_43], %51 {strides = array<i32>} : memref<256x1152xbf16, #tpu.memory_space<vmem>>, vector<256x128xbf16>,
    %53 = vector.extract_strided_slice %49 {offsets = [6, 0, 0], sizes = [16, 16, 128], strides = [1, 1, 1]} : vector<28x16x128xbf16> to vector<16x16x128xbf16>
    %54 = vector.shape_cast %53 : vector<16x16x128xbf16> to vector<256x128xbf16>
    %c0_44 = arith.constant 0 : index
    %c128 = arith.constant 128 : index
    %55 = vector.load %arg10[%c0_44, %c128] : memref<256x1152xbf16, #tpu.memory_space<vmem>>, vector<256x128xbf16>
    tpu.vector_store %arg10[%c0_44, %c128], %54 {strides = array<i32>} : memref<256x1152xbf16, #tpu.memory_space<vmem>>, vector<256x128xbf16>,
    %56 = vector.extract_strided_slice %49 {offsets = [12, 0, 0], sizes = [16, 16, 128], strides = [1, 1, 1]} : vector<28x16x128xbf16> to vector<16x16x128xbf16>
    %57 = vector.shape_cast %56 : vector<16x16x128xbf16> to vector<256x128xbf16>
    %c0_45 = arith.constant 0 : index
    %c256_46 = arith.constant 256 : index
    %58 = vector.load %arg10[%c0_45, %c256_46] : memref<256x1152xbf16, #tpu.memory_space<vmem>>, vector<256x128xbf16>
    tpu.vector_store %arg10[%c0_45, %c256_46], %57 {strides = array<i32>} : memref<256x1152xbf16, #tpu.memory_space<vmem>>, vector<256x128xbf16>,
    %c6_47 = arith.constant 6 : index
    %c16_48 = arith.constant 16 : index
    %c0_49 = arith.constant 0 : index
    %59 = vector.load %arg9[%c6_47, %c16_48, %c0_49] : memref<40x48x128xbf16, #tpu.memory_space<vmem>>, vector<28x16x128xbf16>
    %60 = vector.extract_strided_slice %59 {offsets = [0, 0, 0], sizes = [16, 16, 128], strides = [1, 1, 1]} : vector<28x16x128xbf16> to vector<16x16x128xbf16>
    %61 = vector.shape_cast %60 : vector<16x16x128xbf16> to vector<256x128xbf16>
    %c0_50 = arith.constant 0 : index
    %c384 = arith.constant 384 : index
    %62 = vector.load %arg10[%c0_50, %c384] : memref<256x1152xbf16, #tpu.memory_space<vmem>>, vector<256x128xbf16>
    tpu.vector_store %arg10[%c0_50, %c384], %61 {strides = array<i32>} : memref<256x1152xbf16, #tpu.memory_space<vmem>>, vector<256x128xbf16>,
    %63 = vector.extract_strided_slice %59 {offsets = [6, 0, 0], sizes = [16, 16, 128], strides = [1, 1, 1]} : vector<28x16x128xbf16> to vector<16x16x128xbf16>
    %64 = vector.shape_cast %63 : vector<16x16x128xbf16> to vector<256x128xbf16>
    %c0_51 = arith.constant 0 : index
    %c512 = arith.constant 512 : index
    %65 = vector.load %arg10[%c0_51, %c512] : memref<256x1152xbf16, #tpu.memory_space<vmem>>, vector<256x128xbf16>
    tpu.vector_store %arg10[%c0_51, %c512], %64 {strides = array<i32>} : memref<256x1152xbf16, #tpu.memory_space<vmem>>, vector<256x128xbf16>,
    %66 = vector.extract_strided_slice %59 {offsets = [12, 0, 0], sizes = [16, 16, 128], strides = [1, 1, 1]} : vector<28x16x128xbf16> to vector<16x16x128xbf16>
    %67 = vector.shape_cast %66 : vector<16x16x128xbf16> to vector<256x128xbf16>
    %c0_52 = arith.constant 0 : index
    %c640 = arith.constant 640 : index
    %68 = vector.load %arg10[%c0_52, %c640] : memref<256x1152xbf16, #tpu.memory_space<vmem>>, vector<256x128xbf16>
    tpu.vector_store %arg10[%c0_52, %c640], %67 {strides = array<i32>} : memref<256x1152xbf16, #tpu.memory_space<vmem>>, vector<256x128xbf16>,
    %c6_53 = arith.constant 6 : index
    %c22 = arith.constant 22 : index
    %c0_54 = arith.constant 0 : index
    %69 = vector.load %arg9[%c6_53, %c22, %c0_54] : memref<40x48x128xbf16, #tpu.memory_space<vmem>>, vector<28x16x128xbf16>
    %70 = vector.extract_strided_slice %69 {offsets = [0, 0, 0], sizes = [16, 16, 128], strides = [1, 1, 1]} : vector<28x16x128xbf16> to vector<16x16x128xbf16>
    %71 = vector.shape_cast %70 : vector<16x16x128xbf16> to vector<256x128xbf16>
    %c0_55 = arith.constant 0 : index
    %c768 = arith.constant 768 : index
    %72 = vector.load %arg10[%c0_55, %c768] : memref<256x1152xbf16, #tpu.memory_space<vmem>>, vector<256x128xbf16>
    tpu.vector_store %arg10[%c0_55, %c768], %71 {strides = array<i32>} : memref<256x1152xbf16, #tpu.memory_space<vmem>>, vector<256x128xbf16>,
    %73 = vector.extract_strided_slice %69 {offsets = [6, 0, 0], sizes = [16, 16, 128], strides = [1, 1, 1]} : vector<28x16x128xbf16> to vector<16x16x128xbf16>
    %74 = vector.shape_cast %73 : vector<16x16x128xbf16> to vector<256x128xbf16>
    %c0_56 = arith.constant 0 : index
    %c896 = arith.constant 896 : index
    %75 = vector.load %arg10[%c0_56, %c896] : memref<256x1152xbf16, #tpu.memory_space<vmem>>, vector<256x128xbf16>
    tpu.vector_store %arg10[%c0_56, %c896], %74 {strides = array<i32>} : memref<256x1152xbf16, #tpu.memory_space<vmem>>, vector<256x128xbf16>,
    %76 = vector.extract_strided_slice %69 {offsets = [12, 0, 0], sizes = [16, 16, 128], strides = [1, 1, 1]} : vector<28x16x128xbf16> to vector<16x16x128xbf16>
    %77 = vector.shape_cast %76 : vector<16x16x128xbf16> to vector<256x128xbf16>
    %c0_57 = arith.constant 0 : index
    %c1024 = arith.constant 1024 : index
    %78 = vector.load %arg10[%c0_57, %c1024] : memref<256x1152xbf16, #tpu.memory_space<vmem>>, vector<256x128xbf16>
    tpu.vector_store %arg10[%c0_57, %c1024], %77 {strides = array<i32>} : memref<256x1152xbf16, #tpu.memory_space<vmem>>, vector<256x128xbf16>,
    %c0_58 = arith.constant 0 : index
    %c0_59 = arith.constant 0 : index
    %79 = vector.load %arg10[%c0_58, %c0_59] : memref<256x1152xbf16, #tpu.memory_space<vmem>>, vector<256x1152xbf16>
    %c0_60 = arith.constant 0 : index
    %c0_61 = arith.constant 0 : index
    %80 = vector.load %arg3[%c0_60, %c0_61] : memref<1152x256xbf16, #tpu.memory_space<vmem>>, vector<1152x256xbf16>
    %cst_62 = arith.constant dense<0.000000e+00> : vector<256x256xf32>
    %81 = tpu.matmul %79, %80, %cst_62 {dimension_numbers = #tpu.dot_dimension_numbers<[1], [0], [0], [1], [0, 0, 1, 1], [], []>} : vector<256x1152xbf16>, vector<1152x256xbf16>, vector<256x256xf32> -> vector<256x256xf32>
    %c2 = arith.constant 2 : index
    %c0_63 = arith.constant 0 : index
    %82 = vector.load %arg6[%c2, %c0_63] : memref<5x256xf32, #tpu.memory_space<vmem>>, vector<1x256xf32>
    %c2_64 = arith.constant 2 : index
    %c0_65 = arith.constant 0 : index
    %83 = vector.load %arg7[%c2_64, %c0_65] : memref<5x256xf32, #tpu.memory_space<vmem>>, vector<1x256xf32>
    %84 = vector.broadcast %82 : vector<1x256xf32> to vector<256x256xf32>
    %85 = arith.mulf %81, %84 : vector<256x256xf32>
    %86 = vector.broadcast %83 : vector<1x256xf32> to vector<256x256xf32>
    %87 = arith.addf %85, %86 : vector<256x256xf32>
    %cst_66 = arith.constant 0.000000e+00 : f32
    %88 = vector.broadcast %cst_66 : f32 to vector<256x256xf32>
    %89 = arith.maximumf %87, %88 : vector<256x256xf32>
    %90 = vector.shape_cast %89 : vector<256x256xf32> to vector<16x16x256xf32>
    %91 = arith.truncf %90 : vector<16x16x256xf32> to vector<16x16x256xbf16>
    %c0_67 = arith.constant 0 : index
    %c0_68 = arith.constant 0 : index
    %c0_69 = arith.constant 0 : index
    %c512_70 = arith.constant 512 : index
    %92 = vector.load %arg8[%c0_67, %c0_68, %c0_69, %c512_70] : memref<1x16x16x1280xbf16, #tpu.memory_space<vmem>>, vector<1x16x16x256xbf16>
    %93 = vector.shape_cast %92 : vector<1x16x16x256xbf16> to vector<16x16x256xbf16>
    %94 = vector.shape_cast %91 : vector<16x16x256xbf16> to vector<1x16x16x256xbf16>
    tpu.vector_store %arg8[%c0_67, %c0_68, %c0_69, %c512_70], %94 {strides = array<i32>} : memref<1x16x16x1280xbf16, #tpu.memory_space<vmem>>, vector<1x16x16x256xbf16>,
    %c0_71 = arith.constant 0 : index
    %c4 = arith.constant 4 : index
    %c0_72 = arith.constant 0 : index
    %95 = vector.load %arg9[%c0_71, %c4, %c0_72] : memref<40x48x128xbf16, #tpu.memory_space<vmem>>, vector<40x16x128xbf16>
    %96 = vector.extract_strided_slice %95 {offsets = [0, 0, 0], sizes = [16, 16, 128], strides = [1, 1, 1]} : vector<40x16x128xbf16> to vector<16x16x128xbf16>
    %97 = vector.shape_cast %96 : vector<16x16x128xbf16> to vector<256x128xbf16>
    %c0_73 = arith.constant 0 : index
    %c0_74 = arith.constant 0 : index
    %98 = vector.load %arg10[%c0_73, %c0_74] : memref<256x1152xbf16, #tpu.memory_space<vmem>>, vector<256x128xbf16>
    tpu.vector_store %arg10[%c0_73, %c0_74], %97 {strides = array<i32>} : memref<256x1152xbf16, #tpu.memory_space<vmem>>, vector<256x128xbf16>,
    %99 = vector.extract_strided_slice %95 {offsets = [12, 0, 0], sizes = [16, 16, 128], strides = [1, 1, 1]} : vector<40x16x128xbf16> to vector<16x16x128xbf16>
    %100 = vector.shape_cast %99 : vector<16x16x128xbf16> to vector<256x128xbf16>
    %c0_75 = arith.constant 0 : index
    %c128_76 = arith.constant 128 : index
    %101 = vector.load %arg10[%c0_75, %c128_76] : memref<256x1152xbf16, #tpu.memory_space<vmem>>, vector<256x128xbf16>
    tpu.vector_store %arg10[%c0_75, %c128_76], %100 {strides = array<i32>} : memref<256x1152xbf16, #tpu.memory_space<vmem>>, vector<256x128xbf16>,
    %102 = vector.extract_strided_slice %95 {offsets = [24, 0, 0], sizes = [16, 16, 128], strides = [1, 1, 1]} : vector<40x16x128xbf16> to vector<16x16x128xbf16>
    %103 = vector.shape_cast %102 : vector<16x16x128xbf16> to vector<256x128xbf16>
    %c0_77 = arith.constant 0 : index
    %c256_78 = arith.constant 256 : index
    %104 = vector.load %arg10[%c0_77, %c256_78] : memref<256x1152xbf16, #tpu.memory_space<vmem>>, vector<256x128xbf16>
    tpu.vector_store %arg10[%c0_77, %c256_78], %103 {strides = array<i32>} : memref<256x1152xbf16, #tpu.memory_space<vmem>>, vector<256x128xbf16>,
    %c0_79 = arith.constant 0 : index
    %c16_80 = arith.constant 16 : index
    %c0_81 = arith.constant 0 : index
    %105 = vector.load %arg9[%c0_79, %c16_80, %c0_81] : memref<40x48x128xbf16, #tpu.memory_space<vmem>>, vector<40x16x128xbf16>
    %106 = vector.extract_strided_slice %105 {offsets = [0, 0, 0], sizes = [16, 16, 128], strides = [1, 1, 1]} : vector<40x16x128xbf16> to vector<16x16x128xbf16>
    %107 = vector.shape_cast %106 : vector<16x16x128xbf16> to vector<256x128xbf16>
    %c0_82 = arith.constant 0 : index
    %c384_83 = arith.constant 384 : index
    %108 = vector.load %arg10[%c0_82, %c384_83] : memref<256x1152xbf16, #tpu.memory_space<vmem>>, vector<256x128xbf16>
    tpu.vector_store %arg10[%c0_82, %c384_83], %107 {strides = array<i32>} : memref<256x1152xbf16, #tpu.memory_space<vmem>>, vector<256x128xbf16>,
    %109 = vector.extract_strided_slice %105 {offsets = [12, 0, 0], sizes = [16, 16, 128], strides = [1, 1, 1]} : vector<40x16x128xbf16> to vector<16x16x128xbf16>
    %110 = vector.shape_cast %109 : vector<16x16x128xbf16> to vector<256x128xbf16>
    %c0_84 = arith.constant 0 : index
    %c512_85 = arith.constant 512 : index
    %111 = vector.load %arg10[%c0_84, %c512_85] : memref<256x1152xbf16, #tpu.memory_space<vmem>>, vector<256x128xbf16>
    tpu.vector_store %arg10[%c0_84, %c512_85], %110 {strides = array<i32>} : memref<256x1152xbf16, #tpu.memory_space<vmem>>, vector<256x128xbf16>,
    %112 = vector.extract_strided_slice %105 {offsets = [24, 0, 0], sizes = [16, 16, 128], strides = [1, 1, 1]} : vector<40x16x128xbf16> to vector<16x16x128xbf16>
    %113 = vector.shape_cast %112 : vector<16x16x128xbf16> to vector<256x128xbf16>
    %c0_86 = arith.constant 0 : index
    %c640_87 = arith.constant 640 : index
    %114 = vector.load %arg10[%c0_86, %c640_87] : memref<256x1152xbf16, #tpu.memory_space<vmem>>, vector<256x128xbf16>
    tpu.vector_store %arg10[%c0_86, %c640_87], %113 {strides = array<i32>} : memref<256x1152xbf16, #tpu.memory_space<vmem>>, vector<256x128xbf16>,
    %c0_88 = arith.constant 0 : index
    %c28_89 = arith.constant 28 : index
    %c0_90 = arith.constant 0 : index
    %115 = vector.load %arg9[%c0_88, %c28_89, %c0_90] : memref<40x48x128xbf16, #tpu.memory_space<vmem>>, vector<40x16x128xbf16>
    %116 = vector.extract_strided_slice %115 {offsets = [0, 0, 0], sizes = [16, 16, 128], strides = [1, 1, 1]} : vector<40x16x128xbf16> to vector<16x16x128xbf16>
    %117 = vector.shape_cast %116 : vector<16x16x128xbf16> to vector<256x128xbf16>
    %c0_91 = arith.constant 0 : index
    %c768_92 = arith.constant 768 : index
    %118 = vector.load %arg10[%c0_91, %c768_92] : memref<256x1152xbf16, #tpu.memory_space<vmem>>, vector<256x128xbf16>
    tpu.vector_store %arg10[%c0_91, %c768_92], %117 {strides = array<i32>} : memref<256x1152xbf16, #tpu.memory_space<vmem>>, vector<256x128xbf16>,
    %119 = vector.extract_strided_slice %115 {offsets = [12, 0, 0], sizes = [16, 16, 128], strides = [1, 1, 1]} : vector<40x16x128xbf16> to vector<16x16x128xbf16>
    %120 = vector.shape_cast %119 : vector<16x16x128xbf16> to vector<256x128xbf16>
    %c0_93 = arith.constant 0 : index
    %c896_94 = arith.constant 896 : index
    %121 = vector.load %arg10[%c0_93, %c896_94] : memref<256x1152xbf16, #tpu.memory_space<vmem>>, vector<256x128xbf16>
    tpu.vector_store %arg10[%c0_93, %c896_94], %120 {strides = array<i32>} : memref<256x1152xbf16, #tpu.memory_space<vmem>>, vector<256x128xbf16>,
    %122 = vector.extract_strided_slice %115 {offsets = [24, 0, 0], sizes = [16, 16, 128], strides = [1, 1, 1]} : vector<40x16x128xbf16> to vector<16x16x128xbf16>
    %123 = vector.shape_cast %122 : vector<16x16x128xbf16> to vector<256x128xbf16>
    %c0_95 = arith.constant 0 : index
    %c1024_96 = arith.constant 1024 : index
    %124 = vector.load %arg10[%c0_95, %c1024_96] : memref<256x1152xbf16, #tpu.memory_space<vmem>>, vector<256x128xbf16>
    tpu.vector_store %arg10[%c0_95, %c1024_96], %123 {strides = array<i32>} : memref<256x1152xbf16, #tpu.memory_space<vmem>>, vector<256x128xbf16>,
    %c0_97 = arith.constant 0 : index
    %c0_98 = arith.constant 0 : index
    %125 = vector.load %arg10[%c0_97, %c0_98] : memref<256x1152xbf16, #tpu.memory_space<vmem>>, vector<256x1152xbf16>
    %c0_99 = arith.constant 0 : index
    %c0_100 = arith.constant 0 : index
    %126 = vector.load %arg4[%c0_99, %c0_100] : memref<1152x256xbf16, #tpu.memory_space<vmem>>, vector<1152x256xbf16>
    %cst_101 = arith.constant dense<0.000000e+00> : vector<256x256xf32>
    %127 = tpu.matmul %125, %126, %cst_101 {dimension_numbers = #tpu.dot_dimension_numbers<[1], [0], [0], [1], [0, 0, 1, 1], [], []>} : vector<256x1152xbf16>, vector<1152x256xbf16>, vector<256x256xf32> -> vector<256x256xf32>
    %c3 = arith.constant 3 : index
    %c0_102 = arith.constant 0 : index
    %128 = vector.load %arg6[%c3, %c0_102] : memref<5x256xf32, #tpu.memory_space<vmem>>, vector<1x256xf32>
    %c3_103 = arith.constant 3 : index
    %c0_104 = arith.constant 0 : index
    %129 = vector.load %arg7[%c3_103, %c0_104] : memref<5x256xf32, #tpu.memory_space<vmem>>, vector<1x256xf32>
    %130 = vector.broadcast %128 : vector<1x256xf32> to vector<256x256xf32>
    %131 = arith.mulf %127, %130 : vector<256x256xf32>
    %132 = vector.broadcast %129 : vector<1x256xf32> to vector<256x256xf32>
    %133 = arith.addf %131, %132 : vector<256x256xf32>
    %cst_105 = arith.constant 0.000000e+00 : f32
    %134 = vector.broadcast %cst_105 : f32 to vector<256x256xf32>
    %135 = arith.maximumf %133, %134 : vector<256x256xf32>
    %136 = vector.shape_cast %135 : vector<256x256xf32> to vector<16x16x256xf32>
    %137 = arith.truncf %136 : vector<16x16x256xf32> to vector<16x16x256xbf16>
    %c0_106 = arith.constant 0 : index
    %c0_107 = arith.constant 0 : index
    %c0_108 = arith.constant 0 : index
    %c768_109 = arith.constant 768 : index
    %138 = vector.load %arg8[%c0_106, %c0_107, %c0_108, %c768_109] : memref<1x16x16x1280xbf16, #tpu.memory_space<vmem>>, vector<1x16x16x256xbf16>
    %139 = vector.shape_cast %138 : vector<1x16x16x256xbf16> to vector<16x16x256xbf16>
    %140 = vector.shape_cast %137 : vector<16x16x256xbf16> to vector<1x16x16x256xbf16>
    tpu.vector_store %arg8[%c0_106, %c0_107, %c0_108, %c768_109], %140 {strides = array<i32>} : memref<1x16x16x1280xbf16, #tpu.memory_space<vmem>>, vector<1x16x16x256xbf16>,
    %141 = vector.extract_strided_slice %34 {offsets = [0, 256], sizes = [256, 256], strides = [1, 1]} : vector<256x512xf32> to vector<256x256xf32>
    %c4_110 = arith.constant 4 : index
    %c0_111 = arith.constant 0 : index
    %142 = vector.load %arg6[%c4_110, %c0_111] : memref<5x256xf32, #tpu.memory_space<vmem>>, vector<1x256xf32>
    %c4_112 = arith.constant 4 : index
    %c0_113 = arith.constant 0 : index
    %143 = vector.load %arg7[%c4_112, %c0_113] : memref<5x256xf32, #tpu.memory_space<vmem>>, vector<1x256xf32>
    %144 = vector.broadcast %142 : vector<1x256xf32> to vector<256x256xf32>
    %145 = arith.mulf %141, %144 : vector<256x256xf32>
    %146 = vector.broadcast %143 : vector<1x256xf32> to vector<256x256xf32>
    %147 = arith.addf %145, %146 : vector<256x256xf32>
    %cst_114 = arith.constant 0.000000e+00 : f32
    %148 = vector.broadcast %cst_114 : f32 to vector<256x256xf32>
    %149 = arith.maximumf %147, %148 : vector<256x256xf32>
    %150 = vector.shape_cast %149 : vector<256x256xf32> to vector<16x16x256xf32>
    %151 = arith.truncf %150 : vector<16x16x256xf32> to vector<16x16x256xbf16>
    %c0_115 = arith.constant 0 : index
    %c0_116 = arith.constant 0 : index
    %c0_117 = arith.constant 0 : index
    %c1024_118 = arith.constant 1024 : index
    %152 = vector.load %arg8[%c0_115, %c0_116, %c0_117, %c1024_118] : memref<1x16x16x1280xbf16, #tpu.memory_space<vmem>>, vector<1x16x16x256xbf16>
    %153 = vector.shape_cast %152 : vector<1x16x16x256xbf16> to vector<16x16x256xbf16>
    %154 = vector.shape_cast %151 : vector<16x16x256xbf16> to vector<1x16x16x256xbf16>
    tpu.vector_store %arg8[%c0_115, %c0_116, %c0_117, %c1024_118], %154 {strides = array<i32>} : memref<1x16x16x1280xbf16, #tpu.memory_space<vmem>>, vector<1x16x16x256xbf16>,
    return
  }
  func.func @transform_0(%arg0: i32) -> (i32, i32, i32, i32) {
    %c0_i32 = arith.constant 0 : i32
    %c0_i32_0 = arith.constant 0 : i32
    %c0_i32_1 = arith.constant 0 : i32
    %c0_i32_2 = arith.constant 0 : i32
    return %arg0, %c0_i32, %c0_i32_0, %c0_i32_1 : i32, i32, i32, i32
  }
  func.func @transform_1(%arg0: i32) -> (i32, i32) {
    %c0_i32 = arith.constant 0 : i32
    %c0_i32_0 = arith.constant 0 : i32
    %c0_i32_1 = arith.constant 0 : i32
    return %c0_i32, %c0_i32_0 : i32, i32
  }
  func.func @transform_2(%arg0: i32) -> (i32, i32) {
    %c0_i32 = arith.constant 0 : i32
    %c0_i32_0 = arith.constant 0 : i32
    %c0_i32_1 = arith.constant 0 : i32
    return %c0_i32, %c0_i32_0 : i32, i32
  }
  func.func @transform_3(%arg0: i32) -> (i32, i32) {
    %c0_i32 = arith.constant 0 : i32
    %c0_i32_0 = arith.constant 0 : i32
    %c0_i32_1 = arith.constant 0 : i32
    return %c0_i32, %c0_i32_0 : i32, i32
  }
  func.func @transform_4(%arg0: i32) -> (i32, i32) {
    %c0_i32 = arith.constant 0 : i32
    %c0_i32_0 = arith.constant 0 : i32
    %c0_i32_1 = arith.constant 0 : i32
    return %c0_i32, %c0_i32_0 : i32, i32
  }
  func.func @transform_5(%arg0: i32) -> (i32, i32) {
    %c0_i32 = arith.constant 0 : i32
    %c0_i32_0 = arith.constant 0 : i32
    %c0_i32_1 = arith.constant 0 : i32
    return %c0_i32, %c0_i32_0 : i32, i32
  }
  func.func @transform_6(%arg0: i32) -> (i32, i32) {
    %c0_i32 = arith.constant 0 : i32
    %c0_i32_0 = arith.constant 0 : i32
    %c0_i32_1 = arith.constant 0 : i32
    return %c0_i32, %c0_i32_0 : i32, i32
  }
  func.func @transform_7(%arg0: i32) -> (i32, i32, i32, i32) {
    %c0_i32 = arith.constant 0 : i32
    %c0_i32_0 = arith.constant 0 : i32
    %c0_i32_1 = arith.constant 0 : i32
    %c0_i32_2 = arith.constant 0 : i32
    return %arg0, %c0_i32, %c0_i32_0, %c0_i32_1 : i32, i32, i32, i32
  }
}

</mosaic_0001>

<llo_original>
// kernel: tpu_custom_call.1
$region0: #{tpu_custom_call.1}
  #allocation0 [shape = 'u32[]', space=smem, size = 0x4, offset = 0x4, fixed_abs, tag = 'smem constant byte address 0x4 - core index']
  #allocation1 [shape = 'u32[144,128]{1,0:T(1,128)}', space=vmem, size = 0x12000, scoped, tag = 'internal scratch']
  #allocation2 [shape = 'bf16[40,48,128]{2,1,0:T(8,128)(2,1)}', space=vmem, size = 0x78000, scoped, tag = 'scratch operand']
  #allocation3 [shape = 'bf16[256,1152]{1,0:T(8,128)(2,1)}', space=vmem, size = 0x90000, scoped, tag = 'scratch operand']
  %s0 = inlined_call_operand.hbm [shape: bf16[2,16,16,128], index: 0, kind: input, shape index: {}]
  %s1 = inlined_call_operand.hbm [shape: bf16[128,512], index: 1, kind: input, shape index: {}]
  %s2 = inlined_call_operand.hbm [shape: bf16[1152,256], index: 2, kind: input, shape index: {}]
  %s3 = inlined_call_operand.hbm [shape: bf16[1152,256], index: 3, kind: input, shape index: {}]
  %s4 = inlined_call_operand.hbm [shape: bf16[128,256], index: 4, kind: input, shape index: {}]
  %s5 = inlined_call_operand.hbm [shape: f32[5,256], index: 5, kind: input, shape index: {}]
  %s6 = inlined_call_operand.hbm [shape: f32[5,256], index: 6, kind: input, shape index: {}]
  %s7 = inlined_call_operand.hbm [shape: bf16[2,16,16,1280], index: 7, kind: output, shape index: {}]
  %s8 = sld [smem:[#allocation0]]
  $region89: #{tpu_custom_call.1} parent=0
    _
  %s10 = ssub.s32 1, %s8
  %s11 = scalar_select 0, %s10, %s8
  $region1: #{tpu_custom_call.1} parent=0
    #allocation4 [shape = 'u8[131072]{0}', space=vmem, size = 0x20000, scoped, tag = 'input window, operand 0']
    #allocation5 [shape = 's32[2]{0}', space=sflag, size = 0x8, scoped, tag = 'scoped memory for tpu_custom_call.1']
    #allocation6 [shape = 's32[2]{0}', space=sflag, size = 0x8, scoped, tag = 'scoped memory for tpu_custom_call.1']
    #allocation7 [shape = 'u8[131072]{0}', space=vmem, size = 0x20000, scoped, tag = 'input window, operand 1, single buffered']
    #allocation8 [shape = 's32[1]{0}', space=sflag, size = 0x4, scoped, tag = 'scoped memory for tpu_custom_call.1']
    #allocation9 [shape = 'u8[589824]{0}', space=vmem, size = 0x90000, scoped, tag = 'input window, operand 2, single buffered']
    #allocation10 [shape = 'u8[589824]{0}', space=vmem, size = 0x90000, scoped, tag = 'input window, operand 3, single buffered']
    #allocation11 [shape = 's32[1]{0}', space=sflag, size = 0x4, scoped, tag = 'scoped memory for tpu_custom_call.1']
    #allocation12 [shape = 'u8[65536]{0}', space=vmem, size = 0x10000, scoped, tag = 'input window, operand 4, single buffered']
    #allocation13 [shape = 'u8[8192]{0}', space=vmem, size = 0x2000, scoped, tag = 'input window, operand 5, single buffered']
    #allocation14 [shape = 's32[1]{0}', space=sflag, size = 0x4, scoped, tag = 'scoped memory for tpu_custom_call.1']
    #allocation15 [shape = 'u8[8192]{0}', space=vmem, size = 0x2000, scoped, tag = 'input window, operand 6, single buffered']
    #allocation16 [shape = 'u8[1310720]{0}', space=vmem, size = 0x140000, scoped, tag = 'output window, operand 0']
    %12 = vsyncpa [#allocation5], 0
    %s13 = scalar_lea.sflag [#allocation5], 1
    %14 = vsyncpa %s13, 0
    %15 = vsyncpa [#allocation8], 0
    %16 = vsyncpa [#allocation11], 0
    %17 = vsyncpa [#allocation14], 0
    %18 = vsyncpa [#allocation6], 0
    %s19 = scalar_lea.sflag [#allocation6], 1
    %20 = vsyncpa %s19, 0
    loop: start=0, step=1, limit=4
    $region2: #{tpu_custom_call.1} parent=1 // loop_pre_header
      _
    $region3: #{tpu_custom_call.1} parent=1 // loop_header
      %s22 = sphi 0, %s26
      %p23 = scmp.ge.s32.totalorder %s22, 4
      %s32 = sphi 0, %s34
      %s35 = sphi 0, %s32
      %s36 = sphi 0, %s35
      %s52 = sphi 0, %s36
      %s56 = sphi 0, %s56
      %s58 = sphi 0, %s56
      %s59 = sphi 0, %s58
      %s73 = sphi 0, %s59
      %s77 = sphi 0, %s77
      %s79 = sphi 0, %s77
      %s80 = sphi 0, %s79
      %s94 = sphi 0, %s80
      %s98 = sphi 0, %s98
      %s100 = sphi 0, %s98
      %s101 = sphi 0, %s100
      %s115 = sphi 0, %s101
      %s119 = sphi 0, %s119
      %s121 = sphi 0, %s119
      %s122 = sphi 0, %s121
      %s136 = sphi 0, %s122
      %s140 = sphi 0, %s140
      %s142 = sphi 0, %s140
      %s143 = sphi 0, %s142
      %s157 = sphi 0, %s143
      %s161 = sphi 0, %s161
      %s163 = sphi 0, %s161
      %s164 = sphi 0, %s163
      %s178 = sphi 0, %s164
      %s184 = sphi 0, %s186
      %s187 = sphi 0, %s184
      %s188 = sphi 0, %s187
      %s204 = sphi 0, %s188
    $region4: #{tpu_custom_call.1} parent=1 // loop_header_branch
      %25 = sbr.rel (%p23) target = $region8
    $region5: #{tpu_custom_call.1} parent=1 // loop_body
      %s27 = ssub.s32 %s22, 1
      %s28 = ssub.s32 %s22, 2
      %s29 = sadd.s32 %s22, 1
      %s30 = ssub.s32 %s22, %s29
      %p31 = scmp.eq.s32.totalorder %s30, 0
      %s33 = sadd.s32 %s32, 1
      %s34 = scalar_select %p31, %s32, %s33
      %p37 = pneg %p31
      %p38 = scmp.eq.s32.totalorder %s22, 1
      %p39 = por %p37, %p38
      %p40 = scmp.ne.s32.totalorder %s32, %s35
      %p41 = scmp.eq.s32.totalorder %s22, 0
      %p42 = por %p40, %p41
      %p43 = scmp.ne.s32.totalorder %s32, %s35
      %p44 = scmp.eq.s32.totalorder %s27, 1
      %p45 = por %p43, %p44
      %p46 = scmp.ne.s32.totalorder %s35, %s36
      %p47 = scmp.eq.s32.totalorder %s27, 0
      %p48 = por %p46, %p47
      %p49 = scmp.ne.s32.totalorder %s35, %s36
      %p50 = scmp.eq.s32.totalorder %s28, 1
      %p51 = por %p49, %p50
      %p53 = scmp.ne.s32.totalorder %s36, %s52
      %p54 = scmp.eq.s32.totalorder %s28, 0
      %p55 = por %p53, %p54
      %s57 = sadd.s32 %s56, 1
      %p60 = scmp.eq.s32.totalorder %s22, 1
      %p61 = scmp.ne.s32.totalorder %s56, %s58
      %p62 = scmp.eq.s32.totalorder %s22, 0
      %p63 = por %p61, %p62
      %p64 = scmp.ne.s32.totalorder %s56, %s58
      %p65 = scmp.eq.s32.totalorder %s27, 1
      %p66 = por %p64, %p65
      %p67 = scmp.ne.s32.totalorder %s58, %s59
      %p68 = scmp.eq.s32.totalorder %s27, 0
      %p69 = por %p67, %p68
      %p70 = scmp.ne.s32.totalorder %s58, %s59
      %p71 = scmp.eq.s32.totalorder %s28, 1
      %p72 = por %p70, %p71
      %p74 = scmp.ne.s32.totalorder %s59, %s73
      %p75 = scmp.eq.s32.totalorder %s28, 0
      %p76 = por %p74, %p75
      %s78 = sadd.s32 %s77, 1
      %p81 = scmp.eq.s32.totalorder %s22, 1
      %p82 = scmp.ne.s32.totalorder %s77, %s79
      %p83 = scmp.eq.s32.totalorder %s22, 0
      %p84 = por %p82, %p83
      %p85 = scmp.ne.s32.totalorder %s77, %s79
      %p86 = scmp.eq.s32.totalorder %s27, 1
      %p87 = por %p85, %p86
      %p88 = scmp.ne.s32.totalorder %s79, %s80
      %p89 = scmp.eq.s32.totalorder %s27, 0
      %p90 = por %p88, %p89
      %p91 = scmp.ne.s32.totalorder %s79, %s80
      %p92 = scmp.eq.s32.totalorder %s28, 1
      %p93 = por %p91, %p92
      %p95 = scmp.ne.s32.totalorder %s80, %s94
      %p96 = scmp.eq.s32.totalorder %s28, 0
      %p97 = por %p95, %p96
      %s99 = sadd.s32 %s98, 1
      %p102 = scmp.eq.s32.totalorder %s22, 1
      %p103 = scmp.ne.s32.totalorder %s98, %s100
      %p104 = scmp.eq.s32.totalorder %s22, 0
      %p105 = por %p103, %p104
      %p106 = scmp.ne.s32.totalorder %s98, %s100
      %p107 = scmp.eq.s32.totalorder %s27, 1
      %p108 = por %p106, %p107
      %p109 = scmp.ne.s32.totalorder %s100, %s101
      %p110 = scmp.eq.s32.totalorder %s27, 0
      %p111 = por %p109, %p110
      %p112 = scmp.ne.s32.totalorder %s100, %s101
      %p113 = scmp.eq.s32.totalorder %s28, 1
      %p114 = por %p112, %p113
      %p116 = scmp.ne.s32.totalorder %s101, %s115
      %p117 = scmp.eq.s32.totalorder %s28, 0
      %p118 = por %p116, %p117
      %s120 = sadd.s32 %s119, 1
      %p123 = scmp.eq.s32.totalorder %s22, 1
      %p124 = scmp.ne.s32.totalorder %s119, %s121
      %p125 = scmp.eq.s32.totalorder %s22, 0
      %p126 = por %p124, %p125
      %p127 = scmp.ne.s32.totalorder %s119, %s121
      %p128 = scmp.eq.s32.totalorder %s27, 1
      %p129 = por %p127, %p128
      %p130 = scmp.ne.s32.totalorder %s121, %s122
      %p131 = scmp.eq.s32.totalorder %s27, 0
      %p132 = por %p130, %p131
      %p133 = scmp.ne.s32.totalorder %s121, %s122
      %p134 = scmp.eq.s32.totalorder %s28, 1
      %p135 = por %p133, %p134
      %p137 = scmp.ne.s32.totalorder %s122, %s136
      %p138 = scmp.eq.s32.totalorder %s28, 0
      %p139 = por %p137, %p138
      %s141 = sadd.s32 %s140, 1
      %p144 = scmp.eq.s32.totalorder %s22, 1
      %p145 = scmp.ne.s32.totalorder %s140, %s142
      %p146 = scmp.eq.s32.totalorder %s22, 0
      %p147 = por %p145, %p146
      %p148 = scmp.ne.s32.totalorder %s140, %s142
      %p149 = scmp.eq.s32.totalorder %s27, 1
      %p150 = por %p148, %p149
      %p151 = scmp.ne.s32.totalorder %s142, %s143
      %p152 = scmp.eq.s32.totalorder %s27, 0
      %p153 = por %p151, %p152
      %p154 = scmp.ne.s32.totalorder %s142, %s143
      %p155 = scmp.eq.s32.totalorder %s28, 1
      %p156 = por %p154, %p155
      %p158 = scmp.ne.s32.totalorder %s143, %s157
      %p159 = scmp.eq.s32.totalorder %s28, 0
      %p160 = por %p158, %p159
      %s162 = sadd.s32 %s161, 1
      %p165 = scmp.eq.s32.totalorder %s22, 1
      %p166 = scmp.ne.s32.totalorder %s161, %s163
      %p167 = scmp.eq.s32.totalorder %s22, 0
      %p168 = por %p166, %p167
      %p169 = scmp.ne.s32.totalorder %s161, %s163
      %p170 = scmp.eq.s32.totalorder %s27, 1
      %p171 = por %p169, %p170
      %p172 = scmp.ne.s32.totalorder %s163, %s164
      %p173 = scmp.eq.s32.totalorder %s27, 0
      %p174 = por %p172, %p173
      %p175 = scmp.ne.s32.totalorder %s163, %s164
      %p176 = scmp.eq.s32.totalorder %s28, 1
      %p177 = por %p175, %p176
      %p179 = scmp.ne.s32.totalorder %s164, %s178
      %p180 = scmp.eq.s32.totalorder %s28, 0
      %p181 = por %p179, %p180
      %s182 = ssub.s32 %s22, %s29
      %p183 = scmp.eq.s32.totalorder %s182, 0
      %s185 = sadd.s32 %s184, 1
      %s186 = scalar_select %p183, %s184, %s185
      %p189 = pneg %p183
      %p190 = scmp.eq.s32.totalorder %s22, 1
      %p191 = por %p189, %p190
      %p192 = scmp.ne.s32.totalorder %s184, %s187
      %p193 = scmp.eq.s32.totalorder %s22, 0
      %p194 = por %p192, %p193
      %p195 = scmp.ne.s32.totalorder %s184, %s187
      %p196 = scmp.eq.s32.totalorder %s27, 1
      %p197 = por %p195, %p196
      %p198 = scmp.ne.s32.totalorder %s187, %s188
      %p199 = scmp.eq.s32.totalorder %s27, 0
      %p200 = por %p198, %p199
      %p201 = scmp.ne.s32.totalorder %s187, %s188
      %p202 = scmp.eq.s32.totalorder %s28, 1
      %p203 = por %p201, %p202
      %p205 = scmp.ne.s32.totalorder %s188, %s204
      %p206 = scmp.eq.s32.totalorder %s28, 0
      %p207 = por %p205, %p206
      %p208 = scmp.le.s32.totalorder 1, %s22
      %p209 = scmp.lt.s32.totalorder %s22, 3
      %p210 = pnand %p208, %p209
      %p211 = pneg %p210
      // Predicated region
      $region9: #{tpu_custom_call.1} parent=5 // pred_check
        _
      $region10: #{tpu_custom_call.1} parent=5 // pred_check_branch
        %213 = sbr.rel (%p210) target = $region12
      $region11: #{tpu_custom_call.1} parent=5 // pred_region
        %s214 = ssub.s32 %s22, 1
        // Predicated region
        $region13: #{tpu_custom_call.1} parent=11 // pred_check
          %p215 = pneg %p69
        $region14: #{tpu_custom_call.1} parent=11 // pred_check_branch
          %217 = sbr.rel (%p215) target = $region16
        $region15: #{tpu_custom_call.1} parent=11 // pred_region
          %s219 = ssub.s32 4096, 4096
          %220 = vsyncadd [#allocation8], %s219
          %s221 = sshll.u32 [#allocation7], 4
          %s222 = int_to_ptr.vmem [resolvable:$true] %s221
          %227 = dma.hbm_to_vmem [thread:$0]  %s1, 4096, %s222, [#allocation8], 256, 256, 16
        $region16: #{tpu_custom_call.1} parent=11 // pred_fallthru
          _
        // Predicated region
        $region17: #{tpu_custom_call.1} parent=11 // pred_check
          %p228 = pneg %p90
        $region18: #{tpu_custom_call.1} parent=11 // pred_check_branch
          %230 = sbr.rel (%p228) target = $region20
        $region19: #{tpu_custom_call.1} parent=11 // pred_region
          %s232 = ssub.s32 18432, 18432
          %233 = vsyncadd [#allocation8], %s232
          %s234 = sshll.u32 [#allocation9], 4
          %s235 = int_to_ptr.vmem [resolvable:$true] %s234
          %240 = dma.hbm_to_vmem [thread:$0]  %s2, 18432, %s235, [#allocation8], 128, 128, 8
        $region20: #{tpu_custom_call.1} parent=11 // pred_fallthru
          _
        // Predicated region
        $region21: #{tpu_custom_call.1} parent=11 // pred_check
          %p241 = pneg %p111
        $region22: #{tpu_custom_call.1} parent=11 // pred_check_branch
          %243 = sbr.rel (%p241) target = $region24
        $region23: #{tpu_custom_call.1} parent=11 // pred_region
          %s245 = ssub.s32 18432, 18432
          %246 = vsyncadd [#allocation11], %s245
          %s247 = sshll.u32 [#allocation10], 4
          %s248 = int_to_ptr.vmem [resolvable:$true] %s247
          %253 = dma.hbm_to_vmem [thread:$0]  %s3, 18432, %s248, [#allocation11], 128, 128, 8
        $region24: #{tpu_custom_call.1} parent=11 // pred_fallthru
          _
        // Predicated region
        $region25: #{tpu_custom_call.1} parent=11 // pred_check
          %p254 = pneg %p132
        $region26: #{tpu_custom_call.1} parent=11 // pred_check_branch
          %256 = sbr.rel (%p254) target = $region28
        $region27: #{tpu_custom_call.1} parent=11 // pred_region
          %s258 = ssub.s32 2048, 2048
          %259 = vsyncadd [#allocation11], %s258
          %s260 = sshll.u32 [#allocation12], 4
          %s261 = int_to_ptr.vmem [resolvable:$true] %s260
          %266 = dma.hbm_to_vmem [thread:$0]  %s4, 2048, %s261, [#allocation11], 128, 128, 8
        $region28: #{tpu_custom_call.1} parent=11 // pred_fallthru
          _
        // Predicated region
        $region29: #{tpu_custom_call.1} parent=11 // pred_check
          %p267 = pneg %p153
        $region30: #{tpu_custom_call.1} parent=11 // pred_check_branch
          %269 = sbr.rel (%p267) target = $region32
        $region31: #{tpu_custom_call.1} parent=11 // pred_region
          %s271 = ssub.s32 256, 256
          %272 = vsyncadd [#allocation14], %s271
          %s274 = sshll.u32 [#allocation13], 4
          %s275 = int_to_ptr.vmem [resolvable:$true] %s274
          %277 = dma.hbm_to_vmem [thread:$0]  %s5, 256, %s275, [#allocation14]
        $region32: #{tpu_custom_call.1} parent=11 // pred_fallthru
          _
        // Predicated region
        $region33: #{tpu_custom_call.1} parent=11 // pred_check
          %p278 = pneg %p174
        $region34: #{tpu_custom_call.1} parent=11 // pred_check_branch
          %280 = sbr.rel (%p278) target = $region36
        $region35: #{tpu_custom_call.1} parent=11 // pred_region
          %s282 = ssub.s32 256, 256
          %283 = vsyncadd [#allocation14], %s282
          %s285 = sshll.u32 [#allocation15], 4
          %s286 = int_to_ptr.vmem [resolvable:$true] %s285
          %288 = dma.hbm_to_vmem [thread:$0]  %s6, 256, %s286, [#allocation14]
        $region36: #{tpu_custom_call.1} parent=11 // pred_fallthru
          _
      $region12: #{tpu_custom_call.1} parent=5 // pred_fallthru
        _
      %p289 = scmp.lt.s32.totalorder %s22, 2
      // Predicated region
      $region37: #{tpu_custom_call.1} parent=5 // pred_check
        %p290 = pneg %p289
      $region38: #{tpu_custom_call.1} parent=5 // pred_check_branch
        %292 = sbr.rel (%p290) target = $region40
      $region39: #{tpu_custom_call.1} parent=5 // pred_region
        // Predicated region
        $region41: #{tpu_custom_call.1} parent=39 // pred_check
          %p293 = pneg %p42
        $region42: #{tpu_custom_call.1} parent=39 // pred_check_branch
          %295 = sbr.rel (%p293) target = $region44
        $region43: #{tpu_custom_call.1} parent=39 // pred_region
          %s296 = sand.u32 %s32, 1
          %s297 = scalar_lea.sflag [#allocation5], %s296
          %s298 = sand.u32 %s32, 1
          %s299 = smul.addr %s298, 128
          %s300 = scalar_lea.vmem [#allocation4], %s299
          %s302 = ssub.s32 2048, 2048
          %303 = vsyncadd %s297, %s302
          %s304 = smul.addr %s22, 32
          %s305 = smul.addr %s304, 64
          %s306 = scalar_lea.hbm %s0, %s305
          %s307 = sshll.u32 %s300, 4
          %s308 = int_to_ptr.vmem [resolvable:$true] %s307
          %313 = dma.hbm_to_vmem [thread:$0]  %s306, 2048, %s308, %s297, 64, 64, 4
        $region44: #{tpu_custom_call.1} parent=39 // pred_fallthru
          _
      $region40: #{tpu_custom_call.1} parent=5 // pred_fallthru
        _
      %p314 = scmp.le.s32.totalorder 1, %s22
      %p315 = scmp.lt.s32.totalorder %s22, 3
      %p316 = pnand %p314, %p315
      %p317 = pneg %p316
      // Predicated region
      $region45: #{tpu_custom_call.1} parent=5 // pred_check
        _
      $region46: #{tpu_custom_call.1} parent=5 // pred_check_branch
        %319 = sbr.rel (%p316) target = $region48
      $region47: #{tpu_custom_call.1} parent=5 // pred_region
        %s320 = ssub.s32 %s22, 1
        %s321 = sand.u32 %s35, 1
        %s322 = scalar_lea.sflag [#allocation5], %s321
        %s323 = sand.u32 %s35, 1
        %s324 = smul.addr %s323, 128
        %s325 = scalar_lea.vmem [#allocation4], %s324
        // Predicated region
        $region49: #{tpu_custom_call.1} parent=47 // pred_check
          %p326 = pneg %p48
        $region50: #{tpu_custom_call.1} parent=47 // pred_check_branch
          %328 = sbr.rel (%p326) target = $region52
        $region51: #{tpu_custom_call.1} parent=47 // pred_region
          %329 = dma.done %s322, 2048
        $region52: #{tpu_custom_call.1} parent=47 // pred_fallthru
          _
        // Predicated region
        $region53: #{tpu_custom_call.1} parent=47 // pred_check
          %p330 = pneg %p69
        $region54: #{tpu_custom_call.1} parent=47 // pred_check_branch
          %332 = sbr.rel (%p330) target = $region56
        $region55: #{tpu_custom_call.1} parent=47 // pred_region
          %333 = dma.done [#allocation8], 4096
        $region56: #{tpu_custom_call.1} parent=47 // pred_fallthru
          _
        // Predicated region
        $region57: #{tpu_custom_call.1} parent=47 // pred_check
          %p334 = pneg %p90
        $region58: #{tpu_custom_call.1} parent=47 // pred_check_branch
          %336 = sbr.rel (%p334) target = $region60
        $region59: #{tpu_custom_call.1} parent=47 // pred_region
          %337 = dma.done [#allocation8], 18432
        $region60: #{tpu_custom_call.1} parent=47 // pred_fallthru
          _
        // Predicated region
        $region61: #{tpu_custom_call.1} parent=47 // pred_check
          %p338 = pneg %p111
        $region62: #{tpu_custom_call.1} parent=47 // pred_check_branch
          %340 = sbr.rel (%p338) target = $region64
        $region63: #{tpu_custom_call.1} parent=47 // pred_region
          %341 = dma.done [#allocation11], 18432
        $region64: #{tpu_custom_call.1} parent=47 // pred_fallthru
          _
        // Predicated region
        $region65: #{tpu_custom_call.1} parent=47 // pred_check
          %p342 = pneg %p132
        $region66: #{tpu_custom_call.1} parent=47 // pred_check_branch
          %344 = sbr.rel (%p342) target = $region68
        $region67: #{tpu_custom_call.1} parent=47 // pred_region
          %345 = dma.done [#allocation11], 2048
        $region68: #{tpu_custom_call.1} parent=47 // pred_fallthru
          _
        // Predicated region
        $region69: #{tpu_custom_call.1} parent=47 // pred_check
          %p346 = pneg %p153
        $region70: #{tpu_custom_call.1} parent=47 // pred_check_branch
          %348 = sbr.rel (%p346) target = $region72
        $region71: #{tpu_custom_call.1} parent=47 // pred_region
          %349 = dma.done [#allocation14], 256
        $region72: #{tpu_custom_call.1} parent=47 // pred_fallthru
          _
        // Predicated region
        $region73: #{tpu_custom_call.1} parent=47 // pred_check
          %p350 = pneg %p174
        $region74: #{tpu_custom_call.1} parent=47 // pred_check_branch
          %352 = sbr.rel (%p350) target = $region76
        $region75: #{tpu_custom_call.1} parent=47 // pred_region
          %353 = dma.done [#allocation14], 256
        $region76: #{tpu_custom_call.1} parent=47 // pred_fallthru
          _
        %s354 = sand.u32 %s35, 1
        %s355 = scalar_lea.sflag [#allocation5], %s354
        %s356 = sand.u32 %s35, 1
        %s357 = smul.addr %s356, 128
        %s358 = scalar_lea.vmem [#allocation4], %s357
        %p359 = pneg %p48
        %p360 = pneg %p45
        %p361 = pneg %p69
        %p362 = pneg %p66
        %p363 = pneg %p90
        %p364 = pneg %p87
        %p365 = pneg %p111
        %p366 = pneg %p108
        %p367 = pneg %p132
        %p368 = pneg %p129
        %p369 = pneg %p153
        %p370 = pneg %p150
        %p371 = pneg %p174
        %p372 = pneg %p171
        %p373 = pneg %p200
        %p374 = pneg %p197
        %s375 = sand.u32 %s187, 1
        %s376 = scalar_lea.sflag [#allocation6], %s375
        %s377 = sand.u32 %s187, 1
        %s378 = smul.addr %s377, 1280
        %s379 = scalar_lea.vmem [#allocation16], %s378
        %v381 = vld [vmem:[%s325] sm:$0xf]
        %v382 = vld [vmem:[%s325 + $0x4] sm:$0xf]
        %v383 = vld [vmem:[%s325 + $0x8] sm:$0xf]
        %v384 = vld [vmem:[%s325 + $0xc] sm:$0xf]
        %v385 = vld [vmem:[%s325 + $0x10] sm:$0xf]
        %v386 = vld [vmem:[%s325 + $0x14] sm:$0xf]
        %v387 = vld [vmem:[%s325 + $0x18] sm:$0xf]
        %v388 = vld [vmem:[%s325 + $0x1c] sm:$0xf]
        %v389 = vld [vmem:[%s325 + $0x20] sm:$0xf]
        %v390 = vld [vmem:[%s325 + $0x24] sm:$0xf]
        %v391 = vld [vmem:[%s325 + $0x28] sm:$0xf]
        %v392 = vld [vmem:[%s325 + $0x2c] sm:$0xf]
        %v393 = vld [vmem:[%s325 + $0x30] sm:$0xf]
        %v394 = vld [vmem:[%s325 + $0x34] sm:$0xf]
        %v395 = vld [vmem:[%s325 + $0x38] sm:$0xf]
        %v396 = vld [vmem:[%s325 + $0x3c] sm:$0xf]
        %v397 = vld [vmem:[%s325 + $0x40] sm:$0xf]
        %v398 = vld [vmem:[%s325 + $0x44] sm:$0xf]
        %v399 = vld [vmem:[%s325 + $0x48] sm:$0xf]
        %v400 = vld [vmem:[%s325 + $0x4c] sm:$0xf]
        %v401 = vld [vmem:[%s325 + $0x50] sm:$0xf]
        %v402 = vld [vmem:[%s325 + $0x54] sm:$0xf]
        %v403 = vld [vmem:[%s325 + $0x58] sm:$0xf]
        %v404 = vld [vmem:[%s325 + $0x5c] sm:$0xf]
        %v405 = vld [vmem:[%s325 + $0x60] sm:$0xf]
        %v406 = vld [vmem:[%s325 + $0x64] sm:$0xf]
        %v407 = vld [vmem:[%s325 + $0x68] sm:$0xf]
        %v408 = vld [vmem:[%s325 + $0x6c] sm:$0xf]
        %v409 = vld [vmem:[%s325 + $0x70] sm:$0xf]
        %v410 = vld [vmem:[%s325 + $0x74] sm:$0xf]
        %v411 = vld [vmem:[%s325 + $0x78] sm:$0xf]
        %v412 = vld [vmem:[%s325 + $0x7c] sm:$0xf]
        %413 = vst [vmem:[#allocation2] sm:$0xf] 0
        %414 = vst [vmem:[#allocation2 + $0x4] sm:$0xf] 0
        %415 = vst [vmem:[#allocation2 + $0x8] sm:$0xf] 0
        %416 = vst [vmem:[#allocation2 + $0xc] sm:$0xf] 0
        %417 = vst [vmem:[#allocation2 + $0x10] sm:$0xf] 0
        %418 = vst [vmem:[#allocation2 + $0x14] sm:$0xf] 0
        %419 = vst [vmem:[#allocation2 + $0x18] sm:$0xf] 0
        %420 = vst [vmem:[#allocation2 + $0x1c] sm:$0xf] 0
        %421 = vst [vmem:[#allocation2 + $0x20] sm:$0xf] 0
        %422 = vst [vmem:[#allocation2 + $0x24] sm:$0xf] 0
        %423 = vst [vmem:[#allocation2 + $0x28] sm:$0xf] 0
        %424 = vst [vmem:[#allocation2 + $0x2c] sm:$0xf] 0
        %425 = vst [vmem:[#allocation2 + $0x30] sm:$0xf] 0
        %426 = vst [vmem:[#allocation2 + $0x34] sm:$0xf] 0
        %427 = vst [vmem:[#allocation2 + $0x38] sm:$0xf] 0
        %428 = vst [vmem:[#allocation2 + $0x3c] sm:$0xf] 0
        %429 = vst [vmem:[#allocation2 + $0x40] sm:$0xf] 0
        %430 = vst [vmem:[#allocation2 + $0x44] sm:$0xf] 0
        %431 = vst [vmem:[#allocation2 + $0x48] sm:$0xf] 0
        %432 = vst [vmem:[#allocation2 + $0x4c] sm:$0xf] 0
        %433 = vst [vmem:[#allocation2 + $0x50] sm:$0xf] 0
        %434 = vst [vmem:[#allocation2 + $0x54] sm:$0xf] 0
        %435 = vst [vmem:[#allocation2 + $0x58] sm:$0xf] 0
        %436 = vst [vmem:[#allocation2 + $0x5c] sm:$0xf] 0
        %437 = vst [vmem:[#allocation2 + $0x60] sm:$0xf] 0
        %438 = vst [vmem:[#allocation2 + $0x64] sm:$0xf] 0
        %439 = vst [vmem:[#allocation2 + $0x68] sm:$0xf] 0
        %440 = vst [vmem:[#allocation2 + $0x6c] sm:$0xf] 0
        %441 = vst [vmem:[#allocation2 + $0x70] sm:$0xf] 0
        %442 = vst [vmem:[#allocation2 + $0x74] sm:$0xf] 0
        %443 = vst [vmem:[#allocation2 + $0x78] sm:$0xf] 0
        %444 = vst [vmem:[#allocation2 + $0x7c] sm:$0xf] 0
        %445 = vst [vmem:[#allocation2 + $0x80] sm:$0xf] 0
        %446 = vst [vmem:[#allocation2 + $0x84] sm:$0xf] 0
        %447 = vst [vmem:[#allocation2 + $0x88] sm:$0xf] 0
        %448 = vst [vmem:[#allocation2 + $0x8c] sm:$0xf] 0
        %449 = vst [vmem:[#allocation2 + $0x90] sm:$0xf] 0
        %450 = vst [vmem:[#allocation2 + $0x94] sm:$0xf] 0
        %451 = vst [vmem:[#allocation2 + $0x98] sm:$0xf] 0
        %452 = vst [vmem:[#allocation2 + $0x9c] sm:$0xf] 0
        %453 = vst [vmem:[#allocation2 + $0xa0] sm:$0xf] 0
        %454 = vst [vmem:[#allocation2 + $0xa4] sm:$0xf] 0
        %455 = vst [vmem:[#allocation2 + $0xa8] sm:$0xf] 0
        %456 = vst [vmem:[#allocation2 + $0xac] sm:$0xf] 0
        %457 = vst [vmem:[#allocation2 + $0xb0] sm:$0xf] 0
        %458 = vst [vmem:[#allocation2 + $0xb4] sm:$0xf] 0
        %459 = vst [vmem:[#allocation2 + $0xb8] sm:$0xf] 0
        %460 = vst [vmem:[#allocation2 + $0xbc] sm:$0xf] 0
        %461 = vst [vmem:[#allocation2 + $0xc0] sm:$0xf] 0
        %462 = vst [vmem:[#allocation2 + $0xc4] sm:$0xf] 0
        %463 = vst [vmem:[#allocation2 + $0xc8] sm:$0xf] 0
        %464 = vst [vmem:[#allocation2 + $0xcc] sm:$0xf] 0
        %465 = vst [vmem:[#allocation2 + $0xd0] sm:$0xf] 0
        %466 = vst [vmem:[#allocation2 + $0xd4] sm:$0xf] 0
        %467 = vst [vmem:[#allocation2 + $0xd8] sm:$0xf] 0
        %468 = vst [vmem:[#allocation2 + $0xdc] sm:$0xf] 0
        %469 = vst [vmem:[#allocation2 + $0xe0] sm:$0xf] 0
        %470 = vst [vmem:[#allocation2 + $0xe4] sm:$0xf] 0
        %471 = vst [vmem:[#allocation2 + $0xe8] sm:$0xf] 0
        %472 = vst [vmem:[#allocation2 + $0xec] sm:$0xf] 0
        %473 = vst [vmem:[#allocation2 + $0xf0] sm:$0xf] 0
        %474 = vst [vmem:[#allocation2 + $0xf4] sm:$0xf] 0
        %475 = vst [vmem:[#allocation2 + $0xf8] sm:$0xf] 0
        %476 = vst [vmem:[#allocation2 + $0xfc] sm:$0xf] 0
        %477 = vst [vmem:[#allocation2 + $0x100] sm:$0xf] 0
        %478 = vst [vmem:[#allocation2 + $0x104] sm:$0xf] 0
        %479 = vst [vmem:[#allocation2 + $0x108] sm:$0xf] 0
        %480 = vst [vmem:[#allocation2 + $0x10c] sm:$0xf] 0
        %481 = vst [vmem:[#allocation2 + $0x110] sm:$0xf] 0
        %482 = vst [vmem:[#allocation2 + $0x114] sm:$0xf] 0
        %483 = vst [vmem:[#allocation2 + $0x118] sm:$0xf] 0
        %484 = vst [vmem:[#allocation2 + $0x11c] sm:$0xf] 0
        %s485 = scalar_lea.vmem [#allocation2], 672
        %486 = vst [vmem:[%s485] sm:$0xf] 0
        %487 = vst [vmem:[%s485 + $0x4] sm:$0xf] 0
        %488 = vst [vmem:[%s485 + $0x8] sm:$0xf] 0
        %489 = vst [vmem:[%s485 + $0xc] sm:$0xf] 0
        %490 = vst [vmem:[%s485 + $0x10] sm:$0xf] 0
        %491 = vst [vmem:[%s485 + $0x14] sm:$0xf] 0
        %492 = vst [vmem:[%s485 + $0x18] sm:$0xf] 0
        %493 = vst [vmem:[%s485 + $0x1c] sm:$0xf] 0
        %494 = vst [vmem:[%s485 + $0x20] sm:$0xf] 0
        %495 = vst [vmem:[%s485 + $0x24] sm:$0xf] 0
        %496 = vst [vmem:[%s485 + $0x28] sm:$0xf] 0
        %497 = vst [vmem:[%s485 + $0x2c] sm:$0xf] 0
        %498 = vst [vmem:[%s485 + $0x30] sm:$0xf] 0
        %499 = vst [vmem:[%s485 + $0x34] sm:$0xf] 0
        %500 = vst [vmem:[%s485 + $0x38] sm:$0xf] 0
        %501 = vst [vmem:[%s485 + $0x3c] sm:$0xf] 0
        %502 = vst [vmem:[%s485 + $0x40] sm:$0xf] 0
        %503 = vst [vmem:[%s485 + $0x44] sm:$0xf] 0
        %504 = vst [vmem:[%s485 + $0x48] sm:$0xf] 0
        %505 = vst [vmem:[%s485 + $0x4c] sm:$0xf] 0
        %506 = vst [vmem:[%s485 + $0x50] sm:$0xf] 0
        %507 = vst [vmem:[%s485 + $0x54] sm:$0xf] 0
        %508 = vst [vmem:[%s485 + $0x58] sm:$0xf] 0
        %509 = vst [vmem:[%s485 + $0x5c] sm:$0xf] 0
        %510 = vst [vmem:[%s485 + $0x60] sm:$0xf] 0
        %511 = vst [vmem:[%s485 + $0x64] sm:$0xf] 0
        %512 = vst [vmem:[%s485 + $0x68] sm:$0xf] 0
        %513 = vst [vmem:[%s485 + $0x6c] sm:$0xf] 0
        %514 = vst [vmem:[%s485 + $0x70] sm:$0xf] 0
        %515 = vst [vmem:[%s485 + $0x74] sm:$0xf] 0
        %516 = vst [vmem:[%s485 + $0x78] sm:$0xf] 0
        %517 = vst [vmem:[%s485 + $0x7c] sm:$0xf] 0
        %518 = vst [vmem:[%s485 + $0x80] sm:$0xf] 0
        %519 = vst [vmem:[%s485 + $0x84] sm:$0xf] 0
        %520 = vst [vmem:[%s485 + $0x88] sm:$0xf] 0
        %521 = vst [vmem:[%s485 + $0x8c] sm:$0xf] 0
        %522 = vst [vmem:[%s485 + $0x90] sm:$0xf] 0
        %523 = vst [vmem:[%s485 + $0x94] sm:$0xf] 0
        %524 = vst [vmem:[%s485 + $0x98] sm:$0xf] 0
        %525 = vst [vmem:[%s485 + $0x9c] sm:$0xf] 0
        %526 = vst [vmem:[%s485 + $0xa0] sm:$0xf] 0
        %527 = vst [vmem:[%s485 + $0xa4] sm:$0xf] 0
        %528 = vst [vmem:[%s485 + $0xa8] sm:$0xf] 0
        %529 = vst [vmem:[%s485 + $0xac] sm:$0xf] 0
        %530 = vst [vmem:[%s485 + $0xb0] sm:$0xf] 0
        %531 = vst [vmem:[%s485 + $0xb4] sm:$0xf] 0
        %532 = vst [vmem:[%s485 + $0xb8] sm:$0xf] 0
        %533 = vst [vmem:[%s485 + $0xbc] sm:$0xf] 0
        %534 = vst [vmem:[%s485 + $0xc0] sm:$0xf] 0
        %535 = vst [vmem:[%s485 + $0xc4] sm:$0xf] 0
        %536 = vst [vmem:[%s485 + $0xc8] sm:$0xf] 0
        %537 = vst [vmem:[%s485 + $0xcc] sm:$0xf] 0
        %538 = vst [vmem:[%s485 + $0xd0] sm:$0xf] 0
        %539 = vst [vmem:[%s485 + $0xd4] sm:$0xf] 0
        %540 = vst [vmem:[%s485 + $0xd8] sm:$0xf] 0
        %541 = vst [vmem:[%s485 + $0xdc] sm:$0xf] 0
        %542 = vst [vmem:[%s485 + $0xe0] sm:$0xf] 0
        %543 = vst [vmem:[%s485 + $0xe4] sm:$0xf] 0
        %544 = vst [vmem:[%s485 + $0xe8] sm:$0xf] 0
        %545 = vst [vmem:[%s485 + $0xec] sm:$0xf] 0
        %546 = vst [vmem:[%s485 + $0xf0] sm:$0xf] 0
        %547 = vst [vmem:[%s485 + $0xf4] sm:$0xf] 0
        %548 = vst [vmem:[%s485 + $0xf8] sm:$0xf] 0
        %549 = vst [vmem:[%s485 + $0xfc] sm:$0xf] 0
        %550 = vst [vmem:[%s485 + $0x100] sm:$0xf] 0
        %551 = vst [vmem:[%s485 + $0x104] sm:$0xf] 0
        %552 = vst [vmem:[%s485 + $0x108] sm:$0xf] 0
        %553 = vst [vmem:[%s485 + $0x10c] sm:$0xf] 0
        %554 = vst [vmem:[%s485 + $0x110] sm:$0xf] 0
        %555 = vst [vmem:[%s485 + $0x114] sm:$0xf] 0
        %556 = vst [vmem:[%s485 + $0x118] sm:$0xf] 0
        %557 = vst [vmem:[%s485 + $0x11c] sm:$0xf] 0
        %s558 = scalar_lea.vmem [#allocation2], 288
        %559 = vst [vmem:[%s558] sm:$0xf] 0
        %560 = vst [vmem:[%s558 + $0x4] sm:$0xf] 0
        %561 = vst [vmem:[%s558 + $0x18] sm:$0xf] 0
        %562 = vst [vmem:[%s558 + $0x1c] sm:$0xf] 0
        %563 = vst [vmem:[%s558 + $0x30] sm:$0xf] 0
        %564 = vst [vmem:[%s558 + $0x34] sm:$0xf] 0
        %565 = vst [vmem:[%s558 + $0x48] sm:$0xf] 0
        %566 = vst [vmem:[%s558 + $0x4c] sm:$0xf] 0
        %567 = vst [vmem:[%s558 + $0x60] sm:$0xf] 0
        %568 = vst [vmem:[%s558 + $0x64] sm:$0xf] 0
        %569 = vst [vmem:[%s558 + $0x78] sm:$0xf] 0
        %570 = vst [vmem:[%s558 + $0x7c] sm:$0xf] 0
        %571 = vst [vmem:[%s558 + $0x90] sm:$0xf] 0
        %572 = vst [vmem:[%s558 + $0x94] sm:$0xf] 0
        %573 = vst [vmem:[%s558 + $0xa8] sm:$0xf] 0
        %574 = vst [vmem:[%s558 + $0xac] sm:$0xf] 0
        %575 = vst [vmem:[%s558 + $0xc0] sm:$0xf] 0
        %576 = vst [vmem:[%s558 + $0xc4] sm:$0xf] 0
        %577 = vst [vmem:[%s558 + $0xd8] sm:$0xf] 0
        %578 = vst [vmem:[%s558 + $0xdc] sm:$0xf] 0
        %579 = vst [vmem:[%s558 + $0xf0] sm:$0xf] 0
        %580 = vst [vmem:[%s558 + $0xf4] sm:$0xf] 0
        %581 = vst [vmem:[%s558 + $0x108] sm:$0xf] 0
        %582 = vst [vmem:[%s558 + $0x10c] sm:$0xf] 0
        %583 = vst [vmem:[%s558 + $0x120] sm:$0xf] 0
        %584 = vst [vmem:[%s558 + $0x124] sm:$0xf] 0
        %585 = vst [vmem:[%s558 + $0x138] sm:$0xf] 0
        %586 = vst [vmem:[%s558 + $0x13c] sm:$0xf] 0
        %587 = vst [vmem:[%s558 + $0x150] sm:$0xf] 0
        %588 = vst [vmem:[%s558 + $0x154] sm:$0xf] 0
        %589 = vst [vmem:[%s558 + $0x168] sm:$0xf] 0
        %590 = vst [vmem:[%s558 + $0x16c] sm:$0xf] 0
        %591 = vst [vmem:[%s558 + $0x10] sm:$0xf] 0
        %592 = vst [vmem:[%s558 + $0x14] sm:$0xf] 0
        %593 = vst [vmem:[%s558 + $0x28] sm:$0xf] 0
        %594 = vst [vmem:[%s558 + $0x2c] sm:$0xf] 0
        %595 = vst [vmem:[%s558 + $0x40] sm:$0xf] 0
        %596 = vst [vmem:[%s558 + $0x44] sm:$0xf] 0
        %597 = vst [vmem:[%s558 + $0x58] sm:$0xf] 0
        %598 = vst [vmem:[%s558 + $0x5c] sm:$0xf] 0
        %599 = vst [vmem:[%s558 + $0x70] sm:$0xf] 0
        %600 = vst [vmem:[%s558 + $0x74] sm:$0xf] 0
        %601 = vst [vmem:[%s558 + $0x88] sm:$0xf] 0
        %602 = vst [vmem:[%s558 + $0x8c] sm:$0xf] 0
        %603 = vst [vmem:[%s558 + $0xa0] sm:$0xf] 0
        %604 = vst [vmem:[%s558 + $0xa4] sm:$0xf] 0
        %605 = vst [vmem:[%s558 + $0xb8] sm:$0xf] 0
        %606 = vst [vmem:[%s558 + $0xbc] sm:$0xf] 0
        %607 = vst [vmem:[%s558 + $0xd0] sm:$0xf] 0
        %608 = vst [vmem:[%s558 + $0xd4] sm:$0xf] 0
        %609 = vst [vmem:[%s558 + $0xe8] sm:$0xf] 0
        %610 = vst [vmem:[%s558 + $0xec] sm:$0xf] 0
        %611 = vst [vmem:[%s558 + $0x100] sm:$0xf] 0
        %612 = vst [vmem:[%s558 + $0x104] sm:$0xf] 0
        %613 = vst [vmem:[%s558 + $0x118] sm:$0xf] 0
        %614 = vst [vmem:[%s558 + $0x11c] sm:$0xf] 0
        %615 = vst [vmem:[%s558 + $0x130] sm:$0xf] 0
        %616 = vst [vmem:[%s558 + $0x134] sm:$0xf] 0
        %617 = vst [vmem:[%s558 + $0x148] sm:$0xf] 0
        %618 = vst [vmem:[%s558 + $0x14c] sm:$0xf] 0
        %619 = vst [vmem:[%s558 + $0x160] sm:$0xf] 0
        %620 = vst [vmem:[%s558 + $0x164] sm:$0xf] 0
        %621 = vst [vmem:[%s558 + $0x178] sm:$0xf] 0
        %622 = vst [vmem:[%s558 + $0x17c] sm:$0xf] 0
        %623 = vst [vmem:[%s558 + $0x8] sm:$0xf] %v381
        %624 = vst [vmem:[%s558 + $0xc] sm:$0xf] %v382
        %625 = vst [vmem:[%s558 + $0x20] sm:$0xf] %v383
        %626 = vst [vmem:[%s558 + $0x24] sm:$0xf] %v384
        %627 = vst [vmem:[%s558 + $0x38] sm:$0xf] %v385
        %628 = vst [vmem:[%s558 + $0x3c] sm:$0xf] %v386
        %629 = vst [vmem:[%s558 + $0x50] sm:$0xf] %v387
        %630 = vst [vmem:[%s558 + $0x54] sm:$0xf] %v388
        %631 = vst [vmem:[%s558 + $0x68] sm:$0xf] %v389
        %632 = vst [vmem:[%s558 + $0x6c] sm:$0xf] %v390
        %633 = vst [vmem:[%s558 + $0x80] sm:$0xf] %v391
        %634 = vst [vmem:[%s558 + $0x84] sm:$0xf] %v392
        %635 = vst [vmem:[%s558 + $0x98] sm:$0xf] %v393
        %636 = vst [vmem:[%s558 + $0x9c] sm:$0xf] %v394
        %637 = vst [vmem:[%s558 + $0xb0] sm:$0xf] %v395
        %638 = vst [vmem:[%s558 + $0xb4] sm:$0xf] %v396
        %639 = vst [vmem:[%s558 + $0xc8] sm:$0xf] %v397
        %640 = vst [vmem:[%s558 + $0xcc] sm:$0xf] %v398
        %641 = vst [vmem:[%s558 + $0xe0] sm:$0xf] %v399
        %642 = vst [vmem:[%s558 + $0xe4] sm:$0xf] %v400
        %643 = vst [vmem:[%s558 + $0xf8] sm:$0xf] %v401
        %644 = vst [vmem:[%s558 + $0xfc] sm:$0xf] %v402
        %645 = vst [vmem:[%s558 + $0x110] sm:$0xf] %v403
        %646 = vst [vmem:[%s558 + $0x114] sm:$0xf] %v404
        %647 = vst [vmem:[%s558 + $0x128] sm:$0xf] %v405
        %648 = vst [vmem:[%s558 + $0x12c] sm:$0xf] %v406
        %649 = vst [vmem:[%s558 + $0x140] sm:$0xf] %v407
        %650 = vst [vmem:[%s558 + $0x144] sm:$0xf] %v408
        %651 = vst [vmem:[%s558 + $0x158] sm:$0xf] %v409
        %652 = vst [vmem:[%s558 + $0x15c] sm:$0xf] %v410
        %653 = vst [vmem:[%s558 + $0x170] sm:$0xf] %v411
        %654 = vst [vmem:[%s558 + $0x174] sm:$0xf] %v412
        %v655 = vunpack.c.l.bf16 %v381
        %v656 = vunpack.c.l.bf16 %v382
        %v657 = vunpack.c.l.bf16 %v383
        %v658 = vunpack.c.l.bf16 %v384
        %v659 = vunpack.c.l.bf16 %v385
        %v660 = vunpack.c.l.bf16 %v386
        %v661 = vunpack.c.l.bf16 %v387
        %v662 = vunpack.c.l.bf16 %v388
        %v663 = vunpack.c.l.bf16 %v389
        %v664 = vunpack.c.l.bf16 %v390
        %v665 = vunpack.c.l.bf16 %v391
        %v666 = vunpack.c.l.bf16 %v392
        %v667 = vunpack.c.l.bf16 %v393
        %v668 = vunpack.c.l.bf16 %v394
        %v669 = vunpack.c.l.bf16 %v395
        %v670 = vunpack.c.l.bf16 %v396
        %v671 = vunpack.c.l.bf16 %v397
        %v672 = vunpack.c.l.bf16 %v398
        %v673 = vunpack.c.l.bf16 %v399
        %v674 = vunpack.c.l.bf16 %v400
        %v675 = vunpack.c.l.bf16 %v401
        %v676 = vunpack.c.l.bf16 %v402
        %v677 = vunpack.c.l.bf16 %v403
        %v678 = vunpack.c.l.bf16 %v404
        %v679 = vunpack.c.l.bf16 %v405
        %v680 = vunpack.c.l.bf16 %v406
        %v681 = vunpack.c.l.bf16 %v407
        %v682 = vunpack.c.l.bf16 %v408
        %v683 = vunpack.c.l.bf16 %v409
        %v684 = vunpack.c.l.bf16 %v410
        %v685 = vunpack.c.l.bf16 %v411
        %v686 = vunpack.c.l.bf16 %v412
        %v687 = vadd.f32 %v655, %v656
        %v688 = vadd.f32 %v687, %v657
        %v689 = vadd.f32 %v688, %v658
        %v690 = vadd.f32 %v689, %v659
        %v691 = vadd.f32 %v690, %v660
        %v692 = vadd.f32 %v691, %v661
        %v693 = vadd.f32 %v692, %v662
        %v694 = vadd.f32 %v693, %v663
        %v695 = vadd.f32 %v694, %v664
        %v696 = vadd.f32 %v695, %v665
        %v697 = vadd.f32 %v696, %v666
        %v698 = vadd.f32 %v697, %v667
        %v699 = vadd.f32 %v698, %v668
        %v700 = vadd.f32 %v699, %v669
        %v701 = vadd.f32 %v700, %v670
        %v702 = vadd.f32 %v701, %v671
        %v703 = vadd.f32 %v702, %v672
        %v704 = vadd.f32 %v703, %v673
        %v705 = vadd.f32 %v704, %v674
        %v706 = vadd.f32 %v705, %v675
        %v707 = vadd.f32 %v706, %v676
        %v708 = vadd.f32 %v707, %v677
        %v709 = vadd.f32 %v708, %v678
        %v710 = vadd.f32 %v709, %v679
        %v711 = vadd.f32 %v710, %v680
        %v712 = vadd.f32 %v711, %v681
        %v713 = vadd.f32 %v712, %v682
        %v714 = vadd.f32 %v713, %v683
        %v715 = vadd.f32 %v714, %v684
        %v716 = vadd.f32 %v715, %v685
        %v717 = vadd.f32 %v716, %v686
        %v718 = vrot.slane %v717, 4
        %v719 = vadd.f32 %v717, %v718
        %v720 = vrot.slane %v719, 2
        %v721 = vadd.f32 %v719, %v720
        %v722 = vrot.slane %v721, 1
        %v723 = vadd.f32 %v721, %v722
        %v724 = vrcp.pop 256.0
        %v725 = vmul.f32 %v723, %v724
        %v726 = vpack.c.bf16 %v725, %v725
        %v727 = vld [vmem:[#allocation12] sm:$0xff]
        %v728 = vld [vmem:[#allocation12 + $0x8] sm:$0xff]
        %v729 = vld [vmem:[#allocation12 + $0x10] sm:$0xff]
        %v730 = vld [vmem:[#allocation12 + $0x18] sm:$0xff]
        %v731 = vld [vmem:[#allocation12 + $0x20] sm:$0xff]
        %v732 = vld [vmem:[#allocation12 + $0x28] sm:$0xff]
        %v733 = vld [vmem:[#allocation12 + $0x30] sm:$0xff]
        %v734 = vld [vmem:[#allocation12 + $0x38] sm:$0xff]
        %v735 = vld [vmem:[#allocation12 + $0x40] sm:$0xff]
        %v736 = vld [vmem:[#allocation12 + $0x48] sm:$0xff]
        %v737 = vld [vmem:[#allocation12 + $0x50] sm:$0xff]
        %v738 = vld [vmem:[#allocation12 + $0x58] sm:$0xff]
        %v739 = vld [vmem:[#allocation12 + $0x60] sm:$0xff]
        %v740 = vld [vmem:[#allocation12 + $0x68] sm:$0xff]
        %v741 = vld [vmem:[#allocation12 + $0x70] sm:$0xff]
        %v742 = vld [vmem:[#allocation12 + $0x78] sm:$0xff]
        %v759 = vunpack.c.l.b16 %v727
        %v760 = vunpack.c.h.b16 %v727
        %v761 = vunpack.c.l.b16 %v728
        %v762 = vunpack.c.h.b16 %v728
        %v763 = vunpack.c.l.b16 %v729
        %v764 = vunpack.c.h.b16 %v729
        %v765 = vunpack.c.l.b16 %v730
        %v766 = vunpack.c.h.b16 %v730
        %v767 = vunpack.c.l.b16 %v731
        %v768 = vunpack.c.h.b16 %v731
        %v769 = vunpack.c.l.b16 %v732
        %v770 = vunpack.c.h.b16 %v732
        %v771 = vunpack.c.l.b16 %v733
        %v772 = vunpack.c.h.b16 %v733
        %v773 = vunpack.c.l.b16 %v734
        %v774 = vunpack.c.h.b16 %v734
        %v775 = vunpack.c.l.b16 %v735
        %v776 = vunpack.c.h.b16 %v735
        %v777 = vunpack.c.l.b16 %v736
        %v778 = vunpack.c.h.b16 %v736
        %v779 = vunpack.c.l.b16 %v737
        %v780 = vunpack.c.h.b16 %v737
        %v781 = vunpack.c.l.b16 %v738
        %v782 = vunpack.c.h.b16 %v738
        %v783 = vunpack.c.l.b16 %v739
        %v784 = vunpack.c.h.b16 %v739
        %v785 = vunpack.c.l.b16 %v740
        %v786 = vunpack.c.h.b16 %v740
        %v787 = vunpack.c.l.b16 %v741
        %v788 = vunpack.c.h.b16 %v741
        %v789 = vunpack.c.l.b16 %v742
        %v790 = vunpack.c.h.b16 %v742
        %v791 = vpack.c.b16 %v761, %v759
        %v792 = vpack.c.b16 %v762, %v760
        %v793 = vpack.c.b16 %v765, %v763
        %v794 = vpack.c.b16 %v766, %v764
        %v795 = vpack.c.b16 %v769, %v767
        %v796 = vpack.c.b16 %v770, %v768
        %v797 = vpack.c.b16 %v773, %v771
        %v798 = vpack.c.b16 %v774, %v772
        %v799 = vpack.c.b16 %v777, %v775
        %v800 = vpack.c.b16 %v778, %v776
        %v801 = vpack.c.b16 %v781, %v779
        %v802 = vpack.c.b16 %v782, %v780
        %v803 = vpack.c.b16 %v785, %v783
        %v804 = vpack.c.b16 %v786, %v784
        %v805 = vpack.c.b16 %v789, %v787
        %v806 = vpack.c.b16 %v790, %v788
        %823 = vmatprep.subr.bf16.mxu0 %v806
        %824 = vmatpush1.bf16.msra.mxu0 %v805
        %825 = vmatprep.subr.bf16.mxu0 %v804
        %826 = vmatpush1.bf16.msra.mxu0 %v803
        %827 = vmatprep.subr.bf16.mxu0 %v802
        %828 = vmatpush1.bf16.msra.mxu0 %v801
        %829 = vmatprep.subr.bf16.mxu0 %v800
        %830 = vmatpush1.bf16.msra.mxu0 %v799
        %831 = vmatprep.subr.bf16.mxu0 %v798
        %832 = vmatpush1.bf16.msra.mxu0 %v797
        %833 = vmatprep.subr.bf16.mxu0 %v796
        %834 = vmatpush1.bf16.msra.mxu0 %v795
        %835 = vmatprep.subr.bf16.mxu0 %v794
        %836 = vmatpush1.bf16.msra.mxu0 %v793
        %837 = vmatprep.subr.bf16.mxu0 %v792
        %838 = vmatpush1.bf16.msra.mxu0 %v791
        %839 = vmatprep.subr.bf16.mxu0 0
        %840 = vmatpush2.bf16.msra.mxu0 0
        %841 = vmatprep.subr.bf16.mxu0 0
        %842 = vmatpush2.bf16.msra.mxu0 0
        %843 = vmatprep.subr.bf16.mxu0 0
        %844 = vmatpush2.bf16.msra.mxu0 0
        %845 = vmatprep.subr.bf16.mxu0 0
        %846 = vmatpush2.bf16.msra.mxu0 0
        %847 = vmatprep.subr.bf16.mxu0 0
        %848 = vmatpush2.bf16.msra.mxu0 0
        %849 = vmatprep.subr.bf16.mxu0 0
        %850 = vmatpush2.bf16.msra.mxu0 0
        %851 = vmatprep.subr.bf16.mxu0 0
        %852 = vmatpush2.bf16.msra.mxu0 0
        %853 = vmatprep.subr.bf16.mxu0 0
        %854 = vmatpush2.bf16.msra.mxu0 0
        %855 = vmatprep.mubr.bf16.mxu0 0
        %856 = vmatmul.mubr.bf16.gmra.mxu0 %v726
        %v857 = vpop.f32.mrf.mxu0
        %v858 = vadd.f32 0.0, %v857
        %v859 = vpop.f32.mrf.mxu0
        %v860 = vadd.f32 0.0, %v859
        %v861 = vpop.f32.mrf.mxu0
        %v862 = vpop.f32.mrf.mxu0
        %863 = vdwg.mxu0
        %v864 = vld [vmem:[#allocation13] ss:$8 sm:$0x3]
        %v865 = vld [vmem:[#allocation15] ss:$8 sm:$0x3]
        %v867 = vlaneseq
        %v868 = vshrl.u32 %v867, 7
        %v869 = vsub.s32 0, %v868
        %v870 = vrot.slane %v864, %v869
        %v871 = vlaneseq
        %v872 = vshrl.u32 %v871, 7
        %v873 = vsub.s32 1, %v872
        %v874 = vrot.slane %v864, %v873
        %v877 = vmul.f32 %v858, %v870
        %v878 = vmul.f32 %v860, %v874
        %v880 = vlaneseq
        %v881 = vshrl.u32 %v880, 7
        %v882 = vsub.s32 0, %v881
        %v883 = vrot.slane %v865, %v882
        %v884 = vlaneseq
        %v885 = vshrl.u32 %v884, 7
        %v886 = vsub.s32 1, %v885
        %v887 = vrot.slane %v865, %v886
        %v890 = vadd.f32 %v877, %v883
        %v891 = vadd.f32 %v878, %v887
        %v892 = vmax.f32 %v890, 0.0
        %v893 = vmax.f32 %v891, 0.0
        %v894 = vlaneseq
        %v895 = vshrl.u32 %v894, 7
        %v896 = vsub.s32 0, %v895
        %v897 = vrot.slane %v892, %v896
        %v898 = vlaneseq
        %v899 = vshrl.u32 %v898, 7
        %v900 = vsub.s32 0, %v899
        %v901 = vrot.slane %v893, %v900
        %v902 = vpack.c.bf16 %v897, %v897
        %v903 = vpack.c.bf16 %v901, %v901
        %v906 = vunpack.c.l.b16 %v902
        %v907 = vunpack.c.l.b16 %v903
        %v908 = vpack.c.b16 %v907, %v906
        %910 = vst [vmem:[%s379] sm:$0xff] %v908
        %911 = vst [vmem:[%s379 + $0x28] sm:$0xff] %v908
        %912 = vst [vmem:[%s379 + $0x50] sm:$0xff] %v908
        %913 = vst [vmem:[%s379 + $0x78] sm:$0xff] %v908
        %914 = vst [vmem:[%s379 + $0xa0] sm:$0xff] %v908
        %915 = vst [vmem:[%s379 + $0xc8] sm:$0xff] %v908
        %916 = vst [vmem:[%s379 + $0xf0] sm:$0xff] %v908
        %917 = vst [vmem:[%s379 + $0x118] sm:$0xff] %v908
        %918 = vst [vmem:[%s379 + $0x140] sm:$0xff] %v908
        %919 = vst [vmem:[%s379 + $0x168] sm:$0xff] %v908
        %920 = vst [vmem:[%s379 + $0x190] sm:$0xff] %v908
        %921 = vst [vmem:[%s379 + $0x1b8] sm:$0xff] %v908
        %922 = vst [vmem:[%s379 + $0x1e0] sm:$0xff] %v908
        %923 = vst [vmem:[%s379 + $0x208] sm:$0xff] %v908
        %924 = vst [vmem:[%s379 + $0x230] sm:$0xff] %v908
        %925 = vst [vmem:[%s379 + $0x258] sm:$0xff] %v908
        %926 = vst [vmem:[%s379 + $0x280] sm:$0xff] %v908
        %927 = vst [vmem:[%s379 + $0x2a8] sm:$0xff] %v908
        %928 = vst [vmem:[%s379 + $0x2d0] sm:$0xff] %v908
        %929 = vst [vmem:[%s379 + $0x2f8] sm:$0xff] %v908
        %930 = vst [vmem:[%s379 + $0x320] sm:$0xff] %v908
        %931 = vst [vmem:[%s379 + $0x348] sm:$0xff] %v908
        %932 = vst [vmem:[%s379 + $0x370] sm:$0xff] %v908
        %933 = vst [vmem:[%s379 + $0x398] sm:$0xff] %v908
        %934 = vst [vmem:[%s379 + $0x3c0] sm:$0xff] %v908
        %935 = vst [vmem:[%s379 + $0x3e8] sm:$0xff] %v908
        %936 = vst [vmem:[%s379 + $0x410] sm:$0xff] %v908
        %937 = vst [vmem:[%s379 + $0x438] sm:$0xff] %v908
        %938 = vst [vmem:[%s379 + $0x460] sm:$0xff] %v908
        %939 = vst [vmem:[%s379 + $0x488] sm:$0xff] %v908
        %940 = vst [vmem:[%s379 + $0x4b0] sm:$0xff] %v908
        %941 = vst [vmem:[%s379 + $0x4d8] sm:$0xff] %v908
        %v942 = vld [vmem:[#allocation7] sm:$0xff]
        %v943 = vld [vmem:[#allocation7 + $0x8] sm:$0xff]
        %v944 = vld [vmem:[#allocation7 + $0x10] sm:$0xff]
        %v945 = vld [vmem:[#allocation7 + $0x18] sm:$0xff]
        %v946 = vld [vmem:[#allocation7 + $0x20] sm:$0xff]
        %v947 = vld [vmem:[#allocation7 + $0x28] sm:$0xff]
        %v948 = vld [vmem:[#allocation7 + $0x30] sm:$0xff]
        %v949 = vld [vmem:[#allocation7 + $0x38] sm:$0xff]
        %v950 = vld [vmem:[#allocation7 + $0x40] sm:$0xff]
        %v951 = vld [vmem:[#allocation7 + $0x48] sm:$0xff]
        %v952 = vld [vmem:[#allocation7 + $0x50] sm:$0xff]
        %v953 = vld [vmem:[#allocation7 + $0x58] sm:$0xff]
        %v954 = vld [vmem:[#allocation7 + $0x60] sm:$0xff]
        %v955 = vld [vmem:[#allocation7 + $0x68] sm:$0xff]
        %v956 = vld [vmem:[#allocation7 + $0x70] sm:$0xff]
        %v957 = vld [vmem:[#allocation7 + $0x78] sm:$0xff]
        %v958 = vld [vmem:[#allocation7 + $0x80] sm:$0xff]
        %v959 = vld [vmem:[#allocation7 + $0x88] sm:$0xff]
        %v960 = vld [vmem:[#allocation7 + $0x90] sm:$0xff]
        %v961 = vld [vmem:[#allocation7 + $0x98] sm:$0xff]
        %v962 = vld [vmem:[#allocation7 + $0xa0] sm:$0xff]
        %v963 = vld [vmem:[#allocation7 + $0xa8] sm:$0xff]
        %v964 = vld [vmem:[#allocation7 + $0xb0] sm:$0xff]
        %v965 = vld [vmem:[#allocation7 + $0xb8] sm:$0xff]
        %v966 = vld [vmem:[#allocation7 + $0xc0] sm:$0xff]
        %v967 = vld [vmem:[#allocation7 + $0xc8] sm:$0xff]
        %v968 = vld [vmem:[#allocation7 + $0xd0] sm:$0xff]
        %v969 = vld [vmem:[#allocation7 + $0xd8] sm:$0xff]
        %v970 = vld [vmem:[#allocation7 + $0xe0] sm:$0xff]
        %v971 = vld [vmem:[#allocation7 + $0xe8] sm:$0xff]
        %v972 = vld [vmem:[#allocation7 + $0xf0] sm:$0xff]
        %v973 = vld [vmem:[#allocation7 + $0xf8] sm:$0xff]
        %v1006 = vunpack.c.l.b16 %v381
        %v1007 = vunpack.c.l.b16 %v382
        %v1008 = vunpack.c.l.b16 %v383
        %v1009 = vunpack.c.l.b16 %v384
        %v1010 = vunpack.c.l.b16 %v385
        %v1011 = vunpack.c.l.b16 %v386
        %v1012 = vunpack.c.l.b16 %v387
        %v1013 = vunpack.c.l.b16 %v388
        %v1014 = vunpack.c.l.b16 %v389
        %v1015 = vunpack.c.l.b16 %v390
        %v1016 = vunpack.c.l.b16 %v391
        %v1017 = vunpack.c.l.b16 %v392
        %v1018 = vunpack.c.l.b16 %v393
        %v1019 = vunpack.c.l.b16 %v394
        %v1020 = vunpack.c.l.b16 %v395
        %v1021 = vunpack.c.l.b16 %v396
        %v1022 = vunpack.c.l.b16 %v397
        %v1023 = vunpack.c.l.b16 %v398
        %v1024 = vunpack.c.l.b16 %v399
        %v1025 = vunpack.c.l.b16 %v400
        %v1026 = vunpack.c.l.b16 %v401
        %v1027 = vunpack.c.l.b16 %v402
        %v1028 = vunpack.c.l.b16 %v403
        %v1029 = vunpack.c.l.b16 %v404
        %v1030 = vunpack.c.l.b16 %v405
        %v1031 = vunpack.c.l.b16 %v406
        %v1032 = vunpack.c.l.b16 %v407
        %v1033 = vunpack.c.l.b16 %v408
        %v1034 = vunpack.c.l.b16 %v409
        %v1035 = vunpack.c.l.b16 %v410
        %v1036 = vunpack.c.l.b16 %v411
        %v1037 = vunpack.c.l.b16 %v412
        %v1038 = vpack.c.b16 %v1007, %v1006
        %v1039 = vpack.c.b16 %v1009, %v1008
        %v1040 = vpack.c.b16 %v1011, %v1010
        %v1041 = vpack.c.b16 %v1013, %v1012
        %v1042 = vpack.c.b16 %v1015, %v1014
        %v1043 = vpack.c.b16 %v1017, %v1016
        %v1044 = vpack.c.b16 %v1019, %v1018
        %v1045 = vpack.c.b16 %v1021, %v1020
        %v1046 = vpack.c.b16 %v1023, %v1022
        %v1047 = vpack.c.b16 %v1025, %v1024
        %v1048 = vpack.c.b16 %v1027, %v1026
        %v1049 = vpack.c.b16 %v1029, %v1028
        %v1050 = vpack.c.b16 %v1031, %v1030
        %v1051 = vpack.c.b16 %v1033, %v1032
        %v1052 = vpack.c.b16 %v1035, %v1034
        %v1053 = vpack.c.b16 %v1037, %v1036
        %v1102 = vunpack.c.l.b16 %v942
        %v1103 = vunpack.c.h.b16 %v942
        %v1104 = vunpack.c.l.b16 %v943
        %v1105 = vunpack.c.h.b16 %v943
        %v1106 = vunpack.c.l.b16 %v944
        %v1107 = vunpack.c.h.b16 %v944
        %v1108 = vunpack.c.l.b16 %v945
        %v1109 = vunpack.c.h.b16 %v945
        %v1110 = vunpack.c.l.b16 %v946
        %v1111 = vunpack.c.h.b16 %v946
        %v1112 = vunpack.c.l.b16 %v947
        %v1113 = vunpack.c.h.b16 %v947
        %v1114 = vunpack.c.l.b16 %v948
        %v1115 = vunpack.c.h.b16 %v948
        %v1116 = vunpack.c.l.b16 %v949
        %v1117 = vunpack.c.h.b16 %v949
        %v1118 = vunpack.c.l.b16 %v950
        %v1119 = vunpack.c.h.b16 %v950
        %v1120 = vunpack.c.l.b16 %v951
        %v1121 = vunpack.c.h.b16 %v951
        %v1122 = vunpack.c.l.b16 %v952
        %v1123 = vunpack.c.h.b16 %v952
        %v1124 = vunpack.c.l.b16 %v953
        %v1125 = vunpack.c.h.b16 %v953
        %v1126 = vunpack.c.l.b16 %v954
        %v1127 = vunpack.c.h.b16 %v954
        %v1128 = vunpack.c.l.b16 %v955
        %v1129 = vunpack.c.h.b16 %v955
        %v1130 = vunpack.c.l.b16 %v956
        %v1131 = vunpack.c.h.b16 %v956
        %v1132 = vunpack.c.l.b16 %v957
        %v1133 = vunpack.c.h.b16 %v957
        %v1134 = vunpack.c.l.b16 %v958
        %v1135 = vunpack.c.h.b16 %v958
        %v1136 = vunpack.c.l.b16 %v959
        %v1137 = vunpack.c.h.b16 %v959
        %v1138 = vunpack.c.l.b16 %v960
        %v1139 = vunpack.c.h.b16 %v960
        %v1140 = vunpack.c.l.b16 %v961
        %v1141 = vunpack.c.h.b16 %v961
        %v1142 = vunpack.c.l.b16 %v962
        %v1143 = vunpack.c.h.b16 %v962
        %v1144 = vunpack.c.l.b16 %v963
        %v1145 = vunpack.c.h.b16 %v963
        %v1146 = vunpack.c.l.b16 %v964
        %v1147 = vunpack.c.h.b16 %v964
        %v1148 = vunpack.c.l.b16 %v965
        %v1149 = vunpack.c.h.b16 %v965
        %v1150 = vunpack.c.l.b16 %v966
        %v1151 = vunpack.c.h.b16 %v966
        %v1152 = vunpack.c.l.b16 %v967
        %v1153 = vunpack.c.h.b16 %v967
        %v1154 = vunpack.c.l.b16 %v968
        %v1155 = vunpack.c.h.b16 %v968
        %v1156 = vunpack.c.l.b16 %v969
        %v1157 = vunpack.c.h.b16 %v969
        %v1158 = vunpack.c.l.b16 %v970
        %v1159 = vunpack.c.h.b16 %v970
        %v1160 = vunpack.c.l.b16 %v971
        %v1161 = vunpack.c.h.b16 %v971
        %v1162 = vunpack.c.l.b16 %v972
        %v1163 = vunpack.c.h.b16 %v972
        %v1164 = vunpack.c.l.b16 %v973
        %v1165 = vunpack.c.h.b16 %v973
        %v1166 = vpack.c.b16 %v1106, %v1102
        %v1167 = vpack.c.b16 %v1107, %v1103
        %v1168 = vpack.c.b16 %v1108, %v1104
        %v1169 = vpack.c.b16 %v1109, %v1105
        %v1170 = vpack.c.b16 %v1114, %v1110
        %v1171 = vpack.c.b16 %v1115, %v1111
        %v1172 = vpack.c.b16 %v1116, %v1112
        %v1173 = vpack.c.b16 %v1117, %v1113
        %v1174 = vpack.c.b16 %v1122, %v1118
        %v1175 = vpack.c.b16 %v1123, %v1119
        %v1176 = vpack.c.b16 %v1124, %v1120
        %v1177 = vpack.c.b16 %v1125, %v1121
        %v1178 = vpack.c.b16 %v1130, %v1126
        %v1179 = vpack.c.b16 %v1131, %v1127
        %v1180 = vpack.c.b16 %v1132, %v1128
        %v1181 = vpack.c.b16 %v1133, %v1129
        %v1182 = vpack.c.b16 %v1138, %v1134
        %v1183 = vpack.c.b16 %v1139, %v1135
        %v1184 = vpack.c.b16 %v1140, %v1136
        %v1185 = vpack.c.b16 %v1141, %v1137
        %v1186 = vpack.c.b16 %v1146, %v1142
        %v1187 = vpack.c.b16 %v1147, %v1143
        %v1188 = vpack.c.b16 %v1148, %v1144
        %v1189 = vpack.c.b16 %v1149, %v1145
        %v1190 = vpack.c.b16 %v1154, %v1150
        %v1191 = vpack.c.b16 %v1155, %v1151
        %v1192 = vpack.c.b16 %v1156, %v1152
        %v1193 = vpack.c.b16 %v1157, %v1153
        %v1194 = vpack.c.b16 %v1162, %v1158
        %v1195 = vpack.c.b16 %v1163, %v1159
        %v1196 = vpack.c.b16 %v1164, %v1160
        %v1197 = vpack.c.b16 %v1165, %v1161
        %1230 = vmatprep.subr.bf16.mxu0 %v1195
        %1231 = vmatpush1.bf16.msra.mxu0 %v1194
        %1232 = vmatprep.subr.bf16.mxu0 %v1191
        %1233 = vmatpush1.bf16.msra.mxu0 %v1190
        %1234 = vmatprep.subr.bf16.mxu0 %v1187
        %1235 = vmatpush1.bf16.msra.mxu0 %v1186
        %1236 = vmatprep.subr.bf16.mxu0 %v1183
        %1237 = vmatpush1.bf16.msra.mxu0 %v1182
        %1238 = vmatprep.subr.bf16.mxu0 %v1179
        %1239 = vmatpush1.bf16.msra.mxu0 %v1178
        %1240 = vmatprep.subr.bf16.mxu0 %v1175
        %1241 = vmatpush1.bf16.msra.mxu0 %v1174
        %1242 = vmatprep.subr.bf16.mxu0 %v1171
        %1243 = vmatpush1.bf16.msra.mxu0 %v1170
        %1244 = vmatprep.subr.bf16.mxu0 %v1167
        %1245 = vmatpush1.bf16.msra.mxu0 %v1166
        %1246 = vmatprep.subr.bf16.mxu0 0
        %1247 = vmatpush2.bf16.msra.mxu0 0
        %1248 = vmatprep.subr.bf16.mxu0 0
        %1249 = vmatpush2.bf16.msra.mxu0 0
        %1250 = vmatprep.subr.bf16.mxu0 0
        %1251 = vmatpush2.bf16.msra.mxu0 0
        %1252 = vmatprep.subr.bf16.mxu0 0
        %1253 = vmatpush2.bf16.msra.mxu0 0
        %1254 = vmatprep.subr.bf16.mxu0 0
        %1255 = vmatpush2.bf16.msra.mxu0 0
        %1256 = vmatprep.subr.bf16.mxu0 0
        %1257 = vmatpush2.bf16.msra.mxu0 0
        %1258 = vmatprep.subr.bf16.mxu0 0
        %1259 = vmatpush2.bf16.msra.mxu0 0
        %1260 = vmatprep.subr.bf16.mxu0 0
        %1261 = vmatpush2.bf16.msra.mxu0 0
        %1262 = vmatprep.mubr.bf16.mxu0 0
        %1263 = vmatmul.mubr.bf16.gmra.mxu0 %v1038
        %v1264 = vpop.f32.mrf.mxu0
        %v1265 = vadd.f32 0.0, %v1264
        %v1266 = vpop.f32.mrf.mxu0
        %v1267 = vadd.f32 0.0, %v1266
        %v1268 = vpop.f32.mrf.mxu0
        %v1269 = vadd.f32 0.0, %v1268
        %v1270 = vpop.f32.mrf.mxu0
        %v1271 = vadd.f32 0.0, %v1270
        %1272 = vmatprep.mubr.bf16.mxu0 0
        %1273 = vmatmul.mubr.bf16.gmra.mxu0 %v1039
        %v1274 = vpop.f32.mrf.mxu0
        %v1275 = vadd.f32 0.0, %v1274
        %v1276 = vpop.f32.mrf.mxu0
        %v1277 = vadd.f32 0.0, %v1276
        %v1278 = vpop.f32.mrf.mxu0
        %v1279 = vadd.f32 0.0, %v1278
        %v1280 = vpop.f32.mrf.mxu0
        %v1281 = vadd.f32 0.0, %v1280
        %1282 = vmatprep.mubr.bf16.mxu0 0
        %1283 = vmatmul.mubr.bf16.gmra.mxu0 %v1040
        %v1284 = vpop.f32.mrf.mxu0
        %v1285 = vadd.f32 0.0, %v1284
        %v1286 = vpop.f32.mrf.mxu0
        %v1287 = vadd.f32 0.0, %v1286
        %v1288 = vpop.f32.mrf.mxu0
        %v1289 = vadd.f32 0.0, %v1288
        %v1290 = vpop.f32.mrf.mxu0
        %v1291 = vadd.f32 0.0, %v1290
        %1292 = vmatprep.mubr.bf16.mxu0 0
        %1293 = vmatmul.mubr.bf16.gmra.mxu0 %v1041
        %v1294 = vpop.f32.mrf.mxu0
        %v1295 = vadd.f32 0.0, %v1294
        %v1296 = vpop.f32.mrf.mxu0
        %v1297 = vadd.f32 0.0, %v1296
        %v1298 = vpop.f32.mrf.mxu0
        %v1299 = vadd.f32 0.0, %v1298
        %v1300 = vpop.f32.mrf.mxu0
        %v1301 = vadd.f32 0.0, %v1300
        %1302 = vmatprep.mubr.bf16.mxu0 0
        %1303 = vmatmul.mubr.bf16.gmra.mxu0 %v1042
        %v1304 = vpop.f32.mrf.mxu0
        %v1305 = vadd.f32 0.0, %v1304
        %v1306 = vpop.f32.mrf.mxu0
        %v1307 = vadd.f32 0.0, %v1306
        %v1308 = vpop.f32.mrf.mxu0
        %v1309 = vadd.f32 0.0, %v1308
        %v1310 = vpop.f32.mrf.mxu0
        %v1311 = vadd.f32 0.0, %v1310
        %1312 = vmatprep.mubr.bf16.mxu0 0
        %1313 = vmatmul.mubr.bf16.gmra.mxu0 %v1043
        %v1314 = vpop.f32.mrf.mxu0
        %v1315 = vadd.f32 0.0, %v1314
        %v1316 = vpop.f32.mrf.mxu0
        %v1317 = vadd.f32 0.0, %v1316
        %v1318 = vpop.f32.mrf.mxu0
        %v1319 = vadd.f32 0.0, %v1318
        %v1320 = vpop.f32.mrf.mxu0
        %v1321 = vadd.f32 0.0, %v1320
        %1322 = vmatprep.mubr.bf16.mxu0 0
        %1323 = vmatmul.mubr.bf16.gmra.mxu0 %v1044
        %v1324 = vpop.f32.mrf.mxu0
        %v1325 = vadd.f32 0.0, %v1324
        %v1326 = vpop.f32.mrf.mxu0
        %v1327 = vadd.f32 0.0, %v1326
        %v1328 = vpop.f32.mrf.mxu0
        %v1329 = vadd.f32 0.0, %v1328
        %v1330 = vpop.f32.mrf.mxu0
        %v1331 = vadd.f32 0.0, %v1330
        %1332 = vmatprep.mubr.bf16.mxu0 0
        %1333 = vmatmul.mubr.bf16.gmra.mxu0 %v1045
        %v1334 = vpop.f32.mrf.mxu0
        %v1335 = vadd.f32 0.0, %v1334
        %v1336 = vpop.f32.mrf.mxu0
        %v1337 = vadd.f32 0.0, %v1336
        %v1338 = vpop.f32.mrf.mxu0
        %v1339 = vadd.f32 0.0, %v1338
        %v1340 = vpop.f32.mrf.mxu0
        %v1341 = vadd.f32 0.0, %v1340
        %1342 = vmatprep.mubr.bf16.mxu0 0
        %1343 = vmatmul.mubr.bf16.gmra.mxu0 %v1046
        %v1344 = vpop.f32.mrf.mxu0
        %v1345 = vadd.f32 0.0, %v1344
        %v1346 = vpop.f32.mrf.mxu0
        %v1347 = vadd.f32 0.0, %v1346
        %v1348 = vpop.f32.mrf.mxu0
        %v1349 = vadd.f32 0.0, %v1348
        %v1350 = vpop.f32.mrf.mxu0
        %v1351 = vadd.f32 0.0, %v1350
        %1352 = vmatprep.mubr.bf16.mxu0 0
        %1353 = vmatmul.mubr.bf16.gmra.mxu0 %v1047
        %v1354 = vpop.f32.mrf.mxu0
        %v1355 = vadd.f32 0.0, %v1354
        %v1356 = vpop.f32.mrf.mxu0
        %v1357 = vadd.f32 0.0, %v1356
        %v1358 = vpop.f32.mrf.mxu0
        %v1359 = vadd.f32 0.0, %v1358
        %v1360 = vpop.f32.mrf.mxu0
        %v1361 = vadd.f32 0.0, %v1360
        %1362 = vmatprep.mubr.bf16.mxu0 0
        %1363 = vmatmul.mubr.bf16.gmra.mxu0 %v1048
        %v1364 = vpop.f32.mrf.mxu0
        %v1365 = vadd.f32 0.0, %v1364
        %v1366 = vpop.f32.mrf.mxu0
        %v1367 = vadd.f32 0.0, %v1366
        %v1368 = vpop.f32.mrf.mxu0
        %v1369 = vadd.f32 0.0, %v1368
        %v1370 = vpop.f32.mrf.mxu0
        %v1371 = vadd.f32 0.0, %v1370
        %1372 = vmatprep.mubr.bf16.mxu0 0
        %1373 = vmatmul.mubr.bf16.gmra.mxu0 %v1049
        %v1374 = vpop.f32.mrf.mxu0
        %v1375 = vadd.f32 0.0, %v1374
        %v1376 = vpop.f32.mrf.mxu0
        %v1377 = vadd.f32 0.0, %v1376
        %v1378 = vpop.f32.mrf.mxu0
        %v1379 = vadd.f32 0.0, %v1378
        %v1380 = vpop.f32.mrf.mxu0
        %v1381 = vadd.f32 0.0, %v1380
        %1382 = vmatprep.mubr.bf16.mxu0 0
        %1383 = vmatmul.mubr.bf16.gmra.mxu0 %v1050
        %v1384 = vpop.f32.mrf.mxu0
        %v1385 = vadd.f32 0.0, %v1384
        %v1386 = vpop.f32.mrf.mxu0
        %v1387 = vadd.f32 0.0, %v1386
        %v1388 = vpop.f32.mrf.mxu0
        %v1389 = vadd.f32 0.0, %v1388
        %v1390 = vpop.f32.mrf.mxu0
        %v1391 = vadd.f32 0.0, %v1390
        %1392 = vmatprep.mubr.bf16.mxu0 0
        %1393 = vmatmul.mubr.bf16.gmra.mxu0 %v1051
        %v1394 = vpop.f32.mrf.mxu0
        %v1395 = vadd.f32 0.0, %v1394
        %v1396 = vpop.f32.mrf.mxu0
        %v1397 = vadd.f32 0.0, %v1396
        %v1398 = vpop.f32.mrf.mxu0
        %v1399 = vadd.f32 0.0, %v1398
        %v1400 = vpop.f32.mrf.mxu0
        %v1401 = vadd.f32 0.0, %v1400
        %1402 = vmatprep.mubr.bf16.mxu0 0
        %1403 = vmatmul.mubr.bf16.gmra.mxu0 %v1052
        %v1404 = vpop.f32.mrf.mxu0
        %v1405 = vadd.f32 0.0, %v1404
        %v1406 = vpop.f32.mrf.mxu0
        %v1407 = vadd.f32 0.0, %v1406
        %v1408 = vpop.f32.mrf.mxu0
        %v1409 = vadd.f32 0.0, %v1408
        %v1410 = vpop.f32.mrf.mxu0
        %v1411 = vadd.f32 0.0, %v1410
        %1412 = vmatprep.mubr.bf16.mxu0 0
        %1413 = vmatmul.mubr.bf16.gmra.mxu0 %v1053
        %v1414 = vpop.f32.mrf.mxu0
        %v1415 = vadd.f32 0.0, %v1414
        %v1416 = vpop.f32.mrf.mxu0
        %v1417 = vadd.f32 0.0, %v1416
        %v1418 = vpop.f32.mrf.mxu0
        %v1419 = vadd.f32 0.0, %v1418
        %v1420 = vpop.f32.mrf.mxu0
        %v1421 = vadd.f32 0.0, %v1420
        %1422 = vdwg.mxu0
        %1423 = vmatprep.subr.bf16.mxu0 %v1197
        %1424 = vmatpush1.bf16.msra.mxu0 %v1196
        %1425 = vmatprep.subr.bf16.mxu0 %v1193
        %1426 = vmatpush1.bf16.msra.mxu0 %v1192
        %1427 = vmatprep.subr.bf16.mxu0 %v1189
        %1428 = vmatpush1.bf16.msra.mxu0 %v1188
        %1429 = vmatprep.subr.bf16.mxu0 %v1185
        %1430 = vmatpush1.bf16.msra.mxu0 %v1184
        %1431 = vmatprep.subr.bf16.mxu0 %v1181
        %1432 = vmatpush1.bf16.msra.mxu0 %v1180
        %1433 = vmatprep.subr.bf16.mxu0 %v1177
        %1434 = vmatpush1.bf16.msra.mxu0 %v1176
        %1435 = vmatprep.subr.bf16.mxu0 %v1173
        %1436 = vmatpush1.bf16.msra.mxu0 %v1172
        %1437 = vmatprep.subr.bf16.mxu0 %v1169
        %1438 = vmatpush1.bf16.msra.mxu0 %v1168
        %1439 = vmatprep.subr.bf16.mxu0 0
        %1440 = vmatpush2.bf16.msra.mxu0 0
        %1441 = vmatprep.subr.bf16.mxu0 0
        %1442 = vmatpush2.bf16.msra.mxu0 0
        %1443 = vmatprep.subr.bf16.mxu0 0
        %1444 = vmatpush2.bf16.msra.mxu0 0
        %1445 = vmatprep.subr.bf16.mxu0 0
        %1446 = vmatpush2.bf16.msra.mxu0 0
        %1447 = vmatprep.subr.bf16.mxu0 0
        %1448 = vmatpush2.bf16.msra.mxu0 0
        %1449 = vmatprep.subr.bf16.mxu0 0
        %1450 = vmatpush2.bf16.msra.mxu0 0
        %1451 = vmatprep.subr.bf16.mxu0 0
        %1452 = vmatpush2.bf16.msra.mxu0 0
        %1453 = vmatprep.subr.bf16.mxu0 0
        %1454 = vmatpush2.bf16.msra.mxu0 0
        %1455 = vmatprep.mubr.bf16.mxu0 0
        %1456 = vmatmul.mubr.bf16.gmra.mxu0 %v1038
        %v1457 = vpop.f32.mrf.mxu0
        %v1458 = vadd.f32 0.0, %v1457
        %v1459 = vpop.f32.mrf.mxu0
        %v1460 = vadd.f32 0.0, %v1459
        %v1461 = vpop.f32.mrf.mxu0
        %v1462 = vadd.f32 0.0, %v1461
        %v1463 = vpop.f32.mrf.mxu0
        %v1464 = vadd.f32 0.0, %v1463
        %1465 = vmatprep.mubr.bf16.mxu0 0
        %1466 = vmatmul.mubr.bf16.gmra.mxu0 %v1039
        %v1467 = vpop.f32.mrf.mxu0
        %v1468 = vadd.f32 0.0, %v1467
        %v1469 = vpop.f32.mrf.mxu0
        %v1470 = vadd.f32 0.0, %v1469
        %v1471 = vpop.f32.mrf.mxu0
        %v1472 = vadd.f32 0.0, %v1471
        %v1473 = vpop.f32.mrf.mxu0
        %v1474 = vadd.f32 0.0, %v1473
        %1475 = vmatprep.mubr.bf16.mxu0 0
        %1476 = vmatmul.mubr.bf16.gmra.mxu0 %v1040
        %v1477 = vpop.f32.mrf.mxu0
        %v1478 = vadd.f32 0.0, %v1477
        %v1479 = vpop.f32.mrf.mxu0
        %v1480 = vadd.f32 0.0, %v1479
        %v1481 = vpop.f32.mrf.mxu0
        %v1482 = vadd.f32 0.0, %v1481
        %v1483 = vpop.f32.mrf.mxu0
        %v1484 = vadd.f32 0.0, %v1483
        %1485 = vmatprep.mubr.bf16.mxu0 0
        %1486 = vmatmul.mubr.bf16.gmra.mxu0 %v1041
        %v1487 = vpop.f32.mrf.mxu0
        %v1488 = vadd.f32 0.0, %v1487
        %v1489 = vpop.f32.mrf.mxu0
        %v1490 = vadd.f32 0.0, %v1489
        %v1491 = vpop.f32.mrf.mxu0
        %v1492 = vadd.f32 0.0, %v1491
        %v1493 = vpop.f32.mrf.mxu0
        %v1494 = vadd.f32 0.0, %v1493
        %1495 = vmatprep.mubr.bf16.mxu0 0
        %1496 = vmatmul.mubr.bf16.gmra.mxu0 %v1042
        %v1497 = vpop.f32.mrf.mxu0
        %v1498 = vadd.f32 0.0, %v1497
        %v1499 = vpop.f32.mrf.mxu0
        %v1500 = vadd.f32 0.0, %v1499
        %v1501 = vpop.f32.mrf.mxu0
        %v1502 = vadd.f32 0.0, %v1501
        %v1503 = vpop.f32.mrf.mxu0
        %v1504 = vadd.f32 0.0, %v1503
        %1505 = vmatprep.mubr.bf16.mxu0 0
        %1506 = vmatmul.mubr.bf16.gmra.mxu0 %v1043
        %v1507 = vpop.f32.mrf.mxu0
        %v1508 = vadd.f32 0.0, %v1507
        %v1509 = vpop.f32.mrf.mxu0
        %v1510 = vadd.f32 0.0, %v1509
        %v1511 = vpop.f32.mrf.mxu0
        %v1512 = vadd.f32 0.0, %v1511
        %v1513 = vpop.f32.mrf.mxu0
        %v1514 = vadd.f32 0.0, %v1513
        %1515 = vmatprep.mubr.bf16.mxu0 0
        %1516 = vmatmul.mubr.bf16.gmra.mxu0 %v1044
        %v1517 = vpop.f32.mrf.mxu0
        %v1518 = vadd.f32 0.0, %v1517
        %v1519 = vpop.f32.mrf.mxu0
        %v1520 = vadd.f32 0.0, %v1519
        %v1521 = vpop.f32.mrf.mxu0
        %v1522 = vadd.f32 0.0, %v1521
        %v1523 = vpop.f32.mrf.mxu0
        %v1524 = vadd.f32 0.0, %v1523
        %1525 = vmatprep.mubr.bf16.mxu0 0
        %1526 = vmatmul.mubr.bf16.gmra.mxu0 %v1045
        %v1527 = vpop.f32.mrf.mxu0
        %v1528 = vadd.f32 0.0, %v1527
        %v1529 = vpop.f32.mrf.mxu0
        %v1530 = vadd.f32 0.0, %v1529
        %v1531 = vpop.f32.mrf.mxu0
        %v1532 = vadd.f32 0.0, %v1531
        %v1533 = vpop.f32.mrf.mxu0
        %v1534 = vadd.f32 0.0, %v1533
        %1535 = vmatprep.mubr.bf16.mxu0 0
        %1536 = vmatmul.mubr.bf16.gmra.mxu0 %v1046
        %v1537 = vpop.f32.mrf.mxu0
        %v1538 = vadd.f32 0.0, %v1537
        %v1539 = vpop.f32.mrf.mxu0
        %v1540 = vadd.f32 0.0, %v1539
        %v1541 = vpop.f32.mrf.mxu0
        %v1542 = vadd.f32 0.0, %v1541
        %v1543 = vpop.f32.mrf.mxu0
        %v1544 = vadd.f32 0.0, %v1543
        %1545 = vmatprep.mubr.bf16.mxu0 0
        %1546 = vmatmul.mubr.bf16.gmra.mxu0 %v1047
        %v1547 = vpop.f32.mrf.mxu0
        %v1548 = vadd.f32 0.0, %v1547
        %v1549 = vpop.f32.mrf.mxu0
        %v1550 = vadd.f32 0.0, %v1549
        %v1551 = vpop.f32.mrf.mxu0
        %v1552 = vadd.f32 0.0, %v1551
        %v1553 = vpop.f32.mrf.mxu0
        %v1554 = vadd.f32 0.0, %v1553
        %1555 = vmatprep.mubr.bf16.mxu0 0
        %1556 = vmatmul.mubr.bf16.gmra.mxu0 %v1048
        %v1557 = vpop.f32.mrf.mxu0
        %v1558 = vadd.f32 0.0, %v1557
        %v1559 = vpop.f32.mrf.mxu0
        %v1560 = vadd.f32 0.0, %v1559
        %v1561 = vpop.f32.mrf.mxu0
        %v1562 = vadd.f32 0.0, %v1561
        %v1563 = vpop.f32.mrf.mxu0
        %v1564 = vadd.f32 0.0, %v1563
        %1565 = vmatprep.mubr.bf16.mxu0 0
        %1566 = vmatmul.mubr.bf16.gmra.mxu0 %v1049
        %v1567 = vpop.f32.mrf.mxu0
        %v1568 = vadd.f32 0.0, %v1567
        %v1569 = vpop.f32.mrf.mxu0
        %v1570 = vadd.f32 0.0, %v1569
        %v1571 = vpop.f32.mrf.mxu0
        %v1572 = vadd.f32 0.0, %v1571
        %v1573 = vpop.f32.mrf.mxu0
        %v1574 = vadd.f32 0.0, %v1573
        %1575 = vmatprep.mubr.bf16.mxu0 0
        %1576 = vmatmul.mubr.bf16.gmra.mxu0 %v1050
        %v1577 = vpop.f32.mrf.mxu0
        %v1578 = vadd.f32 0.0, %v1577
        %v1579 = vpop.f32.mrf.mxu0
        %v1580 = vadd.f32 0.0, %v1579
        %v1581 = vpop.f32.mrf.mxu0
        %v1582 = vadd.f32 0.0, %v1581
        %v1583 = vpop.f32.mrf.mxu0
        %v1584 = vadd.f32 0.0, %v1583
        %1585 = vmatprep.mubr.bf16.mxu0 0
        %1586 = vmatmul.mubr.bf16.gmra.mxu0 %v1051
        %v1587 = vpop.f32.mrf.mxu0
        %v1588 = vadd.f32 0.0, %v1587
        %v1589 = vpop.f32.mrf.mxu0
        %v1590 = vadd.f32 0.0, %v1589
        %v1591 = vpop.f32.mrf.mxu0
        %v1592 = vadd.f32 0.0, %v1591
        %v1593 = vpop.f32.mrf.mxu0
        %v1594 = vadd.f32 0.0, %v1593
        %1595 = vmatprep.mubr.bf16.mxu0 0
        %1596 = vmatmul.mubr.bf16.gmra.mxu0 %v1052
        %v1597 = vpop.f32.mrf.mxu0
        %v1598 = vadd.f32 0.0, %v1597
        %v1599 = vpop.f32.mrf.mxu0
        %v1600 = vadd.f32 0.0, %v1599
        %v1601 = vpop.f32.mrf.mxu0
        %v1602 = vadd.f32 0.0, %v1601
        %v1603 = vpop.f32.mrf.mxu0
        %v1604 = vadd.f32 0.0, %v1603
        %1605 = vmatprep.mubr.bf16.mxu0 0
        %1606 = vmatmul.mubr.bf16.gmra.mxu0 %v1053
        %v1607 = vpop.f32.mrf.mxu0
        %v1608 = vadd.f32 0.0, %v1607
        %v1609 = vpop.f32.mrf.mxu0
        %v1610 = vadd.f32 0.0, %v1609
        %v1611 = vpop.f32.mrf.mxu0
        %v1612 = vadd.f32 0.0, %v1611
        %v1613 = vpop.f32.mrf.mxu0
        %v1614 = vadd.f32 0.0, %v1613
        %1615 = vdwg.mxu0
        %s1616 = scalar_lea.vmem [#allocation13], 1
        %v1617 = vld [vmem:[%s1616] ss:$8 sm:$0x3]
        %s1618 = scalar_lea.vmem [#allocation15], 1
        %v1619 = vld [vmem:[%s1618] ss:$8 sm:$0x3]
        %v1621 = vlaneseq
        %v1622 = vshrl.u32 %v1621, 7
        %v1623 = vsub.s32 0, %v1622
        %v1624 = vrot.slane %v1617, %v1623
        %v1625 = vlaneseq
        %v1626 = vshrl.u32 %v1625, 7
        %v1627 = vsub.s32 1, %v1626
        %v1628 = vrot.slane %v1617, %v1627
        %v1631 = vmul.f32 %v1265, %v1624
        %v1632 = vmul.f32 %v1267, %v1628
        %v1633 = vmul.f32 %v1269, %v1624
        %v1634 = vmul.f32 %v1271, %v1628
        %v1635 = vmul.f32 %v1275, %v1624
        %v1636 = vmul.f32 %v1277, %v1628
        %v1637 = vmul.f32 %v1279, %v1624
        %v1638 = vmul.f32 %v1281, %v1628
        %v1639 = vmul.f32 %v1285, %v1624
        %v1640 = vmul.f32 %v1287, %v1628
        %v1641 = vmul.f32 %v1289, %v1624
        %v1642 = vmul.f32 %v1291, %v1628
        %v1643 = vmul.f32 %v1295, %v1624
        %v1644 = vmul.f32 %v1297, %v1628
        %v1645 = vmul.f32 %v1299, %v1624
        %v1646 = vmul.f32 %v1301, %v1628
        %v1647 = vmul.f32 %v1305, %v1624
        %v1648 = vmul.f32 %v1307, %v1628
        %v1649 = vmul.f32 %v1309, %v1624
        %v1650 = vmul.f32 %v1311, %v1628
        %v1651 = vmul.f32 %v1315, %v1624
        %v1652 = vmul.f32 %v1317, %v1628
        %v1653 = vmul.f32 %v1319, %v1624
        %v1654 = vmul.f32 %v1321, %v1628
        %v1655 = vmul.f32 %v1325, %v1624
        %v1656 = vmul.f32 %v1327, %v1628
        %v1657 = vmul.f32 %v1329, %v1624
        %v1658 = vmul.f32 %v1331, %v1628
        %v1659 = vmul.f32 %v1335, %v1624
        %v1660 = vmul.f32 %v1337, %v1628
        %v1661 = vmul.f32 %v1339, %v1624
        %v1662 = vmul.f32 %v1341, %v1628
        %v1663 = vmul.f32 %v1345, %v1624
        %v1664 = vmul.f32 %v1347, %v1628
        %v1665 = vmul.f32 %v1349, %v1624
        %v1666 = vmul.f32 %v1351, %v1628
        %v1667 = vmul.f32 %v1355, %v1624
        %v1668 = vmul.f32 %v1357, %v1628
        %v1669 = vmul.f32 %v1359, %v1624
        %v1670 = vmul.f32 %v1361, %v1628
        %v1671 = vmul.f32 %v1365, %v1624
        %v1672 = vmul.f32 %v1367, %v1628
        %v1673 = vmul.f32 %v1369, %v1624
        %v1674 = vmul.f32 %v1371, %v1628
        %v1675 = vmul.f32 %v1375, %v1624
        %v1676 = vmul.f32 %v1377, %v1628
        %v1677 = vmul.f32 %v1379, %v1624
        %v1678 = vmul.f32 %v1381, %v1628
        %v1679 = vmul.f32 %v1385, %v1624
        %v1680 = vmul.f32 %v1387, %v1628
        %v1681 = vmul.f32 %v1389, %v1624
        %v1682 = vmul.f32 %v1391, %v1628
        %v1683 = vmul.f32 %v1395, %v1624
        %v1684 = vmul.f32 %v1397, %v1628
        %v1685 = vmul.f32 %v1399, %v1624
        %v1686 = vmul.f32 %v1401, %v1628
        %v1687 = vmul.f32 %v1405, %v1624
        %v1688 = vmul.f32 %v1407, %v1628
        %v1689 = vmul.f32 %v1409, %v1624
        %v1690 = vmul.f32 %v1411, %v1628
        %v1691 = vmul.f32 %v1415, %v1624
        %v1692 = vmul.f32 %v1417, %v1628
        %v1693 = vmul.f32 %v1419, %v1624
        %v1694 = vmul.f32 %v1421, %v1628
        %v1696 = vlaneseq
        %v1697 = vshrl.u32 %v1696, 7
        %v1698 = vsub.s32 0, %v1697
        %v1699 = vrot.slane %v1619, %v1698
        %v1700 = vlaneseq
        %v1701 = vshrl.u32 %v1700, 7
        %v1702 = vsub.s32 1, %v1701
        %v1703 = vrot.slane %v1619, %v1702
        %v1706 = vadd.f32 %v1631, %v1699
        %v1707 = vadd.f32 %v1632, %v1703
        %v1708 = vadd.f32 %v1633, %v1699
        %v1709 = vadd.f32 %v1634, %v1703
        %v1710 = vadd.f32 %v1635, %v1699
        %v1711 = vadd.f32 %v1636, %v1703
        %v1712 = vadd.f32 %v1637, %v1699
        %v1713 = vadd.f32 %v1638, %v1703
        %v1714 = vadd.f32 %v1639, %v1699
        %v1715 = vadd.f32 %v1640, %v1703
        %v1716 = vadd.f32 %v1641, %v1699
        %v1717 = vadd.f32 %v1642, %v1703
        %v1718 = vadd.f32 %v1643, %v1699
        %v1719 = vadd.f32 %v1644, %v1703
        %v1720 = vadd.f32 %v1645, %v1699
        %v1721 = vadd.f32 %v1646, %v1703
        %v1722 = vadd.f32 %v1647, %v1699
        %v1723 = vadd.f32 %v1648, %v1703
        %v1724 = vadd.f32 %v1649, %v1699
        %v1725 = vadd.f32 %v1650, %v1703
        %v1726 = vadd.f32 %v1651, %v1699
        %v1727 = vadd.f32 %v1652, %v1703
        %v1728 = vadd.f32 %v1653, %v1699
        %v1729 = vadd.f32 %v1654, %v1703
        %v1730 = vadd.f32 %v1655, %v1699
        %v1731 = vadd.f32 %v1656, %v1703
        %v1732 = vadd.f32 %v1657, %v1699
        %v1733 = vadd.f32 %v1658, %v1703
        %v1734 = vadd.f32 %v1659, %v1699
        %v1735 = vadd.f32 %v1660, %v1703
        %v1736 = vadd.f32 %v1661, %v1699
        %v1737 = vadd.f32 %v1662, %v1703
        %v1738 = vadd.f32 %v1663, %v1699
        %v1739 = vadd.f32 %v1664, %v1703
        %v1740 = vadd.f32 %v1665, %v1699
        %v1741 = vadd.f32 %v1666, %v1703
        %v1742 = vadd.f32 %v1667, %v1699
        %v1743 = vadd.f32 %v1668, %v1703
        %v1744 = vadd.f32 %v1669, %v1699
        %v1745 = vadd.f32 %v1670, %v1703
        %v1746 = vadd.f32 %v1671, %v1699
        %v1747 = vadd.f32 %v1672, %v1703
        %v1748 = vadd.f32 %v1673, %v1699
        %v1749 = vadd.f32 %v1674, %v1703
        %v1750 = vadd.f32 %v1675, %v1699
        %v1751 = vadd.f32 %v1676, %v1703
        %v1752 = vadd.f32 %v1677, %v1699
        %v1753 = vadd.f32 %v1678, %v1703
        %v1754 = vadd.f32 %v1679, %v1699
        %v1755 = vadd.f32 %v1680, %v1703
        %v1756 = vadd.f32 %v1681, %v1699
        %v1757 = vadd.f32 %v1682, %v1703
        %v1758 = vadd.f32 %v1683, %v1699
        %v1759 = vadd.f32 %v1684, %v1703
        %v1760 = vadd.f32 %v1685, %v1699
        %v1761 = vadd.f32 %v1686, %v1703
        %v1762 = vadd.f32 %v1687, %v1699
        %v1763 = vadd.f32 %v1688, %v1703
        %v1764 = vadd.f32 %v1689, %v1699
        %v1765 = vadd.f32 %v1690, %v1703
        %v1766 = vadd.f32 %v1691, %v1699
        %v1767 = vadd.f32 %v1692, %v1703
        %v1768 = vadd.f32 %v1693, %v1699
        %v1769 = vadd.f32 %v1694, %v1703
        %v1770 = vmax.f32 %v1706, 0.0
        %v1771 = vmax.f32 %v1707, 0.0
        %v1772 = vmax.f32 %v1708, 0.0
        %v1773 = vmax.f32 %v1709, 0.0
        %v1774 = vmax.f32 %v1710, 0.0
        %v1775 = vmax.f32 %v1711, 0.0
        %v1776 = vmax.f32 %v1712, 0.0
        %v1777 = vmax.f32 %v1713, 0.0
        %v1778 = vmax.f32 %v1714, 0.0
        %v1779 = vmax.f32 %v1715, 0.0
        %v1780 = vmax.f32 %v1716, 0.0
        %v1781 = vmax.f32 %v1717, 0.0
        %v1782 = vmax.f32 %v1718, 0.0
        %v1783 = vmax.f32 %v1719, 0.0
        %v1784 = vmax.f32 %v1720, 0.0
        %v1785 = vmax.f32 %v1721, 0.0
        %v1786 = vmax.f32 %v1722, 0.0
        %v1787 = vmax.f32 %v1723, 0.0
        %v1788 = vmax.f32 %v1724, 0.0
        %v1789 = vmax.f32 %v1725, 0.0
        %v1790 = vmax.f32 %v1726, 0.0
        %v1791 = vmax.f32 %v1727, 0.0
        %v1792 = vmax.f32 %v1728, 0.0
        %v1793 = vmax.f32 %v1729, 0.0
        %v1794 = vmax.f32 %v1730, 0.0
        %v1795 = vmax.f32 %v1731, 0.0
        %v1796 = vmax.f32 %v1732, 0.0
        %v1797 = vmax.f32 %v1733, 0.0
        %v1798 = vmax.f32 %v1734, 0.0
        %v1799 = vmax.f32 %v1735, 0.0
        %v1800 = vmax.f32 %v1736, 0.0
        %v1801 = vmax.f32 %v1737, 0.0
        %v1802 = vmax.f32 %v1738, 0.0
        %v1803 = vmax.f32 %v1739, 0.0
        %v1804 = vmax.f32 %v1740, 0.0
        %v1805 = vmax.f32 %v1741, 0.0
        %v1806 = vmax.f32 %v1742, 0.0
        %v1807 = vmax.f32 %v1743, 0.0
        %v1808 = vmax.f32 %v1744, 0.0
        %v1809 = vmax.f32 %v1745, 0.0
        %v1810 = vmax.f32 %v1746, 0.0
        %v1811 = vmax.f32 %v1747, 0.0
        %v1812 = vmax.f32 %v1748, 0.0
        %v1813 = vmax.f32 %v1749, 0.0
        %v1814 = vmax.f32 %v1750, 0.0
        %v1815 = vmax.f32 %v1751, 0.0
        %v1816 = vmax.f32 %v1752, 0.0
        %v1817 = vmax.f32 %v1753, 0.0
        %v1818 = vmax.f32 %v1754, 0.0
        %v1819 = vmax.f32 %v1755, 0.0
        %v1820 = vmax.f32 %v1756, 0.0
        %v1821 = vmax.f32 %v1757, 0.0
        %v1822 = vmax.f32 %v1758, 0.0
        %v1823 = vmax.f32 %v1759, 0.0
        %v1824 = vmax.f32 %v1760, 0.0
        %v1825 = vmax.f32 %v1761, 0.0
        %v1826 = vmax.f32 %v1762, 0.0
        %v1827 = vmax.f32 %v1763, 0.0
        %v1828 = vmax.f32 %v1764, 0.0
        %v1829 = vmax.f32 %v1765, 0.0
        %v1830 = vmax.f32 %v1766, 0.0
        %v1831 = vmax.f32 %v1767, 0.0
        %v1832 = vmax.f32 %v1768, 0.0
        %v1833 = vmax.f32 %v1769, 0.0
        %v1834 = vpack.c.bf16 %v1772, %v1770
        %v1835 = vpack.c.bf16 %v1773, %v1771
        %v1836 = vpack.c.bf16 %v1776, %v1774
        %v1837 = vpack.c.bf16 %v1777, %v1775
        %v1838 = vpack.c.bf16 %v1780, %v1778
        %v1839 = vpack.c.bf16 %v1781, %v1779
        %v1840 = vpack.c.bf16 %v1784, %v1782
        %v1841 = vpack.c.bf16 %v1785, %v1783
        %v1842 = vpack.c.bf16 %v1788, %v1786
        %v1843 = vpack.c.bf16 %v1789, %v1787
        %v1844 = vpack.c.bf16 %v1792, %v1790
        %v1845 = vpack.c.bf16 %v1793, %v1791
        %v1846 = vpack.c.bf16 %v1796, %v1794
        %v1847 = vpack.c.bf16 %v1797, %v1795
        %v1848 = vpack.c.bf16 %v1800, %v1798
        %v1849 = vpack.c.bf16 %v1801, %v1799
        %v1850 = vpack.c.bf16 %v1804, %v1802
        %v1851 = vpack.c.bf16 %v1805, %v1803
        %v1852 = vpack.c.bf16 %v1808, %v1806
        %v1853 = vpack.c.bf16 %v1809, %v1807
        %v1854 = vpack.c.bf16 %v1812, %v1810
        %v1855 = vpack.c.bf16 %v1813, %v1811
        %v1856 = vpack.c.bf16 %v1816, %v1814
        %v1857 = vpack.c.bf16 %v1817, %v1815
        %v1858 = vpack.c.bf16 %v1820, %v1818
        %v1859 = vpack.c.bf16 %v1821, %v1819
        %v1860 = vpack.c.bf16 %v1824, %v1822
        %v1861 = vpack.c.bf16 %v1825, %v1823
        %v1862 = vpack.c.bf16 %v1828, %v1826
        %v1863 = vpack.c.bf16 %v1829, %v1827
        %v1864 = vpack.c.bf16 %v1832, %v1830
        %v1865 = vpack.c.bf16 %v1833, %v1831
        %v1898 = vunpack.c.l.b16 %v1834
        %v1899 = vunpack.c.l.b16 %v1835
        %v1900 = vunpack.c.h.b16 %v1834
        %v1901 = vunpack.c.h.b16 %v1835
        %v1902 = vunpack.c.l.b16 %v1836
        %v1903 = vunpack.c.l.b16 %v1837
        %v1904 = vunpack.c.h.b16 %v1836
        %v1905 = vunpack.c.h.b16 %v1837
        %v1906 = vunpack.c.l.b16 %v1838
        %v1907 = vunpack.c.l.b16 %v1839
        %v1908 = vunpack.c.h.b16 %v1838
        %v1909 = vunpack.c.h.b16 %v1839
        %v1910 = vunpack.c.l.b16 %v1840
        %v1911 = vunpack.c.l.b16 %v1841
        %v1912 = vunpack.c.h.b16 %v1840
        %v1913 = vunpack.c.h.b16 %v1841
        %v1914 = vunpack.c.l.b16 %v1842
        %v1915 = vunpack.c.l.b16 %v1843
        %v1916 = vunpack.c.h.b16 %v1842
        %v1917 = vunpack.c.h.b16 %v1843
        %v1918 = vunpack.c.l.b16 %v1844
        %v1919 = vunpack.c.l.b16 %v1845
        %v1920 = vunpack.c.h.b16 %v1844
        %v1921 = vunpack.c.h.b16 %v1845
        %v1922 = vunpack.c.l.b16 %v1846
        %v1923 = vunpack.c.l.b16 %v1847
        %v1924 = vunpack.c.h.b16 %v1846
        %v1925 = vunpack.c.h.b16 %v1847
        %v1926 = vunpack.c.l.b16 %v1848
        %v1927 = vunpack.c.l.b16 %v1849
        %v1928 = vunpack.c.h.b16 %v1848
        %v1929 = vunpack.c.h.b16 %v1849
        %v1930 = vunpack.c.l.b16 %v1850
        %v1931 = vunpack.c.l.b16 %v1851
        %v1932 = vunpack.c.h.b16 %v1850
        %v1933 = vunpack.c.h.b16 %v1851
        %v1934 = vunpack.c.l.b16 %v1852
        %v1935 = vunpack.c.l.b16 %v1853
        %v1936 = vunpack.c.h.b16 %v1852
        %v1937 = vunpack.c.h.b16 %v1853
        %v1938 = vunpack.c.l.b16 %v1854
        %v1939 = vunpack.c.l.b16 %v1855
        %v1940 = vunpack.c.h.b16 %v1854
        %v1941 = vunpack.c.h.b16 %v1855
        %v1942 = vunpack.c.l.b16 %v1856
        %v1943 = vunpack.c.l.b16 %v1857
        %v1944 = vunpack.c.h.b16 %v1856
        %v1945 = vunpack.c.h.b16 %v1857
        %v1946 = vunpack.c.l.b16 %v1858
        %v1947 = vunpack.c.l.b16 %v1859
        %v1948 = vunpack.c.h.b16 %v1858
        %v1949 = vunpack.c.h.b16 %v1859
        %v1950 = vunpack.c.l.b16 %v1860
        %v1951 = vunpack.c.l.b16 %v1861
        %v1952 = vunpack.c.h.b16 %v1860
        %v1953 = vunpack.c.h.b16 %v1861
        %v1954 = vunpack.c.l.b16 %v1862
        %v1955 = vunpack.c.l.b16 %v1863
        %v1956 = vunpack.c.h.b16 %v1862
        %v1957 = vunpack.c.h.b16 %v1863
        %v1958 = vunpack.c.l.b16 %v1864
        %v1959 = vunpack.c.l.b16 %v1865
        %v1960 = vunpack.c.h.b16 %v1864
        %v1961 = vunpack.c.h.b16 %v1865
        %v1962 = vpack.c.b16 %v1899, %v1898
        %v1963 = vpack.c.b16 %v1901, %v1900
        %v1964 = vpack.c.b16 %v1903, %v1902
        %v1965 = vpack.c.b16 %v1905, %v1904
        %v1966 = vpack.c.b16 %v1907, %v1906
        %v1967 = vpack.c.b16 %v1909, %v1908
        %v1968 = vpack.c.b16 %v1911, %v1910
        %v1969 = vpack.c.b16 %v1913, %v1912
        %v1970 = vpack.c.b16 %v1915, %v1914
        %v1971 = vpack.c.b16 %v1917, %v1916
        %v1972 = vpack.c.b16 %v1919, %v1918
        %v1973 = vpack.c.b16 %v1921, %v1920
        %v1974 = vpack.c.b16 %v1923, %v1922
        %v1975 = vpack.c.b16 %v1925, %v1924
        %v1976 = vpack.c.b16 %v1927, %v1926
        %v1977 = vpack.c.b16 %v1929, %v1928
        %v1978 = vpack.c.b16 %v1931, %v1930
        %v1979 = vpack.c.b16 %v1933, %v1932
        %v1980 = vpack.c.b16 %v1935, %v1934
        %v1981 = vpack.c.b16 %v1937, %v1936
        %v1982 = vpack.c.b16 %v1939, %v1938
        %v1983 = vpack.c.b16 %v1941, %v1940
        %v1984 = vpack.c.b16 %v1943, %v1942
        %v1985 = vpack.c.b16 %v1945, %v1944
        %v1986 = vpack.c.b16 %v1947, %v1946
        %v1987 = vpack.c.b16 %v1949, %v1948
        %v1988 = vpack.c.b16 %v1951, %v1950
        %v1989 = vpack.c.b16 %v1953, %v1952
        %v1990 = vpack.c.b16 %v1955, %v1954
        %v1991 = vpack.c.b16 %v1957, %v1956
        %v1992 = vpack.c.b16 %v1959, %v1958
        %v1993 = vpack.c.b16 %v1961, %v1960
        %2026 = vst [vmem:[%s379 + $0x8] sm:$0xff] %v1962
        %2027 = vst [vmem:[%s379 + $0x30] sm:$0xff] %v1963
        %2028 = vst [vmem:[%s379 + $0x58] sm:$0xff] %v1964
        %2029 = vst [vmem:[%s379 + $0x80] sm:$0xff] %v1965
        %2030 = vst [vmem:[%s379 + $0xa8] sm:$0xff] %v1966
        %2031 = vst [vmem:[%s379 + $0xd0] sm:$0xff] %v1967
        %2032 = vst [vmem:[%s379 + $0xf8] sm:$0xff] %v1968
        %2033 = vst [vmem:[%s379 + $0x120] sm:$0xff] %v1969
        %2034 = vst [vmem:[%s379 + $0x148] sm:$0xff] %v1970
        %2035 = vst [vmem:[%s379 + $0x170] sm:$0xff] %v1971
        %2036 = vst [vmem:[%s379 + $0x198] sm:$0xff] %v1972
        %2037 = vst [vmem:[%s379 + $0x1c0] sm:$0xff] %v1973
        %2038 = vst [vmem:[%s379 + $0x1e8] sm:$0xff] %v1974
        %2039 = vst [vmem:[%s379 + $0x210] sm:$0xff] %v1975
        %2040 = vst [vmem:[%s379 + $0x238] sm:$0xff] %v1976
        %2041 = vst [vmem:[%s379 + $0x260] sm:$0xff] %v1977
        %2042 = vst [vmem:[%s379 + $0x288] sm:$0xff] %v1978
        %2043 = vst [vmem:[%s379 + $0x2b0] sm:$0xff] %v1979
        %2044 = vst [vmem:[%s379 + $0x2d8] sm:$0xff] %v1980
        %2045 = vst [vmem:[%s379 + $0x300] sm:$0xff] %v1981
        %2046 = vst [vmem:[%s379 + $0x328] sm:$0xff] %v1982
        %2047 = vst [vmem:[%s379 + $0x350] sm:$0xff] %v1983
        %2048 = vst [vmem:[%s379 + $0x378] sm:$0xff] %v1984
        %2049 = vst [vmem:[%s379 + $0x3a0] sm:$0xff] %v1985
        %2050 = vst [vmem:[%s379 + $0x3c8] sm:$0xff] %v1986
        %2051 = vst [vmem:[%s379 + $0x3f0] sm:$0xff] %v1987
        %2052 = vst [vmem:[%s379 + $0x418] sm:$0xff] %v1988
        %2053 = vst [vmem:[%s379 + $0x440] sm:$0xff] %v1989
        %2054 = vst [vmem:[%s379 + $0x468] sm:$0xff] %v1990
        %2055 = vst [vmem:[%s379 + $0x490] sm:$0xff] %v1991
        %2056 = vst [vmem:[%s379 + $0x4b8] sm:$0xff] %v1992
        %2057 = vst [vmem:[%s379 + $0x4e0] sm:$0xff] %v1993
        %s2058 = scalar_lea.vmem [#allocation2], 144
        %v2059 = vld [vmem:[%s2058 + $0x4] sm:$0xe]
        %v2060 = vld [vmem:[%s2058 + $0x8] sm:$0xf]
        %v2061 = vld [vmem:[%s2058 + $0xc] sm:$0x1]
        %v2062 = vld [vmem:[%s2058 + $0x1c] sm:$0xe]
        %v2063 = vld [vmem:[%s2058 + $0x20] sm:$0xf]
        %v2064 = vld [vmem:[%s2058 + $0x24] sm:$0x1]
        %v2065 = vld [vmem:[%s2058 + $0x34] sm:$0xe]
        %v2066 = vld [vmem:[%s2058 + $0x38] sm:$0xf]
        %v2067 = vld [vmem:[%s2058 + $0x3c] sm:$0x1]
        %v2068 = vld [vmem:[%s2058 + $0x4c] sm:$0xe]
        %v2069 = vld [vmem:[%s2058 + $0x50] sm:$0xf]
        %v2070 = vld [vmem:[%s2058 + $0x54] sm:$0x1]
        %v2071 = vld [vmem:[%s2058 + $0x64] sm:$0xe]
        %v2072 = vld [vmem:[%s2058 + $0x68] sm:$0xf]
        %v2073 = vld [vmem:[%s2058 + $0x6c] sm:$0x1]
        %v2074 = vld [vmem:[%s2058 + $0x7c] sm:$0xe]
        %v2075 = vld [vmem:[%s2058 + $0x80] sm:$0xf]
        %v2076 = vld [vmem:[%s2058 + $0x84] sm:$0x1]
        %v2077 = vld [vmem:[%s2058 + $0x94] sm:$0xe]
        %v2078 = vld [vmem:[%s2058 + $0x98] sm:$0xf]
        %v2079 = vld [vmem:[%s2058 + $0x9c] sm:$0x1]
        %v2080 = vld [vmem:[%s2058 + $0xac] sm:$0xe]
        %v2081 = vld [vmem:[%s2058 + $0xb0] sm:$0xf]
        %v2082 = vld [vmem:[%s2058 + $0xb4] sm:$0x1]
        %v2083 = vld [vmem:[%s2058 + $0xc4] sm:$0xe]
        %v2084 = vld [vmem:[%s2058 + $0xc8] sm:$0xf]
        %v2085 = vld [vmem:[%s2058 + $0xcc] sm:$0x1]
        %v2086 = vld [vmem:[%s2058 + $0xdc] sm:$0xe]
        %v2087 = vld [vmem:[%s2058 + $0xe0] sm:$0xf]
        %v2088 = vld [vmem:[%s2058 + $0xe4] sm:$0x1]
        %v2089 = vld [vmem:[%s2058 + $0xf4] sm:$0xe]
        %v2090 = vld [vmem:[%s2058 + $0xf8] sm:$0xf]
        %v2091 = vld [vmem:[%s2058 + $0xfc] sm:$0x1]
        %v2092 = vld [vmem:[%s2058 + $0x10c] sm:$0xe]
        %v2093 = vld [vmem:[%s2058 + $0x110] sm:$0xf]
        %v2094 = vld [vmem:[%s2058 + $0x114] sm:$0x1]
        %v2095 = vld [vmem:[%s2058 + $0x124] sm:$0xe]
        %v2096 = vld [vmem:[%s2058 + $0x128] sm:$0xf]
        %v2097 = vld [vmem:[%s2058 + $0x12c] sm:$0x1]
        %v2098 = vld [vmem:[%s2058 + $0x13c] sm:$0xe]
        %v2099 = vld [vmem:[%s2058 + $0x140] sm:$0xf]
        %v2100 = vld [vmem:[%s2058 + $0x144] sm:$0x1]
        %v2101 = vld [vmem:[%s2058 + $0x154] sm:$0xe]
        %v2102 = vld [vmem:[%s2058 + $0x158] sm:$0xf]
        %v2103 = vld [vmem:[%s2058 + $0x15c] sm:$0x1]
        %v2104 = vld [vmem:[%s2058 + $0x16c] sm:$0xe]
        %v2105 = vld [vmem:[%s2058 + $0x170] sm:$0xf]
        %v2106 = vld [vmem:[%s2058 + $0x174] sm:$0x1]
        %v2107 = vld [vmem:[%s2058 + $0x184] sm:$0xe]
        %v2108 = vld [vmem:[%s2058 + $0x188] sm:$0xf]
        %v2109 = vld [vmem:[%s2058 + $0x18c] sm:$0x1]
        %v2110 = vld [vmem:[%s2058 + $0x19c] sm:$0xe]
        %v2111 = vld [vmem:[%s2058 + $0x1a0] sm:$0xf]
        %v2112 = vld [vmem:[%s2058 + $0x1a4] sm:$0x1]
        %v2113 = vld [vmem:[%s2058 + $0x1b4] sm:$0xe]
        %v2114 = vld [vmem:[%s2058 + $0x1b8] sm:$0xf]
        %v2115 = vld [vmem:[%s2058 + $0x1bc] sm:$0x1]
        %v2116 = vld [vmem:[%s2058 + $0x1cc] sm:$0xe]
        %v2117 = vld [vmem:[%s2058 + $0x1d0] sm:$0xf]
        %v2118 = vld [vmem:[%s2058 + $0x1d4] sm:$0x1]
        %v2119 = vld [vmem:[%s2058 + $0x1e4] sm:$0xe]
        %v2120 = vld [vmem:[%s2058 + $0x1e8] sm:$0xf]
        %v2121 = vld [vmem:[%s2058 + $0x1ec] sm:$0x1]
        %v2122 = vld [vmem:[%s2058 + $0x1fc] sm:$0xe]
        %v2123 = vld [vmem:[%s2058 + $0x200] sm:$0xf]
        %v2124 = vld [vmem:[%s2058 + $0x204] sm:$0x1]
        %v2125 = vld [vmem:[%s2058 + $0x214] sm:$0xe]
        %v2126 = vld [vmem:[%s2058 + $0x218] sm:$0xf]
        %v2127 = vld [vmem:[%s2058 + $0x21c] sm:$0x1]
        %v2128 = vld [vmem:[%s2058 + $0x22c] sm:$0xe]
        %v2129 = vld [vmem:[%s2058 + $0x230] sm:$0xf]
        %v2130 = vld [vmem:[%s2058 + $0x234] sm:$0x1]
        %v2131 = vld [vmem:[%s2058 + $0x244] sm:$0xe]
        %v2132 = vld [vmem:[%s2058 + $0x248] sm:$0xf]
        %v2133 = vld [vmem:[%s2058 + $0x24c] sm:$0x1]
        %v2134 = vld [vmem:[%s2058 + $0x25c] sm:$0xe]
        %v2135 = vld [vmem:[%s2058 + $0x260] sm:$0xf]
        %v2136 = vld [vmem:[%s2058 + $0x264] sm:$0x1]
        %v2137 = vld [vmem:[%s2058 + $0x274] sm:$0xe]
        %v2138 = vld [vmem:[%s2058 + $0x278] sm:$0xf]
        %v2139 = vld [vmem:[%s2058 + $0x27c] sm:$0x1]
        %v2140 = vld [vmem:[%s2058 + $0x28c] sm:$0xe]
        %v2141 = vld [vmem:[%s2058 + $0x290] sm:$0xf]
        %v2142 = vld [vmem:[%s2058 + $0x294] sm:$0x1]
        %vm2191 = vcmask 1042432
        %vm2192 = vcmask 1046532
        %vm2193 = vmor %vm2191, %vm2192
        %v2194 = vrot.slane %v2059, 5
        %v2195 = vrot.slane %v2194, 4
        %v2196 = vrot.slane %v2060, 5
        %v2197 = vsel %vm2193, %v2195, %v2196
        %v2198 = vrot.slane %v2196, 4
        %v2199 = vrot.slane %v2061, 5
        %v2200 = vsel %vm2193, %v2198, %v2199
        %v2201 = vrot.slane %v2062, 5
        %v2202 = vrot.slane %v2201, 4
        %v2203 = vrot.slane %v2063, 5
        %v2204 = vsel %vm2193, %v2202, %v2203
        %v2205 = vrot.slane %v2203, 4
        %v2206 = vrot.slane %v2064, 5
        %v2207 = vsel %vm2193, %v2205, %v2206
        %v2208 = vrot.slane %v2065, 5
        %v2209 = vrot.slane %v2208, 4
        %v2210 = vrot.slane %v2066, 5
        %v2211 = vsel %vm2193, %v2209, %v2210
        %v2212 = vrot.slane %v2210, 4
        %v2213 = vrot.slane %v2067, 5
        %v2214 = vsel %vm2193, %v2212, %v2213
        %v2215 = vrot.slane %v2068, 5
        %v2216 = vrot.slane %v2215, 4
        %v2217 = vrot.slane %v2069, 5
        %v2218 = vsel %vm2193, %v2216, %v2217
        %v2219 = vrot.slane %v2217, 4
        %v2220 = vrot.slane %v2070, 5
        %v2221 = vsel %vm2193, %v2219, %v2220
        %v2222 = vrot.slane %v2071, 5
        %v2223 = vrot.slane %v2222, 4
        %v2224 = vrot.slane %v2072, 5
        %v2225 = vsel %vm2193, %v2223, %v2224
        %v2226 = vrot.slane %v2224, 4
        %v2227 = vrot.slane %v2073, 5
        %v2228 = vsel %vm2193, %v2226, %v2227
        %v2229 = vrot.slane %v2074, 5
        %v2230 = vrot.slane %v2229, 4
        %v2231 = vrot.slane %v2075, 5
        %v2232 = vsel %vm2193, %v2230, %v2231
        %v2233 = vrot.slane %v2231, 4
        %v2234 = vrot.slane %v2076, 5
        %v2235 = vsel %vm2193, %v2233, %v2234
        %v2236 = vrot.slane %v2077, 5
        %v2237 = vrot.slane %v2236, 4
        %v2238 = vrot.slane %v2078, 5
        %v2239 = vsel %vm2193, %v2237, %v2238
        %v2240 = vrot.slane %v2238, 4
        %v2241 = vrot.slane %v2079, 5
        %v2242 = vsel %vm2193, %v2240, %v2241
        %v2243 = vrot.slane %v2080, 5
        %v2244 = vrot.slane %v2243, 4
        %v2245 = vrot.slane %v2081, 5
        %v2246 = vsel %vm2193, %v2244, %v2245
        %v2247 = vrot.slane %v2245, 4
        %v2248 = vrot.slane %v2082, 5
        %v2249 = vsel %vm2193, %v2247, %v2248
        %v2250 = vrot.slane %v2083, 5
        %v2251 = vrot.slane %v2250, 4
        %v2252 = vrot.slane %v2084, 5
        %v2253 = vsel %vm2193, %v2251, %v2252
        %v2254 = vrot.slane %v2252, 4
        %v2255 = vrot.slane %v2085, 5
        %v2256 = vsel %vm2193, %v2254, %v2255
        %v2257 = vrot.slane %v2086, 5
        %v2258 = vrot.slane %v2257, 4
        %v2259 = vrot.slane %v2087, 5
        %v2260 = vsel %vm2193, %v2258, %v2259
        %v2261 = vrot.slane %v2259, 4
        %v2262 = vrot.slane %v2088, 5
        %v2263 = vsel %vm2193, %v2261, %v2262
        %v2264 = vrot.slane %v2089, 5
        %v2265 = vrot.slane %v2264, 4
        %v2266 = vrot.slane %v2090, 5
        %v2267 = vsel %vm2193, %v2265, %v2266
        %v2268 = vrot.slane %v2266, 4
        %v2269 = vrot.slane %v2091, 5
        %v2270 = vsel %vm2193, %v2268, %v2269
        %v2271 = vrot.slane %v2092, 5
        %v2272 = vrot.slane %v2271, 4
        %v2273 = vrot.slane %v2093, 5
        %v2274 = vsel %vm2193, %v2272, %v2273
        %v2275 = vrot.slane %v2273, 4
        %v2276 = vrot.slane %v2094, 5
        %v2277 = vsel %vm2193, %v2275, %v2276
        %v2278 = vrot.slane %v2095, 5
        %v2279 = vrot.slane %v2278, 4
        %v2280 = vrot.slane %v2096, 5
        %v2281 = vsel %vm2193, %v2279, %v2280
        %v2282 = vrot.slane %v2280, 4
        %v2283 = vrot.slane %v2097, 5
        %v2284 = vsel %vm2193, %v2282, %v2283
        %v2285 = vrot.slane %v2098, 5
        %v2286 = vrot.slane %v2285, 4
        %v2287 = vrot.slane %v2099, 5
        %v2288 = vsel %vm2193, %v2286, %v2287
        %v2289 = vrot.slane %v2287, 4
        %v2290 = vrot.slane %v2100, 5
        %v2291 = vsel %vm2193, %v2289, %v2290
        %v2292 = vrot.slane %v2101, 5
        %v2293 = vrot.slane %v2292, 4
        %v2294 = vrot.slane %v2102, 5
        %v2295 = vsel %vm2193, %v2293, %v2294
        %v2296 = vrot.slane %v2294, 4
        %v2297 = vrot.slane %v2103, 5
        %v2298 = vsel %vm2193, %v2296, %v2297
        %v2299 = vrot.slane %v2104, 5
        %v2300 = vrot.slane %v2299, 4
        %v2301 = vrot.slane %v2105, 5
        %v2302 = vsel %vm2193, %v2300, %v2301
        %v2303 = vrot.slane %v2301, 4
        %v2304 = vrot.slane %v2106, 5
        %v2305 = vsel %vm2193, %v2303, %v2304
        %2338 = vst [vmem:[#allocation3] sm:$0xf] %v2197
        %2339 = vst [vmem:[#allocation3 + $0x24] sm:$0xf] %v2200
        %2340 = vst [vmem:[#allocation3 + $0x48] sm:$0xf] %v2204
        %2341 = vst [vmem:[#allocation3 + $0x6c] sm:$0xf] %v2207
        %2342 = vst [vmem:[#allocation3 + $0x90] sm:$0xf] %v2211
        %2343 = vst [vmem:[#allocation3 + $0xb4] sm:$0xf] %v2214
        %2344 = vst [vmem:[#allocation3 + $0xd8] sm:$0xf] %v2218
        %2345 = vst [vmem:[#allocation3 + $0xfc] sm:$0xf] %v2221
        %2346 = vst [vmem:[#allocation3 + $0x120] sm:$0xf] %v2225
        %2347 = vst [vmem:[#allocation3 + $0x144] sm:$0xf] %v2228
        %2348 = vst [vmem:[#allocation3 + $0x168] sm:$0xf] %v2232
        %2349 = vst [vmem:[#allocation3 + $0x18c] sm:$0xf] %v2235
        %2350 = vst [vmem:[#allocation3 + $0x1b0] sm:$0xf] %v2239
        %2351 = vst [vmem:[#allocation3 + $0x1d4] sm:$0xf] %v2242
        %2352 = vst [vmem:[#allocation3 + $0x1f8] sm:$0xf] %v2246
        %2353 = vst [vmem:[#allocation3 + $0x21c] sm:$0xf] %v2249
        %2354 = vst [vmem:[#allocation3 + $0x240] sm:$0xf] %v2253
        %2355 = vst [vmem:[#allocation3 + $0x264] sm:$0xf] %v2256
        %2356 = vst [vmem:[#allocation3 + $0x288] sm:$0xf] %v2260
        %2357 = vst [vmem:[#allocation3 + $0x2ac] sm:$0xf] %v2263
        %2358 = vst [vmem:[#allocation3 + $0x2d0] sm:$0xf] %v2267
        %2359 = vst [vmem:[#allocation3 + $0x2f4] sm:$0xf] %v2270
        %2360 = vst [vmem:[#allocation3 + $0x318] sm:$0xf] %v2274
        %2361 = vst [vmem:[#allocation3 + $0x33c] sm:$0xf] %v2277
        %2362 = vst [vmem:[#allocation3 + $0x360] sm:$0xf] %v2281
        %2363 = vst [vmem:[#allocation3 + $0x384] sm:$0xf] %v2284
        %2364 = vst [vmem:[#allocation3 + $0x3a8] sm:$0xf] %v2288
        %2365 = vst [vmem:[#allocation3 + $0x3cc] sm:$0xf] %v2291
        %2366 = vst [vmem:[#allocation3 + $0x3f0] sm:$0xf] %v2295
        %2367 = vst [vmem:[#allocation3 + $0x414] sm:$0xf] %v2298
        %2368 = vst [vmem:[#allocation3 + $0x438] sm:$0xf] %v2302
        %2369 = vst [vmem:[#allocation3 + $0x45c] sm:$0xf] %v2305
        %v2388 = vrot.slane %v2107, 5
        %v2389 = vrot.slane %v2388, 4
        %v2390 = vrot.slane %v2108, 5
        %v2391 = vsel %vm2193, %v2389, %v2390
        %v2392 = vrot.slane %v2390, 4
        %v2393 = vrot.slane %v2109, 5
        %v2394 = vsel %vm2193, %v2392, %v2393
        %v2395 = vrot.slane %v2110, 5
        %v2396 = vrot.slane %v2395, 4
        %v2397 = vrot.slane %v2111, 5
        %v2398 = vsel %vm2193, %v2396, %v2397
        %v2399 = vrot.slane %v2397, 4
        %v2400 = vrot.slane %v2112, 5
        %v2401 = vsel %vm2193, %v2399, %v2400
        %v2402 = vrot.slane %v2113, 5
        %v2403 = vrot.slane %v2402, 4
        %v2404 = vrot.slane %v2114, 5
        %v2405 = vsel %vm2193, %v2403, %v2404
        %v2406 = vrot.slane %v2404, 4
        %v2407 = vrot.slane %v2115, 5
        %v2408 = vsel %vm2193, %v2406, %v2407
        %v2409 = vrot.slane %v2116, 5
        %v2410 = vrot.slane %v2409, 4
        %v2411 = vrot.slane %v2117, 5
        %v2412 = vsel %vm2193, %v2410, %v2411
        %v2413 = vrot.slane %v2411, 4
        %v2414 = vrot.slane %v2118, 5
        %v2415 = vsel %vm2193, %v2413, %v2414
        %v2416 = vrot.slane %v2119, 5
        %v2417 = vrot.slane %v2416, 4
        %v2418 = vrot.slane %v2120, 5
        %v2419 = vsel %vm2193, %v2417, %v2418
        %v2420 = vrot.slane %v2418, 4
        %v2421 = vrot.slane %v2121, 5
        %v2422 = vsel %vm2193, %v2420, %v2421
        %v2423 = vrot.slane %v2122, 5
        %v2424 = vrot.slane %v2423, 4
        %v2425 = vrot.slane %v2123, 5
        %v2426 = vsel %vm2193, %v2424, %v2425
        %v2427 = vrot.slane %v2425, 4
        %v2428 = vrot.slane %v2124, 5
        %v2429 = vsel %vm2193, %v2427, %v2428
        %2442 = vst [vmem:[#allocation3 + $0x4] sm:$0xf] %v2239
        %2443 = vst [vmem:[#allocation3 + $0x28] sm:$0xf] %v2242
        %2444 = vst [vmem:[#allocation3 + $0x4c] sm:$0xf] %v2246
        %2445 = vst [vmem:[#allocation3 + $0x70] sm:$0xf] %v2249
        %2446 = vst [vmem:[#allocation3 + $0x94] sm:$0xf] %v2253
        %2447 = vst [vmem:[#allocation3 + $0xb8] sm:$0xf] %v2256
        %2448 = vst [vmem:[#allocation3 + $0xdc] sm:$0xf] %v2260
        %2449 = vst [vmem:[#allocation3 + $0x100] sm:$0xf] %v2263
        %2450 = vst [vmem:[#allocation3 + $0x124] sm:$0xf] %v2267
        %2451 = vst [vmem:[#allocation3 + $0x148] sm:$0xf] %v2270
        %2452 = vst [vmem:[#allocation3 + $0x16c] sm:$0xf] %v2274
        %2453 = vst [vmem:[#allocation3 + $0x190] sm:$0xf] %v2277
        %2454 = vst [vmem:[#allocation3 + $0x1b4] sm:$0xf] %v2281
        %2455 = vst [vmem:[#allocation3 + $0x1d8] sm:$0xf] %v2284
        %2456 = vst [vmem:[#allocation3 + $0x1fc] sm:$0xf] %v2288
        %2457 = vst [vmem:[#allocation3 + $0x220] sm:$0xf] %v2291
        %2458 = vst [vmem:[#allocation3 + $0x244] sm:$0xf] %v2295
        %2459 = vst [vmem:[#allocation3 + $0x268] sm:$0xf] %v2298
        %2460 = vst [vmem:[#allocation3 + $0x28c] sm:$0xf] %v2302
        %2461 = vst [vmem:[#allocation3 + $0x2b0] sm:$0xf] %v2305
        %2462 = vst [vmem:[#allocation3 + $0x2d4] sm:$0xf] %v2391
        %2463 = vst [vmem:[#allocation3 + $0x2f8] sm:$0xf] %v2394
        %2464 = vst [vmem:[#allocation3 + $0x31c] sm:$0xf] %v2398
        %2465 = vst [vmem:[#allocation3 + $0x340] sm:$0xf] %v2401
        %2466 = vst [vmem:[#allocation3 + $0x364] sm:$0xf] %v2405
        %2467 = vst [vmem:[#allocation3 + $0x388] sm:$0xf] %v2408
        %2468 = vst [vmem:[#allocation3 + $0x3ac] sm:$0xf] %v2412
        %2469 = vst [vmem:[#allocation3 + $0x3d0] sm:$0xf] %v2415
        %2470 = vst [vmem:[#allocation3 + $0x3f4] sm:$0xf] %v2419
        %2471 = vst [vmem:[#allocation3 + $0x418] sm:$0xf] %v2422
        %2472 = vst [vmem:[#allocation3 + $0x43c] sm:$0xf] %v2426
        %2473 = vst [vmem:[#allocation3 + $0x460] sm:$0xf] %v2429
        %v2492 = vrot.slane %v2125, 5
        %v2493 = vrot.slane %v2492, 4
        %v2494 = vrot.slane %v2126, 5
        %v2495 = vsel %vm2193, %v2493, %v2494
        %v2496 = vrot.slane %v2494, 4
        %v2497 = vrot.slane %v2127, 5
        %v2498 = vsel %vm2193, %v2496, %v2497
        %v2499 = vrot.slane %v2128, 5
        %v2500 = vrot.slane %v2499, 4
        %v2501 = vrot.slane %v2129, 5
        %v2502 = vsel %vm2193, %v2500, %v2501
        %v2503 = vrot.slane %v2501, 4
        %v2504 = vrot.slane %v2130, 5
        %v2505 = vsel %vm2193, %v2503, %v2504
        %v2506 = vrot.slane %v2131, 5
        %v2507 = vrot.slane %v2506, 4
        %v2508 = vrot.slane %v2132, 5
        %v2509 = vsel %vm2193, %v2507, %v2508
        %v2510 = vrot.slane %v2508, 4
        %v2511 = vrot.slane %v2133, 5
        %v2512 = vsel %vm2193, %v2510, %v2511
        %v2513 = vrot.slane %v2134, 5
        %v2514 = vrot.slane %v2513, 4
        %v2515 = vrot.slane %v2135, 5
        %v2516 = vsel %vm2193, %v2514, %v2515
        %v2517 = vrot.slane %v2515, 4
        %v2518 = vrot.slane %v2136, 5
        %v2519 = vsel %vm2193, %v2517, %v2518
        %v2520 = vrot.slane %v2137, 5
        %v2521 = vrot.slane %v2520, 4
        %v2522 = vrot.slane %v2138, 5
        %v2523 = vsel %vm2193, %v2521, %v2522
        %v2524 = vrot.slane %v2522, 4
        %v2525 = vrot.slane %v2139, 5
        %v2526 = vsel %vm2193, %v2524, %v2525
        %v2527 = vrot.slane %v2140, 5
        %v2528 = vrot.slane %v2527, 4
        %v2529 = vrot.slane %v2141, 5
        %v2530 = vsel %vm2193, %v2528, %v2529
        %v2531 = vrot.slane %v2529, 4
        %v2532 = vrot.slane %v2142, 5
        %v2533 = vsel %vm2193, %v2531, %v2532
        %2546 = vst [vmem:[#allocation3 + $0x8] sm:$0xf] %v2281
        %2547 = vst [vmem:[#allocation3 + $0x2c] sm:$0xf] %v2284
        %2548 = vst [vmem:[#allocation3 + $0x50] sm:$0xf] %v2288
        %2549 = vst [vmem:[#allocation3 + $0x74] sm:$0xf] %v2291
        %2550 = vst [vmem:[#allocation3 + $0x98] sm:$0xf] %v2295
        %2551 = vst [vmem:[#allocation3 + $0xbc] sm:$0xf] %v2298
        %2552 = vst [vmem:[#allocation3 + $0xe0] sm:$0xf] %v2302
        %2553 = vst [vmem:[#allocation3 + $0x104] sm:$0xf] %v2305
        %2554 = vst [vmem:[#allocation3 + $0x128] sm:$0xf] %v2391
        %2555 = vst [vmem:[#allocation3 + $0x14c] sm:$0xf] %v2394
        %2556 = vst [vmem:[#allocation3 + $0x170] sm:$0xf] %v2398
        %2557 = vst [vmem:[#allocation3 + $0x194] sm:$0xf] %v2401
        %2558 = vst [vmem:[#allocation3 + $0x1b8] sm:$0xf] %v2405
        %2559 = vst [vmem:[#allocation3 + $0x1dc] sm:$0xf] %v2408
        %2560 = vst [vmem:[#allocation3 + $0x200] sm:$0xf] %v2412
        %2561 = vst [vmem:[#allocation3 + $0x224] sm:$0xf] %v2415
        %2562 = vst [vmem:[#allocation3 + $0x248] sm:$0xf] %v2419
        %2563 = vst [vmem:[#allocation3 + $0x26c] sm:$0xf] %v2422
        %2564 = vst [vmem:[#allocation3 + $0x290] sm:$0xf] %v2426
        %2565 = vst [vmem:[#allocation3 + $0x2b4] sm:$0xf] %v2429
        %2566 = vst [vmem:[#allocation3 + $0x2d8] sm:$0xf] %v2495
        %2567 = vst [vmem:[#allocation3 + $0x2fc] sm:$0xf] %v2498
        %2568 = vst [vmem:[#allocation3 + $0x320] sm:$0xf] %v2502
        %2569 = vst [vmem:[#allocation3 + $0x344] sm:$0xf] %v2505
        %2570 = vst [vmem:[#allocation3 + $0x368] sm:$0xf] %v2509
        %2571 = vst [vmem:[#allocation3 + $0x38c] sm:$0xf] %v2512
        %2572 = vst [vmem:[#allocation3 + $0x3b0] sm:$0xf] %v2516
        %2573 = vst [vmem:[#allocation3 + $0x3d4] sm:$0xf] %v2519
        %2574 = vst [vmem:[#allocation3 + $0x3f8] sm:$0xf] %v2523
        %2575 = vst [vmem:[#allocation3 + $0x41c] sm:$0xf] %v2526
        %2576 = vst [vmem:[#allocation3 + $0x440] sm:$0xf] %v2530
        %2577 = vst [vmem:[#allocation3 + $0x464] sm:$0xf] %v2533
        %v2578 = vld [vmem:[%s2058 + $0x8] sm:$0xf]
        %v2579 = vld [vmem:[%s2058 + $0xc] sm:$0xf]
        %v2580 = vld [vmem:[%s2058 + $0x20] sm:$0xf]
        %v2581 = vld [vmem:[%s2058 + $0x24] sm:$0xf]
        %v2582 = vld [vmem:[%s2058 + $0x38] sm:$0xf]
        %v2583 = vld [vmem:[%s2058 + $0x3c] sm:$0xf]
        %v2584 = vld [vmem:[%s2058 + $0x50] sm:$0xf]
        %v2585 = vld [vmem:[%s2058 + $0x54] sm:$0xf]
        %v2586 = vld [vmem:[%s2058 + $0x68] sm:$0xf]
        %v2587 = vld [vmem:[%s2058 + $0x6c] sm:$0xf]
        %v2588 = vld [vmem:[%s2058 + $0x80] sm:$0xf]
        %v2589 = vld [vmem:[%s2058 + $0x84] sm:$0xf]
        %v2590 = vld [vmem:[%s2058 + $0x98] sm:$0xf]
        %v2591 = vld [vmem:[%s2058 + $0x9c] sm:$0xf]
        %v2592 = vld [vmem:[%s2058 + $0xb0] sm:$0xf]
        %v2593 = vld [vmem:[%s2058 + $0xb4] sm:$0xf]
        %v2594 = vld [vmem:[%s2058 + $0xc8] sm:$0xf]
        %v2595 = vld [vmem:[%s2058 + $0xcc] sm:$0xf]
        %v2596 = vld [vmem:[%s2058 + $0xe0] sm:$0xf]
        %v2597 = vld [vmem:[%s2058 + $0xe4] sm:$0xf]
        %v2598 = vld [vmem:[%s2058 + $0xf8] sm:$0xf]
        %v2599 = vld [vmem:[%s2058 + $0xfc] sm:$0xf]
        %v2600 = vld [vmem:[%s2058 + $0x110] sm:$0xf]
        %v2601 = vld [vmem:[%s2058 + $0x114] sm:$0xf]
        %v2602 = vld [vmem:[%s2058 + $0x128] sm:$0xf]
        %v2603 = vld [vmem:[%s2058 + $0x12c] sm:$0xf]
        %v2604 = vld [vmem:[%s2058 + $0x140] sm:$0xf]
        %v2605 = vld [vmem:[%s2058 + $0x144] sm:$0xf]
        %v2606 = vld [vmem:[%s2058 + $0x158] sm:$0xf]
        %v2607 = vld [vmem:[%s2058 + $0x15c] sm:$0xf]
        %v2608 = vld [vmem:[%s2058 + $0x170] sm:$0xf]
        %v2609 = vld [vmem:[%s2058 + $0x174] sm:$0xf]
        %v2610 = vld [vmem:[%s2058 + $0x188] sm:$0xf]
        %v2611 = vld [vmem:[%s2058 + $0x18c] sm:$0xf]
        %v2612 = vld [vmem:[%s2058 + $0x1a0] sm:$0xf]
        %v2613 = vld [vmem:[%s2058 + $0x1a4] sm:$0xf]
        %v2614 = vld [vmem:[%s2058 + $0x1b8] sm:$0xf]
        %v2615 = vld [vmem:[%s2058 + $0x1bc] sm:$0xf]
        %v2616 = vld [vmem:[%s2058 + $0x1d0] sm:$0xf]
        %v2617 = vld [vmem:[%s2058 + $0x1d4] sm:$0xf]
        %v2618 = vld [vmem:[%s2058 + $0x1e8] sm:$0xf]
        %v2619 = vld [vmem:[%s2058 + $0x1ec] sm:$0xf]
        %v2620 = vld [vmem:[%s2058 + $0x200] sm:$0xf]
        %v2621 = vld [vmem:[%s2058 + $0x204] sm:$0xf]
        %v2622 = vld [vmem:[%s2058 + $0x218] sm:$0xf]
        %v2623 = vld [vmem:[%s2058 + $0x21c] sm:$0xf]
        %v2624 = vld [vmem:[%s2058 + $0x230] sm:$0xf]
        %v2625 = vld [vmem:[%s2058 + $0x234] sm:$0xf]
        %v2626 = vld [vmem:[%s2058 + $0x248] sm:$0xf]
        %v2627 = vld [vmem:[%s2058 + $0x24c] sm:$0xf]
        %v2628 = vld [vmem:[%s2058 + $0x260] sm:$0xf]
        %v2629 = vld [vmem:[%s2058 + $0x264] sm:$0xf]
        %v2630 = vld [vmem:[%s2058 + $0x278] sm:$0xf]
        %v2631 = vld [vmem:[%s2058 + $0x27c] sm:$0xf]
        %v2632 = vld [vmem:[%s2058 + $0x290] sm:$0xf]
        %v2633 = vld [vmem:[%s2058 + $0x294] sm:$0xf]
        %2634 = vst [vmem:[#allocation3 + $0xc] sm:$0xf] %v2578
        %2635 = vst [vmem:[#allocation3 + $0x30] sm:$0xf] %v2579
        %2636 = vst [vmem:[#allocation3 + $0x54] sm:$0xf] %v2580
        %2637 = vst [vmem:[#allocation3 + $0x78] sm:$0xf] %v2581
        %2638 = vst [vmem:[#allocation3 + $0x9c] sm:$0xf] %v2582
        %2639 = vst [vmem:[#allocation3 + $0xc0] sm:$0xf] %v2583
        %2640 = vst [vmem:[#allocation3 + $0xe4] sm:$0xf] %v2584
        %2641 = vst [vmem:[#allocation3 + $0x108] sm:$0xf] %v2585
        %2642 = vst [vmem:[#allocation3 + $0x12c] sm:$0xf] %v2586
        %2643 = vst [vmem:[#allocation3 + $0x150] sm:$0xf] %v2587
        %2644 = vst [vmem:[#allocation3 + $0x174] sm:$0xf] %v2588
        %2645 = vst [vmem:[#allocation3 + $0x198] sm:$0xf] %v2589
        %2646 = vst [vmem:[#allocation3 + $0x1bc] sm:$0xf] %v2590
        %2647 = vst [vmem:[#allocation3 + $0x1e0] sm:$0xf] %v2591
        %2648 = vst [vmem:[#allocation3 + $0x204] sm:$0xf] %v2592
        %2649 = vst [vmem:[#allocation3 + $0x228] sm:$0xf] %v2593
        %2650 = vst [vmem:[#allocation3 + $0x24c] sm:$0xf] %v2594
        %2651 = vst [vmem:[#allocation3 + $0x270] sm:$0xf] %v2595
        %2652 = vst [vmem:[#allocation3 + $0x294] sm:$0xf] %v2596
        %2653 = vst [vmem:[#allocation3 + $0x2b8] sm:$0xf] %v2597
        %2654 = vst [vmem:[#allocation3 + $0x2dc] sm:$0xf] %v2598
        %2655 = vst [vmem:[#allocation3 + $0x300] sm:$0xf] %v2599
        %2656 = vst [vmem:[#allocation3 + $0x324] sm:$0xf] %v2600
        %2657 = vst [vmem:[#allocation3 + $0x348] sm:$0xf] %v2601
        %2658 = vst [vmem:[#allocation3 + $0x36c] sm:$0xf] %v2602
        %2659 = vst [vmem:[#allocation3 + $0x390] sm:$0xf] %v2603
        %2660 = vst [vmem:[#allocation3 + $0x3b4] sm:$0xf] %v2604
        %2661 = vst [vmem:[#allocation3 + $0x3d8] sm:$0xf] %v2605
        %2662 = vst [vmem:[#allocation3 + $0x3fc] sm:$0xf] %v2606
        %2663 = vst [vmem:[#allocation3 + $0x420] sm:$0xf] %v2607
        %2664 = vst [vmem:[#allocation3 + $0x444] sm:$0xf] %v2608
        %2665 = vst [vmem:[#allocation3 + $0x468] sm:$0xf] %v2609
        %2666 = vst [vmem:[#allocation3 + $0x10] sm:$0xf] %v2590
        %2667 = vst [vmem:[#allocation3 + $0x34] sm:$0xf] %v2591
        %2668 = vst [vmem:[#allocation3 + $0x58] sm:$0xf] %v2592
        %2669 = vst [vmem:[#allocation3 + $0x7c] sm:$0xf] %v2593
        %2670 = vst [vmem:[#allocation3 + $0xa0] sm:$0xf] %v2594
        %2671 = vst [vmem:[#allocation3 + $0xc4] sm:$0xf] %v2595
        %2672 = vst [vmem:[#allocation3 + $0xe8] sm:$0xf] %v2596
        %2673 = vst [vmem:[#allocation3 + $0x10c] sm:$0xf] %v2597
        %2674 = vst [vmem:[#allocation3 + $0x130] sm:$0xf] %v2598
        %2675 = vst [vmem:[#allocation3 + $0x154] sm:$0xf] %v2599
        %2676 = vst [vmem:[#allocation3 + $0x178] sm:$0xf] %v2600
        %2677 = vst [vmem:[#allocation3 + $0x19c] sm:$0xf] %v2601
        %2678 = vst [vmem:[#allocation3 + $0x1c0] sm:$0xf] %v2602
        %2679 = vst [vmem:[#allocation3 + $0x1e4] sm:$0xf] %v2603
        %2680 = vst [vmem:[#allocation3 + $0x208] sm:$0xf] %v2604
        %2681 = vst [vmem:[#allocation3 + $0x22c] sm:$0xf] %v2605
        %2682 = vst [vmem:[#allocation3 + $0x250] sm:$0xf] %v2606
        %2683 = vst [vmem:[#allocation3 + $0x274] sm:$0xf] %v2607
        %2684 = vst [vmem:[#allocation3 + $0x298] sm:$0xf] %v2608
        %2685 = vst [vmem:[#allocation3 + $0x2bc] sm:$0xf] %v2609
        %2686 = vst [vmem:[#allocation3 + $0x2e0] sm:$0xf] %v2610
        %2687 = vst [vmem:[#allocation3 + $0x304] sm:$0xf] %v2611
        %2688 = vst [vmem:[#allocation3 + $0x328] sm:$0xf] %v2612
        %2689 = vst [vmem:[#allocation3 + $0x34c] sm:$0xf] %v2613
        %2690 = vst [vmem:[#allocation3 + $0x370] sm:$0xf] %v2614
        %2691 = vst [vmem:[#allocation3 + $0x394] sm:$0xf] %v2615
        %2692 = vst [vmem:[#allocation3 + $0x3b8] sm:$0xf] %v2616
        %2693 = vst [vmem:[#allocation3 + $0x3dc] sm:$0xf] %v2617
        %2694 = vst [vmem:[#allocation3 + $0x400] sm:$0xf] %v2618
        %2695 = vst [vmem:[#allocation3 + $0x424] sm:$0xf] %v2619
        %2696 = vst [vmem:[#allocation3 + $0x448] sm:$0xf] %v2620
        %2697 = vst [vmem:[#allocation3 + $0x46c] sm:$0xf] %v2621
        %2698 = vst [vmem:[#allocation3 + $0x14] sm:$0xf] %v2602
        %2699 = vst [vmem:[#allocation3 + $0x38] sm:$0xf] %v2603
        %2700 = vst [vmem:[#allocation3 + $0x5c] sm:$0xf] %v2604
        %2701 = vst [vmem:[#allocation3 + $0x80] sm:$0xf] %v2605
        %2702 = vst [vmem:[#allocation3 + $0xa4] sm:$0xf] %v2606
        %2703 = vst [vmem:[#allocation3 + $0xc8] sm:$0xf] %v2607
        %2704 = vst [vmem:[#allocation3 + $0xec] sm:$0xf] %v2608
        %2705 = vst [vmem:[#allocation3 + $0x110] sm:$0xf] %v2609
        %2706 = vst [vmem:[#allocation3 + $0x134] sm:$0xf] %v2610
        %2707 = vst [vmem:[#allocation3 + $0x158] sm:$0xf] %v2611
        %2708 = vst [vmem:[#allocation3 + $0x17c] sm:$0xf] %v2612
        %2709 = vst [vmem:[#allocation3 + $0x1a0] sm:$0xf] %v2613
        %2710 = vst [vmem:[#allocation3 + $0x1c4] sm:$0xf] %v2614
        %2711 = vst [vmem:[#allocation3 + $0x1e8] sm:$0xf] %v2615
        %2712 = vst [vmem:[#allocation3 + $0x20c] sm:$0xf] %v2616
        %2713 = vst [vmem:[#allocation3 + $0x230] sm:$0xf] %v2617
        %2714 = vst [vmem:[#allocation3 + $0x254] sm:$0xf] %v2618
        %2715 = vst [vmem:[#allocation3 + $0x278] sm:$0xf] %v2619
        %2716 = vst [vmem:[#allocation3 + $0x29c] sm:$0xf] %v2620
        %2717 = vst [vmem:[#allocation3 + $0x2c0] sm:$0xf] %v2621
        %2718 = vst [vmem:[#allocation3 + $0x2e4] sm:$0xf] %v2622
        %2719 = vst [vmem:[#allocation3 + $0x308] sm:$0xf] %v2623
        %2720 = vst [vmem:[#allocation3 + $0x32c] sm:$0xf] %v2624
        %2721 = vst [vmem:[#allocation3 + $0x350] sm:$0xf] %v2625
        %2722 = vst [vmem:[#allocation3 + $0x374] sm:$0xf] %v2626
        %2723 = vst [vmem:[#allocation3 + $0x398] sm:$0xf] %v2627
        %2724 = vst [vmem:[#allocation3 + $0x3bc] sm:$0xf] %v2628
        %2725 = vst [vmem:[#allocation3 + $0x3e0] sm:$0xf] %v2629
        %2726 = vst [vmem:[#allocation3 + $0x404] sm:$0xf] %v2630
        %2727 = vst [vmem:[#allocation3 + $0x428] sm:$0xf] %v2631
        %2728 = vst [vmem:[#allocation3 + $0x44c] sm:$0xf] %v2632
        %2729 = vst [vmem:[#allocation3 + $0x470] sm:$0xf] %v2633
        %v2730 = vld [vmem:[%s2058 + $0x8] sm:$0x8]
        %v2731 = vld [vmem:[%s2058 + $0xc] sm:$0xf]
        %v2732 = vld [vmem:[%s2058 + $0x10] sm:$0x7]
        %v2733 = vld [vmem:[%s2058 + $0x20] sm:$0x8]
        %v2734 = vld [vmem:[%s2058 + $0x24] sm:$0xf]
        %v2735 = vld [vmem:[%s2058 + $0x28] sm:$0x7]
        %v2736 = vld [vmem:[%s2058 + $0x38] sm:$0x8]
        %v2737 = vld [vmem:[%s2058 + $0x3c] sm:$0xf]
        %v2738 = vld [vmem:[%s2058 + $0x40] sm:$0x7]
        %v2739 = vld [vmem:[%s2058 + $0x50] sm:$0x8]
        %v2740 = vld [vmem:[%s2058 + $0x54] sm:$0xf]
        %v2741 = vld [vmem:[%s2058 + $0x58] sm:$0x7]
        %v2742 = vld [vmem:[%s2058 + $0x68] sm:$0x8]
        %v2743 = vld [vmem:[%s2058 + $0x6c] sm:$0xf]
        %v2744 = vld [vmem:[%s2058 + $0x70] sm:$0x7]
        %v2745 = vld [vmem:[%s2058 + $0x80] sm:$0x8]
        %v2746 = vld [vmem:[%s2058 + $0x84] sm:$0xf]
        %v2747 = vld [vmem:[%s2058 + $0x88] sm:$0x7]
        %v2748 = vld [vmem:[%s2058 + $0x98] sm:$0x8]
        %v2749 = vld [vmem:[%s2058 + $0x9c] sm:$0xf]
        %v2750 = vld [vmem:[%s2058 + $0xa0] sm:$0x7]
        %v2751 = vld [vmem:[%s2058 + $0xb0] sm:$0x8]
        %v2752 = vld [vmem:[%s2058 + $0xb4] sm:$0xf]
        %v2753 = vld [vmem:[%s2058 + $0xb8] sm:$0x7]
        %v2754 = vld [vmem:[%s2058 + $0xc8] sm:$0x8]
        %v2755 = vld [vmem:[%s2058 + $0xcc] sm:$0xf]
        %v2756 = vld [vmem:[%s2058 + $0xd0] sm:$0x7]
        %v2757 = vld [vmem:[%s2058 + $0xe0] sm:$0x8]
        %v2758 = vld [vmem:[%s2058 + $0xe4] sm:$0xf]
        %v2759 = vld [vmem:[%s2058 + $0xe8] sm:$0x7]
        %v2760 = vld [vmem:[%s2058 + $0xf8] sm:$0x8]
        %v2761 = vld [vmem:[%s2058 + $0xfc] sm:$0xf]
        %v2762 = vld [vmem:[%s2058 + $0x100] sm:$0x7]
        %v2763 = vld [vmem:[%s2058 + $0x110] sm:$0x8]
        %v2764 = vld [vmem:[%s2058 + $0x114] sm:$0xf]
        %v2765 = vld [vmem:[%s2058 + $0x118] sm:$0x7]
        %v2766 = vld [vmem:[%s2058 + $0x128] sm:$0x8]
        %v2767 = vld [vmem:[%s2058 + $0x12c] sm:$0xf]
        %v2768 = vld [vmem:[%s2058 + $0x130] sm:$0x7]
        %v2769 = vld [vmem:[%s2058 + $0x140] sm:$0x8]
        %v2770 = vld [vmem:[%s2058 + $0x144] sm:$0xf]
        %v2771 = vld [vmem:[%s2058 + $0x148] sm:$0x7]
        %v2772 = vld [vmem:[%s2058 + $0x158] sm:$0x8]
        %v2773 = vld [vmem:[%s2058 + $0x15c] sm:$0xf]
        %v2774 = vld [vmem:[%s2058 + $0x160] sm:$0x7]
        %v2775 = vld [vmem:[%s2058 + $0x170] sm:$0x8]
        %v2776 = vld [vmem:[%s2058 + $0x174] sm:$0xf]
        %v2777 = vld [vmem:[%s2058 + $0x178] sm:$0x7]
        %v2778 = vld [vmem:[%s2058 + $0x188] sm:$0x8]
        %v2779 = vld [vmem:[%s2058 + $0x18c] sm:$0xf]
        %v2780 = vld [vmem:[%s2058 + $0x190] sm:$0x7]
        %v2781 = vld [vmem:[%s2058 + $0x1a0] sm:$0x8]
        %v2782 = vld [vmem:[%s2058 + $0x1a4] sm:$0xf]
        %v2783 = vld [vmem:[%s2058 + $0x1a8] sm:$0x7]
        %v2784 = vld [vmem:[%s2058 + $0x1b8] sm:$0x8]
        %v2785 = vld [vmem:[%s2058 + $0x1bc] sm:$0xf]
        %v2786 = vld [vmem:[%s2058 + $0x1c0] sm:$0x7]
        %v2787 = vld [vmem:[%s2058 + $0x1d0] sm:$0x8]
        %v2788 = vld [vmem:[%s2058 + $0x1d4] sm:$0xf]
        %v2789 = vld [vmem:[%s2058 + $0x1d8] sm:$0x7]
        %v2790 = vld [vmem:[%s2058 + $0x1e8] sm:$0x8]
        %v2791 = vld [vmem:[%s2058 + $0x1ec] sm:$0xf]
        %v2792 = vld [vmem:[%s2058 + $0x1f0] sm:$0x7]
        %v2793 = vld [vmem:[%s2058 + $0x200] sm:$0x8]
        %v2794 = vld [vmem:[%s2058 + $0x204] sm:$0xf]
        %v2795 = vld [vmem:[%s2058 + $0x208] sm:$0x7]
        %v2796 = vld [vmem:[%s2058 + $0x218] sm:$0x8]
        %v2797 = vld [vmem:[%s2058 + $0x21c] sm:$0xf]
        %v2798 = vld [vmem:[%s2058 + $0x220] sm:$0x7]
        %v2799 = vld [vmem:[%s2058 + $0x230] sm:$0x8]
        %v2800 = vld [vmem:[%s2058 + $0x234] sm:$0xf]
        %v2801 = vld [vmem:[%s2058 + $0x238] sm:$0x7]
        %v2802 = vld [vmem:[%s2058 + $0x248] sm:$0x8]
        %v2803 = vld [vmem:[%s2058 + $0x24c] sm:$0xf]
        %v2804 = vld [vmem:[%s2058 + $0x250] sm:$0x7]
        %v2805 = vld [vmem:[%s2058 + $0x260] sm:$0x8]
        %v2806 = vld [vmem:[%s2058 + $0x264] sm:$0xf]
        %v2807 = vld [vmem:[%s2058 + $0x268] sm:$0x7]
        %v2808 = vld [vmem:[%s2058 + $0x278] sm:$0x8]
        %v2809 = vld [vmem:[%s2058 + $0x27c] sm:$0xf]
        %v2810 = vld [vmem:[%s2058 + $0x280] sm:$0x7]
        %v2811 = vld [vmem:[%s2058 + $0x290] sm:$0x8]
        %v2812 = vld [vmem:[%s2058 + $0x294] sm:$0xf]
        %v2813 = vld [vmem:[%s2058 + $0x298] sm:$0x7]
        %vm2862 = vcmask 1040384
        %vm2863 = vcmask 1044484
        %vm2864 = vmor %vm2862, %vm2863
        %v2865 = vrot.slane %v2730, 7
        %v2866 = vrot.slane %v2865, 4
        %v2867 = vrot.slane %v2731, 7
        %v2868 = vsel %vm2864, %v2866, %v2867
        %v2869 = vrot.slane %v2867, 4
        %v2870 = vrot.slane %v2732, 7
        %v2871 = vsel %vm2864, %v2869, %v2870
        %v2872 = vrot.slane %v2733, 7
        %v2873 = vrot.slane %v2872, 4
        %v2874 = vrot.slane %v2734, 7
        %v2875 = vsel %vm2864, %v2873, %v2874
        %v2876 = vrot.slane %v2874, 4
        %v2877 = vrot.slane %v2735, 7
        %v2878 = vsel %vm2864, %v2876, %v2877
        %v2879 = vrot.slane %v2736, 7
        %v2880 = vrot.slane %v2879, 4
        %v2881 = vrot.slane %v2737, 7
        %v2882 = vsel %vm2864, %v2880, %v2881
        %v2883 = vrot.slane %v2881, 4
        %v2884 = vrot.slane %v2738, 7
        %v2885 = vsel %vm2864, %v2883, %v2884
        %v2886 = vrot.slane %v2739, 7
        %v2887 = vrot.slane %v2886, 4
        %v2888 = vrot.slane %v2740, 7
        %v2889 = vsel %vm2864, %v2887, %v2888
        %v2890 = vrot.slane %v2888, 4
        %v2891 = vrot.slane %v2741, 7
        %v2892 = vsel %vm2864, %v2890, %v2891
        %v2893 = vrot.slane %v2742, 7
        %v2894 = vrot.slane %v2893, 4
        %v2895 = vrot.slane %v2743, 7
        %v2896 = vsel %vm2864, %v2894, %v2895
        %v2897 = vrot.slane %v2895, 4
        %v2898 = vrot.slane %v2744, 7
        %v2899 = vsel %vm2864, %v2897, %v2898
        %v2900 = vrot.slane %v2745, 7
        %v2901 = vrot.slane %v2900, 4
        %v2902 = vrot.slane %v2746, 7
        %v2903 = vsel %vm2864, %v2901, %v2902
        %v2904 = vrot.slane %v2902, 4
        %v2905 = vrot.slane %v2747, 7
        %v2906 = vsel %vm2864, %v2904, %v2905
        %v2907 = vrot.slane %v2748, 7
        %v2908 = vrot.slane %v2907, 4
        %v2909 = vrot.slane %v2749, 7
        %v2910 = vsel %vm2864, %v2908, %v2909
        %v2911 = vrot.slane %v2909, 4
        %v2912 = vrot.slane %v2750, 7
        %v2913 = vsel %vm2864, %v2911, %v2912
        %v2914 = vrot.slane %v2751, 7
        %v2915 = vrot.slane %v2914, 4
        %v2916 = vrot.slane %v2752, 7
        %v2917 = vsel %vm2864, %v2915, %v2916
        %v2918 = vrot.slane %v2916, 4
        %v2919 = vrot.slane %v2753, 7
        %v2920 = vsel %vm2864, %v2918, %v2919
        %v2921 = vrot.slane %v2754, 7
        %v2922 = vrot.slane %v2921, 4
        %v2923 = vrot.slane %v2755, 7
        %v2924 = vsel %vm2864, %v2922, %v2923
        %v2925 = vrot.slane %v2923, 4
        %v2926 = vrot.slane %v2756, 7
        %v2927 = vsel %vm2864, %v2925, %v2926
        %v2928 = vrot.slane %v2757, 7
        %v2929 = vrot.slane %v2928, 4
        %v2930 = vrot.slane %v2758, 7
        %v2931 = vsel %vm2864, %v2929, %v2930
        %v2932 = vrot.slane %v2930, 4
        %v2933 = vrot.slane %v2759, 7
        %v2934 = vsel %vm2864, %v2932, %v2933
        %v2935 = vrot.slane %v2760, 7
        %v2936 = vrot.slane %v2935, 4
        %v2937 = vrot.slane %v2761, 7
        %v2938 = vsel %vm2864, %v2936, %v2937
        %v2939 = vrot.slane %v2937, 4
        %v2940 = vrot.slane %v2762, 7
        %v2941 = vsel %vm2864, %v2939, %v2940
        %v2942 = vrot.slane %v2763, 7
        %v2943 = vrot.slane %v2942, 4
        %v2944 = vrot.slane %v2764, 7
        %v2945 = vsel %vm2864, %v2943, %v2944
        %v2946 = vrot.slane %v2944, 4
        %v2947 = vrot.slane %v2765, 7
        %v2948 = vsel %vm2864, %v2946, %v2947
        %v2949 = vrot.slane %v2766, 7
        %v2950 = vrot.slane %v2949, 4
        %v2951 = vrot.slane %v2767, 7
        %v2952 = vsel %vm2864, %v2950, %v2951
        %v2953 = vrot.slane %v2951, 4
        %v2954 = vrot.slane %v2768, 7
        %v2955 = vsel %vm2864, %v2953, %v2954
        %v2956 = vrot.slane %v2769, 7
        %v2957 = vrot.slane %v2956, 4
        %v2958 = vrot.slane %v2770, 7
        %v2959 = vsel %vm2864, %v2957, %v2958
        %v2960 = vrot.slane %v2958, 4
        %v2961 = vrot.slane %v2771, 7
        %v2962 = vsel %vm2864, %v2960, %v2961
        %v2963 = vrot.slane %v2772, 7
        %v2964 = vrot.slane %v2963, 4
        %v2965 = vrot.slane %v2773, 7
        %v2966 = vsel %vm2864, %v2964, %v2965
        %v2967 = vrot.slane %v2965, 4
        %v2968 = vrot.slane %v2774, 7
        %v2969 = vsel %vm2864, %v2967, %v2968
        %v2970 = vrot.slane %v2775, 7
        %v2971 = vrot.slane %v2970, 4
        %v2972 = vrot.slane %v2776, 7
        %v2973 = vsel %vm2864, %v2971, %v2972
        %v2974 = vrot.slane %v2972, 4
        %v2975 = vrot.slane %v2777, 7
        %v2976 = vsel %vm2864, %v2974, %v2975
        %3009 = vst [vmem:[#allocation3 + $0x18] sm:$0xf] %v2868
        %3010 = vst [vmem:[#allocation3 + $0x3c] sm:$0xf] %v2871
        %3011 = vst [vmem:[#allocation3 + $0x60] sm:$0xf] %v2875
        %3012 = vst [vmem:[#allocation3 + $0x84] sm:$0xf] %v2878
        %3013 = vst [vmem:[#allocation3 + $0xa8] sm:$0xf] %v2882
        %3014 = vst [vmem:[#allocation3 + $0xcc] sm:$0xf] %v2885
        %3015 = vst [vmem:[#allocation3 + $0xf0] sm:$0xf] %v2889
        %3016 = vst [vmem:[#allocation3 + $0x114] sm:$0xf] %v2892
        %3017 = vst [vmem:[#allocation3 + $0x138] sm:$0xf] %v2896
        %3018 = vst [vmem:[#allocation3 + $0x15c] sm:$0xf] %v2899
        %3019 = vst [vmem:[#allocation3 + $0x180] sm:$0xf] %v2903
        %3020 = vst [vmem:[#allocation3 + $0x1a4] sm:$0xf] %v2906
        %3021 = vst [vmem:[#allocation3 + $0x1c8] sm:$0xf] %v2910
        %3022 = vst [vmem:[#allocation3 + $0x1ec] sm:$0xf] %v2913
        %3023 = vst [vmem:[#allocation3 + $0x210] sm:$0xf] %v2917
        %3024 = vst [vmem:[#allocation3 + $0x234] sm:$0xf] %v2920
        %3025 = vst [vmem:[#allocation3 + $0x258] sm:$0xf] %v2924
        %3026 = vst [vmem:[#allocation3 + $0x27c] sm:$0xf] %v2927
        %3027 = vst [vmem:[#allocation3 + $0x2a0] sm:$0xf] %v2931
        %3028 = vst [vmem:[#allocation3 + $0x2c4] sm:$0xf] %v2934
        %3029 = vst [vmem:[#allocation3 + $0x2e8] sm:$0xf] %v2938
        %3030 = vst [vmem:[#allocation3 + $0x30c] sm:$0xf] %v2941
        %3031 = vst [vmem:[#allocation3 + $0x330] sm:$0xf] %v2945
        %3032 = vst [vmem:[#allocation3 + $0x354] sm:$0xf] %v2948
        %3033 = vst [vmem:[#allocation3 + $0x378] sm:$0xf] %v2952
        %3034 = vst [vmem:[#allocation3 + $0x39c] sm:$0xf] %v2955
        %3035 = vst [vmem:[#allocation3 + $0x3c0] sm:$0xf] %v2959
        %3036 = vst [vmem:[#allocation3 + $0x3e4] sm:$0xf] %v2962
        %3037 = vst [vmem:[#allocation3 + $0x408] sm:$0xf] %v2966
        %3038 = vst [vmem:[#allocation3 + $0x42c] sm:$0xf] %v2969
        %3039 = vst [vmem:[#allocation3 + $0x450] sm:$0xf] %v2973
        %3040 = vst [vmem:[#allocation3 + $0x474] sm:$0xf] %v2976
        %v3059 = vrot.slane %v2778, 7
        %v3060 = vrot.slane %v3059, 4
        %v3061 = vrot.slane %v2779, 7
        %v3062 = vsel %vm2864, %v3060, %v3061
        %v3063 = vrot.slane %v3061, 4
        %v3064 = vrot.slane %v2780, 7
        %v3065 = vsel %vm2864, %v3063, %v3064
        %v3066 = vrot.slane %v2781, 7
        %v3067 = vrot.slane %v3066, 4
        %v3068 = vrot.slane %v2782, 7
        %v3069 = vsel %vm2864, %v3067, %v3068
        %v3070 = vrot.slane %v3068, 4
        %v3071 = vrot.slane %v2783, 7
        %v3072 = vsel %vm2864, %v3070, %v3071
        %v3073 = vrot.slane %v2784, 7
        %v3074 = vrot.slane %v3073, 4
        %v3075 = vrot.slane %v2785, 7
        %v3076 = vsel %vm2864, %v3074, %v3075
        %v3077 = vrot.slane %v3075, 4
        %v3078 = vrot.slane %v2786, 7
        %v3079 = vsel %vm2864, %v3077, %v3078
        %v3080 = vrot.slane %v2787, 7
        %v3081 = vrot.slane %v3080, 4
        %v3082 = vrot.slane %v2788, 7
        %v3083 = vsel %vm2864, %v3081, %v3082
        %v3084 = vrot.slane %v3082, 4
        %v3085 = vrot.slane %v2789, 7
        %v3086 = vsel %vm2864, %v3084, %v3085
        %v3087 = vrot.slane %v2790, 7
        %v3088 = vrot.slane %v3087, 4
        %v3089 = vrot.slane %v2791, 7
        %v3090 = vsel %vm2864, %v3088, %v3089
        %v3091 = vrot.slane %v3089, 4
        %v3092 = vrot.slane %v2792, 7
        %v3093 = vsel %vm2864, %v3091, %v3092
        %v3094 = vrot.slane %v2793, 7
        %v3095 = vrot.slane %v3094, 4
        %v3096 = vrot.slane %v2794, 7
        %v3097 = vsel %vm2864, %v3095, %v3096
        %v3098 = vrot.slane %v3096, 4
        %v3099 = vrot.slane %v2795, 7
        %v3100 = vsel %vm2864, %v3098, %v3099
        %3113 = vst [vmem:[#allocation3 + $0x1c] sm:$0xf] %v2910
        %3114 = vst [vmem:[#allocation3 + $0x40] sm:$0xf] %v2913
        %3115 = vst [vmem:[#allocation3 + $0x64] sm:$0xf] %v2917
        %3116 = vst [vmem:[#allocation3 + $0x88] sm:$0xf] %v2920
        %3117 = vst [vmem:[#allocation3 + $0xac] sm:$0xf] %v2924
        %3118 = vst [vmem:[#allocation3 + $0xd0] sm:$0xf] %v2927
        %3119 = vst [vmem:[#allocation3 + $0xf4] sm:$0xf] %v2931
        %3120 = vst [vmem:[#allocation3 + $0x118] sm:$0xf] %v2934
        %3121 = vst [vmem:[#allocation3 + $0x13c] sm:$0xf] %v2938
        %3122 = vst [vmem:[#allocation3 + $0x160] sm:$0xf] %v2941
        %3123 = vst [vmem:[#allocation3 + $0x184] sm:$0xf] %v2945
        %3124 = vst [vmem:[#allocation3 + $0x1a8] sm:$0xf] %v2948
        %3125 = vst [vmem:[#allocation3 + $0x1cc] sm:$0xf] %v2952
        %3126 = vst [vmem:[#allocation3 + $0x1f0] sm:$0xf] %v2955
        %3127 = vst [vmem:[#allocation3 + $0x214] sm:$0xf] %v2959
        %3128 = vst [vmem:[#allocation3 + $0x238] sm:$0xf] %v2962
        %3129 = vst [vmem:[#allocation3 + $0x25c] sm:$0xf] %v2966
        %3130 = vst [vmem:[#allocation3 + $0x280] sm:$0xf] %v2969
        %3131 = vst [vmem:[#allocation3 + $0x2a4] sm:$0xf] %v2973
        %3132 = vst [vmem:[#allocation3 + $0x2c8] sm:$0xf] %v2976
        %3133 = vst [vmem:[#allocation3 + $0x2ec] sm:$0xf] %v3062
        %3134 = vst [vmem:[#allocation3 + $0x310] sm:$0xf] %v3065
        %3135 = vst [vmem:[#allocation3 + $0x334] sm:$0xf] %v3069
        %3136 = vst [vmem:[#allocation3 + $0x358] sm:$0xf] %v3072
        %3137 = vst [vmem:[#allocation3 + $0x37c] sm:$0xf] %v3076
        %3138 = vst [vmem:[#allocation3 + $0x3a0] sm:$0xf] %v3079
        %3139 = vst [vmem:[#allocation3 + $0x3c4] sm:$0xf] %v3083
        %3140 = vst [vmem:[#allocation3 + $0x3e8] sm:$0xf] %v3086
        %3141 = vst [vmem:[#allocation3 + $0x40c] sm:$0xf] %v3090
        %3142 = vst [vmem:[#allocation3 + $0x430] sm:$0xf] %v3093
        %3143 = vst [vmem:[#allocation3 + $0x454] sm:$0xf] %v3097
        %3144 = vst [vmem:[#allocation3 + $0x478] sm:$0xf] %v3100
        %v3163 = vrot.slane %v2796, 7
        %v3164 = vrot.slane %v3163, 4
        %v3165 = vrot.slane %v2797, 7
        %v3166 = vsel %vm2864, %v3164, %v3165
        %v3167 = vrot.slane %v3165, 4
        %v3168 = vrot.slane %v2798, 7
        %v3169 = vsel %vm2864, %v3167, %v3168
        %v3170 = vrot.slane %v2799, 7
        %v3171 = vrot.slane %v3170, 4
        %v3172 = vrot.slane %v2800, 7
        %v3173 = vsel %vm2864, %v3171, %v3172
        %v3174 = vrot.slane %v3172, 4
        %v3175 = vrot.slane %v2801, 7
        %v3176 = vsel %vm2864, %v3174, %v3175
        %v3177 = vrot.slane %v2802, 7
        %v3178 = vrot.slane %v3177, 4
        %v3179 = vrot.slane %v2803, 7
        %v3180 = vsel %vm2864, %v3178, %v3179
        %v3181 = vrot.slane %v3179, 4
        %v3182 = vrot.slane %v2804, 7
        %v3183 = vsel %vm2864, %v3181, %v3182
        %v3184 = vrot.slane %v2805, 7
        %v3185 = vrot.slane %v3184, 4
        %v3186 = vrot.slane %v2806, 7
        %v3187 = vsel %vm2864, %v3185, %v3186
        %v3188 = vrot.slane %v3186, 4
        %v3189 = vrot.slane %v2807, 7
        %v3190 = vsel %vm2864, %v3188, %v3189
        %v3191 = vrot.slane %v2808, 7
        %v3192 = vrot.slane %v3191, 4
        %v3193 = vrot.slane %v2809, 7
        %v3194 = vsel %vm2864, %v3192, %v3193
        %v3195 = vrot.slane %v3193, 4
        %v3196 = vrot.slane %v2810, 7
        %v3197 = vsel %vm2864, %v3195, %v3196
        %v3198 = vrot.slane %v2811, 7
        %v3199 = vrot.slane %v3198, 4
        %v3200 = vrot.slane %v2812, 7
        %v3201 = vsel %vm2864, %v3199, %v3200
        %v3202 = vrot.slane %v3200, 4
        %v3203 = vrot.slane %v2813, 7
        %v3204 = vsel %vm2864, %v3202, %v3203
        %3217 = vst [vmem:[#allocation3 + $0x20] sm:$0xf] %v2952
        %3218 = vst [vmem:[#allocation3 + $0x44] sm:$0xf] %v2955
        %3219 = vst [vmem:[#allocation3 + $0x68] sm:$0xf] %v2959
        %3220 = vst [vmem:[#allocation3 + $0x8c] sm:$0xf] %v2962
        %3221 = vst [vmem:[#allocation3 + $0xb0] sm:$0xf] %v2966
        %3222 = vst [vmem:[#allocation3 + $0xd4] sm:$0xf] %v2969
        %3223 = vst [vmem:[#allocation3 + $0xf8] sm:$0xf] %v2973
        %3224 = vst [vmem:[#allocation3 + $0x11c] sm:$0xf] %v2976
        %3225 = vst [vmem:[#allocation3 + $0x140] sm:$0xf] %v3062
        %3226 = vst [vmem:[#allocation3 + $0x164] sm:$0xf] %v3065
        %3227 = vst [vmem:[#allocation3 + $0x188] sm:$0xf] %v3069
        %3228 = vst [vmem:[#allocation3 + $0x1ac] sm:$0xf] %v3072
        %3229 = vst [vmem:[#allocation3 + $0x1d0] sm:$0xf] %v3076
        %3230 = vst [vmem:[#allocation3 + $0x1f4] sm:$0xf] %v3079
        %3231 = vst [vmem:[#allocation3 + $0x218] sm:$0xf] %v3083
        %3232 = vst [vmem:[#allocation3 + $0x23c] sm:$0xf] %v3086
        %3233 = vst [vmem:[#allocation3 + $0x260] sm:$0xf] %v3090
        %3234 = vst [vmem:[#allocation3 + $0x284] sm:$0xf] %v3093
        %3235 = vst [vmem:[#allocation3 + $0x2a8] sm:$0xf] %v3097
        %3236 = vst [vmem:[#allocation3 + $0x2cc] sm:$0xf] %v3100
        %3237 = vst [vmem:[#allocation3 + $0x2f0] sm:$0xf] %v3166
        %3238 = vst [vmem:[#allocation3 + $0x314] sm:$0xf] %v3169
        %3239 = vst [vmem:[#allocation3 + $0x338] sm:$0xf] %v3173
        %3240 = vst [vmem:[#allocation3 + $0x35c] sm:$0xf] %v3176
        %3241 = vst [vmem:[#allocation3 + $0x380] sm:$0xf] %v3180
        %3242 = vst [vmem:[#allocation3 + $0x3a4] sm:$0xf] %v3183
        %3243 = vst [vmem:[#allocation3 + $0x3c8] sm:$0xf] %v3187
        %3244 = vst [vmem:[#allocation3 + $0x3ec] sm:$0xf] %v3190
        %3245 = vst [vmem:[#allocation3 + $0x410] sm:$0xf] %v3194
        %3246 = vst [vmem:[#allocation3 + $0x434] sm:$0xf] %v3197
        %3247 = vst [vmem:[#allocation3 + $0x458] sm:$0xf] %v3201
        %3248 = vst [vmem:[#allocation3 + $0x47c] sm:$0xf] %v3204
        %v3249 = vld [vmem:[#allocation3] sm:$0xff]
        %v3250 = vld [vmem:[#allocation3 + $0x8] sm:$0xff]
        %v3251 = vld [vmem:[#allocation3 + $0x10] sm:$0xff]
        %v3252 = vld [vmem:[#allocation3 + $0x18] sm:$0xff]
        %v3253 = vld [vmem:[#allocation3 + $0x20] sm:$0xf]
        %v3254 = vld [vmem:[#allocation3 + $0x24] sm:$0xff]
        %v3255 = vld [vmem:[#allocation3 + $0x2c] sm:$0xff]
        %v3256 = vld [vmem:[#allocation3 + $0x34] sm:$0xff]
        %v3257 = vld [vmem:[#allocation3 + $0x3c] sm:$0xff]
        %v3258 = vld [vmem:[#allocation3 + $0x44] sm:$0xf]
        %v3259 = vld [vmem:[#allocation3 + $0x48] sm:$0xff]
        %v3260 = vld [vmem:[#allocation3 + $0x50] sm:$0xff]
        %v3261 = vld [vmem:[#allocation3 + $0x58] sm:$0xff]
        %v3262 = vld [vmem:[#allocation3 + $0x60] sm:$0xff]
        %v3263 = vld [vmem:[#allocation3 + $0x68] sm:$0xf]
        %v3264 = vld [vmem:[#allocation3 + $0x6c] sm:$0xff]
        %v3265 = vld [vmem:[#allocation3 + $0x74] sm:$0xff]
        %v3266 = vld [vmem:[#allocation3 + $0x7c] sm:$0xff]
        %v3267 = vld [vmem:[#allocation3 + $0x84] sm:$0xff]
        %v3268 = vld [vmem:[#allocation3 + $0x8c] sm:$0xf]
        %v3269 = vld [vmem:[#allocation3 + $0x90] sm:$0xff]
        %v3270 = vld [vmem:[#allocation3 + $0x98] sm:$0xff]
        %v3271 = vld [vmem:[#allocation3 + $0xa0] sm:$0xff]
        %v3272 = vld [vmem:[#allocation3 + $0xa8] sm:$0xff]
        %v3273 = vld [vmem:[#allocation3 + $0xb0] sm:$0xf]
        %v3274 = vld [vmem:[#allocation3 + $0xb4] sm:$0xff]
        %v3275 = vld [vmem:[#allocation3 + $0xbc] sm:$0xff]
        %v3276 = vld [vmem:[#allocation3 + $0xc4] sm:$0xff]
        %v3277 = vld [vmem:[#allocation3 + $0xcc] sm:$0xff]
        %v3278 = vld [vmem:[#allocation3 + $0xd4] sm:$0xf]
        %v3279 = vld [vmem:[#allocation3 + $0xd8] sm:$0xff]
        %v3280 = vld [vmem:[#allocation3 + $0xe0] sm:$0xff]
        %v3281 = vld [vmem:[#allocation3 + $0xe8] sm:$0xff]
        %v3282 = vld [vmem:[#allocation3 + $0xf0] sm:$0xff]
        %v3283 = vld [vmem:[#allocation3 + $0xf8] sm:$0xf]
        %v3284 = vld [vmem:[#allocation3 + $0xfc] sm:$0xff]
        %v3285 = vld [vmem:[#allocation3 + $0x104] sm:$0xff]
        %v3286 = vld [vmem:[#allocation3 + $0x10c] sm:$0xff]
        %v3287 = vld [vmem:[#allocation3 + $0x114] sm:$0xff]
        %v3288 = vld [vmem:[#allocation3 + $0x11c] sm:$0xf]
        %v3289 = vld [vmem:[#allocation3 + $0x120] sm:$0xff]
        %v3290 = vld [vmem:[#allocation3 + $0x128] sm:$0xff]
        %v3291 = vld [vmem:[#allocation3 + $0x130] sm:$0xff]
        %v3292 = vld [vmem:[#allocation3 + $0x138] sm:$0xff]
        %v3293 = vld [vmem:[#allocation3 + $0x140] sm:$0xf]
        %v3294 = vld [vmem:[#allocation3 + $0x144] sm:$0xff]
        %v3295 = vld [vmem:[#allocation3 + $0x14c] sm:$0xff]
        %v3296 = vld [vmem:[#allocation3 + $0x154] sm:$0xff]
        %v3297 = vld [vmem:[#allocation3 + $0x15c] sm:$0xff]
        %v3298 = vld [vmem:[#allocation3 + $0x164] sm:$0xf]
        %v3299 = vld [vmem:[#allocation3 + $0x168] sm:$0xff]
        %v3300 = vld [vmem:[#allocation3 + $0x170] sm:$0xff]
        %v3301 = vld [vmem:[#allocation3 + $0x178] sm:$0xff]
        %v3302 = vld [vmem:[#allocation3 + $0x180] sm:$0xff]
        %v3303 = vld [vmem:[#allocation3 + $0x188] sm:$0xf]
        %v3304 = vld [vmem:[#allocation3 + $0x18c] sm:$0xff]
        %v3305 = vld [vmem:[#allocation3 + $0x194] sm:$0xff]
        %v3306 = vld [vmem:[#allocation3 + $0x19c] sm:$0xff]
        %v3307 = vld [vmem:[#allocation3 + $0x1a4] sm:$0xff]
        %v3308 = vld [vmem:[#allocation3 + $0x1ac] sm:$0xf]
        %v3309 = vld [vmem:[#allocation3 + $0x1b0] sm:$0xff]
        %v3310 = vld [vmem:[#allocation3 + $0x1b8] sm:$0xff]
        %v3311 = vld [vmem:[#allocation3 + $0x1c0] sm:$0xff]
        %v3312 = vld [vmem:[#allocation3 + $0x1c8] sm:$0xff]
        %v3313 = vld [vmem:[#allocation3 + $0x1d0] sm:$0xf]
        %v3314 = vld [vmem:[#allocation3 + $0x1d4] sm:$0xff]
        %v3315 = vld [vmem:[#allocation3 + $0x1dc] sm:$0xff]
        %v3316 = vld [vmem:[#allocation3 + $0x1e4] sm:$0xff]
        %v3317 = vld [vmem:[#allocation3 + $0x1ec] sm:$0xff]
        %v3318 = vld [vmem:[#allocation3 + $0x1f4] sm:$0xf]
        %v3319 = vld [vmem:[#allocation3 + $0x1f8] sm:$0xff]
        %v3320 = vld [vmem:[#allocation3 + $0x200] sm:$0xff]
        %v3321 = vld [vmem:[#allocation3 + $0x208] sm:$0xff]
        %v3322 = vld [vmem:[#allocation3 + $0x210] sm:$0xff]
        %v3323 = vld [vmem:[#allocation3 + $0x218] sm:$0xf]
        %v3324 = vld [vmem:[#allocation3 + $0x21c] sm:$0xff]
        %v3325 = vld [vmem:[#allocation3 + $0x224] sm:$0xff]
        %v3326 = vld [vmem:[#allocation3 + $0x22c] sm:$0xff]
        %v3327 = vld [vmem:[#allocation3 + $0x234] sm:$0xff]
        %v3328 = vld [vmem:[#allocation3 + $0x23c] sm:$0xf]
        %v3329 = vld [vmem:[#allocation3 + $0x240] sm:$0xff]
        %v3330 = vld [vmem:[#allocation3 + $0x248] sm:$0xff]
        %v3331 = vld [vmem:[#allocation3 + $0x250] sm:$0xff]
        %v3332 = vld [vmem:[#allocation3 + $0x258] sm:$0xff]
        %v3333 = vld [vmem:[#allocation3 + $0x260] sm:$0xf]
        %v3334 = vld [vmem:[#allocation3 + $0x264] sm:$0xff]
        %v3335 = vld [vmem:[#allocation3 + $0x26c] sm:$0xff]
        %v3336 = vld [vmem:[#allocation3 + $0x274] sm:$0xff]
        %v3337 = vld [vmem:[#allocation3 + $0x27c] sm:$0xff]
        %v3338 = vld [vmem:[#allocation3 + $0x284] sm:$0xf]
        %v3339 = vld [vmem:[#allocation3 + $0x288] sm:$0xff]
        %v3340 = vld [vmem:[#allocation3 + $0x290] sm:$0xff]
        %v3341 = vld [vmem:[#allocation3 + $0x298] sm:$0xff]
        %v3342 = vld [vmem:[#allocation3 + $0x2a0] sm:$0xff]
        %v3343 = vld [vmem:[#allocation3 + $0x2a8] sm:$0xf]
        %v3344 = vld [vmem:[#allocation3 + $0x2ac] sm:$0xff]
        %v3345 = vld [vmem:[#allocation3 + $0x2b4] sm:$0xff]
        %v3346 = vld [vmem:[#allocation3 + $0x2bc] sm:$0xff]
        %v3347 = vld [vmem:[#allocation3 + $0x2c4] sm:$0xff]
        %v3348 = vld [vmem:[#allocation3 + $0x2cc] sm:$0xf]
        %v3349 = vld [vmem:[#allocation3 + $0x2d0] sm:$0xff]
        %v3350 = vld [vmem:[#allocation3 + $0x2d8] sm:$0xff]
        %v3351 = vld [vmem:[#allocation3 + $0x2e0] sm:$0xff]
        %v3352 = vld [vmem:[#allocation3 + $0x2e8] sm:$0xff]
        %v3353 = vld [vmem:[#allocation3 + $0x2f0] sm:$0xf]
        %v3354 = vld [vmem:[#allocation3 + $0x2f4] sm:$0xff]
        %v3355 = vld [vmem:[#allocation3 + $0x2fc] sm:$0xff]
        %v3356 = vld [vmem:[#allocation3 + $0x304] sm:$0xff]
        %v3357 = vld [vmem:[#allocation3 + $0x30c] sm:$0xff]
        %v3358 = vld [vmem:[#allocation3 + $0x314] sm:$0xf]
        %v3359 = vld [vmem:[#allocation3 + $0x318] sm:$0xff]
        %v3360 = vld [vmem:[#allocation3 + $0x320] sm:$0xff]
        %v3361 = vld [vmem:[#allocation3 + $0x328] sm:$0xff]
        %v3362 = vld [vmem:[#allocation3 + $0x330] sm:$0xff]
        %v3363 = vld [vmem:[#allocation3 + $0x338] sm:$0xf]
        %v3364 = vld [vmem:[#allocation3 + $0x33c] sm:$0xff]
        %v3365 = vld [vmem:[#allocation3 + $0x344] sm:$0xff]
        %v3366 = vld [vmem:[#allocation3 + $0x34c] sm:$0xff]
        %v3367 = vld [vmem:[#allocation3 + $0x354] sm:$0xff]
        %v3368 = vld [vmem:[#allocation3 + $0x35c] sm:$0xf]
        %v3369 = vld [vmem:[#allocation3 + $0x360] sm:$0xff]
        %v3370 = vld [vmem:[#allocation3 + $0x368] sm:$0xff]
        %v3371 = vld [vmem:[#allocation3 + $0x370] sm:$0xff]
        %v3372 = vld [vmem:[#allocation3 + $0x378] sm:$0xff]
        %v3373 = vld [vmem:[#allocation3 + $0x380] sm:$0xf]
        %v3374 = vld [vmem:[#allocation3 + $0x384] sm:$0xff]
        %v3375 = vld [vmem:[#allocation3 + $0x38c] sm:$0xff]
        %v3376 = vld [vmem:[#allocation3 + $0x394] sm:$0xff]
        %v3377 = vld [vmem:[#allocation3 + $0x39c] sm:$0xff]
        %v3378 = vld [vmem:[#allocation3 + $0x3a4] sm:$0xf]
        %v3379 = vld [vmem:[#allocation3 + $0x3a8] sm:$0xff]
        %v3380 = vld [vmem:[#allocation3 + $0x3b0] sm:$0xff]
        %v3381 = vld [vmem:[#allocation3 + $0x3b8] sm:$0xff]
        %v3382 = vld [vmem:[#allocation3 + $0x3c0] sm:$0xff]
        %v3383 = vld [vmem:[#allocation3 + $0x3c8] sm:$0xf]
        %v3384 = vld [vmem:[#allocation3 + $0x3cc] sm:$0xff]
        %v3385 = vld [vmem:[#allocation3 + $0x3d4] sm:$0xff]
        %v3386 = vld [vmem:[#allocation3 + $0x3dc] sm:$0xff]
        %v3387 = vld [vmem:[#allocation3 + $0x3e4] sm:$0xff]
        %v3388 = vld [vmem:[#allocation3 + $0x3ec] sm:$0xf]
        %v3389 = vld [vmem:[#allocation3 + $0x3f0] sm:$0xff]
        %v3390 = vld [vmem:[#allocation3 + $0x3f8] sm:$0xff]
        %v3391 = vld [vmem:[#allocation3 + $0x400] sm:$0xff]
        %v3392 = vld [vmem:[#allocation3 + $0x408] sm:$0xff]
        %v3393 = vld [vmem:[#allocation3 + $0x410] sm:$0xf]
        %v3394 = vld [vmem:[#allocation3 + $0x414] sm:$0xff]
        %v3395 = vld [vmem:[#allocation3 + $0x41c] sm:$0xff]
        %v3396 = vld [vmem:[#allocation3 + $0x424] sm:$0xff]
        %v3397 = vld [vmem:[#allocation3 + $0x42c] sm:$0xff]
        %v3398 = vld [vmem:[#allocation3 + $0x434] sm:$0xf]
        %v3399 = vld [vmem:[#allocation3 + $0x438] sm:$0xff]
        %v3400 = vld [vmem:[#allocation3 + $0x440] sm:$0xff]
        %v3401 = vld [vmem:[#allocation3 + $0x448] sm:$0xff]
        %v3402 = vld [vmem:[#allocation3 + $0x450] sm:$0xff]
        %v3403 = vld [vmem:[#allocation3 + $0x458] sm:$0xf]
        %v3404 = vld [vmem:[#allocation3 + $0x45c] sm:$0xff]
        %v3405 = vld [vmem:[#allocation3 + $0x464] sm:$0xff]
        %v3406 = vld [vmem:[#allocation3 + $0x46c] sm:$0xff]
        %v3407 = vld [vmem:[#allocation3 + $0x474] sm:$0xff]
        %v3408 = vld [vmem:[#allocation3 + $0x47c] sm:$0xf]
        %v3409 = vld [vmem:[#allocation9] sm:$0xff]
        %v3410 = vld [vmem:[#allocation9 + $0x8] sm:$0xff]
        %v3411 = vld [vmem:[#allocation9 + $0x10] sm:$0xff]
        %v3412 = vld [vmem:[#allocation9 + $0x18] sm:$0xff]
        %v3413 = vld [vmem:[#allocation9 + $0x20] sm:$0xff]
        %v3414 = vld [vmem:[#allocation9 + $0x28] sm:$0xff]
        %v3415 = vld [vmem:[#allocation9 + $0x30] sm:$0xff]
        %v3416 = vld [vmem:[#allocation9 + $0x38] sm:$0xff]
        %v3417 = vld [vmem:[#allocation9 + $0x40] sm:$0xff]
        %v3418 = vld [vmem:[#allocation9 + $0x48] sm:$0xff]
        %v3419 = vld [vmem:[#allocation9 + $0x50] sm:$0xff]
        %v3420 = vld [vmem:[#allocation9 + $0x58] sm:$0xff]
        %v3421 = vld [vmem:[#allocation9 + $0x60] sm:$0xff]
        %v3422 = vld [vmem:[#allocation9 + $0x68] sm:$0xff]
        %v3423 = vld [vmem:[#allocation9 + $0x70] sm:$0xff]
        %v3424 = vld [vmem:[#allocation9 + $0x78] sm:$0xff]
        %v3425 = vld [vmem:[#allocation9 + $0x80] sm:$0xff]
        %v3426 = vld [vmem:[#allocation9 + $0x88] sm:$0xff]
        %v3427 = vld [vmem:[#allocation9 + $0x90] sm:$0xff]
        %v3428 = vld [vmem:[#allocation9 + $0x98] sm:$0xff]
        %v3429 = vld [vmem:[#allocation9 + $0xa0] sm:$0xff]
        %v3430 = vld [vmem:[#allocation9 + $0xa8] sm:$0xff]
        %v3431 = vld [vmem:[#allocation9 + $0xb0] sm:$0xff]
        %v3432 = vld [vmem:[#allocation9 + $0xb8] sm:$0xff]
        %v3433 = vld [vmem:[#allocation9 + $0xc0] sm:$0xff]
        %v3434 = vld [vmem:[#allocation9 + $0xc8] sm:$0xff]
        %v3435 = vld [vmem:[#allocation9 + $0xd0] sm:$0xff]
        %v3436 = vld [vmem:[#allocation9 + $0xd8] sm:$0xff]
        %v3437 = vld [vmem:[#allocation9 + $0xe0] sm:$0xff]
        %v3438 = vld [vmem:[#allocation9 + $0xe8] sm:$0xff]
        %v3439 = vld [vmem:[#allocation9 + $0xf0] sm:$0xff]
        %v3440 = vld [vmem:[#allocation9 + $0xf8] sm:$0xff]
        %v3441 = vld [vmem:[#allocation9 + $0x100] sm:$0xff]
        %v3442 = vld [vmem:[#allocation9 + $0x108] sm:$0xff]
        %v3443 = vld [vmem:[#allocation9 + $0x110] sm:$0xff]
        %v3444 = vld [vmem:[#allocation9 + $0x118] sm:$0xff]
        %v3445 = vld [vmem:[#allocation9 + $0x120] sm:$0xff]
        %v3446 = vld [vmem:[#allocation9 + $0x128] sm:$0xff]
        %v3447 = vld [vmem:[#allocation9 + $0x130] sm:$0xff]
        %v3448 = vld [vmem:[#allocation9 + $0x138] sm:$0xff]
        %v3449 = vld [vmem:[#allocation9 + $0x140] sm:$0xff]
        %v3450 = vld [vmem:[#allocation9 + $0x148] sm:$0xff]
        %v3451 = vld [vmem:[#allocation9 + $0x150] sm:$0xff]
        %v3452 = vld [vmem:[#allocation9 + $0x158] sm:$0xff]
        %v3453 = vld [vmem:[#allocation9 + $0x160] sm:$0xff]
        %v3454 = vld [vmem:[#allocation9 + $0x168] sm:$0xff]
        %v3455 = vld [vmem:[#allocation9 + $0x170] sm:$0xff]
        %v3456 = vld [vmem:[#allocation9 + $0x178] sm:$0xff]
        %v3457 = vld [vmem:[#allocation9 + $0x180] sm:$0xff]
        %v3458 = vld [vmem:[#allocation9 + $0x188] sm:$0xff]
        %v3459 = vld [vmem:[#allocation9 + $0x190] sm:$0xff]
        %v3460 = vld [vmem:[#allocation9 + $0x198] sm:$0xff]
        %v3461 = vld [vmem:[#allocation9 + $0x1a0] sm:$0xff]
        %v3462 = vld [vmem:[#allocation9 + $0x1a8] sm:$0xff]
        %v3463 = vld [vmem:[#allocation9 + $0x1b0] sm:$0xff]
        %v3464 = vld [vmem:[#allocation9 + $0x1b8] sm:$0xff]
        %v3465 = vld [vmem:[#allocation9 + $0x1c0] sm:$0xff]
        %v3466 = vld [vmem:[#allocation9 + $0x1c8] sm:$0xff]
        %v3467 = vld [vmem:[#allocation9 + $0x1d0] sm:$0xff]
        %v3468 = vld [vmem:[#allocation9 + $0x1d8] sm:$0xff]
        %v3469 = vld [vmem:[#allocation9 + $0x1e0] sm:$0xff]
        %v3470 = vld [vmem:[#allocation9 + $0x1e8] sm:$0xff]
        %v3471 = vld [vmem:[#allocation9 + $0x1f0] sm:$0xff]
        %v3472 = vld [vmem:[#allocation9 + $0x1f8] sm:$0xff]
        %v3473 = vld [vmem:[#allocation9 + $0x200] sm:$0xff]
        %v3474 = vld [vmem:[#allocation9 + $0x208] sm:$0xff]
        %v3475 = vld [vmem:[#allocation9 + $0x210] sm:$0xff]
        %v3476 = vld [vmem:[#allocation9 + $0x218] sm:$0xff]
        %v3477 = vld [vmem:[#allocation9 + $0x220] sm:$0xff]
        %v3478 = vld [vmem:[#allocation9 + $0x228] sm:$0xff]
        %v3479 = vld [vmem:[#allocation9 + $0x230] sm:$0xff]
        %v3480 = vld [vmem:[#allocation9 + $0x238] sm:$0xff]
        %v3481 = vld [vmem:[#allocation9 + $0x240] sm:$0xff]
        %v3482 = vld [vmem:[#allocation9 + $0x248] sm:$0xff]
        %v3483 = vld [vmem:[#allocation9 + $0x250] sm:$0xff]
        %v3484 = vld [vmem:[#allocation9 + $0x258] sm:$0xff]
        %v3485 = vld [vmem:[#allocation9 + $0x260] sm:$0xff]
        %v3486 = vld [vmem:[#allocation9 + $0x268] sm:$0xff]
        %v3487 = vld [vmem:[#allocation9 + $0x270] sm:$0xff]
        %v3488 = vld [vmem:[#allocation9 + $0x278] sm:$0xff]
        %v3489 = vld [vmem:[#allocation9 + $0x280] sm:$0xff]
        %v3490 = vld [vmem:[#allocation9 + $0x288] sm:$0xff]
        %v3491 = vld [vmem:[#allocation9 + $0x290] sm:$0xff]
        %v3492 = vld [vmem:[#allocation9 + $0x298] sm:$0xff]
        %v3493 = vld [vmem:[#allocation9 + $0x2a0] sm:$0xff]
        %v3494 = vld [vmem:[#allocation9 + $0x2a8] sm:$0xff]
        %v3495 = vld [vmem:[#allocation9 + $0x2b0] sm:$0xff]
        %v3496 = vld [vmem:[#allocation9 + $0x2b8] sm:$0xff]
        %v3497 = vld [vmem:[#allocation9 + $0x2c0] sm:$0xff]
        %v3498 = vld [vmem:[#allocation9 + $0x2c8] sm:$0xff]
        %v3499 = vld [vmem:[#allocation9 + $0x2d0] sm:$0xff]
        %v3500 = vld [vmem:[#allocation9 + $0x2d8] sm:$0xff]
        %v3501 = vld [vmem:[#allocation9 + $0x2e0] sm:$0xff]
        %v3502 = vld [vmem:[#allocation9 + $0x2e8] sm:$0xff]
        %v3503 = vld [vmem:[#allocation9 + $0x2f0] sm:$0xff]
        %v3504 = vld [vmem:[#allocation9 + $0x2f8] sm:$0xff]
        %v3505 = vld [vmem:[#allocation9 + $0x300] sm:$0xff]
        %v3506 = vld [vmem:[#allocation9 + $0x308] sm:$0xff]
        %v3507 = vld [vmem:[#allocation9 + $0x310] sm:$0xff]
        %v3508 = vld [vmem:[#allocation9 + $0x318] sm:$0xff]
        %v3509 = vld [vmem:[#allocation9 + $0x320] sm:$0xff]
        %v3510 = vld [vmem:[#allocation9 + $0x328] sm:$0xff]
        %v3511 = vld [vmem:[#allocation9 + $0x330] sm:$0xff]
        %v3512 = vld [vmem:[#allocation9 + $0x338] sm:$0xff]
        %v3513 = vld [vmem:[#allocation9 + $0x340] sm:$0xff]
        %v3514 = vld [vmem:[#allocation9 + $0x348] sm:$0xff]
        %v3515 = vld [vmem:[#allocation9 + $0x350] sm:$0xff]
        %v3516 = vld [vmem:[#allocation9 + $0x358] sm:$0xff]
        %v3517 = vld [vmem:[#allocation9 + $0x360] sm:$0xff]
        %v3518 = vld [vmem:[#allocation9 + $0x368] sm:$0xff]
        %v3519 = vld [vmem:[#allocation9 + $0x370] sm:$0xff]
        %v3520 = vld [vmem:[#allocation9 + $0x378] sm:$0xff]
        %v3521 = vld [vmem:[#allocation9 + $0x380] sm:$0xff]
        %v3522 = vld [vmem:[#allocation9 + $0x388] sm:$0xff]
        %v3523 = vld [vmem:[#allocation9 + $0x390] sm:$0xff]
        %v3524 = vld [vmem:[#allocation9 + $0x398] sm:$0xff]
        %v3525 = vld [vmem:[#allocation9 + $0x3a0] sm:$0xff]
        %v3526 = vld [vmem:[#allocation9 + $0x3a8] sm:$0xff]
        %v3527 = vld [vmem:[#allocation9 + $0x3b0] sm:$0xff]
        %v3528 = vld [vmem:[#allocation9 + $0x3b8] sm:$0xff]
        %v3529 = vld [vmem:[#allocation9 + $0x3c0] sm:$0xff]
        %v3530 = vld [vmem:[#allocation9 + $0x3c8] sm:$0xff]
        %v3531 = vld [vmem:[#allocation9 + $0x3d0] sm:$0xff]
        %v3532 = vld [vmem:[#allocation9 + $0x3d8] sm:$0xff]
        %v3533 = vld [vmem:[#allocation9 + $0x3e0] sm:$0xff]
        %v3534 = vld [vmem:[#allocation9 + $0x3e8] sm:$0xff]
        %v3535 = vld [vmem:[#allocation9 + $0x3f0] sm:$0xff]
        %v3536 = vld [vmem:[#allocation9 + $0x3f8] sm:$0xff]
        %v3537 = vld [vmem:[#allocation9 + $0x400] sm:$0xff]
        %v3538 = vld [vmem:[#allocation9 + $0x408] sm:$0xff]
        %v3539 = vld [vmem:[#allocation9 + $0x410] sm:$0xff]
        %v3540 = vld [vmem:[#allocation9 + $0x418] sm:$0xff]
        %v3541 = vld [vmem:[#allocation9 + $0x420] sm:$0xff]
        %v3542 = vld [vmem:[#allocation9 + $0x428] sm:$0xff]
        %v3543 = vld [vmem:[#allocation9 + $0x430] sm:$0xff]
        %v3544 = vld [vmem:[#allocation9 + $0x438] sm:$0xff]
        %v3545 = vld [vmem:[#allocation9 + $0x440] sm:$0xff]
        %v3546 = vld [vmem:[#allocation9 + $0x448] sm:$0xff]
        %v3547 = vld [vmem:[#allocation9 + $0x450] sm:$0xff]
        %v3548 = vld [vmem:[#allocation9 + $0x458] sm:$0xff]
        %v3549 = vld [vmem:[#allocation9 + $0x460] sm:$0xff]
        %v3550 = vld [vmem:[#allocation9 + $0x468] sm:$0xff]
        %v3551 = vld [vmem:[#allocation9 + $0x470] sm:$0xff]
        %v3552 = vld [vmem:[#allocation9 + $0x478] sm:$0xff]
        %v3713 = vunpack.c.l.b16 %v3249
        %v3714 = vunpack.c.h.b16 %v3249
        %v3715 = vunpack.c.l.b16 %v3250
        %v3716 = vunpack.c.h.b16 %v3250
        %v3717 = vunpack.c.l.b16 %v3251
        %v3718 = vunpack.c.h.b16 %v3251
        %v3719 = vunpack.c.l.b16 %v3252
        %v3720 = vunpack.c.h.b16 %v3252
        %v3721 = vunpack.c.l.b16 %v3253
        %v3722 = vunpack.c.l.b16 %v3254
        %v3723 = vunpack.c.h.b16 %v3254
        %v3724 = vunpack.c.l.b16 %v3255
        %v3725 = vunpack.c.h.b16 %v3255
        %v3726 = vunpack.c.l.b16 %v3256
        %v3727 = vunpack.c.h.b16 %v3256
        %v3728 = vunpack.c.l.b16 %v3257
        %v3729 = vunpack.c.h.b16 %v3257
        %v3730 = vunpack.c.l.b16 %v3258
        %v3731 = vunpack.c.l.b16 %v3259
        %v3732 = vunpack.c.h.b16 %v3259
        %v3733 = vunpack.c.l.b16 %v3260
        %v3734 = vunpack.c.h.b16 %v3260
        %v3735 = vunpack.c.l.b16 %v3261
        %v3736 = vunpack.c.h.b16 %v3261
        %v3737 = vunpack.c.l.b16 %v3262
        %v3738 = vunpack.c.h.b16 %v3262
        %v3739 = vunpack.c.l.b16 %v3263
        %v3740 = vunpack.c.l.b16 %v3264
        %v3741 = vunpack.c.h.b16 %v3264
        %v3742 = vunpack.c.l.b16 %v3265
        %v3743 = vunpack.c.h.b16 %v3265
        %v3744 = vunpack.c.l.b16 %v3266
        %v3745 = vunpack.c.h.b16 %v3266
        %v3746 = vunpack.c.l.b16 %v3267
        %v3747 = vunpack.c.h.b16 %v3267
        %v3748 = vunpack.c.l.b16 %v3268
        %v3749 = vunpack.c.l.b16 %v3269
        %v3750 = vunpack.c.h.b16 %v3269
        %v3751 = vunpack.c.l.b16 %v3270
        %v3752 = vunpack.c.h.b16 %v3270
        %v3753 = vunpack.c.l.b16 %v3271
        %v3754 = vunpack.c.h.b16 %v3271
        %v3755 = vunpack.c.l.b16 %v3272
        %v3756 = vunpack.c.h.b16 %v3272
        %v3757 = vunpack.c.l.b16 %v3273
        %v3758 = vunpack.c.l.b16 %v3274
        %v3759 = vunpack.c.h.b16 %v3274
        %v3760 = vunpack.c.l.b16 %v3275
        %v3761 = vunpack.c.h.b16 %v3275
        %v3762 = vunpack.c.l.b16 %v3276
        %v3763 = vunpack.c.h.b16 %v3276
        %v3764 = vunpack.c.l.b16 %v3277
        %v3765 = vunpack.c.h.b16 %v3277
        %v3766 = vunpack.c.l.b16 %v3278
        %v3767 = vunpack.c.l.b16 %v3279
        %v3768 = vunpack.c.h.b16 %v3279
        %v3769 = vunpack.c.l.b16 %v3280
        %v3770 = vunpack.c.h.b16 %v3280
        %v3771 = vunpack.c.l.b16 %v3281
        %v3772 = vunpack.c.h.b16 %v3281
        %v3773 = vunpack.c.l.b16 %v3282
        %v3774 = vunpack.c.h.b16 %v3282
        %v3775 = vunpack.c.l.b16 %v3283
        %v3776 = vunpack.c.l.b16 %v3284
        %v3777 = vunpack.c.h.b16 %v3284
        %v3778 = vunpack.c.l.b16 %v3285
        %v3779 = vunpack.c.h.b16 %v3285
        %v3780 = vunpack.c.l.b16 %v3286
        %v3781 = vunpack.c.h.b16 %v3286
        %v3782 = vunpack.c.l.b16 %v3287
        %v3783 = vunpack.c.h.b16 %v3287
        %v3784 = vunpack.c.l.b16 %v3288
        %v3785 = vunpack.c.l.b16 %v3289
        %v3786 = vunpack.c.h.b16 %v3289
        %v3787 = vunpack.c.l.b16 %v3290
        %v3788 = vunpack.c.h.b16 %v3290
        %v3789 = vunpack.c.l.b16 %v3291
        %v3790 = vunpack.c.h.b16 %v3291
        %v3791 = vunpack.c.l.b16 %v3292
        %v3792 = vunpack.c.h.b16 %v3292
        %v3793 = vunpack.c.l.b16 %v3293
        %v3794 = vunpack.c.l.b16 %v3294
        %v3795 = vunpack.c.h.b16 %v3294
        %v3796 = vunpack.c.l.b16 %v3295
        %v3797 = vunpack.c.h.b16 %v3295
        %v3798 = vunpack.c.l.b16 %v3296
        %v3799 = vunpack.c.h.b16 %v3296
        %v3800 = vunpack.c.l.b16 %v3297
        %v3801 = vunpack.c.h.b16 %v3297
        %v3802 = vunpack.c.l.b16 %v3298
        %v3803 = vunpack.c.l.b16 %v3299
        %v3804 = vunpack.c.h.b16 %v3299
        %v3805 = vunpack.c.l.b16 %v3300
        %v3806 = vunpack.c.h.b16 %v3300
        %v3807 = vunpack.c.l.b16 %v3301
        %v3808 = vunpack.c.h.b16 %v3301
        %v3809 = vunpack.c.l.b16 %v3302
        %v3810 = vunpack.c.h.b16 %v3302
        %v3811 = vunpack.c.l.b16 %v3303
        %v3812 = vunpack.c.l.b16 %v3304
        %v3813 = vunpack.c.h.b16 %v3304
        %v3814 = vunpack.c.l.b16 %v3305
        %v3815 = vunpack.c.h.b16 %v3305
        %v3816 = vunpack.c.l.b16 %v3306
        %v3817 = vunpack.c.h.b16 %v3306
        %v3818 = vunpack.c.l.b16 %v3307
        %v3819 = vunpack.c.h.b16 %v3307
        %v3820 = vunpack.c.l.b16 %v3308
        %v3821 = vunpack.c.l.b16 %v3309
        %v3822 = vunpack.c.h.b16 %v3309
        %v3823 = vunpack.c.l.b16 %v3310
        %v3824 = vunpack.c.h.b16 %v3310
        %v3825 = vunpack.c.l.b16 %v3311
        %v3826 = vunpack.c.h.b16 %v3311
        %v3827 = vunpack.c.l.b16 %v3312
        %v3828 = vunpack.c.h.b16 %v3312
        %v3829 = vunpack.c.l.b16 %v3313
        %v3830 = vunpack.c.l.b16 %v3314
        %v3831 = vunpack.c.h.b16 %v3314
        %v3832 = vunpack.c.l.b16 %v3315
        %v3833 = vunpack.c.h.b16 %v3315
        %v3834 = vunpack.c.l.b16 %v3316
        %v3835 = vunpack.c.h.b16 %v3316
        %v3836 = vunpack.c.l.b16 %v3317
        %v3837 = vunpack.c.h.b16 %v3317
        %v3838 = vunpack.c.l.b16 %v3318
        %v3839 = vunpack.c.l.b16 %v3319
        %v3840 = vunpack.c.h.b16 %v3319
        %v3841 = vunpack.c.l.b16 %v3320
        %v3842 = vunpack.c.h.b16 %v3320
        %v3843 = vunpack.c.l.b16 %v3321
        %v3844 = vunpack.c.h.b16 %v3321
        %v3845 = vunpack.c.l.b16 %v3322
        %v3846 = vunpack.c.h.b16 %v3322
        %v3847 = vunpack.c.l.b16 %v3323
        %v3848 = vunpack.c.l.b16 %v3324
        %v3849 = vunpack.c.h.b16 %v3324
        %v3850 = vunpack.c.l.b16 %v3325
        %v3851 = vunpack.c.h.b16 %v3325
        %v3852 = vunpack.c.l.b16 %v3326
        %v3853 = vunpack.c.h.b16 %v3326
        %v3854 = vunpack.c.l.b16 %v3327
        %v3855 = vunpack.c.h.b16 %v3327
        %v3856 = vunpack.c.l.b16 %v3328
        %v3857 = vunpack.c.l.b16 %v3329
        %v3858 = vunpack.c.h.b16 %v3329
        %v3859 = vunpack.c.l.b16 %v3330
        %v3860 = vunpack.c.h.b16 %v3330
        %v3861 = vunpack.c.l.b16 %v3331
        %v3862 = vunpack.c.h.b16 %v3331
        %v3863 = vunpack.c.l.b16 %v3332
        %v3864 = vunpack.c.h.b16 %v3332
        %v3865 = vunpack.c.l.b16 %v3333
        %v3866 = vunpack.c.l.b16 %v3334
        %v3867 = vunpack.c.h.b16 %v3334
        %v3868 = vunpack.c.l.b16 %v3335
        %v3869 = vunpack.c.h.b16 %v3335
        %v3870 = vunpack.c.l.b16 %v3336
        %v3871 = vunpack.c.h.b16 %v3336
        %v3872 = vunpack.c.l.b16 %v3337
        %v3873 = vunpack.c.h.b16 %v3337
        %v3874 = vunpack.c.l.b16 %v3338
        %v3875 = vunpack.c.l.b16 %v3339
        %v3876 = vunpack.c.h.b16 %v3339
        %v3877 = vunpack.c.l.b16 %v3340
        %v3878 = vunpack.c.h.b16 %v3340
        %v3879 = vunpack.c.l.b16 %v3341
        %v3880 = vunpack.c.h.b16 %v3341
        %v3881 = vunpack.c.l.b16 %v3342
        %v3882 = vunpack.c.h.b16 %v3342
        %v3883 = vunpack.c.l.b16 %v3343
        %v3884 = vunpack.c.l.b16 %v3344
        %v3885 = vunpack.c.h.b16 %v3344
        %v3886 = vunpack.c.l.b16 %v3345
        %v3887 = vunpack.c.h.b16 %v3345
        %v3888 = vunpack.c.l.b16 %v3346
        %v3889 = vunpack.c.h.b16 %v3346
        %v3890 = vunpack.c.l.b16 %v3347
        %v3891 = vunpack.c.h.b16 %v3347
        %v3892 = vunpack.c.l.b16 %v3348
        %v3893 = vunpack.c.l.b16 %v3349
        %v3894 = vunpack.c.h.b16 %v3349
        %v3895 = vunpack.c.l.b16 %v3350
        %v3896 = vunpack.c.h.b16 %v3350
        %v3897 = vunpack.c.l.b16 %v3351
        %v3898 = vunpack.c.h.b16 %v3351
        %v3899 = vunpack.c.l.b16 %v3352
        %v3900 = vunpack.c.h.b16 %v3352
        %v3901 = vunpack.c.l.b16 %v3353
        %v3902 = vunpack.c.l.b16 %v3354
        %v3903 = vunpack.c.h.b16 %v3354
        %v3904 = vunpack.c.l.b16 %v3355
        %v3905 = vunpack.c.h.b16 %v3355
        %v3906 = vunpack.c.l.b16 %v3356
        %v3907 = vunpack.c.h.b16 %v3356
        %v3908 = vunpack.c.l.b16 %v3357
        %v3909 = vunpack.c.h.b16 %v3357
        %v3910 = vunpack.c.l.b16 %v3358
        %v3911 = vunpack.c.l.b16 %v3359
        %v3912 = vunpack.c.h.b16 %v3359
        %v3913 = vunpack.c.l.b16 %v3360
        %v3914 = vunpack.c.h.b16 %v3360
        %v3915 = vunpack.c.l.b16 %v3361
        %v3916 = vunpack.c.h.b16 %v3361
        %v3917 = vunpack.c.l.b16 %v3362
        %v3918 = vunpack.c.h.b16 %v3362
        %v3919 = vunpack.c.l.b16 %v3363
        %v3920 = vunpack.c.l.b16 %v3364
        %v3921 = vunpack.c.h.b16 %v3364
        %v3922 = vunpack.c.l.b16 %v3365
        %v3923 = vunpack.c.h.b16 %v3365
        %v3924 = vunpack.c.l.b16 %v3366
        %v3925 = vunpack.c.h.b16 %v3366
        %v3926 = vunpack.c.l.b16 %v3367
        %v3927 = vunpack.c.h.b16 %v3367
        %v3928 = vunpack.c.l.b16 %v3368
        %v3929 = vunpack.c.l.b16 %v3369
        %v3930 = vunpack.c.h.b16 %v3369
        %v3931 = vunpack.c.l.b16 %v3370
        %v3932 = vunpack.c.h.b16 %v3370
        %v3933 = vunpack.c.l.b16 %v3371
        %v3934 = vunpack.c.h.b16 %v3371
        %v3935 = vunpack.c.l.b16 %v3372
        %v3936 = vunpack.c.h.b16 %v3372
        %v3937 = vunpack.c.l.b16 %v3373
        %v3938 = vunpack.c.l.b16 %v3374
        %v3939 = vunpack.c.h.b16 %v3374
        %v3940 = vunpack.c.l.b16 %v3375
        %v3941 = vunpack.c.h.b16 %v3375
        %v3942 = vunpack.c.l.b16 %v3376
        %v3943 = vunpack.c.h.b16 %v3376
        %v3944 = vunpack.c.l.b16 %v3377
        %v3945 = vunpack.c.h.b16 %v3377
        %v3946 = vunpack.c.l.b16 %v3378
        %v3947 = vunpack.c.l.b16 %v3379
        %v3948 = vunpack.c.h.b16 %v3379
        %v3949 = vunpack.c.l.b16 %v3380
        %v3950 = vunpack.c.h.b16 %v3380
        %v3951 = vunpack.c.l.b16 %v3381
        %v3952 = vunpack.c.h.b16 %v3381
        %v3953 = vunpack.c.l.b16 %v3382
        %v3954 = vunpack.c.h.b16 %v3382
        %v3955 = vunpack.c.l.b16 %v3383
        %v3956 = vunpack.c.l.b16 %v3384
        %v3957 = vunpack.c.h.b16 %v3384
        %v3958 = vunpack.c.l.b16 %v3385
        %v3959 = vunpack.c.h.b16 %v3385
        %v3960 = vunpack.c.l.b16 %v3386
        %v3961 = vunpack.c.h.b16 %v3386
        %v3962 = vunpack.c.l.b16 %v3387
        %v3963 = vunpack.c.h.b16 %v3387
        %v3964 = vunpack.c.l.b16 %v3388
        %v3965 = vunpack.c.l.b16 %v3389
        %v3966 = vunpack.c.h.b16 %v3389
        %v3967 = vunpack.c.l.b16 %v3390
        %v3968 = vunpack.c.h.b16 %v3390
        %v3969 = vunpack.c.l.b16 %v3391
        %v3970 = vunpack.c.h.b16 %v3391
        %v3971 = vunpack.c.l.b16 %v3392
        %v3972 = vunpack.c.h.b16 %v3392
        %v3973 = vunpack.c.l.b16 %v3393
        %v3974 = vunpack.c.l.b16 %v3394
        %v3975 = vunpack.c.h.b16 %v3394
        %v3976 = vunpack.c.l.b16 %v3395
        %v3977 = vunpack.c.h.b16 %v3395
        %v3978 = vunpack.c.l.b16 %v3396
        %v3979 = vunpack.c.h.b16 %v3396
        %v3980 = vunpack.c.l.b16 %v3397
        %v3981 = vunpack.c.h.b16 %v3397
        %v3982 = vunpack.c.l.b16 %v3398
        %v3983 = vunpack.c.l.b16 %v3399
        %v3984 = vunpack.c.h.b16 %v3399
        %v3985 = vunpack.c.l.b16 %v3400
        %v3986 = vunpack.c.h.b16 %v3400
        %v3987 = vunpack.c.l.b16 %v3401
        %v3988 = vunpack.c.h.b16 %v3401
        %v3989 = vunpack.c.l.b16 %v3402
        %v3990 = vunpack.c.h.b16 %v3402
        %v3991 = vunpack.c.l.b16 %v3403
        %v3992 = vunpack.c.l.b16 %v3404
        %v3993 = vunpack.c.h.b16 %v3404
        %v3994 = vunpack.c.l.b16 %v3405
        %v3995 = vunpack.c.h.b16 %v3405
        %v3996 = vunpack.c.l.b16 %v3406
        %v3997 = vunpack.c.h.b16 %v3406
        %v3998 = vunpack.c.l.b16 %v3407
        %v3999 = vunpack.c.h.b16 %v3407
        %v4000 = vunpack.c.l.b16 %v3408
        %v4001 = vpack.c.b16 %v3722, %v3713
        %v4002 = vpack.c.b16 %v3723, %v3714
        %v4003 = vpack.c.b16 %v3724, %v3715
        %v4004 = vpack.c.b16 %v3725, %v3716
        %v4005 = vpack.c.b16 %v3726, %v3717
        %v4006 = vpack.c.b16 %v3727, %v3718
        %v4007 = vpack.c.b16 %v3728, %v3719
        %v4008 = vpack.c.b16 %v3729, %v3720
        %v4009 = vpack.c.b16 %v3730, %v3721
        %v4010 = vpack.c.b16 %v3740, %v3731
        %v4011 = vpack.c.b16 %v3741, %v3732
        %v4012 = vpack.c.b16 %v3742, %v3733
        %v4013 = vpack.c.b16 %v3743, %v3734
        %v4014 = vpack.c.b16 %v3744, %v3735
        %v4015 = vpack.c.b16 %v3745, %v3736
        %v4016 = vpack.c.b16 %v3746, %v3737
        %v4017 = vpack.c.b16 %v3747, %v3738
        %v4018 = vpack.c.b16 %v3748, %v3739
        %v4019 = vpack.c.b16 %v3758, %v3749
        %v4020 = vpack.c.b16 %v3759, %v3750
        %v4021 = vpack.c.b16 %v3760, %v3751
        %v4022 = vpack.c.b16 %v3761, %v3752
        %v4023 = vpack.c.b16 %v3762, %v3753
        %v4024 = vpack.c.b16 %v3763, %v3754
        %v4025 = vpack.c.b16 %v3764, %v3755
        %v4026 = vpack.c.b16 %v3765, %v3756
        %v4027 = vpack.c.b16 %v3766, %v3757
        %v4028 = vpack.c.b16 %v3776, %v3767
        %v4029 = vpack.c.b16 %v3777, %v3768
        %v4030 = vpack.c.b16 %v3778, %v3769
        %v4031 = vpack.c.b16 %v3779, %v3770
        %v4032 = vpack.c.b16 %v3780, %v3771
        %v4033 = vpack.c.b16 %v3781, %v3772
        %v4034 = vpack.c.b16 %v3782, %v3773
        %v4035 = vpack.c.b16 %v3783, %v3774
        %v4036 = vpack.c.b16 %v3784, %v3775
        %v4037 = vpack.c.b16 %v3794, %v3785
        %v4038 = vpack.c.b16 %v3795, %v3786
        %v4039 = vpack.c.b16 %v3796, %v3787
        %v4040 = vpack.c.b16 %v3797, %v3788
        %v4041 = vpack.c.b16 %v3798, %v3789
        %v4042 = vpack.c.b16 %v3799, %v3790
        %v4043 = vpack.c.b16 %v3800, %v3791
        %v4044 = vpack.c.b16 %v3801, %v3792
        %v4045 = vpack.c.b16 %v3802, %v3793
        %v4046 = vpack.c.b16 %v3812, %v3803
        %v4047 = vpack.c.b16 %v3813, %v3804
        %v4048 = vpack.c.b16 %v3814, %v3805
        %v4049 = vpack.c.b16 %v3815, %v3806
        %v4050 = vpack.c.b16 %v3816, %v3807
        %v4051 = vpack.c.b16 %v3817, %v3808
        %v4052 = vpack.c.b16 %v3818, %v3809
        %v4053 = vpack.c.b16 %v3819, %v3810
        %v4054 = vpack.c.b16 %v3820, %v3811
        %v4055 = vpack.c.b16 %v3830, %v3821
        %v4056 = vpack.c.b16 %v3831, %v3822
        %v4057 = vpack.c.b16 %v3832, %v3823
        %v4058 = vpack.c.b16 %v3833, %v3824
        %v4059 = vpack.c.b16 %v3834, %v3825
        %v4060 = vpack.c.b16 %v3835, %v3826
        %v4061 = vpack.c.b16 %v3836, %v3827
        %v4062 = vpack.c.b16 %v3837, %v3828
        %v4063 = vpack.c.b16 %v3838, %v3829
        %v4064 = vpack.c.b16 %v3848, %v3839
        %v4065 = vpack.c.b16 %v3849, %v3840
        %v4066 = vpack.c.b16 %v3850, %v3841
        %v4067 = vpack.c.b16 %v3851, %v3842
        %v4068 = vpack.c.b16 %v3852, %v3843
        %v4069 = vpack.c.b16 %v3853, %v3844
        %v4070 = vpack.c.b16 %v3854, %v3845
        %v4071 = vpack.c.b16 %v3855, %v3846
        %v4072 = vpack.c.b16 %v3856, %v3847
        %v4073 = vpack.c.b16 %v3866, %v3857
        %v4074 = vpack.c.b16 %v3867, %v3858
        %v4075 = vpack.c.b16 %v3868, %v3859
        %v4076 = vpack.c.b16 %v3869, %v3860
        %v4077 = vpack.c.b16 %v3870, %v3861
        %v4078 = vpack.c.b16 %v3871, %v3862
        %v4079 = vpack.c.b16 %v3872, %v3863
        %v4080 = vpack.c.b16 %v3873, %v3864
        %v4081 = vpack.c.b16 %v3874, %v3865
        %v4082 = vpack.c.b16 %v3884, %v3875
        %v4083 = vpack.c.b16 %v3885, %v3876
        %v4084 = vpack.c.b16 %v3886, %v3877
        %v4085 = vpack.c.b16 %v3887, %v3878
        %v4086 = vpack.c.b16 %v3888, %v3879
        %v4087 = vpack.c.b16 %v3889, %v3880
        %v4088 = vpack.c.b16 %v3890, %v3881
        %v4089 = vpack.c.b16 %v3891, %v3882
        %v4090 = vpack.c.b16 %v3892, %v3883
        %v4091 = vpack.c.b16 %v3902, %v3893
        %v4092 = vpack.c.b16 %v3903, %v3894
        %v4093 = vpack.c.b16 %v3904, %v3895
        %v4094 = vpack.c.b16 %v3905, %v3896
        %v4095 = vpack.c.b16 %v3906, %v3897
        %v4096 = vpack.c.b16 %v3907, %v3898
        %v4097 = vpack.c.b16 %v3908, %v3899
        %v4098 = vpack.c.b16 %v3909, %v3900
        %v4099 = vpack.c.b16 %v3910, %v3901
        %v4100 = vpack.c.b16 %v3920, %v3911
        %v4101 = vpack.c.b16 %v3921, %v3912
        %v4102 = vpack.c.b16 %v3922, %v3913
        %v4103 = vpack.c.b16 %v3923, %v3914
        %v4104 = vpack.c.b16 %v3924, %v3915
        %v4105 = vpack.c.b16 %v3925, %v3916
        %v4106 = vpack.c.b16 %v3926, %v3917
        %v4107 = vpack.c.b16 %v3927, %v3918
        %v4108 = vpack.c.b16 %v3928, %v3919
        %v4109 = vpack.c.b16 %v3938, %v3929
        %v4110 = vpack.c.b16 %v3939, %v3930
        %v4111 = vpack.c.b16 %v3940, %v3931
        %v4112 = vpack.c.b16 %v3941, %v3932
        %v4113 = vpack.c.b16 %v3942, %v3933
        %v4114 = vpack.c.b16 %v3943, %v3934
        %v4115 = vpack.c.b16 %v3944, %v3935
        %v4116 = vpack.c.b16 %v3945, %v3936
        %v4117 = vpack.c.b16 %v3946, %v3937
        %v4118 = vpack.c.b16 %v3956, %v3947
        %v4119 = vpack.c.b16 %v3957, %v3948
        %v4120 = vpack.c.b16 %v3958, %v3949
        %v4121 = vpack.c.b16 %v3959, %v3950
        %v4122 = vpack.c.b16 %v3960, %v3951
        %v4123 = vpack.c.b16 %v3961, %v3952
        %v4124 = vpack.c.b16 %v3962, %v3953
        %v4125 = vpack.c.b16 %v3963, %v3954
        %v4126 = vpack.c.b16 %v3964, %v3955
        %v4127 = vpack.c.b16 %v3974, %v3965
        %v4128 = vpack.c.b16 %v3975, %v3966
        %v4129 = vpack.c.b16 %v3976, %v3967
        %v4130 = vpack.c.b16 %v3977, %v3968
        %v4131 = vpack.c.b16 %v3978, %v3969
        %v4132 = vpack.c.b16 %v3979, %v3970
        %v4133 = vpack.c.b16 %v3980, %v3971
        %v4134 = vpack.c.b16 %v3981, %v3972
        %v4135 = vpack.c.b16 %v3982, %v3973
        %v4136 = vpack.c.b16 %v3992, %v3983
        %v4137 = vpack.c.b16 %v3993, %v3984
        %v4138 = vpack.c.b16 %v3994, %v3985
        %v4139 = vpack.c.b16 %v3995, %v3986
        %v4140 = vpack.c.b16 %v3996, %v3987
        %v4141 = vpack.c.b16 %v3997, %v3988
        %v4142 = vpack.c.b16 %v3998, %v3989
        %v4143 = vpack.c.b16 %v3999, %v3990
        %v4144 = vpack.c.b16 %v4000, %v3991
        %v4433 = vunpack.c.l.b16 %v3409
        %v4434 = vunpack.c.h.b16 %v3409
        %v4435 = vunpack.c.l.b16 %v3410
        %v4436 = vunpack.c.h.b16 %v3410
        %v4437 = vunpack.c.l.b16 %v3411
        %v4438 = vunpack.c.h.b16 %v3411
        %v4439 = vunpack.c.l.b16 %v3412
        %v4440 = vunpack.c.h.b16 %v3412
        %v4441 = vunpack.c.l.b16 %v3413
        %v4442 = vunpack.c.h.b16 %v3413
        %v4443 = vunpack.c.l.b16 %v3414
        %v4444 = vunpack.c.h.b16 %v3414
        %v4445 = vunpack.c.l.b16 %v3415
        %v4446 = vunpack.c.h.b16 %v3415
        %v4447 = vunpack.c.l.b16 %v3416
        %v4448 = vunpack.c.h.b16 %v3416
        %v4449 = vunpack.c.l.b16 %v3417
        %v4450 = vunpack.c.h.b16 %v3417
        %v4451 = vunpack.c.l.b16 %v3418
        %v4452 = vunpack.c.h.b16 %v3418
        %v4453 = vunpack.c.l.b16 %v3419
        %v4454 = vunpack.c.h.b16 %v3419
        %v4455 = vunpack.c.l.b16 %v3420
        %v4456 = vunpack.c.h.b16 %v3420
        %v4457 = vunpack.c.l.b16 %v3421
        %v4458 = vunpack.c.h.b16 %v3421
        %v4459 = vunpack.c.l.b16 %v3422
        %v4460 = vunpack.c.h.b16 %v3422
        %v4461 = vunpack.c.l.b16 %v3423
        %v4462 = vunpack.c.h.b16 %v3423
        %v4463 = vunpack.c.l.b16 %v3424
        %v4464 = vunpack.c.h.b16 %v3424
        %v4465 = vunpack.c.l.b16 %v3425
        %v4466 = vunpack.c.h.b16 %v3425
        %v4467 = vunpack.c.l.b16 %v3426
        %v4468 = vunpack.c.h.b16 %v3426
        %v4469 = vunpack.c.l.b16 %v3427
        %v4470 = vunpack.c.h.b16 %v3427
        %v4471 = vunpack.c.l.b16 %v3428
        %v4472 = vunpack.c.h.b16 %v3428
        %v4473 = vunpack.c.l.b16 %v3429
        %v4474 = vunpack.c.h.b16 %v3429
        %v4475 = vunpack.c.l.b16 %v3430
        %v4476 = vunpack.c.h.b16 %v3430
        %v4477 = vunpack.c.l.b16 %v3431
        %v4478 = vunpack.c.h.b16 %v3431
        %v4479 = vunpack.c.l.b16 %v3432
        %v4480 = vunpack.c.h.b16 %v3432
        %v4481 = vunpack.c.l.b16 %v3433
        %v4482 = vunpack.c.h.b16 %v3433
        %v4483 = vunpack.c.l.b16 %v3434
        %v4484 = vunpack.c.h.b16 %v3434
        %v4485 = vunpack.c.l.b16 %v3435
        %v4486 = vunpack.c.h.b16 %v3435
        %v4487 = vunpack.c.l.b16 %v3436
        %v4488 = vunpack.c.h.b16 %v3436
        %v4489 = vunpack.c.l.b16 %v3437
        %v4490 = vunpack.c.h.b16 %v3437
        %v4491 = vunpack.c.l.b16 %v3438
        %v4492 = vunpack.c.h.b16 %v3438
        %v4493 = vunpack.c.l.b16 %v3439
        %v4494 = vunpack.c.h.b16 %v3439
        %v4495 = vunpack.c.l.b16 %v3440
        %v4496 = vunpack.c.h.b16 %v3440
        %v4497 = vunpack.c.l.b16 %v3441
        %v4498 = vunpack.c.h.b16 %v3441
        %v4499 = vunpack.c.l.b16 %v3442
        %v4500 = vunpack.c.h.b16 %v3442
        %v4501 = vunpack.c.l.b16 %v3443
        %v4502 = vunpack.c.h.b16 %v3443
        %v4503 = vunpack.c.l.b16 %v3444
        %v4504 = vunpack.c.h.b16 %v3444
        %v4505 = vunpack.c.l.b16 %v3445
        %v4506 = vunpack.c.h.b16 %v3445
        %v4507 = vunpack.c.l.b16 %v3446
        %v4508 = vunpack.c.h.b16 %v3446
        %v4509 = vunpack.c.l.b16 %v3447
        %v4510 = vunpack.c.h.b16 %v3447
        %v4511 = vunpack.c.l.b16 %v3448
        %v4512 = vunpack.c.h.b16 %v3448
        %v4513 = vunpack.c.l.b16 %v3449
        %v4514 = vunpack.c.h.b16 %v3449
        %v4515 = vunpack.c.l.b16 %v3450
        %v4516 = vunpack.c.h.b16 %v3450
        %v4517 = vunpack.c.l.b16 %v3451
        %v4518 = vunpack.c.h.b16 %v3451
        %v4519 = vunpack.c.l.b16 %v3452
        %v4520 = vunpack.c.h.b16 %v3452
        %v4521 = vunpack.c.l.b16 %v3453
        %v4522 = vunpack.c.h.b16 %v3453
        %v4523 = vunpack.c.l.b16 %v3454
        %v4524 = vunpack.c.h.b16 %v3454
        %v4525 = vunpack.c.l.b16 %v3455
        %v4526 = vunpack.c.h.b16 %v3455
        %v4527 = vunpack.c.l.b16 %v3456
        %v4528 = vunpack.c.h.b16 %v3456
        %v4529 = vunpack.c.l.b16 %v3457
        %v4530 = vunpack.c.h.b16 %v3457
        %v4531 = vunpack.c.l.b16 %v3458
        %v4532 = vunpack.c.h.b16 %v3458
        %v4533 = vunpack.c.l.b16 %v3459
        %v4534 = vunpack.c.h.b16 %v3459
        %v4535 = vunpack.c.l.b16 %v3460
        %v4536 = vunpack.c.h.b16 %v3460
        %v4537 = vunpack.c.l.b16 %v3461
        %v4538 = vunpack.c.h.b16 %v3461
        %v4539 = vunpack.c.l.b16 %v3462
        %v4540 = vunpack.c.h.b16 %v3462
        %v4541 = vunpack.c.l.b16 %v3463
        %v4542 = vunpack.c.h.b16 %v3463
        %v4543 = vunpack.c.l.b16 %v3464
        %v4544 = vunpack.c.h.b16 %v3464
        %v4545 = vunpack.c.l.b16 %v3465
        %v4546 = vunpack.c.h.b16 %v3465
        %v4547 = vunpack.c.l.b16 %v3466
        %v4548 = vunpack.c.h.b16 %v3466
        %v4549 = vunpack.c.l.b16 %v3467
        %v4550 = vunpack.c.h.b16 %v3467
        %v4551 = vunpack.c.l.b16 %v3468
        %v4552 = vunpack.c.h.b16 %v3468
        %v4553 = vunpack.c.l.b16 %v3469
        %v4554 = vunpack.c.h.b16 %v3469
        %v4555 = vunpack.c.l.b16 %v3470
        %v4556 = vunpack.c.h.b16 %v3470
        %v4557 = vunpack.c.l.b16 %v3471
        %v4558 = vunpack.c.h.b16 %v3471
        %v4559 = vunpack.c.l.b16 %v3472
        %v4560 = vunpack.c.h.b16 %v3472
        %v4561 = vunpack.c.l.b16 %v3473
        %v4562 = vunpack.c.h.b16 %v3473
        %v4563 = vunpack.c.l.b16 %v3474
        %v4564 = vunpack.c.h.b16 %v3474
        %v4565 = vunpack.c.l.b16 %v3475
        %v4566 = vunpack.c.h.b16 %v3475
        %v4567 = vunpack.c.l.b16 %v3476
        %v4568 = vunpack.c.h.b16 %v3476
        %v4569 = vunpack.c.l.b16 %v3477
        %v4570 = vunpack.c.h.b16 %v3477
        %v4571 = vunpack.c.l.b16 %v3478
        %v4572 = vunpack.c.h.b16 %v3478
        %v4573 = vunpack.c.l.b16 %v3479
        %v4574 = vunpack.c.h.b16 %v3479
        %v4575 = vunpack.c.l.b16 %v3480
        %v4576 = vunpack.c.h.b16 %v3480
        %v4577 = vunpack.c.l.b16 %v3481
        %v4578 = vunpack.c.h.b16 %v3481
        %v4579 = vunpack.c.l.b16 %v3482
        %v4580 = vunpack.c.h.b16 %v3482
        %v4581 = vunpack.c.l.b16 %v3483
        %v4582 = vunpack.c.h.b16 %v3483
        %v4583 = vunpack.c.l.b16 %v3484
        %v4584 = vunpack.c.h.b16 %v3484
        %v4585 = vunpack.c.l.b16 %v3485
        %v4586 = vunpack.c.h.b16 %v3485
        %v4587 = vunpack.c.l.b16 %v3486
        %v4588 = vunpack.c.h.b16 %v3486
        %v4589 = vunpack.c.l.b16 %v3487
        %v4590 = vunpack.c.h.b16 %v3487
        %v4591 = vunpack.c.l.b16 %v3488
        %v4592 = vunpack.c.h.b16 %v3488
        %v4593 = vunpack.c.l.b16 %v3489
        %v4594 = vunpack.c.h.b16 %v3489
        %v4595 = vunpack.c.l.b16 %v3490
        %v4596 = vunpack.c.h.b16 %v3490
        %v4597 = vunpack.c.l.b16 %v3491
        %v4598 = vunpack.c.h.b16 %v3491
        %v4599 = vunpack.c.l.b16 %v3492
        %v4600 = vunpack.c.h.b16 %v3492
        %v4601 = vunpack.c.l.b16 %v3493
        %v4602 = vunpack.c.h.b16 %v3493
        %v4603 = vunpack.c.l.b16 %v3494
        %v4604 = vunpack.c.h.b16 %v3494
        %v4605 = vunpack.c.l.b16 %v3495
        %v4606 = vunpack.c.h.b16 %v3495
        %v4607 = vunpack.c.l.b16 %v3496
        %v4608 = vunpack.c.h.b16 %v3496
        %v4609 = vunpack.c.l.b16 %v3497
        %v4610 = vunpack.c.h.b16 %v3497
        %v4611 = vunpack.c.l.b16 %v3498
        %v4612 = vunpack.c.h.b16 %v3498
        %v4613 = vunpack.c.l.b16 %v3499
        %v4614 = vunpack.c.h.b16 %v3499
        %v4615 = vunpack.c.l.b16 %v3500
        %v4616 = vunpack.c.h.b16 %v3500
        %v4617 = vunpack.c.l.b16 %v3501
        %v4618 = vunpack.c.h.b16 %v3501
        %v4619 = vunpack.c.l.b16 %v3502
        %v4620 = vunpack.c.h.b16 %v3502
        %v4621 = vunpack.c.l.b16 %v3503
        %v4622 = vunpack.c.h.b16 %v3503
        %v4623 = vunpack.c.l.b16 %v3504
        %v4624 = vunpack.c.h.b16 %v3504
        %v4625 = vunpack.c.l.b16 %v3505
        %v4626 = vunpack.c.h.b16 %v3505
        %v4627 = vunpack.c.l.b16 %v3506
        %v4628 = vunpack.c.h.b16 %v3506
        %v4629 = vunpack.c.l.b16 %v3507
        %v4630 = vunpack.c.h.b16 %v3507
        %v4631 = vunpack.c.l.b16 %v3508
        %v4632 = vunpack.c.h.b16 %v3508
        %v4633 = vunpack.c.l.b16 %v3509
        %v4634 = vunpack.c.h.b16 %v3509
        %v4635 = vunpack.c.l.b16 %v3510
        %v4636 = vunpack.c.h.b16 %v3510
        %v4637 = vunpack.c.l.b16 %v3511
        %v4638 = vunpack.c.h.b16 %v3511
        %v4639 = vunpack.c.l.b16 %v3512
        %v4640 = vunpack.c.h.b16 %v3512
        %v4641 = vunpack.c.l.b16 %v3513
        %v4642 = vunpack.c.h.b16 %v3513
        %v4643 = vunpack.c.l.b16 %v3514
        %v4644 = vunpack.c.h.b16 %v3514
        %v4645 = vunpack.c.l.b16 %v3515
        %v4646 = vunpack.c.h.b16 %v3515
        %v4647 = vunpack.c.l.b16 %v3516
        %v4648 = vunpack.c.h.b16 %v3516
        %v4649 = vunpack.c.l.b16 %v3517
        %v4650 = vunpack.c.h.b16 %v3517
        %v4651 = vunpack.c.l.b16 %v3518
        %v4652 = vunpack.c.h.b16 %v3518
        %v4653 = vunpack.c.l.b16 %v3519
        %v4654 = vunpack.c.h.b16 %v3519
        %v4655 = vunpack.c.l.b16 %v3520
        %v4656 = vunpack.c.h.b16 %v3520
        %v4657 = vunpack.c.l.b16 %v3521
        %v4658 = vunpack.c.h.b16 %v3521
        %v4659 = vunpack.c.l.b16 %v3522
        %v4660 = vunpack.c.h.b16 %v3522
        %v4661 = vunpack.c.l.b16 %v3523
        %v4662 = vunpack.c.h.b16 %v3523
        %v4663 = vunpack.c.l.b16 %v3524
        %v4664 = vunpack.c.h.b16 %v3524
        %v4665 = vunpack.c.l.b16 %v3525
        %v4666 = vunpack.c.h.b16 %v3525
        %v4667 = vunpack.c.l.b16 %v3526
        %v4668 = vunpack.c.h.b16 %v3526
        %v4669 = vunpack.c.l.b16 %v3527
        %v4670 = vunpack.c.h.b16 %v3527
        %v4671 = vunpack.c.l.b16 %v3528
        %v4672 = vunpack.c.h.b16 %v3528
        %v4673 = vunpack.c.l.b16 %v3529
        %v4674 = vunpack.c.h.b16 %v3529
        %v4675 = vunpack.c.l.b16 %v3530
        %v4676 = vunpack.c.h.b16 %v3530
        %v4677 = vunpack.c.l.b16 %v3531
        %v4678 = vunpack.c.h.b16 %v3531
        %v4679 = vunpack.c.l.b16 %v3532
        %v4680 = vunpack.c.h.b16 %v3532
        %v4681 = vunpack.c.l.b16 %v3533
        %v4682 = vunpack.c.h.b16 %v3533
        %v4683 = vunpack.c.l.b16 %v3534
        %v4684 = vunpack.c.h.b16 %v3534
        %v4685 = vunpack.c.l.b16 %v3535
        %v4686 = vunpack.c.h.b16 %v3535
        %v4687 = vunpack.c.l.b16 %v3536
        %v4688 = vunpack.c.h.b16 %v3536
        %v4689 = vunpack.c.l.b16 %v3537
        %v4690 = vunpack.c.h.b16 %v3537
        %v4691 = vunpack.c.l.b16 %v3538
        %v4692 = vunpack.c.h.b16 %v3538
        %v4693 = vunpack.c.l.b16 %v3539
        %v4694 = vunpack.c.h.b16 %v3539
        %v4695 = vunpack.c.l.b16 %v3540
        %v4696 = vunpack.c.h.b16 %v3540
        %v4697 = vunpack.c.l.b16 %v3541
        %v4698 = vunpack.c.h.b16 %v3541
        %v4699 = vunpack.c.l.b16 %v3542
        %v4700 = vunpack.c.h.b16 %v3542
        %v4701 = vunpack.c.l.b16 %v3543
        %v4702 = vunpack.c.h.b16 %v3543
        %v4703 = vunpack.c.l.b16 %v3544
        %v4704 = vunpack.c.h.b16 %v3544
        %v4705 = vunpack.c.l.b16 %v3545
        %v4706 = vunpack.c.h.b16 %v3545
        %v4707 = vunpack.c.l.b16 %v3546
        %v4708 = vunpack.c.h.b16 %v3546
        %v4709 = vunpack.c.l.b16 %v3547
        %v4710 = vunpack.c.h.b16 %v3547
        %v4711 = vunpack.c.l.b16 %v3548
        %v4712 = vunpack.c.h.b16 %v3548
        %v4713 = vunpack.c.l.b16 %v3549
        %v4714 = vunpack.c.h.b16 %v3549
        %v4715 = vunpack.c.l.b16 %v3550
        %v4716 = vunpack.c.h.b16 %v3550
        %v4717 = vunpack.c.l.b16 %v3551
        %v4718 = vunpack.c.h.b16 %v3551
        %v4719 = vunpack.c.l.b16 %v3552
        %v4720 = vunpack.c.h.b16 %v3552
        %v4721 = vpack.c.b16 %v4435, %v4433
        %v4722 = vpack.c.b16 %v4436, %v4434
        %v4723 = vpack.c.b16 %v4439, %v4437
        %v4724 = vpack.c.b16 %v4440, %v4438
        %v4725 = vpack.c.b16 %v4443, %v4441
        %v4726 = vpack.c.b16 %v4444, %v4442
        %v4727 = vpack.c.b16 %v4447, %v4445
        %v4728 = vpack.c.b16 %v4448, %v4446
        %v4729 = vpack.c.b16 %v4451, %v4449
        %v4730 = vpack.c.b16 %v4452, %v4450
        %v4731 = vpack.c.b16 %v4455, %v4453
        %v4732 = vpack.c.b16 %v4456, %v4454
        %v4733 = vpack.c.b16 %v4459, %v4457
        %v4734 = vpack.c.b16 %v4460, %v4458
        %v4735 = vpack.c.b16 %v4463, %v4461
        %v4736 = vpack.c.b16 %v4464, %v4462
        %v4737 = vpack.c.b16 %v4467, %v4465
        %v4738 = vpack.c.b16 %v4468, %v4466
        %v4739 = vpack.c.b16 %v4471, %v4469
        %v4740 = vpack.c.b16 %v4472, %v4470
        %v4741 = vpack.c.b16 %v4475, %v4473
        %v4742 = vpack.c.b16 %v4476, %v4474
        %v4743 = vpack.c.b16 %v4479, %v4477
        %v4744 = vpack.c.b16 %v4480, %v4478
        %v4745 = vpack.c.b16 %v4483, %v4481
        %v4746 = vpack.c.b16 %v4484, %v4482
        %v4747 = vpack.c.b16 %v4487, %v4485
        %v4748 = vpack.c.b16 %v4488, %v4486
        %v4749 = vpack.c.b16 %v4491, %v4489
        %v4750 = vpack.c.b16 %v4492, %v4490
        %v4751 = vpack.c.b16 %v4495, %v4493
        %v4752 = vpack.c.b16 %v4496, %v4494
        %v4753 = vpack.c.b16 %v4499, %v4497
        %v4754 = vpack.c.b16 %v4500, %v4498
        %v4755 = vpack.c.b16 %v4503, %v4501
        %v4756 = vpack.c.b16 %v4504, %v4502
        %v4757 = vpack.c.b16 %v4507, %v4505
        %v4758 = vpack.c.b16 %v4508, %v4506
        %v4759 = vpack.c.b16 %v4511, %v4509
        %v4760 = vpack.c.b16 %v4512, %v4510
        %v4761 = vpack.c.b16 %v4515, %v4513
        %v4762 = vpack.c.b16 %v4516, %v4514
        %v4763 = vpack.c.b16 %v4519, %v4517
        %v4764 = vpack.c.b16 %v4520, %v4518
        %v4765 = vpack.c.b16 %v4523, %v4521
        %v4766 = vpack.c.b16 %v4524, %v4522
        %v4767 = vpack.c.b16 %v4527, %v4525
        %v4768 = vpack.c.b16 %v4528, %v4526
        %v4769 = vpack.c.b16 %v4531, %v4529
        %v4770 = vpack.c.b16 %v4532, %v4530
        %v4771 = vpack.c.b16 %v4535, %v4533
        %v4772 = vpack.c.b16 %v4536, %v4534
        %v4773 = vpack.c.b16 %v4539, %v4537
        %v4774 = vpack.c.b16 %v4540, %v4538
        %v4775 = vpack.c.b16 %v4543, %v4541
        %v4776 = vpack.c.b16 %v4544, %v4542
        %v4777 = vpack.c.b16 %v4547, %v4545
        %v4778 = vpack.c.b16 %v4548, %v4546
        %v4779 = vpack.c.b16 %v4551, %v4549
        %v4780 = vpack.c.b16 %v4552, %v4550
        %v4781 = vpack.c.b16 %v4555, %v4553
        %v4782 = vpack.c.b16 %v4556, %v4554
        %v4783 = vpack.c.b16 %v4559, %v4557
        %v4784 = vpack.c.b16 %v4560, %v4558
        %v4785 = vpack.c.b16 %v4563, %v4561
        %v4786 = vpack.c.b16 %v4564, %v4562
        %v4787 = vpack.c.b16 %v4567, %v4565
        %v4788 = vpack.c.b16 %v4568, %v4566
        %v4789 = vpack.c.b16 %v4571, %v4569
        %v4790 = vpack.c.b16 %v4572, %v4570
        %v4791 = vpack.c.b16 %v4575, %v4573
        %v4792 = vpack.c.b16 %v4576, %v4574
        %v4793 = vpack.c.b16 %v4579, %v4577
        %v4794 = vpack.c.b16 %v4580, %v4578
        %v4795 = vpack.c.b16 %v4583, %v4581
        %v4796 = vpack.c.b16 %v4584, %v4582
        %v4797 = vpack.c.b16 %v4587, %v4585
        %v4798 = vpack.c.b16 %v4588, %v4586
        %v4799 = vpack.c.b16 %v4591, %v4589
        %v4800 = vpack.c.b16 %v4592, %v4590
        %v4801 = vpack.c.b16 %v4595, %v4593
        %v4802 = vpack.c.b16 %v4596, %v4594
        %v4803 = vpack.c.b16 %v4599, %v4597
        %v4804 = vpack.c.b16 %v4600, %v4598
        %v4805 = vpack.c.b16 %v4603, %v4601
        %v4806 = vpack.c.b16 %v4604, %v4602
        %v4807 = vpack.c.b16 %v4607, %v4605
        %v4808 = vpack.c.b16 %v4608, %v4606
        %v4809 = vpack.c.b16 %v4611, %v4609
        %v4810 = vpack.c.b16 %v4612, %v4610
        %v4811 = vpack.c.b16 %v4615, %v4613
        %v4812 = vpack.c.b16 %v4616, %v4614
        %v4813 = vpack.c.b16 %v4619, %v4617
        %v4814 = vpack.c.b16 %v4620, %v4618
        %v4815 = vpack.c.b16 %v4623, %v4621
        %v4816 = vpack.c.b16 %v4624, %v4622
        %v4817 = vpack.c.b16 %v4627, %v4625
        %v4818 = vpack.c.b16 %v4628, %v4626
        %v4819 = vpack.c.b16 %v4631, %v4629
        %v4820 = vpack.c.b16 %v4632, %v4630
        %v4821 = vpack.c.b16 %v4635, %v4633
        %v4822 = vpack.c.b16 %v4636, %v4634
        %v4823 = vpack.c.b16 %v4639, %v4637
        %v4824 = vpack.c.b16 %v4640, %v4638
        %v4825 = vpack.c.b16 %v4643, %v4641
        %v4826 = vpack.c.b16 %v4644, %v4642
        %v4827 = vpack.c.b16 %v4647, %v4645
        %v4828 = vpack.c.b16 %v4648, %v4646
        %v4829 = vpack.c.b16 %v4651, %v4649
        %v4830 = vpack.c.b16 %v4652, %v4650
        %v4831 = vpack.c.b16 %v4655, %v4653
        %v4832 = vpack.c.b16 %v4656, %v4654
        %v4833 = vpack.c.b16 %v4659, %v4657
        %v4834 = vpack.c.b16 %v4660, %v4658
        %v4835 = vpack.c.b16 %v4663, %v4661
        %v4836 = vpack.c.b16 %v4664, %v4662
        %v4837 = vpack.c.b16 %v4667, %v4665
        %v4838 = vpack.c.b16 %v4668, %v4666
        %v4839 = vpack.c.b16 %v4671, %v4669
        %v4840 = vpack.c.b16 %v4672, %v4670
        %v4841 = vpack.c.b16 %v4675, %v4673
        %v4842 = vpack.c.b16 %v4676, %v4674
        %v4843 = vpack.c.b16 %v4679, %v4677
        %v4844 = vpack.c.b16 %v4680, %v4678
        %v4845 = vpack.c.b16 %v4683, %v4681
        %v4846 = vpack.c.b16 %v4684, %v4682
        %v4847 = vpack.c.b16 %v4687, %v4685
        %v4848 = vpack.c.b16 %v4688, %v4686
        %v4849 = vpack.c.b16 %v4691, %v4689
        %v4850 = vpack.c.b16 %v4692, %v4690
        %v4851 = vpack.c.b16 %v4695, %v4693
        %v4852 = vpack.c.b16 %v4696, %v4694
        %v4853 = vpack.c.b16 %v4699, %v4697
        %v4854 = vpack.c.b16 %v4700, %v4698
        %v4855 = vpack.c.b16 %v4703, %v4701
        %v4856 = vpack.c.b16 %v4704, %v4702
        %v4857 = vpack.c.b16 %v4707, %v4705
        %v4858 = vpack.c.b16 %v4708, %v4706
        %v4859 = vpack.c.b16 %v4711, %v4709
        %v4860 = vpack.c.b16 %v4712, %v4710
        %v4861 = vpack.c.b16 %v4715, %v4713
        %v4862 = vpack.c.b16 %v4716, %v4714
        %v4863 = vpack.c.b16 %v4719, %v4717
        %v4864 = vpack.c.b16 %v4720, %v4718
        %5009 = vmatprep.subr.bf16.mxu0 %v4736
        %5010 = vmatpush1.bf16.msra.mxu0 %v4735
        %5011 = vmatprep.subr.bf16.mxu0 %v4734
        %5012 = vmatpush1.bf16.msra.mxu0 %v4733
        %5013 = vmatprep.subr.bf16.mxu0 %v4732
        %5014 = vmatpush1.bf16.msra.mxu0 %v4731
        %5015 = vmatprep.subr.bf16.mxu0 %v4730
        %5016 = vmatpush1.bf16.msra.mxu0 %v4729
        %5017 = vmatprep.subr.bf16.mxu0 %v4728
        %5018 = vmatpush1.bf16.msra.mxu0 %v4727
        %5019 = vmatprep.subr.bf16.mxu0 %v4726
        %5020 = vmatpush1.bf16.msra.mxu0 %v4725
        %5021 = vmatprep.subr.bf16.mxu0 %v4724
        %5022 = vmatpush1.bf16.msra.mxu0 %v4723
        %5023 = vmatprep.subr.bf16.mxu0 %v4722
        %5024 = vmatpush1.bf16.msra.mxu0 %v4721
        %5025 = vmatprep.subr.bf16.mxu0 %v4752
        %5026 = vmatpush2.bf16.msra.mxu0 %v4751
        %5027 = vmatprep.subr.bf16.mxu0 %v4750
        %5028 = vmatpush2.bf16.msra.mxu0 %v4749
        %5029 = vmatprep.subr.bf16.mxu0 %v4748
        %5030 = vmatpush2.bf16.msra.mxu0 %v4747
        %5031 = vmatprep.subr.bf16.mxu0 %v4746
        %5032 = vmatpush2.bf16.msra.mxu0 %v4745
        %5033 = vmatprep.subr.bf16.mxu0 %v4744
        %5034 = vmatpush2.bf16.msra.mxu0 %v4743
        %5035 = vmatprep.subr.bf16.mxu0 %v4742
        %5036 = vmatpush2.bf16.msra.mxu0 %v4741
        %5037 = vmatprep.subr.bf16.mxu0 %v4740
        %5038 = vmatpush2.bf16.msra.mxu0 %v4739
        %5039 = vmatprep.subr.bf16.mxu0 %v4738
        %5040 = vmatpush2.bf16.msra.mxu0 %v4737
        %5041 = vmatprep.mubr.bf16.mxu0 %v4002
        %5042 = vmatmul.mubr.bf16.gmra.mxu0 %v4001
        %v5043 = vpop.f32.mrf.mxu0
        %v5044 = vadd.f32 0.0, %v5043
        %v5045 = vpop.f32.mrf.mxu0
        %v5046 = vadd.f32 0.0, %v5045
        %v5047 = vpop.f32.mrf.mxu0
        %v5048 = vadd.f32 0.0, %v5047
        %v5049 = vpop.f32.mrf.mxu0
        %v5050 = vadd.f32 0.0, %v5049
        %5051 = vmatprep.mubr.bf16.mxu0 %v4011
        %5052 = vmatmul.mubr.bf16.gmra.mxu0 %v4010
        %v5053 = vpop.f32.mrf.mxu0
        %v5054 = vadd.f32 0.0, %v5053
        %v5055 = vpop.f32.mrf.mxu0
        %v5056 = vadd.f32 0.0, %v5055
        %v5057 = vpop.f32.mrf.mxu0
        %v5058 = vadd.f32 0.0, %v5057
        %v5059 = vpop.f32.mrf.mxu0
        %v5060 = vadd.f32 0.0, %v5059
        %5061 = vmatprep.mubr.bf16.mxu0 %v4020
        %5062 = vmatmul.mubr.bf16.gmra.mxu0 %v4019
        %v5063 = vpop.f32.mrf.mxu0
        %v5064 = vadd.f32 0.0, %v5063
        %v5065 = vpop.f32.mrf.mxu0
        %v5066 = vadd.f32 0.0, %v5065
        %v5067 = vpop.f32.mrf.mxu0
        %v5068 = vadd.f32 0.0, %v5067
        %v5069 = vpop.f32.mrf.mxu0
        %v5070 = vadd.f32 0.0, %v5069
        %5071 = vmatprep.mubr.bf16.mxu0 %v4029
        %5072 = vmatmul.mubr.bf16.gmra.mxu0 %v4028
        %v5073 = vpop.f32.mrf.mxu0
        %v5074 = vadd.f32 0.0, %v5073
        %v5075 = vpop.f32.mrf.mxu0
        %v5076 = vadd.f32 0.0, %v5075
        %v5077 = vpop.f32.mrf.mxu0
        %v5078 = vadd.f32 0.0, %v5077
        %v5079 = vpop.f32.mrf.mxu0
        %v5080 = vadd.f32 0.0, %v5079
        %5081 = vmatprep.mubr.bf16.mxu0 %v4038
        %5082 = vmatmul.mubr.bf16.gmra.mxu0 %v4037
        %v5083 = vpop.f32.mrf.mxu0
        %v5084 = vadd.f32 0.0, %v5083
        %v5085 = vpop.f32.mrf.mxu0
        %v5086 = vadd.f32 0.0, %v5085
        %v5087 = vpop.f32.mrf.mxu0
        %v5088 = vadd.f32 0.0, %v5087
        %v5089 = vpop.f32.mrf.mxu0
        %v5090 = vadd.f32 0.0, %v5089
        %5091 = vmatprep.mubr.bf16.mxu0 %v4047
        %5092 = vmatmul.mubr.bf16.gmra.mxu0 %v4046
        %v5093 = vpop.f32.mrf.mxu0
        %v5094 = vadd.f32 0.0, %v5093
        %v5095 = vpop.f32.mrf.mxu0
        %v5096 = vadd.f32 0.0, %v5095
        %v5097 = vpop.f32.mrf.mxu0
        %v5098 = vadd.f32 0.0, %v5097
        %v5099 = vpop.f32.mrf.mxu0
        %v5100 = vadd.f32 0.0, %v5099
        %5101 = vmatprep.mubr.bf16.mxu0 %v4056
        %5102 = vmatmul.mubr.bf16.gmra.mxu0 %v4055
        %v5103 = vpop.f32.mrf.mxu0
        %v5104 = vadd.f32 0.0, %v5103
        %v5105 = vpop.f32.mrf.mxu0
        %v5106 = vadd.f32 0.0, %v5105
        %v5107 = vpop.f32.mrf.mxu0
        %v5108 = vadd.f32 0.0, %v5107
        %v5109 = vpop.f32.mrf.mxu0
        %v5110 = vadd.f32 0.0, %v5109
        %5111 = vmatprep.mubr.bf16.mxu0 %v4065
        %5112 = vmatmul.mubr.bf16.gmra.mxu0 %v4064
        %v5113 = vpop.f32.mrf.mxu0
        %v5114 = vadd.f32 0.0, %v5113
        %v5115 = vpop.f32.mrf.mxu0
        %v5116 = vadd.f32 0.0, %v5115
        %v5117 = vpop.f32.mrf.mxu0
        %v5118 = vadd.f32 0.0, %v5117
        %v5119 = vpop.f32.mrf.mxu0
        %v5120 = vadd.f32 0.0, %v5119
        %5121 = vmatprep.mubr.bf16.mxu0 %v4074
        %5122 = vmatmul.mubr.bf16.gmra.mxu0 %v4073
        %v5123 = vpop.f32.mrf.mxu0
        %v5124 = vadd.f32 0.0, %v5123
        %v5125 = vpop.f32.mrf.mxu0
        %v5126 = vadd.f32 0.0, %v5125
        %v5127 = vpop.f32.mrf.mxu0
        %v5128 = vadd.f32 0.0, %v5127
        %v5129 = vpop.f32.mrf.mxu0
        %v5130 = vadd.f32 0.0, %v5129
        %5131 = vmatprep.mubr.bf16.mxu0 %v4083
        %5132 = vmatmul.mubr.bf16.gmra.mxu0 %v4082
        %v5133 = vpop.f32.mrf.mxu0
        %v5134 = vadd.f32 0.0, %v5133
        %v5135 = vpop.f32.mrf.mxu0
        %v5136 = vadd.f32 0.0, %v5135
        %v5137 = vpop.f32.mrf.mxu0
        %v5138 = vadd.f32 0.0, %v5137
        %v5139 = vpop.f32.mrf.mxu0
        %v5140 = vadd.f32 0.0, %v5139
        %5141 = vmatprep.mubr.bf16.mxu0 %v4092
        %5142 = vmatmul.mubr.bf16.gmra.mxu0 %v4091
        %v5143 = vpop.f32.mrf.mxu0
        %v5144 = vadd.f32 0.0, %v5143
        %v5145 = vpop.f32.mrf.mxu0
        %v5146 = vadd.f32 0.0, %v5145
        %v5147 = vpop.f32.mrf.mxu0
        %v5148 = vadd.f32 0.0, %v5147
        %v5149 = vpop.f32.mrf.mxu0
        %v5150 = vadd.f32 0.0, %v5149
        %5151 = vmatprep.mubr.bf16.mxu0 %v4101
        %5152 = vmatmul.mubr.bf16.gmra.mxu0 %v4100
        %v5153 = vpop.f32.mrf.mxu0
        %v5154 = vadd.f32 0.0, %v5153
        %v5155 = vpop.f32.mrf.mxu0
        %v5156 = vadd.f32 0.0, %v5155
        %v5157 = vpop.f32.mrf.mxu0
        %v5158 = vadd.f32 0.0, %v5157
        %v5159 = vpop.f32.mrf.mxu0
        %v5160 = vadd.f32 0.0, %v5159
        %5161 = vmatprep.mubr.bf16.mxu0 %v4110
        %5162 = vmatmul.mubr.bf16.gmra.mxu0 %v4109
        %v5163 = vpop.f32.mrf.mxu0
        %v5164 = vadd.f32 0.0, %v5163
        %v5165 = vpop.f32.mrf.mxu0
        %v5166 = vadd.f32 0.0, %v5165
        %v5167 = vpop.f32.mrf.mxu0
        %v5168 = vadd.f32 0.0, %v5167
        %v5169 = vpop.f32.mrf.mxu0
        %v5170 = vadd.f32 0.0, %v5169
        %5171 = vmatprep.mubr.bf16.mxu0 %v4119
        %5172 = vmatmul.mubr.bf16.gmra.mxu0 %v4118
        %v5173 = vpop.f32.mrf.mxu0
        %v5174 = vadd.f32 0.0, %v5173
        %v5175 = vpop.f32.mrf.mxu0
        %v5176 = vadd.f32 0.0, %v5175
        %v5177 = vpop.f32.mrf.mxu0
        %v5178 = vadd.f32 0.0, %v5177
        %v5179 = vpop.f32.mrf.mxu0
        %v5180 = vadd.f32 0.0, %v5179
        %5181 = vmatprep.mubr.bf16.mxu0 %v4128
        %5182 = vmatmul.mubr.bf16.gmra.mxu0 %v4127
        %v5183 = vpop.f32.mrf.mxu0
        %v5184 = vadd.f32 0.0, %v5183
        %v5185 = vpop.f32.mrf.mxu0
        %v5186 = vadd.f32 0.0, %v5185
        %v5187 = vpop.f32.mrf.mxu0
        %v5188 = vadd.f32 0.0, %v5187
        %v5189 = vpop.f32.mrf.mxu0
        %v5190 = vadd.f32 0.0, %v5189
        %5191 = vmatprep.mubr.bf16.mxu0 %v4137
        %5192 = vmatmul.mubr.bf16.gmra.mxu0 %v4136
        %v5193 = vpop.f32.mrf.mxu0
        %v5194 = vadd.f32 0.0, %v5193
        %v5195 = vpop.f32.mrf.mxu0
        %v5196 = vadd.f32 0.0, %v5195
        %v5197 = vpop.f32.mrf.mxu0
        %v5198 = vadd.f32 0.0, %v5197
        %v5199 = vpop.f32.mrf.mxu0
        %v5200 = vadd.f32 0.0, %v5199
        %5201 = vdwg.mxu0
        %5202 = vmatprep.subr.bf16.mxu0 %v4768
        %5203 = vmatpush1.bf16.msra.mxu0 %v4767
        %5204 = vmatprep.subr.bf16.mxu0 %v4766
        %5205 = vmatpush1.bf16.msra.mxu0 %v4765
        %5206 = vmatprep.subr.bf16.mxu0 %v4764
        %5207 = vmatpush1.bf16.msra.mxu0 %v4763
        %5208 = vmatprep.subr.bf16.mxu0 %v4762
        %5209 = vmatpush1.bf16.msra.mxu0 %v4761
        %5210 = vmatprep.subr.bf16.mxu0 %v4760
        %5211 = vmatpush1.bf16.msra.mxu0 %v4759
        %5212 = vmatprep.subr.bf16.mxu0 %v4758
        %5213 = vmatpush1.bf16.msra.mxu0 %v4757
        %5214 = vmatprep.subr.bf16.mxu0 %v4756
        %5215 = vmatpush1.bf16.msra.mxu0 %v4755
        %5216 = vmatprep.subr.bf16.mxu0 %v4754
        %5217 = vmatpush1.bf16.msra.mxu0 %v4753
        %5218 = vmatprep.subr.bf16.mxu0 %v4784
        %5219 = vmatpush2.bf16.msra.mxu0 %v4783
        %5220 = vmatprep.subr.bf16.mxu0 %v4782
        %5221 = vmatpush2.bf16.msra.mxu0 %v4781
        %5222 = vmatprep.subr.bf16.mxu0 %v4780
        %5223 = vmatpush2.bf16.msra.mxu0 %v4779
        %5224 = vmatprep.subr.bf16.mxu0 %v4778
        %5225 = vmatpush2.bf16.msra.mxu0 %v4777
        %5226 = vmatprep.subr.bf16.mxu0 %v4776
        %5227 = vmatpush2.bf16.msra.mxu0 %v4775
        %5228 = vmatprep.subr.bf16.mxu0 %v4774
        %5229 = vmatpush2.bf16.msra.mxu0 %v4773
        %5230 = vmatprep.subr.bf16.mxu0 %v4772
        %5231 = vmatpush2.bf16.msra.mxu0 %v4771
        %5232 = vmatprep.subr.bf16.mxu0 %v4770
        %5233 = vmatpush2.bf16.msra.mxu0 %v4769
        %5234 = vmatprep.mubr.bf16.mxu0 %v4004
        %5235 = vmatmul.mubr.bf16.gmra.mxu0 %v4003
        %v5236 = vpop.f32.mrf.mxu0
        %v5237 = vadd.f32 %v5044, %v5236
        %v5238 = vpop.f32.mrf.mxu0
        %v5239 = vadd.f32 %v5046, %v5238
        %v5240 = vpop.f32.mrf.mxu0
        %v5241 = vadd.f32 %v5048, %v5240
        %v5242 = vpop.f32.mrf.mxu0
        %v5243 = vadd.f32 %v5050, %v5242
        %5244 = vmatprep.mubr.bf16.mxu0 %v4013
        %5245 = vmatmul.mubr.bf16.gmra.mxu0 %v4012
        %v5246 = vpop.f32.mrf.mxu0
        %v5247 = vadd.f32 %v5054, %v5246
        %v5248 = vpop.f32.mrf.mxu0
        %v5249 = vadd.f32 %v5056, %v5248
        %v5250 = vpop.f32.mrf.mxu0
        %v5251 = vadd.f32 %v5058, %v5250
        %v5252 = vpop.f32.mrf.mxu0
        %v5253 = vadd.f32 %v5060, %v5252
        %5254 = vmatprep.mubr.bf16.mxu0 %v4022
        %5255 = vmatmul.mubr.bf16.gmra.mxu0 %v4021
        %v5256 = vpop.f32.mrf.mxu0
        %v5257 = vadd.f32 %v5064, %v5256
        %v5258 = vpop.f32.mrf.mxu0
        %v5259 = vadd.f32 %v5066, %v5258
        %v5260 = vpop.f32.mrf.mxu0
        %v5261 = vadd.f32 %v5068, %v5260
        %v5262 = vpop.f32.mrf.mxu0
        %v5263 = vadd.f32 %v5070, %v5262
        %5264 = vmatprep.mubr.bf16.mxu0 %v4031
        %5265 = vmatmul.mubr.bf16.gmra.mxu0 %v4030
        %v5266 = vpop.f32.mrf.mxu0
        %v5267 = vadd.f32 %v5074, %v5266
        %v5268 = vpop.f32.mrf.mxu0
        %v5269 = vadd.f32 %v5076, %v5268
        %v5270 = vpop.f32.mrf.mxu0
        %v5271 = vadd.f32 %v5078, %v5270
        %v5272 = vpop.f32.mrf.mxu0
        %v5273 = vadd.f32 %v5080, %v5272
        %5274 = vmatprep.mubr.bf16.mxu0 %v4040
        %5275 = vmatmul.mubr.bf16.gmra.mxu0 %v4039
        %v5276 = vpop.f32.mrf.mxu0
        %v5277 = vadd.f32 %v5084, %v5276
        %v5278 = vpop.f32.mrf.mxu0
        %v5279 = vadd.f32 %v5086, %v5278
        %v5280 = vpop.f32.mrf.mxu0
        %v5281 = vadd.f32 %v5088, %v5280
        %v5282 = vpop.f32.mrf.mxu0
        %v5283 = vadd.f32 %v5090, %v5282
        %5284 = vmatprep.mubr.bf16.mxu0 %v4049
        %5285 = vmatmul.mubr.bf16.gmra.mxu0 %v4048
        %v5286 = vpop.f32.mrf.mxu0
        %v5287 = vadd.f32 %v5094, %v5286
        %v5288 = vpop.f32.mrf.mxu0
        %v5289 = vadd.f32 %v5096, %v5288
        %v5290 = vpop.f32.mrf.mxu0
        %v5291 = vadd.f32 %v5098, %v5290
        %v5292 = vpop.f32.mrf.mxu0
        %v5293 = vadd.f32 %v5100, %v5292
        %5294 = vmatprep.mubr.bf16.mxu0 %v4058
        %5295 = vmatmul.mubr.bf16.gmra.mxu0 %v4057
        %v5296 = vpop.f32.mrf.mxu0
        %v5297 = vadd.f32 %v5104, %v5296
        %v5298 = vpop.f32.mrf.mxu0
        %v5299 = vadd.f32 %v5106, %v5298
        %v5300 = vpop.f32.mrf.mxu0
        %v5301 = vadd.f32 %v5108, %v5300
        %v5302 = vpop.f32.mrf.mxu0
        %v5303 = vadd.f32 %v5110, %v5302
        %5304 = vmatprep.mubr.bf16.mxu0 %v4067
        %5305 = vmatmul.mubr.bf16.gmra.mxu0 %v4066
        %v5306 = vpop.f32.mrf.mxu0
        %v5307 = vadd.f32 %v5114, %v5306
        %v5308 = vpop.f32.mrf.mxu0
        %v5309 = vadd.f32 %v5116, %v5308
        %v5310 = vpop.f32.mrf.mxu0
        %v5311 = vadd.f32 %v5118, %v5310
        %v5312 = vpop.f32.mrf.mxu0
        %v5313 = vadd.f32 %v5120, %v5312
        %5314 = vmatprep.mubr.bf16.mxu0 %v4076
        %5315 = vmatmul.mubr.bf16.gmra.mxu0 %v4075
        %v5316 = vpop.f32.mrf.mxu0
        %v5317 = vadd.f32 %v5124, %v5316
        %v5318 = vpop.f32.mrf.mxu0
        %v5319 = vadd.f32 %v5126, %v5318
        %v5320 = vpop.f32.mrf.mxu0
        %v5321 = vadd.f32 %v5128, %v5320
        %v5322 = vpop.f32.mrf.mxu0
        %v5323 = vadd.f32 %v5130, %v5322
        %5324 = vmatprep.mubr.bf16.mxu0 %v4085
        %5325 = vmatmul.mubr.bf16.gmra.mxu0 %v4084
        %v5326 = vpop.f32.mrf.mxu0
        %v5327 = vadd.f32 %v5134, %v5326
        %v5328 = vpop.f32.mrf.mxu0
        %v5329 = vadd.f32 %v5136, %v5328
        %v5330 = vpop.f32.mrf.mxu0
        %v5331 = vadd.f32 %v5138, %v5330
        %v5332 = vpop.f32.mrf.mxu0
        %v5333 = vadd.f32 %v5140, %v5332
        %5334 = vmatprep.mubr.bf16.mxu0 %v4094
        %5335 = vmatmul.mubr.bf16.gmra.mxu0 %v4093
        %v5336 = vpop.f32.mrf.mxu0
        %v5337 = vadd.f32 %v5144, %v5336
        %v5338 = vpop.f32.mrf.mxu0
        %v5339 = vadd.f32 %v5146, %v5338
        %v5340 = vpop.f32.mrf.mxu0
        %v5341 = vadd.f32 %v5148, %v5340
        %v5342 = vpop.f32.mrf.mxu0
        %v5343 = vadd.f32 %v5150, %v5342
        %5344 = vmatprep.mubr.bf16.mxu0 %v4103
        %5345 = vmatmul.mubr.bf16.gmra.mxu0 %v4102
        %v5346 = vpop.f32.mrf.mxu0
        %v5347 = vadd.f32 %v5154, %v5346
        %v5348 = vpop.f32.mrf.mxu0
        %v5349 = vadd.f32 %v5156, %v5348
        %v5350 = vpop.f32.mrf.mxu0
        %v5351 = vadd.f32 %v5158, %v5350
        %v5352 = vpop.f32.mrf.mxu0
        %v5353 = vadd.f32 %v5160, %v5352
        %5354 = vmatprep.mubr.bf16.mxu0 %v4112
        %5355 = vmatmul.mubr.bf16.gmra.mxu0 %v4111
        %v5356 = vpop.f32.mrf.mxu0
        %v5357 = vadd.f32 %v5164, %v5356
        %v5358 = vpop.f32.mrf.mxu0
        %v5359 = vadd.f32 %v5166, %v5358
        %v5360 = vpop.f32.mrf.mxu0
        %v5361 = vadd.f32 %v5168, %v5360
        %v5362 = vpop.f32.mrf.mxu0
        %v5363 = vadd.f32 %v5170, %v5362
        %5364 = vmatprep.mubr.bf16.mxu0 %v4121
        %5365 = vmatmul.mubr.bf16.gmra.mxu0 %v4120
        %v5366 = vpop.f32.mrf.mxu0
        %v5367 = vadd.f32 %v5174, %v5366
        %v5368 = vpop.f32.mrf.mxu0
        %v5369 = vadd.f32 %v5176, %v5368
        %v5370 = vpop.f32.mrf.mxu0
        %v5371 = vadd.f32 %v5178, %v5370
        %v5372 = vpop.f32.mrf.mxu0
        %v5373 = vadd.f32 %v5180, %v5372
        %5374 = vmatprep.mubr.bf16.mxu0 %v4130
        %5375 = vmatmul.mubr.bf16.gmra.mxu0 %v4129
        %v5376 = vpop.f32.mrf.mxu0
        %v5377 = vadd.f32 %v5184, %v5376
        %v5378 = vpop.f32.mrf.mxu0
        %v5379 = vadd.f32 %v5186, %v5378
        %v5380 = vpop.f32.mrf.mxu0
        %v5381 = vadd.f32 %v5188, %v5380
        %v5382 = vpop.f32.mrf.mxu0
        %v5383 = vadd.f32 %v5190, %v5382
        %5384 = vmatprep.mubr.bf16.mxu0 %v4139
        %5385 = vmatmul.mubr.bf16.gmra.mxu0 %v4138
        %v5386 = vpop.f32.mrf.mxu0
        %v5387 = vadd.f32 %v5194, %v5386
        %v5388 = vpop.f32.mrf.mxu0
        %v5389 = vadd.f32 %v5196, %v5388
        %v5390 = vpop.f32.mrf.mxu0
        %v5391 = vadd.f32 %v5198, %v5390
        %v5392 = vpop.f32.mrf.mxu0
        %v5393 = vadd.f32 %v5200, %v5392
        %5394 = vdwg.mxu0
        %5395 = vmatprep.subr.bf16.mxu0 %v4800
        %5396 = vmatpush1.bf16.msra.mxu0 %v4799
        %5397 = vmatprep.subr.bf16.mxu0 %v4798
        %5398 = vmatpush1.bf16.msra.mxu0 %v4797
        %5399 = vmatprep.subr.bf16.mxu0 %v4796
        %5400 = vmatpush1.bf16.msra.mxu0 %v4795
        %5401 = vmatprep.subr.bf16.mxu0 %v4794
        %5402 = vmatpush1.bf16.msra.mxu0 %v4793
        %5403 = vmatprep.subr.bf16.mxu0 %v4792
        %5404 = vmatpush1.bf16.msra.mxu0 %v4791
        %5405 = vmatprep.subr.bf16.mxu0 %v4790
        %5406 = vmatpush1.bf16.msra.mxu0 %v4789
        %5407 = vmatprep.subr.bf16.mxu0 %v4788
        %5408 = vmatpush1.bf16.msra.mxu0 %v4787
        %5409 = vmatprep.subr.bf16.mxu0 %v4786
        %5410 = vmatpush1.bf16.msra.mxu0 %v4785
        %5411 = vmatprep.subr.bf16.mxu0 %v4816
        %5412 = vmatpush2.bf16.msra.mxu0 %v4815
        %5413 = vmatprep.subr.bf16.mxu0 %v4814
        %5414 = vmatpush2.bf16.msra.mxu0 %v4813
        %5415 = vmatprep.subr.bf16.mxu0 %v4812
        %5416 = vmatpush2.bf16.msra.mxu0 %v4811
        %5417 = vmatprep.subr.bf16.mxu0 %v4810
        %5418 = vmatpush2.bf16.msra.mxu0 %v4809
        %5419 = vmatprep.subr.bf16.mxu0 %v4808
        %5420 = vmatpush2.bf16.msra.mxu0 %v4807
        %5421 = vmatprep.subr.bf16.mxu0 %v4806
        %5422 = vmatpush2.bf16.msra.mxu0 %v4805
        %5423 = vmatprep.subr.bf16.mxu0 %v4804
        %5424 = vmatpush2.bf16.msra.mxu0 %v4803
        %5425 = vmatprep.subr.bf16.mxu0 %v4802
        %5426 = vmatpush2.bf16.msra.mxu0 %v4801
        %5427 = vmatprep.mubr.bf16.mxu0 %v4006
        %5428 = vmatmul.mubr.bf16.gmra.mxu0 %v4005
        %v5429 = vpop.f32.mrf.mxu0
        %v5430 = vadd.f32 %v5237, %v5429
        %v5431 = vpop.f32.mrf.mxu0
        %v5432 = vadd.f32 %v5239, %v5431
        %v5433 = vpop.f32.mrf.mxu0
        %v5434 = vadd.f32 %v5241, %v5433
        %v5435 = vpop.f32.mrf.mxu0
        %v5436 = vadd.f32 %v5243, %v5435
        %5437 = vmatprep.mubr.bf16.mxu0 %v4015
        %5438 = vmatmul.mubr.bf16.gmra.mxu0 %v4014
        %v5439 = vpop.f32.mrf.mxu0
        %v5440 = vadd.f32 %v5247, %v5439
        %v5441 = vpop.f32.mrf.mxu0
        %v5442 = vadd.f32 %v5249, %v5441
        %v5443 = vpop.f32.mrf.mxu0
        %v5444 = vadd.f32 %v5251, %v5443
        %v5445 = vpop.f32.mrf.mxu0
        %v5446 = vadd.f32 %v5253, %v5445
        %5447 = vmatprep.mubr.bf16.mxu0 %v4024
        %5448 = vmatmul.mubr.bf16.gmra.mxu0 %v4023
        %v5449 = vpop.f32.mrf.mxu0
        %v5450 = vadd.f32 %v5257, %v5449
        %v5451 = vpop.f32.mrf.mxu0
        %v5452 = vadd.f32 %v5259, %v5451
        %v5453 = vpop.f32.mrf.mxu0
        %v5454 = vadd.f32 %v5261, %v5453
        %v5455 = vpop.f32.mrf.mxu0
        %v5456 = vadd.f32 %v5263, %v5455
        %5457 = vmatprep.mubr.bf16.mxu0 %v4033
        %5458 = vmatmul.mubr.bf16.gmra.mxu0 %v4032
        %v5459 = vpop.f32.mrf.mxu0
        %v5460 = vadd.f32 %v5267, %v5459
        %v5461 = vpop.f32.mrf.mxu0
        %v5462 = vadd.f32 %v5269, %v5461
        %v5463 = vpop.f32.mrf.mxu0
        %v5464 = vadd.f32 %v5271, %v5463
        %v5465 = vpop.f32.mrf.mxu0
        %v5466 = vadd.f32 %v5273, %v5465
        %5467 = vmatprep.mubr.bf16.mxu0 %v4042
        %5468 = vmatmul.mubr.bf16.gmra.mxu0 %v4041
        %v5469 = vpop.f32.mrf.mxu0
        %v5470 = vadd.f32 %v5277, %v5469
        %v5471 = vpop.f32.mrf.mxu0
        %v5472 = vadd.f32 %v5279, %v5471
        %v5473 = vpop.f32.mrf.mxu0
        %v5474 = vadd.f32 %v5281, %v5473
        %v5475 = vpop.f32.mrf.mxu0
        %v5476 = vadd.f32 %v5283, %v5475
        %5477 = vmatprep.mubr.bf16.mxu0 %v4051
        %5478 = vmatmul.mubr.bf16.gmra.mxu0 %v4050
        %v5479 = vpop.f32.mrf.mxu0
        %v5480 = vadd.f32 %v5287, %v5479
        %v5481 = vpop.f32.mrf.mxu0
        %v5482 = vadd.f32 %v5289, %v5481
        %v5483 = vpop.f32.mrf.mxu0
        %v5484 = vadd.f32 %v5291, %v5483
        %v5485 = vpop.f32.mrf.mxu0
        %v5486 = vadd.f32 %v5293, %v5485
        %5487 = vmatprep.mubr.bf16.mxu0 %v4060
        %5488 = vmatmul.mubr.bf16.gmra.mxu0 %v4059
        %v5489 = vpop.f32.mrf.mxu0
        %v5490 = vadd.f32 %v5297, %v5489
        %v5491 = vpop.f32.mrf.mxu0
        %v5492 = vadd.f32 %v5299, %v5491
        %v5493 = vpop.f32.mrf.mxu0
        %v5494 = vadd.f32 %v5301, %v5493
        %v5495 = vpop.f32.mrf.mxu0
        %v5496 = vadd.f32 %v5303, %v5495
        %5497 = vmatprep.mubr.bf16.mxu0 %v4069
        %5498 = vmatmul.mubr.bf16.gmra.mxu0 %v4068
        %v5499 = vpop.f32.mrf.mxu0
        %v5500 = vadd.f32 %v5307, %v5499
        %v5501 = vpop.f32.mrf.mxu0
        %v5502 = vadd.f32 %v5309, %v5501
        %v5503 = vpop.f32.mrf.mxu0
        %v5504 = vadd.f32 %v5311, %v5503
        %v5505 = vpop.f32.mrf.mxu0
        %v5506 = vadd.f32 %v5313, %v5505
        %5507 = vmatprep.mubr.bf16.mxu0 %v4078
        %5508 = vmatmul.mubr.bf16.gmra.mxu0 %v4077
        %v5509 = vpop.f32.mrf.mxu0
        %v5510 = vadd.f32 %v5317, %v5509
        %v5511 = vpop.f32.mrf.mxu0
        %v5512 = vadd.f32 %v5319, %v5511
        %v5513 = vpop.f32.mrf.mxu0
        %v5514 = vadd.f32 %v5321, %v5513
        %v5515 = vpop.f32.mrf.mxu0
        %v5516 = vadd.f32 %v5323, %v5515
        %5517 = vmatprep.mubr.bf16.mxu0 %v4087
        %5518 = vmatmul.mubr.bf16.gmra.mxu0 %v4086
        %v5519 = vpop.f32.mrf.mxu0
        %v5520 = vadd.f32 %v5327, %v5519
        %v5521 = vpop.f32.mrf.mxu0
        %v5522 = vadd.f32 %v5329, %v5521
        %v5523 = vpop.f32.mrf.mxu0
        %v5524 = vadd.f32 %v5331, %v5523
        %v5525 = vpop.f32.mrf.mxu0
        %v5526 = vadd.f32 %v5333, %v5525
        %5527 = vmatprep.mubr.bf16.mxu0 %v4096
        %5528 = vmatmul.mubr.bf16.gmra.mxu0 %v4095
        %v5529 = vpop.f32.mrf.mxu0
        %v5530 = vadd.f32 %v5337, %v5529
        %v5531 = vpop.f32.mrf.mxu0
        %v5532 = vadd.f32 %v5339, %v5531
        %v5533 = vpop.f32.mrf.mxu0
        %v5534 = vadd.f32 %v5341, %v5533
        %v5535 = vpop.f32.mrf.mxu0
        %v5536 = vadd.f32 %v5343, %v5535
        %5537 = vmatprep.mubr.bf16.mxu0 %v4105
        %5538 = vmatmul.mubr.bf16.gmra.mxu0 %v4104
        %v5539 = vpop.f32.mrf.mxu0
        %v5540 = vadd.f32 %v5347, %v5539
        %v5541 = vpop.f32.mrf.mxu0
        %v5542 = vadd.f32 %v5349, %v5541
        %v5543 = vpop.f32.mrf.mxu0
        %v5544 = vadd.f32 %v5351, %v5543
        %v5545 = vpop.f32.mrf.mxu0
        %v5546 = vadd.f32 %v5353, %v5545
        %5547 = vmatprep.mubr.bf16.mxu0 %v4114
        %5548 = vmatmul.mubr.bf16.gmra.mxu0 %v4113
        %v5549 = vpop.f32.mrf.mxu0
        %v5550 = vadd.f32 %v5357, %v5549
        %v5551 = vpop.f32.mrf.mxu0
        %v5552 = vadd.f32 %v5359, %v5551
        %v5553 = vpop.f32.mrf.mxu0
        %v5554 = vadd.f32 %v5361, %v5553
        %v5555 = vpop.f32.mrf.mxu0
        %v5556 = vadd.f32 %v5363, %v5555
        %5557 = vmatprep.mubr.bf16.mxu0 %v4123
        %5558 = vmatmul.mubr.bf16.gmra.mxu0 %v4122
        %v5559 = vpop.f32.mrf.mxu0
        %v5560 = vadd.f32 %v5367, %v5559
        %v5561 = vpop.f32.mrf.mxu0
        %v5562 = vadd.f32 %v5369, %v5561
        %v5563 = vpop.f32.mrf.mxu0
        %v5564 = vadd.f32 %v5371, %v5563
        %v5565 = vpop.f32.mrf.mxu0
        %v5566 = vadd.f32 %v5373, %v5565
        %5567 = vmatprep.mubr.bf16.mxu0 %v4132
        %5568 = vmatmul.mubr.bf16.gmra.mxu0 %v4131
        %v5569 = vpop.f32.mrf.mxu0
        %v5570 = vadd.f32 %v5377, %v5569
        %v5571 = vpop.f32.mrf.mxu0
        %v5572 = vadd.f32 %v5379, %v5571
        %v5573 = vpop.f32.mrf.mxu0
        %v5574 = vadd.f32 %v5381, %v5573
        %v5575 = vpop.f32.mrf.mxu0
        %v5576 = vadd.f32 %v5383, %v5575
        %5577 = vmatprep.mubr.bf16.mxu0 %v4141
        %5578 = vmatmul.mubr.bf16.gmra.mxu0 %v4140
        %v5579 = vpop.f32.mrf.mxu0
        %v5580 = vadd.f32 %v5387, %v5579
        %v5581 = vpop.f32.mrf.mxu0
        %v5582 = vadd.f32 %v5389, %v5581
        %v5583 = vpop.f32.mrf.mxu0
        %v5584 = vadd.f32 %v5391, %v5583
        %v5585 = vpop.f32.mrf.mxu0
        %v5586 = vadd.f32 %v5393, %v5585
        %5587 = vdwg.mxu0
        %5588 = vmatprep.subr.bf16.mxu0 %v4832
        %5589 = vmatpush1.bf16.msra.mxu0 %v4831
        %5590 = vmatprep.subr.bf16.mxu0 %v4830
        %5591 = vmatpush1.bf16.msra.mxu0 %v4829
        %5592 = vmatprep.subr.bf16.mxu0 %v4828
        %5593 = vmatpush1.bf16.msra.mxu0 %v4827
        %5594 = vmatprep.subr.bf16.mxu0 %v4826
        %5595 = vmatpush1.bf16.msra.mxu0 %v4825
        %5596 = vmatprep.subr.bf16.mxu0 %v4824
        %5597 = vmatpush1.bf16.msra.mxu0 %v4823
        %5598 = vmatprep.subr.bf16.mxu0 %v4822
        %5599 = vmatpush1.bf16.msra.mxu0 %v4821
        %5600 = vmatprep.subr.bf16.mxu0 %v4820
        %5601 = vmatpush1.bf16.msra.mxu0 %v4819
        %5602 = vmatprep.subr.bf16.mxu0 %v4818
        %5603 = vmatpush1.bf16.msra.mxu0 %v4817
        %5604 = vmatprep.subr.bf16.mxu0 %v4848
        %5605 = vmatpush2.bf16.msra.mxu0 %v4847
        %5606 = vmatprep.subr.bf16.mxu0 %v4846
        %5607 = vmatpush2.bf16.msra.mxu0 %v4845
        %5608 = vmatprep.subr.bf16.mxu0 %v4844
        %5609 = vmatpush2.bf16.msra.mxu0 %v4843
        %5610 = vmatprep.subr.bf16.mxu0 %v4842
        %5611 = vmatpush2.bf16.msra.mxu0 %v4841
        %5612 = vmatprep.subr.bf16.mxu0 %v4840
        %5613 = vmatpush2.bf16.msra.mxu0 %v4839
        %5614 = vmatprep.subr.bf16.mxu0 %v4838
        %5615 = vmatpush2.bf16.msra.mxu0 %v4837
        %5616 = vmatprep.subr.bf16.mxu0 %v4836
        %5617 = vmatpush2.bf16.msra.mxu0 %v4835
        %5618 = vmatprep.subr.bf16.mxu0 %v4834
        %5619 = vmatpush2.bf16.msra.mxu0 %v4833
        %5620 = vmatprep.mubr.bf16.mxu0 %v4008
        %5621 = vmatmul.mubr.bf16.gmra.mxu0 %v4007
        %v5622 = vpop.f32.mrf.mxu0
        %v5623 = vadd.f32 %v5430, %v5622
        %v5624 = vpop.f32.mrf.mxu0
        %v5625 = vadd.f32 %v5432, %v5624
        %v5626 = vpop.f32.mrf.mxu0
        %v5627 = vadd.f32 %v5434, %v5626
        %v5628 = vpop.f32.mrf.mxu0
        %v5629 = vadd.f32 %v5436, %v5628
        %5630 = vmatprep.mubr.bf16.mxu0 %v4017
        %5631 = vmatmul.mubr.bf16.gmra.mxu0 %v4016
        %v5632 = vpop.f32.mrf.mxu0
        %v5633 = vadd.f32 %v5440, %v5632
        %v5634 = vpop.f32.mrf.mxu0
        %v5635 = vadd.f32 %v5442, %v5634
        %v5636 = vpop.f32.mrf.mxu0
        %v5637 = vadd.f32 %v5444, %v5636
        %v5638 = vpop.f32.mrf.mxu0
        %v5639 = vadd.f32 %v5446, %v5638
        %5640 = vmatprep.mubr.bf16.mxu0 %v4026
        %5641 = vmatmul.mubr.bf16.gmra.mxu0 %v4025
        %v5642 = vpop.f32.mrf.mxu0
        %v5643 = vadd.f32 %v5450, %v5642
        %v5644 = vpop.f32.mrf.mxu0
        %v5645 = vadd.f32 %v5452, %v5644
        %v5646 = vpop.f32.mrf.mxu0
        %v5647 = vadd.f32 %v5454, %v5646
        %v5648 = vpop.f32.mrf.mxu0
        %v5649 = vadd.f32 %v5456, %v5648
        %5650 = vmatprep.mubr.bf16.mxu0 %v4035
        %5651 = vmatmul.mubr.bf16.gmra.mxu0 %v4034
        %v5652 = vpop.f32.mrf.mxu0
        %v5653 = vadd.f32 %v5460, %v5652
        %v5654 = vpop.f32.mrf.mxu0
        %v5655 = vadd.f32 %v5462, %v5654
        %v5656 = vpop.f32.mrf.mxu0
        %v5657 = vadd.f32 %v5464, %v5656
        %v5658 = vpop.f32.mrf.mxu0
        %v5659 = vadd.f32 %v5466, %v5658
        %5660 = vmatprep.mubr.bf16.mxu0 %v4044
        %5661 = vmatmul.mubr.bf16.gmra.mxu0 %v4043
        %v5662 = vpop.f32.mrf.mxu0
        %v5663 = vadd.f32 %v5470, %v5662
        %v5664 = vpop.f32.mrf.mxu0
        %v5665 = vadd.f32 %v5472, %v5664
        %v5666 = vpop.f32.mrf.mxu0
        %v5667 = vadd.f32 %v5474, %v5666
        %v5668 = vpop.f32.mrf.mxu0
        %v5669 = vadd.f32 %v5476, %v5668
        %5670 = vmatprep.mubr.bf16.mxu0 %v4053
        %5671 = vmatmul.mubr.bf16.gmra.mxu0 %v4052
        %v5672 = vpop.f32.mrf.mxu0
        %v5673 = vadd.f32 %v5480, %v5672
        %v5674 = vpop.f32.mrf.mxu0
        %v5675 = vadd.f32 %v5482, %v5674
        %v5676 = vpop.f32.mrf.mxu0
        %v5677 = vadd.f32 %v5484, %v5676
        %v5678 = vpop.f32.mrf.mxu0
        %v5679 = vadd.f32 %v5486, %v5678
        %5680 = vmatprep.mubr.bf16.mxu0 %v4062
        %5681 = vmatmul.mubr.bf16.gmra.mxu0 %v4061
        %v5682 = vpop.f32.mrf.mxu0
        %v5683 = vadd.f32 %v5490, %v5682
        %v5684 = vpop.f32.mrf.mxu0
        %v5685 = vadd.f32 %v5492, %v5684
        %v5686 = vpop.f32.mrf.mxu0
        %v5687 = vadd.f32 %v5494, %v5686
        %v5688 = vpop.f32.mrf.mxu0
        %v5689 = vadd.f32 %v5496, %v5688
        %5690 = vmatprep.mubr.bf16.mxu0 %v4071
        %5691 = vmatmul.mubr.bf16.gmra.mxu0 %v4070
        %v5692 = vpop.f32.mrf.mxu0
        %v5693 = vadd.f32 %v5500, %v5692
        %v5694 = vpop.f32.mrf.mxu0
        %v5695 = vadd.f32 %v5502, %v5694
        %v5696 = vpop.f32.mrf.mxu0
        %v5697 = vadd.f32 %v5504, %v5696
        %v5698 = vpop.f32.mrf.mxu0
        %v5699 = vadd.f32 %v5506, %v5698
        %5700 = vmatprep.mubr.bf16.mxu0 %v4080
        %5701 = vmatmul.mubr.bf16.gmra.mxu0 %v4079
        %v5702 = vpop.f32.mrf.mxu0
        %v5703 = vadd.f32 %v5510, %v5702
        %v5704 = vpop.f32.mrf.mxu0
        %v5705 = vadd.f32 %v5512, %v5704
        %v5706 = vpop.f32.mrf.mxu0
        %v5707 = vadd.f32 %v5514, %v5706
        %v5708 = vpop.f32.mrf.mxu0
        %v5709 = vadd.f32 %v5516, %v5708
        %5710 = vmatprep.mubr.bf16.mxu0 %v4089
        %5711 = vmatmul.mubr.bf16.gmra.mxu0 %v4088
        %v5712 = vpop.f32.mrf.mxu0
        %v5713 = vadd.f32 %v5520, %v5712
        %v5714 = vpop.f32.mrf.mxu0
        %v5715 = vadd.f32 %v5522, %v5714
        %v5716 = vpop.f32.mrf.mxu0
        %v5717 = vadd.f32 %v5524, %v5716
        %v5718 = vpop.f32.mrf.mxu0
        %v5719 = vadd.f32 %v5526, %v5718
        %5720 = vmatprep.mubr.bf16.mxu0 %v4098
        %5721 = vmatmul.mubr.bf16.gmra.mxu0 %v4097
        %v5722 = vpop.f32.mrf.mxu0
        %v5723 = vadd.f32 %v5530, %v5722
        %v5724 = vpop.f32.mrf.mxu0
        %v5725 = vadd.f32 %v5532, %v5724
        %v5726 = vpop.f32.mrf.mxu0
        %v5727 = vadd.f32 %v5534, %v5726
        %v5728 = vpop.f32.mrf.mxu0
        %v5729 = vadd.f32 %v5536, %v5728
        %5730 = vmatprep.mubr.bf16.mxu0 %v4107
        %5731 = vmatmul.mubr.bf16.gmra.mxu0 %v4106
        %v5732 = vpop.f32.mrf.mxu0
        %v5733 = vadd.f32 %v5540, %v5732
        %v5734 = vpop.f32.mrf.mxu0
        %v5735 = vadd.f32 %v5542, %v5734
        %v5736 = vpop.f32.mrf.mxu0
        %v5737 = vadd.f32 %v5544, %v5736
        %v5738 = vpop.f32.mrf.mxu0
        %v5739 = vadd.f32 %v5546, %v5738
        %5740 = vmatprep.mubr.bf16.mxu0 %v4116
        %5741 = vmatmul.mubr.bf16.gmra.mxu0 %v4115
        %v5742 = vpop.f32.mrf.mxu0
        %v5743 = vadd.f32 %v5550, %v5742
        %v5744 = vpop.f32.mrf.mxu0
        %v5745 = vadd.f32 %v5552, %v5744
        %v5746 = vpop.f32.mrf.mxu0
        %v5747 = vadd.f32 %v5554, %v5746
        %v5748 = vpop.f32.mrf.mxu0
        %v5749 = vadd.f32 %v5556, %v5748
        %5750 = vmatprep.mubr.bf16.mxu0 %v4125
        %5751 = vmatmul.mubr.bf16.gmra.mxu0 %v4124
        %v5752 = vpop.f32.mrf.mxu0
        %v5753 = vadd.f32 %v5560, %v5752
        %v5754 = vpop.f32.mrf.mxu0
        %v5755 = vadd.f32 %v5562, %v5754
        %v5756 = vpop.f32.mrf.mxu0
        %v5757 = vadd.f32 %v5564, %v5756
        %v5758 = vpop.f32.mrf.mxu0
        %v5759 = vadd.f32 %v5566, %v5758
        %5760 = vmatprep.mubr.bf16.mxu0 %v4134
        %5761 = vmatmul.mubr.bf16.gmra.mxu0 %v4133
        %v5762 = vpop.f32.mrf.mxu0
        %v5763 = vadd.f32 %v5570, %v5762
        %v5764 = vpop.f32.mrf.mxu0
        %v5765 = vadd.f32 %v5572, %v5764
        %v5766 = vpop.f32.mrf.mxu0
        %v5767 = vadd.f32 %v5574, %v5766
        %v5768 = vpop.f32.mrf.mxu0
        %v5769 = vadd.f32 %v5576, %v5768
        %5770 = vmatprep.mubr.bf16.mxu0 %v4143
        %5771 = vmatmul.mubr.bf16.gmra.mxu0 %v4142
        %v5772 = vpop.f32.mrf.mxu0
        %v5773 = vadd.f32 %v5580, %v5772
        %v5774 = vpop.f32.mrf.mxu0
        %v5775 = vadd.f32 %v5582, %v5774
        %v5776 = vpop.f32.mrf.mxu0
        %v5777 = vadd.f32 %v5584, %v5776
        %v5778 = vpop.f32.mrf.mxu0
        %v5779 = vadd.f32 %v5586, %v5778
        %5780 = vdwg.mxu0
        %5781 = vmatprep.subr.bf16.mxu0 %v4864
        %5782 = vmatpush1.bf16.msra.mxu0 %v4863
        %5783 = vmatprep.subr.bf16.mxu0 %v4862
        %5784 = vmatpush1.bf16.msra.mxu0 %v4861
        %5785 = vmatprep.subr.bf16.mxu0 %v4860
        %5786 = vmatpush1.bf16.msra.mxu0 %v4859
        %5787 = vmatprep.subr.bf16.mxu0 %v4858
        %5788 = vmatpush1.bf16.msra.mxu0 %v4857
        %5789 = vmatprep.subr.bf16.mxu0 %v4856
        %5790 = vmatpush1.bf16.msra.mxu0 %v4855
        %5791 = vmatprep.subr.bf16.mxu0 %v4854
        %5792 = vmatpush1.bf16.msra.mxu0 %v4853
        %5793 = vmatprep.subr.bf16.mxu0 %v4852
        %5794 = vmatpush1.bf16.msra.mxu0 %v4851
        %5795 = vmatprep.subr.bf16.mxu0 %v4850
        %5796 = vmatpush1.bf16.msra.mxu0 %v4849
        %5797 = vmatprep.subr.bf16.mxu0 0
        %5798 = vmatpush2.bf16.msra.mxu0 0
        %5799 = vmatprep.subr.bf16.mxu0 0
        %5800 = vmatpush2.bf16.msra.mxu0 0
        %5801 = vmatprep.subr.bf16.mxu0 0
        %5802 = vmatpush2.bf16.msra.mxu0 0
        %5803 = vmatprep.subr.bf16.mxu0 0
        %5804 = vmatpush2.bf16.msra.mxu0 0
        %5805 = vmatprep.subr.bf16.mxu0 0
        %5806 = vmatpush2.bf16.msra.mxu0 0
        %5807 = vmatprep.subr.bf16.mxu0 0
        %5808 = vmatpush2.bf16.msra.mxu0 0
        %5809 = vmatprep.subr.bf16.mxu0 0
        %5810 = vmatpush2.bf16.msra.mxu0 0
        %5811 = vmatprep.subr.bf16.mxu0 0
        %5812 = vmatpush2.bf16.msra.mxu0 0
        %5813 = vmatprep.mubr.bf16.mxu0 0
        %5814 = vmatmul.mubr.bf16.gmra.mxu0 %v4009
        %v5815 = vpop.f32.mrf.mxu0
        %v5816 = vadd.f32 %v5623, %v5815
        %v5817 = vpop.f32.mrf.mxu0
        %v5818 = vadd.f32 %v5625, %v5817
        %v5819 = vpop.f32.mrf.mxu0
        %v5820 = vadd.f32 %v5627, %v5819
        %v5821 = vpop.f32.mrf.mxu0
        %v5822 = vadd.f32 %v5629, %v5821
        %5823 = vmatprep.mubr.bf16.mxu0 0
        %5824 = vmatmul.mubr.bf16.gmra.mxu0 %v4018
        %v5825 = vpop.f32.mrf.mxu0
        %v5826 = vadd.f32 %v5633, %v5825
        %v5827 = vpop.f32.mrf.mxu0
        %v5828 = vadd.f32 %v5635, %v5827
        %v5829 = vpop.f32.mrf.mxu0
        %v5830 = vadd.f32 %v5637, %v5829
        %v5831 = vpop.f32.mrf.mxu0
        %v5832 = vadd.f32 %v5639, %v5831
        %5833 = vmatprep.mubr.bf16.mxu0 0
        %5834 = vmatmul.mubr.bf16.gmra.mxu0 %v4027
        %v5835 = vpop.f32.mrf.mxu0
        %v5836 = vadd.f32 %v5643, %v5835
        %v5837 = vpop.f32.mrf.mxu0
        %v5838 = vadd.f32 %v5645, %v5837
        %v5839 = vpop.f32.mrf.mxu0
        %v5840 = vadd.f32 %v5647, %v5839
        %v5841 = vpop.f32.mrf.mxu0
        %v5842 = vadd.f32 %v5649, %v5841
        %5843 = vmatprep.mubr.bf16.mxu0 0
        %5844 = vmatmul.mubr.bf16.gmra.mxu0 %v4036
        %v5845 = vpop.f32.mrf.mxu0
        %v5846 = vadd.f32 %v5653, %v5845
        %v5847 = vpop.f32.mrf.mxu0
        %v5848 = vadd.f32 %v5655, %v5847
        %v5849 = vpop.f32.mrf.mxu0
        %v5850 = vadd.f32 %v5657, %v5849
        %v5851 = vpop.f32.mrf.mxu0
        %v5852 = vadd.f32 %v5659, %v5851
        %5853 = vmatprep.mubr.bf16.mxu0 0
        %5854 = vmatmul.mubr.bf16.gmra.mxu0 %v4045
        %v5855 = vpop.f32.mrf.mxu0
        %v5856 = vadd.f32 %v5663, %v5855
        %v5857 = vpop.f32.mrf.mxu0
        %v5858 = vadd.f32 %v5665, %v5857
        %v5859 = vpop.f32.mrf.mxu0
        %v5860 = vadd.f32 %v5667, %v5859
        %v5861 = vpop.f32.mrf.mxu0
        %v5862 = vadd.f32 %v5669, %v5861
        %5863 = vmatprep.mubr.bf16.mxu0 0
        %5864 = vmatmul.mubr.bf16.gmra.mxu0 %v4054
        %v5865 = vpop.f32.mrf.mxu0
        %v5866 = vadd.f32 %v5673, %v5865
        %v5867 = vpop.f32.mrf.mxu0
        %v5868 = vadd.f32 %v5675, %v5867
        %v5869 = vpop.f32.mrf.mxu0
        %v5870 = vadd.f32 %v5677, %v5869
        %v5871 = vpop.f32.mrf.mxu0
        %v5872 = vadd.f32 %v5679, %v5871
        %5873 = vmatprep.mubr.bf16.mxu0 0
        %5874 = vmatmul.mubr.bf16.gmra.mxu0 %v4063
        %v5875 = vpop.f32.mrf.mxu0
        %v5876 = vadd.f32 %v5683, %v5875
        %v5877 = vpop.f32.mrf.mxu0
        %v5878 = vadd.f32 %v5685, %v5877
        %v5879 = vpop.f32.mrf.mxu0
        %v5880 = vadd.f32 %v5687, %v5879
        %v5881 = vpop.f32.mrf.mxu0
        %v5882 = vadd.f32 %v5689, %v5881
        %5883 = vmatprep.mubr.bf16.mxu0 0
        %5884 = vmatmul.mubr.bf16.gmra.mxu0 %v4072
        %v5885 = vpop.f32.mrf.mxu0
        %v5886 = vadd.f32 %v5693, %v5885
        %v5887 = vpop.f32.mrf.mxu0
        %v5888 = vadd.f32 %v5695, %v5887
        %v5889 = vpop.f32.mrf.mxu0
        %v5890 = vadd.f32 %v5697, %v5889
        %v5891 = vpop.f32.mrf.mxu0
        %v5892 = vadd.f32 %v5699, %v5891
        %5893 = vmatprep.mubr.bf16.mxu0 0
        %5894 = vmatmul.mubr.bf16.gmra.mxu0 %v4081
        %v5895 = vpop.f32.mrf.mxu0
        %v5896 = vadd.f32 %v5703, %v5895
        %v5897 = vpop.f32.mrf.mxu0
        %v5898 = vadd.f32 %v5705, %v5897
        %v5899 = vpop.f32.mrf.mxu0
        %v5900 = vadd.f32 %v5707, %v5899
        %v5901 = vpop.f32.mrf.mxu0
        %v5902 = vadd.f32 %v5709, %v5901
        %5903 = vmatprep.mubr.bf16.mxu0 0
        %5904 = vmatmul.mubr.bf16.gmra.mxu0 %v4090
        %v5905 = vpop.f32.mrf.mxu0
        %v5906 = vadd.f32 %v5713, %v5905
        %v5907 = vpop.f32.mrf.mxu0
        %v5908 = vadd.f32 %v5715, %v5907
        %v5909 = vpop.f32.mrf.mxu0
        %v5910 = vadd.f32 %v5717, %v5909
        %v5911 = vpop.f32.mrf.mxu0
        %v5912 = vadd.f32 %v5719, %v5911
        %5913 = vmatprep.mubr.bf16.mxu0 0
        %5914 = vmatmul.mubr.bf16.gmra.mxu0 %v4099
        %v5915 = vpop.f32.mrf.mxu0
        %v5916 = vadd.f32 %v5723, %v5915
        %v5917 = vpop.f32.mrf.mxu0
        %v5918 = vadd.f32 %v5725, %v5917
        %v5919 = vpop.f32.mrf.mxu0
        %v5920 = vadd.f32 %v5727, %v5919
        %v5921 = vpop.f32.mrf.mxu0
        %v5922 = vadd.f32 %v5729, %v5921
        %5923 = vmatprep.mubr.bf16.mxu0 0
        %5924 = vmatmul.mubr.bf16.gmra.mxu0 %v4108
        %v5925 = vpop.f32.mrf.mxu0
        %v5926 = vadd.f32 %v5733, %v5925
        %v5927 = vpop.f32.mrf.mxu0
        %v5928 = vadd.f32 %v5735, %v5927
        %v5929 = vpop.f32.mrf.mxu0
        %v5930 = vadd.f32 %v5737, %v5929
        %v5931 = vpop.f32.mrf.mxu0
        %v5932 = vadd.f32 %v5739, %v5931
        %5933 = vmatprep.mubr.bf16.mxu0 0
        %5934 = vmatmul.mubr.bf16.gmra.mxu0 %v4117
        %v5935 = vpop.f32.mrf.mxu0
        %v5936 = vadd.f32 %v5743, %v5935
        %v5937 = vpop.f32.mrf.mxu0
        %v5938 = vadd.f32 %v5745, %v5937
        %v5939 = vpop.f32.mrf.mxu0
        %v5940 = vadd.f32 %v5747, %v5939
        %v5941 = vpop.f32.mrf.mxu0
        %v5942 = vadd.f32 %v5749, %v5941
        %5943 = vmatprep.mubr.bf16.mxu0 0
        %5944 = vmatmul.mubr.bf16.gmra.mxu0 %v4126
        %v5945 = vpop.f32.mrf.mxu0
        %v5946 = vadd.f32 %v5753, %v5945
        %v5947 = vpop.f32.mrf.mxu0
        %v5948 = vadd.f32 %v5755, %v5947
        %v5949 = vpop.f32.mrf.mxu0
        %v5950 = vadd.f32 %v5757, %v5949
        %v5951 = vpop.f32.mrf.mxu0
        %v5952 = vadd.f32 %v5759, %v5951
        %5953 = vmatprep.mubr.bf16.mxu0 0
        %5954 = vmatmul.mubr.bf16.gmra.mxu0 %v4135
        %v5955 = vpop.f32.mrf.mxu0
        %v5956 = vadd.f32 %v5763, %v5955
        %v5957 = vpop.f32.mrf.mxu0
        %v5958 = vadd.f32 %v5765, %v5957
        %v5959 = vpop.f32.mrf.mxu0
        %v5960 = vadd.f32 %v5767, %v5959
        %v5961 = vpop.f32.mrf.mxu0
        %v5962 = vadd.f32 %v5769, %v5961
        %5963 = vmatprep.mubr.bf16.mxu0 0
        %5964 = vmatmul.mubr.bf16.gmra.mxu0 %v4144
        %v5965 = vpop.f32.mrf.mxu0
        %v5966 = vadd.f32 %v5773, %v5965
        %v5967 = vpop.f32.mrf.mxu0
        %v5968 = vadd.f32 %v5775, %v5967
        %v5969 = vpop.f32.mrf.mxu0
        %v5970 = vadd.f32 %v5777, %v5969
        %v5971 = vpop.f32.mrf.mxu0
        %v5972 = vadd.f32 %v5779, %v5971
        %5973 = vdwg.mxu0
        %s5974 = scalar_lea.vmem [#allocation13], 2
        %v5975 = vld [vmem:[%s5974] ss:$8 sm:$0x3]
        %s5976 = scalar_lea.vmem [#allocation15], 2
        %v5977 = vld [vmem:[%s5976] ss:$8 sm:$0x3]
        %v5979 = vlaneseq
        %v5980 = vshrl.u32 %v5979, 7
        %v5981 = vsub.s32 0, %v5980
        %v5982 = vrot.slane %v5975, %v5981
        %v5983 = vlaneseq
        %v5984 = vshrl.u32 %v5983, 7
        %v5985 = vsub.s32 1, %v5984
        %v5986 = vrot.slane %v5975, %v5985
        %v5989 = vmul.f32 %v5816, %v5982
        %v5990 = vmul.f32 %v5818, %v5986
        %v5991 = vmul.f32 %v5820, %v5982
        %v5992 = vmul.f32 %v5822, %v5986
        %v5993 = vmul.f32 %v5826, %v5982
        %v5994 = vmul.f32 %v5828, %v5986
        %v5995 = vmul.f32 %v5830, %v5982
        %v5996 = vmul.f32 %v5832, %v5986
        %v5997 = vmul.f32 %v5836, %v5982
        %v5998 = vmul.f32 %v5838, %v5986
        %v5999 = vmul.f32 %v5840, %v5982
        %v6000 = vmul.f32 %v5842, %v5986
        %v6001 = vmul.f32 %v5846, %v5982
        %v6002 = vmul.f32 %v5848, %v5986
        %v6003 = vmul.f32 %v5850, %v5982
        %v6004 = vmul.f32 %v5852, %v5986
        %v6005 = vmul.f32 %v5856, %v5982
        %v6006 = vmul.f32 %v5858, %v5986
        %v6007 = vmul.f32 %v5860, %v5982
        %v6008 = vmul.f32 %v5862, %v5986
        %v6009 = vmul.f32 %v5866, %v5982
        %v6010 = vmul.f32 %v5868, %v5986
        %v6011 = vmul.f32 %v5870, %v5982
        %v6012 = vmul.f32 %v5872, %v5986
        %v6013 = vmul.f32 %v5876, %v5982
        %v6014 = vmul.f32 %v5878, %v5986
        %v6015 = vmul.f32 %v5880, %v5982
        %v6016 = vmul.f32 %v5882, %v5986
        %v6017 = vmul.f32 %v5886, %v5982
        %v6018 = vmul.f32 %v5888, %v5986
        %v6019 = vmul.f32 %v5890, %v5982
        %v6020 = vmul.f32 %v5892, %v5986
        %v6021 = vmul.f32 %v5896, %v5982
        %v6022 = vmul.f32 %v5898, %v5986
        %v6023 = vmul.f32 %v5900, %v5982
        %v6024 = vmul.f32 %v5902, %v5986
        %v6025 = vmul.f32 %v5906, %v5982
        %v6026 = vmul.f32 %v5908, %v5986
        %v6027 = vmul.f32 %v5910, %v5982
        %v6028 = vmul.f32 %v5912, %v5986
        %v6029 = vmul.f32 %v5916, %v5982
        %v6030 = vmul.f32 %v5918, %v5986
        %v6031 = vmul.f32 %v5920, %v5982
        %v6032 = vmul.f32 %v5922, %v5986
        %v6033 = vmul.f32 %v5926, %v5982
        %v6034 = vmul.f32 %v5928, %v5986
        %v6035 = vmul.f32 %v5930, %v5982
        %v6036 = vmul.f32 %v5932, %v5986
        %v6037 = vmul.f32 %v5936, %v5982
        %v6038 = vmul.f32 %v5938, %v5986
        %v6039 = vmul.f32 %v5940, %v5982
        %v6040 = vmul.f32 %v5942, %v5986
        %v6041 = vmul.f32 %v5946, %v5982
        %v6042 = vmul.f32 %v5948, %v5986
        %v6043 = vmul.f32 %v5950, %v5982
        %v6044 = vmul.f32 %v5952, %v5986
        %v6045 = vmul.f32 %v5956, %v5982
        %v6046 = vmul.f32 %v5958, %v5986
        %v6047 = vmul.f32 %v5960, %v5982
        %v6048 = vmul.f32 %v5962, %v5986
        %v6049 = vmul.f32 %v5966, %v5982
        %v6050 = vmul.f32 %v5968, %v5986
        %v6051 = vmul.f32 %v5970, %v5982
        %v6052 = vmul.f32 %v5972, %v5986
        %v6054 = vlaneseq
        %v6055 = vshrl.u32 %v6054, 7
        %v6056 = vsub.s32 0, %v6055
        %v6057 = vrot.slane %v5977, %v6056
        %v6058 = vlaneseq
        %v6059 = vshrl.u32 %v6058, 7
        %v6060 = vsub.s32 1, %v6059
        %v6061 = vrot.slane %v5977, %v6060
        %v6064 = vadd.f32 %v5989, %v6057
        %v6065 = vadd.f32 %v5990, %v6061
        %v6066 = vadd.f32 %v5991, %v6057
        %v6067 = vadd.f32 %v5992, %v6061
        %v6068 = vadd.f32 %v5993, %v6057
        %v6069 = vadd.f32 %v5994, %v6061
        %v6070 = vadd.f32 %v5995, %v6057
        %v6071 = vadd.f32 %v5996, %v6061
        %v6072 = vadd.f32 %v5997, %v6057
        %v6073 = vadd.f32 %v5998, %v6061
        %v6074 = vadd.f32 %v5999, %v6057
        %v6075 = vadd.f32 %v6000, %v6061
        %v6076 = vadd.f32 %v6001, %v6057
        %v6077 = vadd.f32 %v6002, %v6061
        %v6078 = vadd.f32 %v6003, %v6057
        %v6079 = vadd.f32 %v6004, %v6061
        %v6080 = vadd.f32 %v6005, %v6057
        %v6081 = vadd.f32 %v6006, %v6061
        %v6082 = vadd.f32 %v6007, %v6057
        %v6083 = vadd.f32 %v6008, %v6061
        %v6084 = vadd.f32 %v6009, %v6057
        %v6085 = vadd.f32 %v6010, %v6061
        %v6086 = vadd.f32 %v6011, %v6057
        %v6087 = vadd.f32 %v6012, %v6061
        %v6088 = vadd.f32 %v6013, %v6057
        %v6089 = vadd.f32 %v6014, %v6061
        %v6090 = vadd.f32 %v6015, %v6057
        %v6091 = vadd.f32 %v6016, %v6061
        %v6092 = vadd.f32 %v6017, %v6057
        %v6093 = vadd.f32 %v6018, %v6061
        %v6094 = vadd.f32 %v6019, %v6057
        %v6095 = vadd.f32 %v6020, %v6061
        %v6096 = vadd.f32 %v6021, %v6057
        %v6097 = vadd.f32 %v6022, %v6061
        %v6098 = vadd.f32 %v6023, %v6057
        %v6099 = vadd.f32 %v6024, %v6061
        %v6100 = vadd.f32 %v6025, %v6057
        %v6101 = vadd.f32 %v6026, %v6061
        %v6102 = vadd.f32 %v6027, %v6057
        %v6103 = vadd.f32 %v6028, %v6061
        %v6104 = vadd.f32 %v6029, %v6057
        %v6105 = vadd.f32 %v6030, %v6061
        %v6106 = vadd.f32 %v6031, %v6057
        %v6107 = vadd.f32 %v6032, %v6061
        %v6108 = vadd.f32 %v6033, %v6057
        %v6109 = vadd.f32 %v6034, %v6061
        %v6110 = vadd.f32 %v6035, %v6057
        %v6111 = vadd.f32 %v6036, %v6061
        %v6112 = vadd.f32 %v6037, %v6057
        %v6113 = vadd.f32 %v6038, %v6061
        %v6114 = vadd.f32 %v6039, %v6057
        %v6115 = vadd.f32 %v6040, %v6061
        %v6116 = vadd.f32 %v6041, %v6057
        %v6117 = vadd.f32 %v6042, %v6061
        %v6118 = vadd.f32 %v6043, %v6057
        %v6119 = vadd.f32 %v6044, %v6061
        %v6120 = vadd.f32 %v6045, %v6057
        %v6121 = vadd.f32 %v6046, %v6061
        %v6122 = vadd.f32 %v6047, %v6057
        %v6123 = vadd.f32 %v6048, %v6061
        %v6124 = vadd.f32 %v6049, %v6057
        %v6125 = vadd.f32 %v6050, %v6061
        %v6126 = vadd.f32 %v6051, %v6057
        %v6127 = vadd.f32 %v6052, %v6061
        %v6128 = vmax.f32 %v6064, 0.0
        %v6129 = vmax.f32 %v6065, 0.0
        %v6130 = vmax.f32 %v6066, 0.0
        %v6131 = vmax.f32 %v6067, 0.0
        %v6132 = vmax.f32 %v6068, 0.0
        %v6133 = vmax.f32 %v6069, 0.0
        %v6134 = vmax.f32 %v6070, 0.0
        %v6135 = vmax.f32 %v6071, 0.0
        %v6136 = vmax.f32 %v6072, 0.0
        %v6137 = vmax.f32 %v6073, 0.0
        %v6138 = vmax.f32 %v6074, 0.0
        %v6139 = vmax.f32 %v6075, 0.0
        %v6140 = vmax.f32 %v6076, 0.0
        %v6141 = vmax.f32 %v6077, 0.0
        %v6142 = vmax.f32 %v6078, 0.0
        %v6143 = vmax.f32 %v6079, 0.0
        %v6144 = vmax.f32 %v6080, 0.0
        %v6145 = vmax.f32 %v6081, 0.0
        %v6146 = vmax.f32 %v6082, 0.0
        %v6147 = vmax.f32 %v6083, 0.0
        %v6148 = vmax.f32 %v6084, 0.0
        %v6149 = vmax.f32 %v6085, 0.0
        %v6150 = vmax.f32 %v6086, 0.0
        %v6151 = vmax.f32 %v6087, 0.0
        %v6152 = vmax.f32 %v6088, 0.0
        %v6153 = vmax.f32 %v6089, 0.0
        %v6154 = vmax.f32 %v6090, 0.0
        %v6155 = vmax.f32 %v6091, 0.0
        %v6156 = vmax.f32 %v6092, 0.0
        %v6157 = vmax.f32 %v6093, 0.0
        %v6158 = vmax.f32 %v6094, 0.0
        %v6159 = vmax.f32 %v6095, 0.0
        %v6160 = vmax.f32 %v6096, 0.0
        %v6161 = vmax.f32 %v6097, 0.0
        %v6162 = vmax.f32 %v6098, 0.0
        %v6163 = vmax.f32 %v6099, 0.0
        %v6164 = vmax.f32 %v6100, 0.0
        %v6165 = vmax.f32 %v6101, 0.0
        %v6166 = vmax.f32 %v6102, 0.0
        %v6167 = vmax.f32 %v6103, 0.0
        %v6168 = vmax.f32 %v6104, 0.0
        %v6169 = vmax.f32 %v6105, 0.0
        %v6170 = vmax.f32 %v6106, 0.0
        %v6171 = vmax.f32 %v6107, 0.0
        %v6172 = vmax.f32 %v6108, 0.0
        %v6173 = vmax.f32 %v6109, 0.0
        %v6174 = vmax.f32 %v6110, 0.0
        %v6175 = vmax.f32 %v6111, 0.0
        %v6176 = vmax.f32 %v6112, 0.0
        %v6177 = vmax.f32 %v6113, 0.0
        %v6178 = vmax.f32 %v6114, 0.0
        %v6179 = vmax.f32 %v6115, 0.0
        %v6180 = vmax.f32 %v6116, 0.0
        %v6181 = vmax.f32 %v6117, 0.0
        %v6182 = vmax.f32 %v6118, 0.0
        %v6183 = vmax.f32 %v6119, 0.0
        %v6184 = vmax.f32 %v6120, 0.0
        %v6185 = vmax.f32 %v6121, 0.0
        %v6186 = vmax.f32 %v6122, 0.0
        %v6187 = vmax.f32 %v6123, 0.0
        %v6188 = vmax.f32 %v6124, 0.0
        %v6189 = vmax.f32 %v6125, 0.0
        %v6190 = vmax.f32 %v6126, 0.0
        %v6191 = vmax.f32 %v6127, 0.0
        %v6192 = vpack.c.bf16 %v6130, %v6128
        %v6193 = vpack.c.bf16 %v6131, %v6129
        %v6194 = vpack.c.bf16 %v6134, %v6132
        %v6195 = vpack.c.bf16 %v6135, %v6133
        %v6196 = vpack.c.bf16 %v6138, %v6136
        %v6197 = vpack.c.bf16 %v6139, %v6137
        %v6198 = vpack.c.bf16 %v6142, %v6140
        %v6199 = vpack.c.bf16 %v6143, %v6141
        %v6200 = vpack.c.bf16 %v6146, %v6144
        %v6201 = vpack.c.bf16 %v6147, %v6145
        %v6202 = vpack.c.bf16 %v6150, %v6148
        %v6203 = vpack.c.bf16 %v6151, %v6149
        %v6204 = vpack.c.bf16 %v6154, %v6152
        %v6205 = vpack.c.bf16 %v6155, %v6153
        %v6206 = vpack.c.bf16 %v6158, %v6156
        %v6207 = vpack.c.bf16 %v6159, %v6157
        %v6208 = vpack.c.bf16 %v6162, %v6160
        %v6209 = vpack.c.bf16 %v6163, %v6161
        %v6210 = vpack.c.bf16 %v6166, %v6164
        %v6211 = vpack.c.bf16 %v6167, %v6165
        %v6212 = vpack.c.bf16 %v6170, %v6168
        %v6213 = vpack.c.bf16 %v6171, %v6169
        %v6214 = vpack.c.bf16 %v6174, %v6172
        %v6215 = vpack.c.bf16 %v6175, %v6173
        %v6216 = vpack.c.bf16 %v6178, %v6176
        %v6217 = vpack.c.bf16 %v6179, %v6177
        %v6218 = vpack.c.bf16 %v6182, %v6180
        %v6219 = vpack.c.bf16 %v6183, %v6181
        %v6220 = vpack.c.bf16 %v6186, %v6184
        %v6221 = vpack.c.bf16 %v6187, %v6185
        %v6222 = vpack.c.bf16 %v6190, %v6188
        %v6223 = vpack.c.bf16 %v6191, %v6189
        %v6256 = vunpack.c.l.b16 %v6192
        %v6257 = vunpack.c.l.b16 %v6193
        %v6258 = vunpack.c.h.b16 %v6192
        %v6259 = vunpack.c.h.b16 %v6193
        %v6260 = vunpack.c.l.b16 %v6194
        %v6261 = vunpack.c.l.b16 %v6195
        %v6262 = vunpack.c.h.b16 %v6194
        %v6263 = vunpack.c.h.b16 %v6195
        %v6264 = vunpack.c.l.b16 %v6196
        %v6265 = vunpack.c.l.b16 %v6197
        %v6266 = vunpack.c.h.b16 %v6196
        %v6267 = vunpack.c.h.b16 %v6197
        %v6268 = vunpack.c.l.b16 %v6198
        %v6269 = vunpack.c.l.b16 %v6199
        %v6270 = vunpack.c.h.b16 %v6198
        %v6271 = vunpack.c.h.b16 %v6199
        %v6272 = vunpack.c.l.b16 %v6200
        %v6273 = vunpack.c.l.b16 %v6201
        %v6274 = vunpack.c.h.b16 %v6200
        %v6275 = vunpack.c.h.b16 %v6201
        %v6276 = vunpack.c.l.b16 %v6202
        %v6277 = vunpack.c.l.b16 %v6203
        %v6278 = vunpack.c.h.b16 %v6202
        %v6279 = vunpack.c.h.b16 %v6203
        %v6280 = vunpack.c.l.b16 %v6204
        %v6281 = vunpack.c.l.b16 %v6205
        %v6282 = vunpack.c.h.b16 %v6204
        %v6283 = vunpack.c.h.b16 %v6205
        %v6284 = vunpack.c.l.b16 %v6206
        %v6285 = vunpack.c.l.b16 %v6207
        %v6286 = vunpack.c.h.b16 %v6206
        %v6287 = vunpack.c.h.b16 %v6207
        %v6288 = vunpack.c.l.b16 %v6208
        %v6289 = vunpack.c.l.b16 %v6209
        %v6290 = vunpack.c.h.b16 %v6208
        %v6291 = vunpack.c.h.b16 %v6209
        %v6292 = vunpack.c.l.b16 %v6210
        %v6293 = vunpack.c.l.b16 %v6211
        %v6294 = vunpack.c.h.b16 %v6210
        %v6295 = vunpack.c.h.b16 %v6211
        %v6296 = vunpack.c.l.b16 %v6212
        %v6297 = vunpack.c.l.b16 %v6213
        %v6298 = vunpack.c.h.b16 %v6212
        %v6299 = vunpack.c.h.b16 %v6213
        %v6300 = vunpack.c.l.b16 %v6214
        %v6301 = vunpack.c.l.b16 %v6215
        %v6302 = vunpack.c.h.b16 %v6214
        %v6303 = vunpack.c.h.b16 %v6215
        %v6304 = vunpack.c.l.b16 %v6216
        %v6305 = vunpack.c.l.b16 %v6217
        %v6306 = vunpack.c.h.b16 %v6216
        %v6307 = vunpack.c.h.b16 %v6217
        %v6308 = vunpack.c.l.b16 %v6218
        %v6309 = vunpack.c.l.b16 %v6219
        %v6310 = vunpack.c.h.b16 %v6218
        %v6311 = vunpack.c.h.b16 %v6219
        %v6312 = vunpack.c.l.b16 %v6220
        %v6313 = vunpack.c.l.b16 %v6221
        %v6314 = vunpack.c.h.b16 %v6220
        %v6315 = vunpack.c.h.b16 %v6221
        %v6316 = vunpack.c.l.b16 %v6222
        %v6317 = vunpack.c.l.b16 %v6223
        %v6318 = vunpack.c.h.b16 %v6222
        %v6319 = vunpack.c.h.b16 %v6223
        %v6320 = vpack.c.b16 %v6257, %v6256
        %v6321 = vpack.c.b16 %v6259, %v6258
        %v6322 = vpack.c.b16 %v6261, %v6260
        %v6323 = vpack.c.b16 %v6263, %v6262
        %v6324 = vpack.c.b16 %v6265, %v6264
        %v6325 = vpack.c.b16 %v6267, %v6266
        %v6326 = vpack.c.b16 %v6269, %v6268
        %v6327 = vpack.c.b16 %v6271, %v6270
        %v6328 = vpack.c.b16 %v6273, %v6272
        %v6329 = vpack.c.b16 %v6275, %v6274
        %v6330 = vpack.c.b16 %v6277, %v6276
        %v6331 = vpack.c.b16 %v6279, %v6278
        %v6332 = vpack.c.b16 %v6281, %v6280
        %v6333 = vpack.c.b16 %v6283, %v6282
        %v6334 = vpack.c.b16 %v6285, %v6284
        %v6335 = vpack.c.b16 %v6287, %v6286
        %v6336 = vpack.c.b16 %v6289, %v6288
        %v6337 = vpack.c.b16 %v6291, %v6290
        %v6338 = vpack.c.b16 %v6293, %v6292
        %v6339 = vpack.c.b16 %v6295, %v6294
        %v6340 = vpack.c.b16 %v6297, %v6296
        %v6341 = vpack.c.b16 %v6299, %v6298
        %v6342 = vpack.c.b16 %v6301, %v6300
        %v6343 = vpack.c.b16 %v6303, %v6302
        %v6344 = vpack.c.b16 %v6305, %v6304
        %v6345 = vpack.c.b16 %v6307, %v6306
        %v6346 = vpack.c.b16 %v6309, %v6308
        %v6347 = vpack.c.b16 %v6311, %v6310
        %v6348 = vpack.c.b16 %v6313, %v6312
        %v6349 = vpack.c.b16 %v6315, %v6314
        %v6350 = vpack.c.b16 %v6317, %v6316
        %v6351 = vpack.c.b16 %v6319, %v6318
        %6384 = vst [vmem:[%s379 + $0x10] sm:$0xff] %v6320
        %6385 = vst [vmem:[%s379 + $0x38] sm:$0xff] %v6321
        %6386 = vst [vmem:[%s379 + $0x60] sm:$0xff] %v6322
        %6387 = vst [vmem:[%s379 + $0x88] sm:$0xff] %v6323
        %6388 = vst [vmem:[%s379 + $0xb0] sm:$0xff] %v6324
        %6389 = vst [vmem:[%s379 + $0xd8] sm:$0xff] %v6325
        %6390 = vst [vmem:[%s379 + $0x100] sm:$0xff] %v6326
        %6391 = vst [vmem:[%s379 + $0x128] sm:$0xff] %v6327
        %6392 = vst [vmem:[%s379 + $0x150] sm:$0xff] %v6328
        %6393 = vst [vmem:[%s379 + $0x178] sm:$0xff] %v6329
        %6394 = vst [vmem:[%s379 + $0x1a0] sm:$0xff] %v6330
        %6395 = vst [vmem:[%s379 + $0x1c8] sm:$0xff] %v6331
        %6396 = vst [vmem:[%s379 + $0x1f0] sm:$0xff] %v6332
        %6397 = vst [vmem:[%s379 + $0x218] sm:$0xff] %v6333
        %6398 = vst [vmem:[%s379 + $0x240] sm:$0xff] %v6334
        %6399 = vst [vmem:[%s379 + $0x268] sm:$0xff] %v6335
        %6400 = vst [vmem:[%s379 + $0x290] sm:$0xff] %v6336
        %6401 = vst [vmem:[%s379 + $0x2b8] sm:$0xff] %v6337
        %6402 = vst [vmem:[%s379 + $0x2e0] sm:$0xff] %v6338
        %6403 = vst [vmem:[%s379 + $0x308] sm:$0xff] %v6339
        %6404 = vst [vmem:[%s379 + $0x330] sm:$0xff] %v6340
        %6405 = vst [vmem:[%s379 + $0x358] sm:$0xff] %v6341
        %6406 = vst [vmem:[%s379 + $0x380] sm:$0xff] %v6342
        %6407 = vst [vmem:[%s379 + $0x3a8] sm:$0xff] %v6343
        %6408 = vst [vmem:[%s379 + $0x3d0] sm:$0xff] %v6344
        %6409 = vst [vmem:[%s379 + $0x3f8] sm:$0xff] %v6345
        %6410 = vst [vmem:[%s379 + $0x420] sm:$0xff] %v6346
        %6411 = vst [vmem:[%s379 + $0x448] sm:$0xff] %v6347
        %6412 = vst [vmem:[%s379 + $0x470] sm:$0xff] %v6348
        %6413 = vst [vmem:[%s379 + $0x498] sm:$0xff] %v6349
        %6414 = vst [vmem:[%s379 + $0x4c0] sm:$0xff] %v6350
        %6415 = vst [vmem:[%s379 + $0x4e8] sm:$0xff] %v6351
        %v6416 = vld [vmem:[#allocation2] sm:$0xc]
        %v6417 = vld [vmem:[#allocation2 + $0x4] sm:$0xf]
        %v6418 = vld [vmem:[#allocation2 + $0x8] sm:$0x3]
        %v6419 = vld [vmem:[#allocation2 + $0x18] sm:$0xc]
        %v6420 = vld [vmem:[#allocation2 + $0x1c] sm:$0xf]
        %v6421 = vld [vmem:[#allocation2 + $0x20] sm:$0x3]
        %v6422 = vld [vmem:[#allocation2 + $0x30] sm:$0xc]
        %v6423 = vld [vmem:[#allocation2 + $0x34] sm:$0xf]
        %v6424 = vld [vmem:[#allocation2 + $0x38] sm:$0x3]
        %v6425 = vld [vmem:[#allocation2 + $0x48] sm:$0xc]
        %v6426 = vld [vmem:[#allocation2 + $0x4c] sm:$0xf]
        %v6427 = vld [vmem:[#allocation2 + $0x50] sm:$0x3]
        %v6428 = vld [vmem:[#allocation2 + $0x60] sm:$0xc]
        %v6429 = vld [vmem:[#allocation2 + $0x64] sm:$0xf]
        %v6430 = vld [vmem:[#allocation2 + $0x68] sm:$0x3]
        %v6431 = vld [vmem:[#allocation2 + $0x78] sm:$0xc]
        %v6432 = vld [vmem:[#allocation2 + $0x7c] sm:$0xf]
        %v6433 = vld [vmem:[#allocation2 + $0x80] sm:$0x3]
        %v6434 = vld [vmem:[#allocation2 + $0x90] sm:$0xc]
        %v6435 = vld [vmem:[#allocation2 + $0x94] sm:$0xf]
        %v6436 = vld [vmem:[#allocation2 + $0x98] sm:$0x3]
        %v6437 = vld [vmem:[#allocation2 + $0xa8] sm:$0xc]
        %v6438 = vld [vmem:[#allocation2 + $0xac] sm:$0xf]
        %v6439 = vld [vmem:[#allocation2 + $0xb0] sm:$0x3]
        %v6440 = vld [vmem:[#allocation2 + $0xc0] sm:$0xc]
        %v6441 = vld [vmem:[#allocation2 + $0xc4] sm:$0xf]
        %v6442 = vld [vmem:[#allocation2 + $0xc8] sm:$0x3]
        %v6443 = vld [vmem:[#allocation2 + $0xd8] sm:$0xc]
        %v6444 = vld [vmem:[#allocation2 + $0xdc] sm:$0xf]
        %v6445 = vld [vmem:[#allocation2 + $0xe0] sm:$0x3]
        %v6446 = vld [vmem:[#allocation2 + $0xf0] sm:$0xc]
        %v6447 = vld [vmem:[#allocation2 + $0xf4] sm:$0xf]
        %v6448 = vld [vmem:[#allocation2 + $0xf8] sm:$0x3]
        %v6449 = vld [vmem:[#allocation2 + $0x108] sm:$0xc]
        %v6450 = vld [vmem:[#allocation2 + $0x10c] sm:$0xf]
        %v6451 = vld [vmem:[#allocation2 + $0x110] sm:$0x3]
        %v6452 = vld [vmem:[#allocation2 + $0x120] sm:$0xc]
        %v6453 = vld [vmem:[#allocation2 + $0x124] sm:$0xf]
        %v6454 = vld [vmem:[#allocation2 + $0x128] sm:$0x3]
        %v6455 = vld [vmem:[#allocation2 + $0x138] sm:$0xc]
        %v6456 = vld [vmem:[#allocation2 + $0x13c] sm:$0xf]
        %v6457 = vld [vmem:[#allocation2 + $0x140] sm:$0x3]
        %v6458 = vld [vmem:[#allocation2 + $0x150] sm:$0xc]
        %v6459 = vld [vmem:[#allocation2 + $0x154] sm:$0xf]
        %v6460 = vld [vmem:[#allocation2 + $0x158] sm:$0x3]
        %v6461 = vld [vmem:[#allocation2 + $0x168] sm:$0xc]
        %v6462 = vld [vmem:[#allocation2 + $0x16c] sm:$0xf]
        %v6463 = vld [vmem:[#allocation2 + $0x170] sm:$0x3]
        %v6464 = vld [vmem:[#allocation2 + $0x180] sm:$0xc]
        %v6465 = vld [vmem:[#allocation2 + $0x184] sm:$0xf]
        %v6466 = vld [vmem:[#allocation2 + $0x188] sm:$0x3]
        %v6467 = vld [vmem:[#allocation2 + $0x198] sm:$0xc]
        %v6468 = vld [vmem:[#allocation2 + $0x19c] sm:$0xf]
        %v6469 = vld [vmem:[#allocation2 + $0x1a0] sm:$0x3]
        %v6470 = vld [vmem:[#allocation2 + $0x1b0] sm:$0xc]
        %v6471 = vld [vmem:[#allocation2 + $0x1b4] sm:$0xf]
        %v6472 = vld [vmem:[#allocation2 + $0x1b8] sm:$0x3]
        %v6473 = vld [vmem:[#allocation2 + $0x1c8] sm:$0xc]
        %v6474 = vld [vmem:[#allocation2 + $0x1cc] sm:$0xf]
        %v6475 = vld [vmem:[#allocation2 + $0x1d0] sm:$0x3]
        %v6476 = vld [vmem:[#allocation2 + $0x1e0] sm:$0xc]
        %v6477 = vld [vmem:[#allocation2 + $0x1e4] sm:$0xf]
        %v6478 = vld [vmem:[#allocation2 + $0x1e8] sm:$0x3]
        %v6479 = vld [vmem:[#allocation2 + $0x1f8] sm:$0xc]
        %v6480 = vld [vmem:[#allocation2 + $0x1fc] sm:$0xf]
        %v6481 = vld [vmem:[#allocation2 + $0x200] sm:$0x3]
        %v6482 = vld [vmem:[#allocation2 + $0x210] sm:$0xc]
        %v6483 = vld [vmem:[#allocation2 + $0x214] sm:$0xf]
        %v6484 = vld [vmem:[#allocation2 + $0x218] sm:$0x3]
        %v6485 = vld [vmem:[#allocation2 + $0x228] sm:$0xc]
        %v6486 = vld [vmem:[#allocation2 + $0x22c] sm:$0xf]
        %v6487 = vld [vmem:[#allocation2 + $0x230] sm:$0x3]
        %v6488 = vld [vmem:[#allocation2 + $0x240] sm:$0xc]
        %v6489 = vld [vmem:[#allocation2 + $0x244] sm:$0xf]
        %v6490 = vld [vmem:[#allocation2 + $0x248] sm:$0x3]
        %v6491 = vld [vmem:[#allocation2 + $0x258] sm:$0xc]
        %v6492 = vld [vmem:[#allocation2 + $0x25c] sm:$0xf]
        %v6493 = vld [vmem:[#allocation2 + $0x260] sm:$0x3]
        %v6494 = vld [vmem:[#allocation2 + $0x270] sm:$0xc]
        %v6495 = vld [vmem:[#allocation2 + $0x274] sm:$0xf]
        %v6496 = vld [vmem:[#allocation2 + $0x278] sm:$0x3]
        %v6497 = vld [vmem:[#allocation2 + $0x288] sm:$0xc]
        %v6498 = vld [vmem:[#allocation2 + $0x28c] sm:$0xf]
        %v6499 = vld [vmem:[#allocation2 + $0x290] sm:$0x3]
        %v6500 = vld [vmem:[#allocation2 + $0x2a0] sm:$0xc]
        %v6501 = vld [vmem:[#allocation2 + $0x2a4] sm:$0xf]
        %v6502 = vld [vmem:[#allocation2 + $0x2a8] sm:$0x3]
        %v6503 = vld [vmem:[#allocation2 + $0x2b8] sm:$0xc]
        %v6504 = vld [vmem:[#allocation2 + $0x2bc] sm:$0xf]
        %v6505 = vld [vmem:[#allocation2 + $0x2c0] sm:$0x3]
        %v6506 = vld [vmem:[#allocation2 + $0x2d0] sm:$0xc]
        %v6507 = vld [vmem:[#allocation2 + $0x2d4] sm:$0xf]
        %v6508 = vld [vmem:[#allocation2 + $0x2d8] sm:$0x3]
        %v6509 = vld [vmem:[#allocation2 + $0x2e8] sm:$0xc]
        %v6510 = vld [vmem:[#allocation2 + $0x2ec] sm:$0xf]
        %v6511 = vld [vmem:[#allocation2 + $0x2f0] sm:$0x3]
        %v6512 = vld [vmem:[#allocation2 + $0x300] sm:$0xc]
        %v6513 = vld [vmem:[#allocation2 + $0x304] sm:$0xf]
        %v6514 = vld [vmem:[#allocation2 + $0x308] sm:$0x3]
        %v6515 = vld [vmem:[#allocation2 + $0x318] sm:$0xc]
        %v6516 = vld [vmem:[#allocation2 + $0x31c] sm:$0xf]
        %v6517 = vld [vmem:[#allocation2 + $0x320] sm:$0x3]
        %v6518 = vld [vmem:[#allocation2 + $0x330] sm:$0xc]
        %v6519 = vld [vmem:[#allocation2 + $0x334] sm:$0xf]
        %v6520 = vld [vmem:[#allocation2 + $0x338] sm:$0x3]
        %v6521 = vld [vmem:[#allocation2 + $0x348] sm:$0xc]
        %v6522 = vld [vmem:[#allocation2 + $0x34c] sm:$0xf]
        %v6523 = vld [vmem:[#allocation2 + $0x350] sm:$0x3]
        %v6524 = vld [vmem:[#allocation2 + $0x360] sm:$0xc]
        %v6525 = vld [vmem:[#allocation2 + $0x364] sm:$0xf]
        %v6526 = vld [vmem:[#allocation2 + $0x368] sm:$0x3]
        %v6527 = vld [vmem:[#allocation2 + $0x378] sm:$0xc]
        %v6528 = vld [vmem:[#allocation2 + $0x37c] sm:$0xf]
        %v6529 = vld [vmem:[#allocation2 + $0x380] sm:$0x3]
        %v6530 = vld [vmem:[#allocation2 + $0x390] sm:$0xc]
        %v6531 = vld [vmem:[#allocation2 + $0x394] sm:$0xf]
        %v6532 = vld [vmem:[#allocation2 + $0x398] sm:$0x3]
        %v6533 = vld [vmem:[#allocation2 + $0x3a8] sm:$0xc]
        %v6534 = vld [vmem:[#allocation2 + $0x3ac] sm:$0xf]
        %v6535 = vld [vmem:[#allocation2 + $0x3b0] sm:$0x3]
        %vm6584 = vcmask 1041408
        %vm6585 = vcmask 1045508
        %vm6586 = vmor %vm6584, %vm6585
        %v6587 = vrot.slane %v6416, 6
        %v6588 = vrot.slane %v6587, 4
        %v6589 = vrot.slane %v6417, 6
        %v6590 = vsel %vm6586, %v6588, %v6589
        %v6591 = vrot.slane %v6589, 4
        %v6592 = vrot.slane %v6418, 6
        %v6593 = vsel %vm6586, %v6591, %v6592
        %v6594 = vrot.slane %v6419, 6
        %v6595 = vrot.slane %v6594, 4
        %v6596 = vrot.slane %v6420, 6
        %v6597 = vsel %vm6586, %v6595, %v6596
        %v6598 = vrot.slane %v6596, 4
        %v6599 = vrot.slane %v6421, 6
        %v6600 = vsel %vm6586, %v6598, %v6599
        %v6601 = vrot.slane %v6422, 6
        %v6602 = vrot.slane %v6601, 4
        %v6603 = vrot.slane %v6423, 6
        %v6604 = vsel %vm6586, %v6602, %v6603
        %v6605 = vrot.slane %v6603, 4
        %v6606 = vrot.slane %v6424, 6
        %v6607 = vsel %vm6586, %v6605, %v6606
        %v6608 = vrot.slane %v6425, 6
        %v6609 = vrot.slane %v6608, 4
        %v6610 = vrot.slane %v6426, 6
        %v6611 = vsel %vm6586, %v6609, %v6610
        %v6612 = vrot.slane %v6610, 4
        %v6613 = vrot.slane %v6427, 6
        %v6614 = vsel %vm6586, %v6612, %v6613
        %v6615 = vrot.slane %v6428, 6
        %v6616 = vrot.slane %v6615, 4
        %v6617 = vrot.slane %v6429, 6
        %v6618 = vsel %vm6586, %v6616, %v6617
        %v6619 = vrot.slane %v6617, 4
        %v6620 = vrot.slane %v6430, 6
        %v6621 = vsel %vm6586, %v6619, %v6620
        %v6622 = vrot.slane %v6431, 6
        %v6623 = vrot.slane %v6622, 4
        %v6624 = vrot.slane %v6432, 6
        %v6625 = vsel %vm6586, %v6623, %v6624
        %v6626 = vrot.slane %v6624, 4
        %v6627 = vrot.slane %v6433, 6
        %v6628 = vsel %vm6586, %v6626, %v6627
        %v6629 = vrot.slane %v6434, 6
        %v6630 = vrot.slane %v6629, 4
        %v6631 = vrot.slane %v6435, 6
        %v6632 = vsel %vm6586, %v6630, %v6631
        %v6633 = vrot.slane %v6631, 4
        %v6634 = vrot.slane %v6436, 6
        %v6635 = vsel %vm6586, %v6633, %v6634
        %v6636 = vrot.slane %v6437, 6
        %v6637 = vrot.slane %v6636, 4
        %v6638 = vrot.slane %v6438, 6
        %v6639 = vsel %vm6586, %v6637, %v6638
        %v6640 = vrot.slane %v6638, 4
        %v6641 = vrot.slane %v6439, 6
        %v6642 = vsel %vm6586, %v6640, %v6641
        %v6643 = vrot.slane %v6440, 6
        %v6644 = vrot.slane %v6643, 4
        %v6645 = vrot.slane %v6441, 6
        %v6646 = vsel %vm6586, %v6644, %v6645
        %v6647 = vrot.slane %v6645, 4
        %v6648 = vrot.slane %v6442, 6
        %v6649 = vsel %vm6586, %v6647, %v6648
        %v6650 = vrot.slane %v6443, 6
        %v6651 = vrot.slane %v6650, 4
        %v6652 = vrot.slane %v6444, 6
        %v6653 = vsel %vm6586, %v6651, %v6652
        %v6654 = vrot.slane %v6652, 4
        %v6655 = vrot.slane %v6445, 6
        %v6656 = vsel %vm6586, %v6654, %v6655
        %v6657 = vrot.slane %v6446, 6
        %v6658 = vrot.slane %v6657, 4
        %v6659 = vrot.slane %v6447, 6
        %v6660 = vsel %vm6586, %v6658, %v6659
        %v6661 = vrot.slane %v6659, 4
        %v6662 = vrot.slane %v6448, 6
        %v6663 = vsel %vm6586, %v6661, %v6662
        %v6664 = vrot.slane %v6449, 6
        %v6665 = vrot.slane %v6664, 4
        %v6666 = vrot.slane %v6450, 6
        %v6667 = vsel %vm6586, %v6665, %v6666
        %v6668 = vrot.slane %v6666, 4
        %v6669 = vrot.slane %v6451, 6
        %v6670 = vsel %vm6586, %v6668, %v6669
        %v6671 = vrot.slane %v6452, 6
        %v6672 = vrot.slane %v6671, 4
        %v6673 = vrot.slane %v6453, 6
        %v6674 = vsel %vm6586, %v6672, %v6673
        %v6675 = vrot.slane %v6673, 4
        %v6676 = vrot.slane %v6454, 6
        %v6677 = vsel %vm6586, %v6675, %v6676
        %v6678 = vrot.slane %v6455, 6
        %v6679 = vrot.slane %v6678, 4
        %v6680 = vrot.slane %v6456, 6
        %v6681 = vsel %vm6586, %v6679, %v6680
        %v6682 = vrot.slane %v6680, 4
        %v6683 = vrot.slane %v6457, 6
        %v6684 = vsel %vm6586, %v6682, %v6683
        %v6685 = vrot.slane %v6458, 6
        %v6686 = vrot.slane %v6685, 4
        %v6687 = vrot.slane %v6459, 6
        %v6688 = vsel %vm6586, %v6686, %v6687
        %v6689 = vrot.slane %v6687, 4
        %v6690 = vrot.slane %v6460, 6
        %v6691 = vsel %vm6586, %v6689, %v6690
        %v6692 = vrot.slane %v6461, 6
        %v6693 = vrot.slane %v6692, 4
        %v6694 = vrot.slane %v6462, 6
        %v6695 = vsel %vm6586, %v6693, %v6694
        %v6696 = vrot.slane %v6694, 4
        %v6697 = vrot.slane %v6463, 6
        %v6698 = vsel %vm6586, %v6696, %v6697
        %6731 = vst [vmem:[#allocation3] sm:$0xf] %v6590
        %6732 = vst [vmem:[#allocation3 + $0x24] sm:$0xf] %v6593
        %6733 = vst [vmem:[#allocation3 + $0x48] sm:$0xf] %v6597
        %6734 = vst [vmem:[#allocation3 + $0x6c] sm:$0xf] %v6600
        %6735 = vst [vmem:[#allocation3 + $0x90] sm:$0xf] %v6604
        %6736 = vst [vmem:[#allocation3 + $0xb4] sm:$0xf] %v6607
        %6737 = vst [vmem:[#allocation3 + $0xd8] sm:$0xf] %v6611
        %6738 = vst [vmem:[#allocation3 + $0xfc] sm:$0xf] %v6614
        %6739 = vst [vmem:[#allocation3 + $0x120] sm:$0xf] %v6618
        %6740 = vst [vmem:[#allocation3 + $0x144] sm:$0xf] %v6621
        %6741 = vst [vmem:[#allocation3 + $0x168] sm:$0xf] %v6625
        %6742 = vst [vmem:[#allocation3 + $0x18c] sm:$0xf] %v6628
        %6743 = vst [vmem:[#allocation3 + $0x1b0] sm:$0xf] %v6632
        %6744 = vst [vmem:[#allocation3 + $0x1d4] sm:$0xf] %v6635
        %6745 = vst [vmem:[#allocation3 + $0x1f8] sm:$0xf] %v6639
        %6746 = vst [vmem:[#allocation3 + $0x21c] sm:$0xf] %v6642
        %6747 = vst [vmem:[#allocation3 + $0x240] sm:$0xf] %v6646
        %6748 = vst [vmem:[#allocation3 + $0x264] sm:$0xf] %v6649
        %6749 = vst [vmem:[#allocation3 + $0x288] sm:$0xf] %v6653
        %6750 = vst [vmem:[#allocation3 + $0x2ac] sm:$0xf] %v6656
        %6751 = vst [vmem:[#allocation3 + $0x2d0] sm:$0xf] %v6660
        %6752 = vst [vmem:[#allocation3 + $0x2f4] sm:$0xf] %v6663
        %6753 = vst [vmem:[#allocation3 + $0x318] sm:$0xf] %v6667
        %6754 = vst [vmem:[#allocation3 + $0x33c] sm:$0xf] %v6670
        %6755 = vst [vmem:[#allocation3 + $0x360] sm:$0xf] %v6674
        %6756 = vst [vmem:[#allocation3 + $0x384] sm:$0xf] %v6677
        %6757 = vst [vmem:[#allocation3 + $0x3a8] sm:$0xf] %v6681
        %6758 = vst [vmem:[#allocation3 + $0x3cc] sm:$0xf] %v6684
        %6759 = vst [vmem:[#allocation3 + $0x3f0] sm:$0xf] %v6688
        %6760 = vst [vmem:[#allocation3 + $0x414] sm:$0xf] %v6691
        %6761 = vst [vmem:[#allocation3 + $0x438] sm:$0xf] %v6695
        %6762 = vst [vmem:[#allocation3 + $0x45c] sm:$0xf] %v6698
        %v6799 = vrot.slane %v6464, 6
        %v6800 = vrot.slane %v6799, 4
        %v6801 = vrot.slane %v6465, 6
        %v6802 = vsel %vm6586, %v6800, %v6801
        %v6803 = vrot.slane %v6801, 4
        %v6804 = vrot.slane %v6466, 6
        %v6805 = vsel %vm6586, %v6803, %v6804
        %v6806 = vrot.slane %v6467, 6
        %v6807 = vrot.slane %v6806, 4
        %v6808 = vrot.slane %v6468, 6
        %v6809 = vsel %vm6586, %v6807, %v6808
        %v6810 = vrot.slane %v6808, 4
        %v6811 = vrot.slane %v6469, 6
        %v6812 = vsel %vm6586, %v6810, %v6811
        %v6813 = vrot.slane %v6470, 6
        %v6814 = vrot.slane %v6813, 4
        %v6815 = vrot.slane %v6471, 6
        %v6816 = vsel %vm6586, %v6814, %v6815
        %v6817 = vrot.slane %v6815, 4
        %v6818 = vrot.slane %v6472, 6
        %v6819 = vsel %vm6586, %v6817, %v6818
        %v6820 = vrot.slane %v6473, 6
        %v6821 = vrot.slane %v6820, 4
        %v6822 = vrot.slane %v6474, 6
        %v6823 = vsel %vm6586, %v6821, %v6822
        %v6824 = vrot.slane %v6822, 4
        %v6825 = vrot.slane %v6475, 6
        %v6826 = vsel %vm6586, %v6824, %v6825
        %v6827 = vrot.slane %v6476, 6
        %v6828 = vrot.slane %v6827, 4
        %v6829 = vrot.slane %v6477, 6
        %v6830 = vsel %vm6586, %v6828, %v6829
        %v6831 = vrot.slane %v6829, 4
        %v6832 = vrot.slane %v6478, 6
        %v6833 = vsel %vm6586, %v6831, %v6832
        %v6834 = vrot.slane %v6479, 6
        %v6835 = vrot.slane %v6834, 4
        %v6836 = vrot.slane %v6480, 6
        %v6837 = vsel %vm6586, %v6835, %v6836
        %v6838 = vrot.slane %v6836, 4
        %v6839 = vrot.slane %v6481, 6
        %v6840 = vsel %vm6586, %v6838, %v6839
        %v6841 = vrot.slane %v6482, 6
        %v6842 = vrot.slane %v6841, 4
        %v6843 = vrot.slane %v6483, 6
        %v6844 = vsel %vm6586, %v6842, %v6843
        %v6845 = vrot.slane %v6843, 4
        %v6846 = vrot.slane %v6484, 6
        %v6847 = vsel %vm6586, %v6845, %v6846
        %v6848 = vrot.slane %v6485, 6
        %v6849 = vrot.slane %v6848, 4
        %v6850 = vrot.slane %v6486, 6
        %v6851 = vsel %vm6586, %v6849, %v6850
        %v6852 = vrot.slane %v6850, 4
        %v6853 = vrot.slane %v6487, 6
        %v6854 = vsel %vm6586, %v6852, %v6853
        %v6855 = vrot.slane %v6488, 6
        %v6856 = vrot.slane %v6855, 4
        %v6857 = vrot.slane %v6489, 6
        %v6858 = vsel %vm6586, %v6856, %v6857
        %v6859 = vrot.slane %v6857, 4
        %v6860 = vrot.slane %v6490, 6
        %v6861 = vsel %vm6586, %v6859, %v6860
        %v6862 = vrot.slane %v6491, 6
        %v6863 = vrot.slane %v6862, 4
        %v6864 = vrot.slane %v6492, 6
        %v6865 = vsel %vm6586, %v6863, %v6864
        %v6866 = vrot.slane %v6864, 4
        %v6867 = vrot.slane %v6493, 6
        %v6868 = vsel %vm6586, %v6866, %v6867
        %v6869 = vrot.slane %v6494, 6
        %v6870 = vrot.slane %v6869, 4
        %v6871 = vrot.slane %v6495, 6
        %v6872 = vsel %vm6586, %v6870, %v6871
        %v6873 = vrot.slane %v6871, 4
        %v6874 = vrot.slane %v6496, 6
        %v6875 = vsel %vm6586, %v6873, %v6874
        %v6876 = vrot.slane %v6497, 6
        %v6877 = vrot.slane %v6876, 4
        %v6878 = vrot.slane %v6498, 6
        %v6879 = vsel %vm6586, %v6877, %v6878
        %v6880 = vrot.slane %v6878, 4
        %v6881 = vrot.slane %v6499, 6
        %v6882 = vsel %vm6586, %v6880, %v6881
        %6907 = vst [vmem:[#allocation3 + $0x4] sm:$0xf] %v6674
        %6908 = vst [vmem:[#allocation3 + $0x28] sm:$0xf] %v6677
        %6909 = vst [vmem:[#allocation3 + $0x4c] sm:$0xf] %v6681
        %6910 = vst [vmem:[#allocation3 + $0x70] sm:$0xf] %v6684
        %6911 = vst [vmem:[#allocation3 + $0x94] sm:$0xf] %v6688
        %6912 = vst [vmem:[#allocation3 + $0xb8] sm:$0xf] %v6691
        %6913 = vst [vmem:[#allocation3 + $0xdc] sm:$0xf] %v6695
        %6914 = vst [vmem:[#allocation3 + $0x100] sm:$0xf] %v6698
        %6915 = vst [vmem:[#allocation3 + $0x124] sm:$0xf] %v6802
        %6916 = vst [vmem:[#allocation3 + $0x148] sm:$0xf] %v6805
        %6917 = vst [vmem:[#allocation3 + $0x16c] sm:$0xf] %v6809
        %6918 = vst [vmem:[#allocation3 + $0x190] sm:$0xf] %v6812
        %6919 = vst [vmem:[#allocation3 + $0x1b4] sm:$0xf] %v6816
        %6920 = vst [vmem:[#allocation3 + $0x1d8] sm:$0xf] %v6819
        %6921 = vst [vmem:[#allocation3 + $0x1fc] sm:$0xf] %v6823
        %6922 = vst [vmem:[#allocation3 + $0x220] sm:$0xf] %v6826
        %6923 = vst [vmem:[#allocation3 + $0x244] sm:$0xf] %v6830
        %6924 = vst [vmem:[#allocation3 + $0x268] sm:$0xf] %v6833
        %6925 = vst [vmem:[#allocation3 + $0x28c] sm:$0xf] %v6837
        %6926 = vst [vmem:[#allocation3 + $0x2b0] sm:$0xf] %v6840
        %6927 = vst [vmem:[#allocation3 + $0x2d4] sm:$0xf] %v6844
        %6928 = vst [vmem:[#allocation3 + $0x2f8] sm:$0xf] %v6847
        %6929 = vst [vmem:[#allocation3 + $0x31c] sm:$0xf] %v6851
        %6930 = vst [vmem:[#allocation3 + $0x340] sm:$0xf] %v6854
        %6931 = vst [vmem:[#allocation3 + $0x364] sm:$0xf] %v6858
        %6932 = vst [vmem:[#allocation3 + $0x388] sm:$0xf] %v6861
        %6933 = vst [vmem:[#allocation3 + $0x3ac] sm:$0xf] %v6865
        %6934 = vst [vmem:[#allocation3 + $0x3d0] sm:$0xf] %v6868
        %6935 = vst [vmem:[#allocation3 + $0x3f4] sm:$0xf] %v6872
        %6936 = vst [vmem:[#allocation3 + $0x418] sm:$0xf] %v6875
        %6937 = vst [vmem:[#allocation3 + $0x43c] sm:$0xf] %v6879
        %6938 = vst [vmem:[#allocation3 + $0x460] sm:$0xf] %v6882
        %v6975 = vrot.slane %v6500, 6
        %v6976 = vrot.slane %v6975, 4
        %v6977 = vrot.slane %v6501, 6
        %v6978 = vsel %vm6586, %v6976, %v6977
        %v6979 = vrot.slane %v6977, 4
        %v6980 = vrot.slane %v6502, 6
        %v6981 = vsel %vm6586, %v6979, %v6980
        %v6982 = vrot.slane %v6503, 6
        %v6983 = vrot.slane %v6982, 4
        %v6984 = vrot.slane %v6504, 6
        %v6985 = vsel %vm6586, %v6983, %v6984
        %v6986 = vrot.slane %v6984, 4
        %v6987 = vrot.slane %v6505, 6
        %v6988 = vsel %vm6586, %v6986, %v6987
        %v6989 = vrot.slane %v6506, 6
        %v6990 = vrot.slane %v6989, 4
        %v6991 = vrot.slane %v6507, 6
        %v6992 = vsel %vm6586, %v6990, %v6991
        %v6993 = vrot.slane %v6991, 4
        %v6994 = vrot.slane %v6508, 6
        %v6995 = vsel %vm6586, %v6993, %v6994
        %v6996 = vrot.slane %v6509, 6
        %v6997 = vrot.slane %v6996, 4
        %v6998 = vrot.slane %v6510, 6
        %v6999 = vsel %vm6586, %v6997, %v6998
        %v7000 = vrot.slane %v6998, 4
        %v7001 = vrot.slane %v6511, 6
        %v7002 = vsel %vm6586, %v7000, %v7001
        %v7003 = vrot.slane %v6512, 6
        %v7004 = vrot.slane %v7003, 4
        %v7005 = vrot.slane %v6513, 6
        %v7006 = vsel %vm6586, %v7004, %v7005
        %v7007 = vrot.slane %v7005, 4
        %v7008 = vrot.slane %v6514, 6
        %v7009 = vsel %vm6586, %v7007, %v7008
        %v7010 = vrot.slane %v6515, 6
        %v7011 = vrot.slane %v7010, 4
        %v7012 = vrot.slane %v6516, 6
        %v7013 = vsel %vm6586, %v7011, %v7012
        %v7014 = vrot.slane %v7012, 4
        %v7015 = vrot.slane %v6517, 6
        %v7016 = vsel %vm6586, %v7014, %v7015
        %v7017 = vrot.slane %v6518, 6
        %v7018 = vrot.slane %v7017, 4
        %v7019 = vrot.slane %v6519, 6
        %v7020 = vsel %vm6586, %v7018, %v7019
        %v7021 = vrot.slane %v7019, 4
        %v7022 = vrot.slane %v6520, 6
        %v7023 = vsel %vm6586, %v7021, %v7022
        %v7024 = vrot.slane %v6521, 6
        %v7025 = vrot.slane %v7024, 4
        %v7026 = vrot.slane %v6522, 6
        %v7027 = vsel %vm6586, %v7025, %v7026
        %v7028 = vrot.slane %v7026, 4
        %v7029 = vrot.slane %v6523, 6
        %v7030 = vsel %vm6586, %v7028, %v7029
        %v7031 = vrot.slane %v6524, 6
        %v7032 = vrot.slane %v7031, 4
        %v7033 = vrot.slane %v6525, 6
        %v7034 = vsel %vm6586, %v7032, %v7033
        %v7035 = vrot.slane %v7033, 4
        %v7036 = vrot.slane %v6526, 6
        %v7037 = vsel %vm6586, %v7035, %v7036
        %v7038 = vrot.slane %v6527, 6
        %v7039 = vrot.slane %v7038, 4
        %v7040 = vrot.slane %v6528, 6
        %v7041 = vsel %vm6586, %v7039, %v7040
        %v7042 = vrot.slane %v7040, 4
        %v7043 = vrot.slane %v6529, 6
        %v7044 = vsel %vm6586, %v7042, %v7043
        %v7045 = vrot.slane %v6530, 6
        %v7046 = vrot.slane %v7045, 4
        %v7047 = vrot.slane %v6531, 6
        %v7048 = vsel %vm6586, %v7046, %v7047
        %v7049 = vrot.slane %v7047, 4
        %v7050 = vrot.slane %v6532, 6
        %v7051 = vsel %vm6586, %v7049, %v7050
        %v7052 = vrot.slane %v6533, 6
        %v7053 = vrot.slane %v7052, 4
        %v7054 = vrot.slane %v6534, 6
        %v7055 = vsel %vm6586, %v7053, %v7054
        %v7056 = vrot.slane %v7054, 4
        %v7057 = vrot.slane %v6535, 6
        %v7058 = vsel %vm6586, %v7056, %v7057
        %7083 = vst [vmem:[#allocation3 + $0x8] sm:$0xf] %v6858
        %7084 = vst [vmem:[#allocation3 + $0x2c] sm:$0xf] %v6861
        %7085 = vst [vmem:[#allocation3 + $0x50] sm:$0xf] %v6865
        %7086 = vst [vmem:[#allocation3 + $0x74] sm:$0xf] %v6868
        %7087 = vst [vmem:[#allocation3 + $0x98] sm:$0xf] %v6872
        %7088 = vst [vmem:[#allocation3 + $0xbc] sm:$0xf] %v6875
        %7089 = vst [vmem:[#allocation3 + $0xe0] sm:$0xf] %v6879
        %7090 = vst [vmem:[#allocation3 + $0x104] sm:$0xf] %v6882
        %7091 = vst [vmem:[#allocation3 + $0x128] sm:$0xf] %v6978
        %7092 = vst [vmem:[#allocation3 + $0x14c] sm:$0xf] %v6981
        %7093 = vst [vmem:[#allocation3 + $0x170] sm:$0xf] %v6985
        %7094 = vst [vmem:[#allocation3 + $0x194] sm:$0xf] %v6988
        %7095 = vst [vmem:[#allocation3 + $0x1b8] sm:$0xf] %v6992
        %7096 = vst [vmem:[#allocation3 + $0x1dc] sm:$0xf] %v6995
        %7097 = vst [vmem:[#allocation3 + $0x200] sm:$0xf] %v6999
        %7098 = vst [vmem:[#allocation3 + $0x224] sm:$0xf] %v7002
        %7099 = vst [vmem:[#allocation3 + $0x248] sm:$0xf] %v7006
        %7100 = vst [vmem:[#allocation3 + $0x26c] sm:$0xf] %v7009
        %7101 = vst [vmem:[#allocation3 + $0x290] sm:$0xf] %v7013
        %7102 = vst [vmem:[#allocation3 + $0x2b4] sm:$0xf] %v7016
        %7103 = vst [vmem:[#allocation3 + $0x2d8] sm:$0xf] %v7020
        %7104 = vst [vmem:[#allocation3 + $0x2fc] sm:$0xf] %v7023
        %7105 = vst [vmem:[#allocation3 + $0x320] sm:$0xf] %v7027
        %7106 = vst [vmem:[#allocation3 + $0x344] sm:$0xf] %v7030
        %7107 = vst [vmem:[#allocation3 + $0x368] sm:$0xf] %v7034
        %7108 = vst [vmem:[#allocation3 + $0x38c] sm:$0xf] %v7037
        %7109 = vst [vmem:[#allocation3 + $0x3b0] sm:$0xf] %v7041
        %7110 = vst [vmem:[#allocation3 + $0x3d4] sm:$0xf] %v7044
        %7111 = vst [vmem:[#allocation3 + $0x3f8] sm:$0xf] %v7048
        %7112 = vst [vmem:[#allocation3 + $0x41c] sm:$0xf] %v7051
        %7113 = vst [vmem:[#allocation3 + $0x440] sm:$0xf] %v7055
        %7114 = vst [vmem:[#allocation3 + $0x464] sm:$0xf] %v7058
        %v7115 = vld [vmem:[#allocation2 + $0x8] sm:$0xf]
        %v7116 = vld [vmem:[#allocation2 + $0xc] sm:$0xf]
        %v7117 = vld [vmem:[#allocation2 + $0x20] sm:$0xf]
        %v7118 = vld [vmem:[#allocation2 + $0x24] sm:$0xf]
        %v7119 = vld [vmem:[#allocation2 + $0x38] sm:$0xf]
        %v7120 = vld [vmem:[#allocation2 + $0x3c] sm:$0xf]
        %v7121 = vld [vmem:[#allocation2 + $0x50] sm:$0xf]
        %v7122 = vld [vmem:[#allocation2 + $0x54] sm:$0xf]
        %v7123 = vld [vmem:[#allocation2 + $0x68] sm:$0xf]
        %v7124 = vld [vmem:[#allocation2 + $0x6c] sm:$0xf]
        %v7125 = vld [vmem:[#allocation2 + $0x80] sm:$0xf]
        %v7126 = vld [vmem:[#allocation2 + $0x84] sm:$0xf]
        %v7127 = vld [vmem:[#allocation2 + $0x98] sm:$0xf]
        %v7128 = vld [vmem:[#allocation2 + $0x9c] sm:$0xf]
        %v7129 = vld [vmem:[#allocation2 + $0xb0] sm:$0xf]
        %v7130 = vld [vmem:[#allocation2 + $0xb4] sm:$0xf]
        %v7131 = vld [vmem:[#allocation2 + $0xc8] sm:$0xf]
        %v7132 = vld [vmem:[#allocation2 + $0xcc] sm:$0xf]
        %v7133 = vld [vmem:[#allocation2 + $0xe0] sm:$0xf]
        %v7134 = vld [vmem:[#allocation2 + $0xe4] sm:$0xf]
        %v7135 = vld [vmem:[#allocation2 + $0xf8] sm:$0xf]
        %v7136 = vld [vmem:[#allocation2 + $0xfc] sm:$0xf]
        %v7137 = vld [vmem:[#allocation2 + $0x110] sm:$0xf]
        %v7138 = vld [vmem:[#allocation2 + $0x114] sm:$0xf]
        %v7139 = vld [vmem:[#allocation2 + $0x128] sm:$0xf]
        %v7140 = vld [vmem:[#allocation2 + $0x12c] sm:$0xf]
        %v7141 = vld [vmem:[#allocation2 + $0x140] sm:$0xf]
        %v7142 = vld [vmem:[#allocation2 + $0x144] sm:$0xf]
        %v7143 = vld [vmem:[#allocation2 + $0x158] sm:$0xf]
        %v7144 = vld [vmem:[#allocation2 + $0x15c] sm:$0xf]
        %v7145 = vld [vmem:[#allocation2 + $0x170] sm:$0xf]
        %v7146 = vld [vmem:[#allocation2 + $0x174] sm:$0xf]
        %v7147 = vld [vmem:[#allocation2 + $0x188] sm:$0xf]
        %v7148 = vld [vmem:[#allocation2 + $0x18c] sm:$0xf]
        %v7149 = vld [vmem:[#allocation2 + $0x1a0] sm:$0xf]
        %v7150 = vld [vmem:[#allocation2 + $0x1a4] sm:$0xf]
        %v7151 = vld [vmem:[#allocation2 + $0x1b8] sm:$0xf]
        %v7152 = vld [vmem:[#allocation2 + $0x1bc] sm:$0xf]
        %v7153 = vld [vmem:[#allocation2 + $0x1d0] sm:$0xf]
        %v7154 = vld [vmem:[#allocation2 + $0x1d4] sm:$0xf]
        %v7155 = vld [vmem:[#allocation2 + $0x1e8] sm:$0xf]
        %v7156 = vld [vmem:[#allocation2 + $0x1ec] sm:$0xf]
        %v7157 = vld [vmem:[#allocation2 + $0x200] sm:$0xf]
        %v7158 = vld [vmem:[#allocation2 + $0x204] sm:$0xf]
        %v7159 = vld [vmem:[#allocation2 + $0x218] sm:$0xf]
        %v7160 = vld [vmem:[#allocation2 + $0x21c] sm:$0xf]
        %v7161 = vld [vmem:[#allocation2 + $0x230] sm:$0xf]
        %v7162 = vld [vmem:[#allocation2 + $0x234] sm:$0xf]
        %v7163 = vld [vmem:[#allocation2 + $0x248] sm:$0xf]
        %v7164 = vld [vmem:[#allocation2 + $0x24c] sm:$0xf]
        %v7165 = vld [vmem:[#allocation2 + $0x260] sm:$0xf]
        %v7166 = vld [vmem:[#allocation2 + $0x264] sm:$0xf]
        %v7167 = vld [vmem:[#allocation2 + $0x278] sm:$0xf]
        %v7168 = vld [vmem:[#allocation2 + $0x27c] sm:$0xf]
        %v7169 = vld [vmem:[#allocation2 + $0x290] sm:$0xf]
        %v7170 = vld [vmem:[#allocation2 + $0x294] sm:$0xf]
        %v7171 = vld [vmem:[#allocation2 + $0x2a8] sm:$0xf]
        %v7172 = vld [vmem:[#allocation2 + $0x2ac] sm:$0xf]
        %v7173 = vld [vmem:[#allocation2 + $0x2c0] sm:$0xf]
        %v7174 = vld [vmem:[#allocation2 + $0x2c4] sm:$0xf]
        %v7175 = vld [vmem:[#allocation2 + $0x2d8] sm:$0xf]
        %v7176 = vld [vmem:[#allocation2 + $0x2dc] sm:$0xf]
        %v7177 = vld [vmem:[#allocation2 + $0x2f0] sm:$0xf]
        %v7178 = vld [vmem:[#allocation2 + $0x2f4] sm:$0xf]
        %v7179 = vld [vmem:[#allocation2 + $0x308] sm:$0xf]
        %v7180 = vld [vmem:[#allocation2 + $0x30c] sm:$0xf]
        %v7181 = vld [vmem:[#allocation2 + $0x320] sm:$0xf]
        %v7182 = vld [vmem:[#allocation2 + $0x324] sm:$0xf]
        %v7183 = vld [vmem:[#allocation2 + $0x338] sm:$0xf]
        %v7184 = vld [vmem:[#allocation2 + $0x33c] sm:$0xf]
        %v7185 = vld [vmem:[#allocation2 + $0x350] sm:$0xf]
        %v7186 = vld [vmem:[#allocation2 + $0x354] sm:$0xf]
        %v7187 = vld [vmem:[#allocation2 + $0x368] sm:$0xf]
        %v7188 = vld [vmem:[#allocation2 + $0x36c] sm:$0xf]
        %v7189 = vld [vmem:[#allocation2 + $0x380] sm:$0xf]
        %v7190 = vld [vmem:[#allocation2 + $0x384] sm:$0xf]
        %v7191 = vld [vmem:[#allocation2 + $0x398] sm:$0xf]
        %v7192 = vld [vmem:[#allocation2 + $0x39c] sm:$0xf]
        %v7193 = vld [vmem:[#allocation2 + $0x3b0] sm:$0xf]
        %v7194 = vld [vmem:[#allocation2 + $0x3b4] sm:$0xf]
        %7195 = vst [vmem:[#allocation3 + $0xc] sm:$0xf] %v7115
        %7196 = vst [vmem:[#allocation3 + $0x30] sm:$0xf] %v7116
        %7197 = vst [vmem:[#allocation3 + $0x54] sm:$0xf] %v7117
        %7198 = vst [vmem:[#allocation3 + $0x78] sm:$0xf] %v7118
        %7199 = vst [vmem:[#allocation3 + $0x9c] sm:$0xf] %v7119
        %7200 = vst [vmem:[#allocation3 + $0xc0] sm:$0xf] %v7120
        %7201 = vst [vmem:[#allocation3 + $0xe4] sm:$0xf] %v7121
        %7202 = vst [vmem:[#allocation3 + $0x108] sm:$0xf] %v7122
        %7203 = vst [vmem:[#allocation3 + $0x12c] sm:$0xf] %v7123
        %7204 = vst [vmem:[#allocation3 + $0x150] sm:$0xf] %v7124
        %7205 = vst [vmem:[#allocation3 + $0x174] sm:$0xf] %v7125
        %7206 = vst [vmem:[#allocation3 + $0x198] sm:$0xf] %v7126
        %7207 = vst [vmem:[#allocation3 + $0x1bc] sm:$0xf] %v7127
        %7208 = vst [vmem:[#allocation3 + $0x1e0] sm:$0xf] %v7128
        %7209 = vst [vmem:[#allocation3 + $0x204] sm:$0xf] %v7129
        %7210 = vst [vmem:[#allocation3 + $0x228] sm:$0xf] %v7130
        %7211 = vst [vmem:[#allocation3 + $0x24c] sm:$0xf] %v7131
        %7212 = vst [vmem:[#allocation3 + $0x270] sm:$0xf] %v7132
        %7213 = vst [vmem:[#allocation3 + $0x294] sm:$0xf] %v7133
        %7214 = vst [vmem:[#allocation3 + $0x2b8] sm:$0xf] %v7134
        %7215 = vst [vmem:[#allocation3 + $0x2dc] sm:$0xf] %v7135
        %7216 = vst [vmem:[#allocation3 + $0x300] sm:$0xf] %v7136
        %7217 = vst [vmem:[#allocation3 + $0x324] sm:$0xf] %v7137
        %7218 = vst [vmem:[#allocation3 + $0x348] sm:$0xf] %v7138
        %7219 = vst [vmem:[#allocation3 + $0x36c] sm:$0xf] %v7139
        %7220 = vst [vmem:[#allocation3 + $0x390] sm:$0xf] %v7140
        %7221 = vst [vmem:[#allocation3 + $0x3b4] sm:$0xf] %v7141
        %7222 = vst [vmem:[#allocation3 + $0x3d8] sm:$0xf] %v7142
        %7223 = vst [vmem:[#allocation3 + $0x3fc] sm:$0xf] %v7143
        %7224 = vst [vmem:[#allocation3 + $0x420] sm:$0xf] %v7144
        %7225 = vst [vmem:[#allocation3 + $0x444] sm:$0xf] %v7145
        %7226 = vst [vmem:[#allocation3 + $0x468] sm:$0xf] %v7146
        %7227 = vst [vmem:[#allocation3 + $0x10] sm:$0xf] %v7139
        %7228 = vst [vmem:[#allocation3 + $0x34] sm:$0xf] %v7140
        %7229 = vst [vmem:[#allocation3 + $0x58] sm:$0xf] %v7141
        %7230 = vst [vmem:[#allocation3 + $0x7c] sm:$0xf] %v7142
        %7231 = vst [vmem:[#allocation3 + $0xa0] sm:$0xf] %v7143
        %7232 = vst [vmem:[#allocation3 + $0xc4] sm:$0xf] %v7144
        %7233 = vst [vmem:[#allocation3 + $0xe8] sm:$0xf] %v7145
        %7234 = vst [vmem:[#allocation3 + $0x10c] sm:$0xf] %v7146
        %7235 = vst [vmem:[#allocation3 + $0x130] sm:$0xf] %v7147
        %7236 = vst [vmem:[#allocation3 + $0x154] sm:$0xf] %v7148
        %7237 = vst [vmem:[#allocation3 + $0x178] sm:$0xf] %v7149
        %7238 = vst [vmem:[#allocation3 + $0x19c] sm:$0xf] %v7150
        %7239 = vst [vmem:[#allocation3 + $0x1c0] sm:$0xf] %v7151
        %7240 = vst [vmem:[#allocation3 + $0x1e4] sm:$0xf] %v7152
        %7241 = vst [vmem:[#allocation3 + $0x208] sm:$0xf] %v7153
        %7242 = vst [vmem:[#allocation3 + $0x22c] sm:$0xf] %v7154
        %7243 = vst [vmem:[#allocation3 + $0x250] sm:$0xf] %v7155
        %7244 = vst [vmem:[#allocation3 + $0x274] sm:$0xf] %v7156
        %7245 = vst [vmem:[#allocation3 + $0x298] sm:$0xf] %v7157
        %7246 = vst [vmem:[#allocation3 + $0x2bc] sm:$0xf] %v7158
        %7247 = vst [vmem:[#allocation3 + $0x2e0] sm:$0xf] %v7159
        %7248 = vst [vmem:[#allocation3 + $0x304] sm:$0xf] %v7160
        %7249 = vst [vmem:[#allocation3 + $0x328] sm:$0xf] %v7161
        %7250 = vst [vmem:[#allocation3 + $0x34c] sm:$0xf] %v7162
        %7251 = vst [vmem:[#allocation3 + $0x370] sm:$0xf] %v7163
        %7252 = vst [vmem:[#allocation3 + $0x394] sm:$0xf] %v7164
        %7253 = vst [vmem:[#allocation3 + $0x3b8] sm:$0xf] %v7165
        %7254 = vst [vmem:[#allocation3 + $0x3dc] sm:$0xf] %v7166
        %7255 = vst [vmem:[#allocation3 + $0x400] sm:$0xf] %v7167
        %7256 = vst [vmem:[#allocation3 + $0x424] sm:$0xf] %v7168
        %7257 = vst [vmem:[#allocation3 + $0x448] sm:$0xf] %v7169
        %7258 = vst [vmem:[#allocation3 + $0x46c] sm:$0xf] %v7170
        %7259 = vst [vmem:[#allocation3 + $0x14] sm:$0xf] %v7163
        %7260 = vst [vmem:[#allocation3 + $0x38] sm:$0xf] %v7164
        %7261 = vst [vmem:[#allocation3 + $0x5c] sm:$0xf] %v7165
        %7262 = vst [vmem:[#allocation3 + $0x80] sm:$0xf] %v7166
        %7263 = vst [vmem:[#allocation3 + $0xa4] sm:$0xf] %v7167
        %7264 = vst [vmem:[#allocation3 + $0xc8] sm:$0xf] %v7168
        %7265 = vst [vmem:[#allocation3 + $0xec] sm:$0xf] %v7169
        %7266 = vst [vmem:[#allocation3 + $0x110] sm:$0xf] %v7170
        %7267 = vst [vmem:[#allocation3 + $0x134] sm:$0xf] %v7171
        %7268 = vst [vmem:[#allocation3 + $0x158] sm:$0xf] %v7172
        %7269 = vst [vmem:[#allocation3 + $0x17c] sm:$0xf] %v7173
        %7270 = vst [vmem:[#allocation3 + $0x1a0] sm:$0xf] %v7174
        %7271 = vst [vmem:[#allocation3 + $0x1c4] sm:$0xf] %v7175
        %7272 = vst [vmem:[#allocation3 + $0x1e8] sm:$0xf] %v7176
        %7273 = vst [vmem:[#allocation3 + $0x20c] sm:$0xf] %v7177
        %7274 = vst [vmem:[#allocation3 + $0x230] sm:$0xf] %v7178
        %7275 = vst [vmem:[#allocation3 + $0x254] sm:$0xf] %v7179
        %7276 = vst [vmem:[#allocation3 + $0x278] sm:$0xf] %v7180
        %7277 = vst [vmem:[#allocation3 + $0x29c] sm:$0xf] %v7181
        %7278 = vst [vmem:[#allocation3 + $0x2c0] sm:$0xf] %v7182
        %7279 = vst [vmem:[#allocation3 + $0x2e4] sm:$0xf] %v7183
        %7280 = vst [vmem:[#allocation3 + $0x308] sm:$0xf] %v7184
        %7281 = vst [vmem:[#allocation3 + $0x32c] sm:$0xf] %v7185
        %7282 = vst [vmem:[#allocation3 + $0x350] sm:$0xf] %v7186
        %7283 = vst [vmem:[#allocation3 + $0x374] sm:$0xf] %v7187
        %7284 = vst [vmem:[#allocation3 + $0x398] sm:$0xf] %v7188
        %7285 = vst [vmem:[#allocation3 + $0x3bc] sm:$0xf] %v7189
        %7286 = vst [vmem:[#allocation3 + $0x3e0] sm:$0xf] %v7190
        %7287 = vst [vmem:[#allocation3 + $0x404] sm:$0xf] %v7191
        %7288 = vst [vmem:[#allocation3 + $0x428] sm:$0xf] %v7192
        %7289 = vst [vmem:[#allocation3 + $0x44c] sm:$0xf] %v7193
        %7290 = vst [vmem:[#allocation3 + $0x470] sm:$0xf] %v7194
        %v7291 = vld [vmem:[#allocation2 + $0xc] sm:$0xc]
        %v7292 = vld [vmem:[#allocation2 + $0x10] sm:$0xf]
        %v7293 = vld [vmem:[#allocation2 + $0x14] sm:$0x3]
        %v7294 = vld [vmem:[#allocation2 + $0x24] sm:$0xc]
        %v7295 = vld [vmem:[#allocation2 + $0x28] sm:$0xf]
        %v7296 = vld [vmem:[#allocation2 + $0x2c] sm:$0x3]
        %v7297 = vld [vmem:[#allocation2 + $0x3c] sm:$0xc]
        %v7298 = vld [vmem:[#allocation2 + $0x40] sm:$0xf]
        %v7299 = vld [vmem:[#allocation2 + $0x44] sm:$0x3]
        %v7300 = vld [vmem:[#allocation2 + $0x54] sm:$0xc]
        %v7301 = vld [vmem:[#allocation2 + $0x58] sm:$0xf]
        %v7302 = vld [vmem:[#allocation2 + $0x5c] sm:$0x3]
        %v7303 = vld [vmem:[#allocation2 + $0x6c] sm:$0xc]
        %v7304 = vld [vmem:[#allocation2 + $0x70] sm:$0xf]
        %v7305 = vld [vmem:[#allocation2 + $0x74] sm:$0x3]
        %v7306 = vld [vmem:[#allocation2 + $0x84] sm:$0xc]
        %v7307 = vld [vmem:[#allocation2 + $0x88] sm:$0xf]
        %v7308 = vld [vmem:[#allocation2 + $0x8c] sm:$0x3]
        %v7309 = vld [vmem:[#allocation2 + $0x9c] sm:$0xc]
        %v7310 = vld [vmem:[#allocation2 + $0xa0] sm:$0xf]
        %v7311 = vld [vmem:[#allocation2 + $0xa4] sm:$0x3]
        %v7312 = vld [vmem:[#allocation2 + $0xb4] sm:$0xc]
        %v7313 = vld [vmem:[#allocation2 + $0xb8] sm:$0xf]
        %v7314 = vld [vmem:[#allocation2 + $0xbc] sm:$0x3]
        %v7315 = vld [vmem:[#allocation2 + $0xcc] sm:$0xc]
        %v7316 = vld [vmem:[#allocation2 + $0xd0] sm:$0xf]
        %v7317 = vld [vmem:[#allocation2 + $0xd4] sm:$0x3]
        %v7318 = vld [vmem:[#allocation2 + $0xe4] sm:$0xc]
        %v7319 = vld [vmem:[#allocation2 + $0xe8] sm:$0xf]
        %v7320 = vld [vmem:[#allocation2 + $0xec] sm:$0x3]
        %v7321 = vld [vmem:[#allocation2 + $0xfc] sm:$0xc]
        %v7322 = vld [vmem:[#allocation2 + $0x100] sm:$0xf]
        %v7323 = vld [vmem:[#allocation2 + $0x104] sm:$0x3]
        %v7324 = vld [vmem:[#allocation2 + $0x114] sm:$0xc]
        %v7325 = vld [vmem:[#allocation2 + $0x118] sm:$0xf]
        %v7326 = vld [vmem:[#allocation2 + $0x11c] sm:$0x3]
        %v7327 = vld [vmem:[#allocation2 + $0x12c] sm:$0xc]
        %v7328 = vld [vmem:[#allocation2 + $0x130] sm:$0xf]
        %v7329 = vld [vmem:[#allocation2 + $0x134] sm:$0x3]
        %v7330 = vld [vmem:[#allocation2 + $0x144] sm:$0xc]
        %v7331 = vld [vmem:[#allocation2 + $0x148] sm:$0xf]
        %v7332 = vld [vmem:[#allocation2 + $0x14c] sm:$0x3]
        %v7333 = vld [vmem:[#allocation2 + $0x15c] sm:$0xc]
        %v7334 = vld [vmem:[#allocation2 + $0x160] sm:$0xf]
        %v7335 = vld [vmem:[#allocation2 + $0x164] sm:$0x3]
        %v7336 = vld [vmem:[#allocation2 + $0x174] sm:$0xc]
        %v7337 = vld [vmem:[#allocation2 + $0x178] sm:$0xf]
        %v7338 = vld [vmem:[#allocation2 + $0x17c] sm:$0x3]
        %v7339 = vld [vmem:[#allocation2 + $0x18c] sm:$0xc]
        %v7340 = vld [vmem:[#allocation2 + $0x190] sm:$0xf]
        %v7341 = vld [vmem:[#allocation2 + $0x194] sm:$0x3]
        %v7342 = vld [vmem:[#allocation2 + $0x1a4] sm:$0xc]
        %v7343 = vld [vmem:[#allocation2 + $0x1a8] sm:$0xf]
        %v7344 = vld [vmem:[#allocation2 + $0x1ac] sm:$0x3]
        %v7345 = vld [vmem:[#allocation2 + $0x1bc] sm:$0xc]
        %v7346 = vld [vmem:[#allocation2 + $0x1c0] sm:$0xf]
        %v7347 = vld [vmem:[#allocation2 + $0x1c4] sm:$0x3]
        %v7348 = vld [vmem:[#allocation2 + $0x1d4] sm:$0xc]
        %v7349 = vld [vmem:[#allocation2 + $0x1d8] sm:$0xf]
        %v7350 = vld [vmem:[#allocation2 + $0x1dc] sm:$0x3]
        %v7351 = vld [vmem:[#allocation2 + $0x1ec] sm:$0xc]
        %v7352 = vld [vmem:[#allocation2 + $0x1f0] sm:$0xf]
        %v7353 = vld [vmem:[#allocation2 + $0x1f4] sm:$0x3]
        %v7354 = vld [vmem:[#allocation2 + $0x204] sm:$0xc]
        %v7355 = vld [vmem:[#allocation2 + $0x208] sm:$0xf]
        %v7356 = vld [vmem:[#allocation2 + $0x20c] sm:$0x3]
        %v7357 = vld [vmem:[#allocation2 + $0x21c] sm:$0xc]
        %v7358 = vld [vmem:[#allocation2 + $0x220] sm:$0xf]
        %v7359 = vld [vmem:[#allocation2 + $0x224] sm:$0x3]
        %v7360 = vld [vmem:[#allocation2 + $0x234] sm:$0xc]
        %v7361 = vld [vmem:[#allocation2 + $0x238] sm:$0xf]
        %v7362 = vld [vmem:[#allocation2 + $0x23c] sm:$0x3]
        %v7363 = vld [vmem:[#allocation2 + $0x24c] sm:$0xc]
        %v7364 = vld [vmem:[#allocation2 + $0x250] sm:$0xf]
        %v7365 = vld [vmem:[#allocation2 + $0x254] sm:$0x3]
        %v7366 = vld [vmem:[#allocation2 + $0x264] sm:$0xc]
        %v7367 = vld [vmem:[#allocation2 + $0x268] sm:$0xf]
        %v7368 = vld [vmem:[#allocation2 + $0x26c] sm:$0x3]
        %v7369 = vld [vmem:[#allocation2 + $0x27c] sm:$0xc]
        %v7370 = vld [vmem:[#allocation2 + $0x280] sm:$0xf]
        %v7371 = vld [vmem:[#allocation2 + $0x284] sm:$0x3]
        %v7372 = vld [vmem:[#allocation2 + $0x294] sm:$0xc]
        %v7373 = vld [vmem:[#allocation2 + $0x298] sm:$0xf]
        %v7374 = vld [vmem:[#allocation2 + $0x29c] sm:$0x3]
        %v7375 = vld [vmem:[#allocation2 + $0x2ac] sm:$0xc]
        %v7376 = vld [vmem:[#allocation2 + $0x2b0] sm:$0xf]
        %v7377 = vld [vmem:[#allocation2 + $0x2b4] sm:$0x3]
        %v7378 = vld [vmem:[#allocation2 + $0x2c4] sm:$0xc]
        %v7379 = vld [vmem:[#allocation2 + $0x2c8] sm:$0xf]
        %v7380 = vld [vmem:[#allocation2 + $0x2cc] sm:$0x3]
        %v7381 = vld [vmem:[#allocation2 + $0x2dc] sm:$0xc]
        %v7382 = vld [vmem:[#allocation2 + $0x2e0] sm:$0xf]
        %v7383 = vld [vmem:[#allocation2 + $0x2e4] sm:$0x3]
        %v7384 = vld [vmem:[#allocation2 + $0x2f4] sm:$0xc]
        %v7385 = vld [vmem:[#allocation2 + $0x2f8] sm:$0xf]
        %v7386 = vld [vmem:[#allocation2 + $0x2fc] sm:$0x3]
        %v7387 = vld [vmem:[#allocation2 + $0x30c] sm:$0xc]
        %v7388 = vld [vmem:[#allocation2 + $0x310] sm:$0xf]
        %v7389 = vld [vmem:[#allocation2 + $0x314] sm:$0x3]
        %v7390 = vld [vmem:[#allocation2 + $0x324] sm:$0xc]
        %v7391 = vld [vmem:[#allocation2 + $0x328] sm:$0xf]
        %v7392 = vld [vmem:[#allocation2 + $0x32c] sm:$0x3]
        %v7393 = vld [vmem:[#allocation2 + $0x33c] sm:$0xc]
        %v7394 = vld [vmem:[#allocation2 + $0x340] sm:$0xf]
        %v7395 = vld [vmem:[#allocation2 + $0x344] sm:$0x3]
        %v7396 = vld [vmem:[#allocation2 + $0x354] sm:$0xc]
        %v7397 = vld [vmem:[#allocation2 + $0x358] sm:$0xf]
        %v7398 = vld [vmem:[#allocation2 + $0x35c] sm:$0x3]
        %v7399 = vld [vmem:[#allocation2 + $0x36c] sm:$0xc]
        %v7400 = vld [vmem:[#allocation2 + $0x370] sm:$0xf]
        %v7401 = vld [vmem:[#allocation2 + $0x374] sm:$0x3]
        %v7402 = vld [vmem:[#allocation2 + $0x384] sm:$0xc]
        %v7403 = vld [vmem:[#allocation2 + $0x388] sm:$0xf]
        %v7404 = vld [vmem:[#allocation2 + $0x38c] sm:$0x3]
        %v7405 = vld [vmem:[#allocation2 + $0x39c] sm:$0xc]
        %v7406 = vld [vmem:[#allocation2 + $0x3a0] sm:$0xf]
        %v7407 = vld [vmem:[#allocation2 + $0x3a4] sm:$0x3]
        %v7408 = vld [vmem:[#allocation2 + $0x3b4] sm:$0xc]
        %v7409 = vld [vmem:[#allocation2 + $0x3b8] sm:$0xf]
        %v7410 = vld [vmem:[#allocation2 + $0x3bc] sm:$0x3]
        %v7459 = vrot.slane %v7291, 6
        %v7460 = vrot.slane %v7459, 4
        %v7461 = vrot.slane %v7292, 6
        %v7462 = vsel %vm6586, %v7460, %v7461
        %v7463 = vrot.slane %v7461, 4
        %v7464 = vrot.slane %v7293, 6
        %v7465 = vsel %vm6586, %v7463, %v7464
        %v7466 = vrot.slane %v7294, 6
        %v7467 = vrot.slane %v7466, 4
        %v7468 = vrot.slane %v7295, 6
        %v7469 = vsel %vm6586, %v7467, %v7468
        %v7470 = vrot.slane %v7468, 4
        %v7471 = vrot.slane %v7296, 6
        %v7472 = vsel %vm6586, %v7470, %v7471
        %v7473 = vrot.slane %v7297, 6
        %v7474 = vrot.slane %v7473, 4
        %v7475 = vrot.slane %v7298, 6
        %v7476 = vsel %vm6586, %v7474, %v7475
        %v7477 = vrot.slane %v7475, 4
        %v7478 = vrot.slane %v7299, 6
        %v7479 = vsel %vm6586, %v7477, %v7478
        %v7480 = vrot.slane %v7300, 6
        %v7481 = vrot.slane %v7480, 4
        %v7482 = vrot.slane %v7301, 6
        %v7483 = vsel %vm6586, %v7481, %v7482
        %v7484 = vrot.slane %v7482, 4
        %v7485 = vrot.slane %v7302, 6
        %v7486 = vsel %vm6586, %v7484, %v7485
        %v7487 = vrot.slane %v7303, 6
        %v7488 = vrot.slane %v7487, 4
        %v7489 = vrot.slane %v7304, 6
        %v7490 = vsel %vm6586, %v7488, %v7489
        %v7491 = vrot.slane %v7489, 4
        %v7492 = vrot.slane %v7305, 6
        %v7493 = vsel %vm6586, %v7491, %v7492
        %v7494 = vrot.slane %v7306, 6
        %v7495 = vrot.slane %v7494, 4
        %v7496 = vrot.slane %v7307, 6
        %v7497 = vsel %vm6586, %v7495, %v7496
        %v7498 = vrot.slane %v7496, 4
        %v7499 = vrot.slane %v7308, 6
        %v7500 = vsel %vm6586, %v7498, %v7499
        %v7501 = vrot.slane %v7309, 6
        %v7502 = vrot.slane %v7501, 4
        %v7503 = vrot.slane %v7310, 6
        %v7504 = vsel %vm6586, %v7502, %v7503
        %v7505 = vrot.slane %v7503, 4
        %v7506 = vrot.slane %v7311, 6
        %v7507 = vsel %vm6586, %v7505, %v7506
        %v7508 = vrot.slane %v7312, 6
        %v7509 = vrot.slane %v7508, 4
        %v7510 = vrot.slane %v7313, 6
        %v7511 = vsel %vm6586, %v7509, %v7510
        %v7512 = vrot.slane %v7510, 4
        %v7513 = vrot.slane %v7314, 6
        %v7514 = vsel %vm6586, %v7512, %v7513
        %v7515 = vrot.slane %v7315, 6
        %v7516 = vrot.slane %v7515, 4
        %v7517 = vrot.slane %v7316, 6
        %v7518 = vsel %vm6586, %v7516, %v7517
        %v7519 = vrot.slane %v7517, 4
        %v7520 = vrot.slane %v7317, 6
        %v7521 = vsel %vm6586, %v7519, %v7520
        %v7522 = vrot.slane %v7318, 6
        %v7523 = vrot.slane %v7522, 4
        %v7524 = vrot.slane %v7319, 6
        %v7525 = vsel %vm6586, %v7523, %v7524
        %v7526 = vrot.slane %v7524, 4
        %v7527 = vrot.slane %v7320, 6
        %v7528 = vsel %vm6586, %v7526, %v7527
        %v7529 = vrot.slane %v7321, 6
        %v7530 = vrot.slane %v7529, 4
        %v7531 = vrot.slane %v7322, 6
        %v7532 = vsel %vm6586, %v7530, %v7531
        %v7533 = vrot.slane %v7531, 4
        %v7534 = vrot.slane %v7323, 6
        %v7535 = vsel %vm6586, %v7533, %v7534
        %v7536 = vrot.slane %v7324, 6
        %v7537 = vrot.slane %v7536, 4
        %v7538 = vrot.slane %v7325, 6
        %v7539 = vsel %vm6586, %v7537, %v7538
        %v7540 = vrot.slane %v7538, 4
        %v7541 = vrot.slane %v7326, 6
        %v7542 = vsel %vm6586, %v7540, %v7541
        %v7543 = vrot.slane %v7327, 6
        %v7544 = vrot.slane %v7543, 4
        %v7545 = vrot.slane %v7328, 6
        %v7546 = vsel %vm6586, %v7544, %v7545
        %v7547 = vrot.slane %v7545, 4
        %v7548 = vrot.slane %v7329, 6
        %v7549 = vsel %vm6586, %v7547, %v7548
        %v7550 = vrot.slane %v7330, 6
        %v7551 = vrot.slane %v7550, 4
        %v7552 = vrot.slane %v7331, 6
        %v7553 = vsel %vm6586, %v7551, %v7552
        %v7554 = vrot.slane %v7552, 4
        %v7555 = vrot.slane %v7332, 6
        %v7556 = vsel %vm6586, %v7554, %v7555
        %v7557 = vrot.slane %v7333, 6
        %v7558 = vrot.slane %v7557, 4
        %v7559 = vrot.slane %v7334, 6
        %v7560 = vsel %vm6586, %v7558, %v7559
        %v7561 = vrot.slane %v7559, 4
        %v7562 = vrot.slane %v7335, 6
        %v7563 = vsel %vm6586, %v7561, %v7562
        %v7564 = vrot.slane %v7336, 6
        %v7565 = vrot.slane %v7564, 4
        %v7566 = vrot.slane %v7337, 6
        %v7567 = vsel %vm6586, %v7565, %v7566
        %v7568 = vrot.slane %v7566, 4
        %v7569 = vrot.slane %v7338, 6
        %v7570 = vsel %vm6586, %v7568, %v7569
        %7603 = vst [vmem:[#allocation3 + $0x18] sm:$0xf] %v7462
        %7604 = vst [vmem:[#allocation3 + $0x3c] sm:$0xf] %v7465
        %7605 = vst [vmem:[#allocation3 + $0x60] sm:$0xf] %v7469
        %7606 = vst [vmem:[#allocation3 + $0x84] sm:$0xf] %v7472
        %7607 = vst [vmem:[#allocation3 + $0xa8] sm:$0xf] %v7476
        %7608 = vst [vmem:[#allocation3 + $0xcc] sm:$0xf] %v7479
        %7609 = vst [vmem:[#allocation3 + $0xf0] sm:$0xf] %v7483
        %7610 = vst [vmem:[#allocation3 + $0x114] sm:$0xf] %v7486
        %7611 = vst [vmem:[#allocation3 + $0x138] sm:$0xf] %v7490
        %7612 = vst [vmem:[#allocation3 + $0x15c] sm:$0xf] %v7493
        %7613 = vst [vmem:[#allocation3 + $0x180] sm:$0xf] %v7497
        %7614 = vst [vmem:[#allocation3 + $0x1a4] sm:$0xf] %v7500
        %7615 = vst [vmem:[#allocation3 + $0x1c8] sm:$0xf] %v7504
        %7616 = vst [vmem:[#allocation3 + $0x1ec] sm:$0xf] %v7507
        %7617 = vst [vmem:[#allocation3 + $0x210] sm:$0xf] %v7511
        %7618 = vst [vmem:[#allocation3 + $0x234] sm:$0xf] %v7514
        %7619 = vst [vmem:[#allocation3 + $0x258] sm:$0xf] %v7518
        %7620 = vst [vmem:[#allocation3 + $0x27c] sm:$0xf] %v7521
        %7621 = vst [vmem:[#allocation3 + $0x2a0] sm:$0xf] %v7525
        %7622 = vst [vmem:[#allocation3 + $0x2c4] sm:$0xf] %v7528
        %7623 = vst [vmem:[#allocation3 + $0x2e8] sm:$0xf] %v7532
        %7624 = vst [vmem:[#allocation3 + $0x30c] sm:$0xf] %v7535
        %7625 = vst [vmem:[#allocation3 + $0x330] sm:$0xf] %v7539
        %7626 = vst [vmem:[#allocation3 + $0x354] sm:$0xf] %v7542
        %7627 = vst [vmem:[#allocation3 + $0x378] sm:$0xf] %v7546
        %7628 = vst [vmem:[#allocation3 + $0x39c] sm:$0xf] %v7549
        %7629 = vst [vmem:[#allocation3 + $0x3c0] sm:$0xf] %v7553
        %7630 = vst [vmem:[#allocation3 + $0x3e4] sm:$0xf] %v7556
        %7631 = vst [vmem:[#allocation3 + $0x408] sm:$0xf] %v7560
        %7632 = vst [vmem:[#allocation3 + $0x42c] sm:$0xf] %v7563
        %7633 = vst [vmem:[#allocation3 + $0x450] sm:$0xf] %v7567
        %7634 = vst [vmem:[#allocation3 + $0x474] sm:$0xf] %v7570
        %v7671 = vrot.slane %v7339, 6
        %v7672 = vrot.slane %v7671, 4
        %v7673 = vrot.slane %v7340, 6
        %v7674 = vsel %vm6586, %v7672, %v7673
        %v7675 = vrot.slane %v7673, 4
        %v7676 = vrot.slane %v7341, 6
        %v7677 = vsel %vm6586, %v7675, %v7676
        %v7678 = vrot.slane %v7342, 6
        %v7679 = vrot.slane %v7678, 4
        %v7680 = vrot.slane %v7343, 6
        %v7681 = vsel %vm6586, %v7679, %v7680
        %v7682 = vrot.slane %v7680, 4
        %v7683 = vrot.slane %v7344, 6
        %v7684 = vsel %vm6586, %v7682, %v7683
        %v7685 = vrot.slane %v7345, 6
        %v7686 = vrot.slane %v7685, 4
        %v7687 = vrot.slane %v7346, 6
        %v7688 = vsel %vm6586, %v7686, %v7687
        %v7689 = vrot.slane %v7687, 4
        %v7690 = vrot.slane %v7347, 6
        %v7691 = vsel %vm6586, %v7689, %v7690
        %v7692 = vrot.slane %v7348, 6
        %v7693 = vrot.slane %v7692, 4
        %v7694 = vrot.slane %v7349, 6
        %v7695 = vsel %vm6586, %v7693, %v7694
        %v7696 = vrot.slane %v7694, 4
        %v7697 = vrot.slane %v7350, 6
        %v7698 = vsel %vm6586, %v7696, %v7697
        %v7699 = vrot.slane %v7351, 6
        %v7700 = vrot.slane %v7699, 4
        %v7701 = vrot.slane %v7352, 6
        %v7702 = vsel %vm6586, %v7700, %v7701
        %v7703 = vrot.slane %v7701, 4
        %v7704 = vrot.slane %v7353, 6
        %v7705 = vsel %vm6586, %v7703, %v7704
        %v7706 = vrot.slane %v7354, 6
        %v7707 = vrot.slane %v7706, 4
        %v7708 = vrot.slane %v7355, 6
        %v7709 = vsel %vm6586, %v7707, %v7708
        %v7710 = vrot.slane %v7708, 4
        %v7711 = vrot.slane %v7356, 6
        %v7712 = vsel %vm6586, %v7710, %v7711
        %v7713 = vrot.slane %v7357, 6
        %v7714 = vrot.slane %v7713, 4
        %v7715 = vrot.slane %v7358, 6
        %v7716 = vsel %vm6586, %v7714, %v7715
        %v7717 = vrot.slane %v7715, 4
        %v7718 = vrot.slane %v7359, 6
        %v7719 = vsel %vm6586, %v7717, %v7718
        %v7720 = vrot.slane %v7360, 6
        %v7721 = vrot.slane %v7720, 4
        %v7722 = vrot.slane %v7361, 6
        %v7723 = vsel %vm6586, %v7721, %v7722
        %v7724 = vrot.slane %v7722, 4
        %v7725 = vrot.slane %v7362, 6
        %v7726 = vsel %vm6586, %v7724, %v7725
        %v7727 = vrot.slane %v7363, 6
        %v7728 = vrot.slane %v7727, 4
        %v7729 = vrot.slane %v7364, 6
        %v7730 = vsel %vm6586, %v7728, %v7729
        %v7731 = vrot.slane %v7729, 4
        %v7732 = vrot.slane %v7365, 6
        %v7733 = vsel %vm6586, %v7731, %v7732
        %v7734 = vrot.slane %v7366, 6
        %v7735 = vrot.slane %v7734, 4
        %v7736 = vrot.slane %v7367, 6
        %v7737 = vsel %vm6586, %v7735, %v7736
        %v7738 = vrot.slane %v7736, 4
        %v7739 = vrot.slane %v7368, 6
        %v7740 = vsel %vm6586, %v7738, %v7739
        %v7741 = vrot.slane %v7369, 6
        %v7742 = vrot.slane %v7741, 4
        %v7743 = vrot.slane %v7370, 6
        %v7744 = vsel %vm6586, %v7742, %v7743
        %v7745 = vrot.slane %v7743, 4
        %v7746 = vrot.slane %v7371, 6
        %v7747 = vsel %vm6586, %v7745, %v7746
        %v7748 = vrot.slane %v7372, 6
        %v7749 = vrot.slane %v7748, 4
        %v7750 = vrot.slane %v7373, 6
        %v7751 = vsel %vm6586, %v7749, %v7750
        %v7752 = vrot.slane %v7750, 4
        %v7753 = vrot.slane %v7374, 6
        %v7754 = vsel %vm6586, %v7752, %v7753
        %7779 = vst [vmem:[#allocation3 + $0x1c] sm:$0xf] %v7546
        %7780 = vst [vmem:[#allocation3 + $0x40] sm:$0xf] %v7549
        %7781 = vst [vmem:[#allocation3 + $0x64] sm:$0xf] %v7553
        %7782 = vst [vmem:[#allocation3 + $0x88] sm:$0xf] %v7556
        %7783 = vst [vmem:[#allocation3 + $0xac] sm:$0xf] %v7560
        %7784 = vst [vmem:[#allocation3 + $0xd0] sm:$0xf] %v7563
        %7785 = vst [vmem:[#allocation3 + $0xf4] sm:$0xf] %v7567
        %7786 = vst [vmem:[#allocation3 + $0x118] sm:$0xf] %v7570
        %7787 = vst [vmem:[#allocation3 + $0x13c] sm:$0xf] %v7674
        %7788 = vst [vmem:[#allocation3 + $0x160] sm:$0xf] %v7677
        %7789 = vst [vmem:[#allocation3 + $0x184] sm:$0xf] %v7681
        %7790 = vst [vmem:[#allocation3 + $0x1a8] sm:$0xf] %v7684
        %7791 = vst [vmem:[#allocation3 + $0x1cc] sm:$0xf] %v7688
        %7792 = vst [vmem:[#allocation3 + $0x1f0] sm:$0xf] %v7691
        %7793 = vst [vmem:[#allocation3 + $0x214] sm:$0xf] %v7695
        %7794 = vst [vmem:[#allocation3 + $0x238] sm:$0xf] %v7698
        %7795 = vst [vmem:[#allocation3 + $0x25c] sm:$0xf] %v7702
        %7796 = vst [vmem:[#allocation3 + $0x280] sm:$0xf] %v7705
        %7797 = vst [vmem:[#allocation3 + $0x2a4] sm:$0xf] %v7709
        %7798 = vst [vmem:[#allocation3 + $0x2c8] sm:$0xf] %v7712
        %7799 = vst [vmem:[#allocation3 + $0x2ec] sm:$0xf] %v7716
        %7800 = vst [vmem:[#allocation3 + $0x310] sm:$0xf] %v7719
        %7801 = vst [vmem:[#allocation3 + $0x334] sm:$0xf] %v7723
        %7802 = vst [vmem:[#allocation3 + $0x358] sm:$0xf] %v7726
        %7803 = vst [vmem:[#allocation3 + $0x37c] sm:$0xf] %v7730
        %7804 = vst [vmem:[#allocation3 + $0x3a0] sm:$0xf] %v7733
        %7805 = vst [vmem:[#allocation3 + $0x3c4] sm:$0xf] %v7737
        %7806 = vst [vmem:[#allocation3 + $0x3e8] sm:$0xf] %v7740
        %7807 = vst [vmem:[#allocation3 + $0x40c] sm:$0xf] %v7744
        %7808 = vst [vmem:[#allocation3 + $0x430] sm:$0xf] %v7747
        %7809 = vst [vmem:[#allocation3 + $0x454] sm:$0xf] %v7751
        %7810 = vst [vmem:[#allocation3 + $0x478] sm:$0xf] %v7754
        %v7847 = vrot.slane %v7375, 6
        %v7848 = vrot.slane %v7847, 4
        %v7849 = vrot.slane %v7376, 6
        %v7850 = vsel %vm6586, %v7848, %v7849
        %v7851 = vrot.slane %v7849, 4
        %v7852 = vrot.slane %v7377, 6
        %v7853 = vsel %vm6586, %v7851, %v7852
        %v7854 = vrot.slane %v7378, 6
        %v7855 = vrot.slane %v7854, 4
        %v7856 = vrot.slane %v7379, 6
        %v7857 = vsel %vm6586, %v7855, %v7856
        %v7858 = vrot.slane %v7856, 4
        %v7859 = vrot.slane %v7380, 6
        %v7860 = vsel %vm6586, %v7858, %v7859
        %v7861 = vrot.slane %v7381, 6
        %v7862 = vrot.slane %v7861, 4
        %v7863 = vrot.slane %v7382, 6
        %v7864 = vsel %vm6586, %v7862, %v7863
        %v7865 = vrot.slane %v7863, 4
        %v7866 = vrot.slane %v7383, 6
        %v7867 = vsel %vm6586, %v7865, %v7866
        %v7868 = vrot.slane %v7384, 6
        %v7869 = vrot.slane %v7868, 4
        %v7870 = vrot.slane %v7385, 6
        %v7871 = vsel %vm6586, %v7869, %v7870
        %v7872 = vrot.slane %v7870, 4
        %v7873 = vrot.slane %v7386, 6
        %v7874 = vsel %vm6586, %v7872, %v7873
        %v7875 = vrot.slane %v7387, 6
        %v7876 = vrot.slane %v7875, 4
        %v7877 = vrot.slane %v7388, 6
        %v7878 = vsel %vm6586, %v7876, %v7877
        %v7879 = vrot.slane %v7877, 4
        %v7880 = vrot.slane %v7389, 6
        %v7881 = vsel %vm6586, %v7879, %v7880
        %v7882 = vrot.slane %v7390, 6
        %v7883 = vrot.slane %v7882, 4
        %v7884 = vrot.slane %v7391, 6
        %v7885 = vsel %vm6586, %v7883, %v7884
        %v7886 = vrot.slane %v7884, 4
        %v7887 = vrot.slane %v7392, 6
        %v7888 = vsel %vm6586, %v7886, %v7887
        %v7889 = vrot.slane %v7393, 6
        %v7890 = vrot.slane %v7889, 4
        %v7891 = vrot.slane %v7394, 6
        %v7892 = vsel %vm6586, %v7890, %v7891
        %v7893 = vrot.slane %v7891, 4
        %v7894 = vrot.slane %v7395, 6
        %v7895 = vsel %vm6586, %v7893, %v7894
        %v7896 = vrot.slane %v7396, 6
        %v7897 = vrot.slane %v7896, 4
        %v7898 = vrot.slane %v7397, 6
        %v7899 = vsel %vm6586, %v7897, %v7898
        %v7900 = vrot.slane %v7898, 4
        %v7901 = vrot.slane %v7398, 6
        %v7902 = vsel %vm6586, %v7900, %v7901
        %v7903 = vrot.slane %v7399, 6
        %v7904 = vrot.slane %v7903, 4
        %v7905 = vrot.slane %v7400, 6
        %v7906 = vsel %vm6586, %v7904, %v7905
        %v7907 = vrot.slane %v7905, 4
        %v7908 = vrot.slane %v7401, 6
        %v7909 = vsel %vm6586, %v7907, %v7908
        %v7910 = vrot.slane %v7402, 6
        %v7911 = vrot.slane %v7910, 4
        %v7912 = vrot.slane %v7403, 6
        %v7913 = vsel %vm6586, %v7911, %v7912
        %v7914 = vrot.slane %v7912, 4
        %v7915 = vrot.slane %v7404, 6
        %v7916 = vsel %vm6586, %v7914, %v7915
        %v7917 = vrot.slane %v7405, 6
        %v7918 = vrot.slane %v7917, 4
        %v7919 = vrot.slane %v7406, 6
        %v7920 = vsel %vm6586, %v7918, %v7919
        %v7921 = vrot.slane %v7919, 4
        %v7922 = vrot.slane %v7407, 6
        %v7923 = vsel %vm6586, %v7921, %v7922
        %v7924 = vrot.slane %v7408, 6
        %v7925 = vrot.slane %v7924, 4
        %v7926 = vrot.slane %v7409, 6
        %v7927 = vsel %vm6586, %v7925, %v7926
        %v7928 = vrot.slane %v7926, 4
        %v7929 = vrot.slane %v7410, 6
        %v7930 = vsel %vm6586, %v7928, %v7929
        %7955 = vst [vmem:[#allocation3 + $0x20] sm:$0xf] %v7730
        %7956 = vst [vmem:[#allocation3 + $0x44] sm:$0xf] %v7733
        %7957 = vst [vmem:[#allocation3 + $0x68] sm:$0xf] %v7737
        %7958 = vst [vmem:[#allocation3 + $0x8c] sm:$0xf] %v7740
        %7959 = vst [vmem:[#allocation3 + $0xb0] sm:$0xf] %v7744
        %7960 = vst [vmem:[#allocation3 + $0xd4] sm:$0xf] %v7747
        %7961 = vst [vmem:[#allocation3 + $0xf8] sm:$0xf] %v7751
        %7962 = vst [vmem:[#allocation3 + $0x11c] sm:$0xf] %v7754
        %7963 = vst [vmem:[#allocation3 + $0x140] sm:$0xf] %v7850
        %7964 = vst [vmem:[#allocation3 + $0x164] sm:$0xf] %v7853
        %7965 = vst [vmem:[#allocation3 + $0x188] sm:$0xf] %v7857
        %7966 = vst [vmem:[#allocation3 + $0x1ac] sm:$0xf] %v7860
        %7967 = vst [vmem:[#allocation3 + $0x1d0] sm:$0xf] %v7864
        %7968 = vst [vmem:[#allocation3 + $0x1f4] sm:$0xf] %v7867
        %7969 = vst [vmem:[#allocation3 + $0x218] sm:$0xf] %v7871
        %7970 = vst [vmem:[#allocation3 + $0x23c] sm:$0xf] %v7874
        %7971 = vst [vmem:[#allocation3 + $0x260] sm:$0xf] %v7878
        %7972 = vst [vmem:[#allocation3 + $0x284] sm:$0xf] %v7881
        %7973 = vst [vmem:[#allocation3 + $0x2a8] sm:$0xf] %v7885
        %7974 = vst [vmem:[#allocation3 + $0x2cc] sm:$0xf] %v7888
        %7975 = vst [vmem:[#allocation3 + $0x2f0] sm:$0xf] %v7892
        %7976 = vst [vmem:[#allocation3 + $0x314] sm:$0xf] %v7895
        %7977 = vst [vmem:[#allocation3 + $0x338] sm:$0xf] %v7899
        %7978 = vst [vmem:[#allocation3 + $0x35c] sm:$0xf] %v7902
        %7979 = vst [vmem:[#allocation3 + $0x380] sm:$0xf] %v7906
        %7980 = vst [vmem:[#allocation3 + $0x3a4] sm:$0xf] %v7909
        %7981 = vst [vmem:[#allocation3 + $0x3c8] sm:$0xf] %v7913
        %7982 = vst [vmem:[#allocation3 + $0x3ec] sm:$0xf] %v7916
        %7983 = vst [vmem:[#allocation3 + $0x410] sm:$0xf] %v7920
        %7984 = vst [vmem:[#allocation3 + $0x434] sm:$0xf] %v7923
        %7985 = vst [vmem:[#allocation3 + $0x458] sm:$0xf] %v7927
        %7986 = vst [vmem:[#allocation3 + $0x47c] sm:$0xf] %v7930
        %v7987 = vld [vmem:[#allocation3] sm:$0xff]
        %v7988 = vld [vmem:[#allocation3 + $0x8] sm:$0xff]
        %v7989 = vld [vmem:[#allocation3 + $0x10] sm:$0xff]
        %v7990 = vld [vmem:[#allocation3 + $0x18] sm:$0xff]
        %v7991 = vld [vmem:[#allocation3 + $0x20] sm:$0xf]
        %v7992 = vld [vmem:[#allocation3 + $0x24] sm:$0xff]
        %v7993 = vld [vmem:[#allocation3 + $0x2c] sm:$0xff]
        %v7994 = vld [vmem:[#allocation3 + $0x34] sm:$0xff]
        %v7995 = vld [vmem:[#allocation3 + $0x3c] sm:$0xff]
        %v7996 = vld [vmem:[#allocation3 + $0x44] sm:$0xf]
        %v7997 = vld [vmem:[#allocation3 + $0x48] sm:$0xff]
        %v7998 = vld [vmem:[#allocation3 + $0x50] sm:$0xff]
        %v7999 = vld [vmem:[#allocation3 + $0x58] sm:$0xff]
        %v8000 = vld [vmem:[#allocation3 + $0x60] sm:$0xff]
        %v8001 = vld [vmem:[#allocation3 + $0x68] sm:$0xf]
        %v8002 = vld [vmem:[#allocation3 + $0x6c] sm:$0xff]
        %v8003 = vld [vmem:[#allocation3 + $0x74] sm:$0xff]
        %v8004 = vld [vmem:[#allocation3 + $0x7c] sm:$0xff]
        %v8005 = vld [vmem:[#allocation3 + $0x84] sm:$0xff]
        %v8006 = vld [vmem:[#allocation3 + $0x8c] sm:$0xf]
        %v8007 = vld [vmem:[#allocation3 + $0x90] sm:$0xff]
        %v8008 = vld [vmem:[#allocation3 + $0x98] sm:$0xff]
        %v8009 = vld [vmem:[#allocation3 + $0xa0] sm:$0xff]
        %v8010 = vld [vmem:[#allocation3 + $0xa8] sm:$0xff]
        %v8011 = vld [vmem:[#allocation3 + $0xb0] sm:$0xf]
        %v8012 = vld [vmem:[#allocation3 + $0xb4] sm:$0xff]
        %v8013 = vld [vmem:[#allocation3 + $0xbc] sm:$0xff]
        %v8014 = vld [vmem:[#allocation3 + $0xc4] sm:$0xff]
        %v8015 = vld [vmem:[#allocation3 + $0xcc] sm:$0xff]
        %v8016 = vld [vmem:[#allocation3 + $0xd4] sm:$0xf]
        %v8017 = vld [vmem:[#allocation3 + $0xd8] sm:$0xff]
        %v8018 = vld [vmem:[#allocation3 + $0xe0] sm:$0xff]
        %v8019 = vld [vmem:[#allocation3 + $0xe8] sm:$0xff]
        %v8020 = vld [vmem:[#allocation3 + $0xf0] sm:$0xff]
        %v8021 = vld [vmem:[#allocation3 + $0xf8] sm:$0xf]
        %v8022 = vld [vmem:[#allocation3 + $0xfc] sm:$0xff]
        %v8023 = vld [vmem:[#allocation3 + $0x104] sm:$0xff]
        %v8024 = vld [vmem:[#allocation3 + $0x10c] sm:$0xff]
        %v8025 = vld [vmem:[#allocation3 + $0x114] sm:$0xff]
        %v8026 = vld [vmem:[#allocation3 + $0x11c] sm:$0xf]
        %v8027 = vld [vmem:[#allocation3 + $0x120] sm:$0xff]
        %v8028 = vld [vmem:[#allocation3 + $0x128] sm:$0xff]
        %v8029 = vld [vmem:[#allocation3 + $0x130] sm:$0xff]
        %v8030 = vld [vmem:[#allocation3 + $0x138] sm:$0xff]
        %v8031 = vld [vmem:[#allocation3 + $0x140] sm:$0xf]
        %v8032 = vld [vmem:[#allocation3 + $0x144] sm:$0xff]
        %v8033 = vld [vmem:[#allocation3 + $0x14c] sm:$0xff]
        %v8034 = vld [vmem:[#allocation3 + $0x154] sm:$0xff]
        %v8035 = vld [vmem:[#allocation3 + $0x15c] sm:$0xff]
        %v8036 = vld [vmem:[#allocation3 + $0x164] sm:$0xf]
        %v8037 = vld [vmem:[#allocation3 + $0x168] sm:$0xff]
        %v8038 = vld [vmem:[#allocation3 + $0x170] sm:$0xff]
        %v8039 = vld [vmem:[#allocation3 + $0x178] sm:$0xff]
        %v8040 = vld [vmem:[#allocation3 + $0x180] sm:$0xff]
        %v8041 = vld [vmem:[#allocation3 + $0x188] sm:$0xf]
        %v8042 = vld [vmem:[#allocation3 + $0x18c] sm:$0xff]
        %v8043 = vld [vmem:[#allocation3 + $0x194] sm:$0xff]
        %v8044 = vld [vmem:[#allocation3 + $0x19c] sm:$0xff]
        %v8045 = vld [vmem:[#allocation3 + $0x1a4] sm:$0xff]
        %v8046 = vld [vmem:[#allocation3 + $0x1ac] sm:$0xf]
        %v8047 = vld [vmem:[#allocation3 + $0x1b0] sm:$0xff]
        %v8048 = vld [vmem:[#allocation3 + $0x1b8] sm:$0xff]
        %v8049 = vld [vmem:[#allocation3 + $0x1c0] sm:$0xff]
        %v8050 = vld [vmem:[#allocation3 + $0x1c8] sm:$0xff]
        %v8051 = vld [vmem:[#allocation3 + $0x1d0] sm:$0xf]
        %v8052 = vld [vmem:[#allocation3 + $0x1d4] sm:$0xff]
        %v8053 = vld [vmem:[#allocation3 + $0x1dc] sm:$0xff]
        %v8054 = vld [vmem:[#allocation3 + $0x1e4] sm:$0xff]
        %v8055 = vld [vmem:[#allocation3 + $0x1ec] sm:$0xff]
        %v8056 = vld [vmem:[#allocation3 + $0x1f4] sm:$0xf]
        %v8057 = vld [vmem:[#allocation3 + $0x1f8] sm:$0xff]
        %v8058 = vld [vmem:[#allocation3 + $0x200] sm:$0xff]
        %v8059 = vld [vmem:[#allocation3 + $0x208] sm:$0xff]
        %v8060 = vld [vmem:[#allocation3 + $0x210] sm:$0xff]
        %v8061 = vld [vmem:[#allocation3 + $0x218] sm:$0xf]
        %v8062 = vld [vmem:[#allocation3 + $0x21c] sm:$0xff]
        %v8063 = vld [vmem:[#allocation3 + $0x224] sm:$0xff]
        %v8064 = vld [vmem:[#allocation3 + $0x22c] sm:$0xff]
        %v8065 = vld [vmem:[#allocation3 + $0x234] sm:$0xff]
        %v8066 = vld [vmem:[#allocation3 + $0x23c] sm:$0xf]
        %v8067 = vld [vmem:[#allocation3 + $0x240] sm:$0xff]
        %v8068 = vld [vmem:[#allocation3 + $0x248] sm:$0xff]
        %v8069 = vld [vmem:[#allocation3 + $0x250] sm:$0xff]
        %v8070 = vld [vmem:[#allocation3 + $0x258] sm:$0xff]
        %v8071 = vld [vmem:[#allocation3 + $0x260] sm:$0xf]
        %v8072 = vld [vmem:[#allocation3 + $0x264] sm:$0xff]
        %v8073 = vld [vmem:[#allocation3 + $0x26c] sm:$0xff]
        %v8074 = vld [vmem:[#allocation3 + $0x274] sm:$0xff]
        %v8075 = vld [vmem:[#allocation3 + $0x27c] sm:$0xff]
        %v8076 = vld [vmem:[#allocation3 + $0x284] sm:$0xf]
        %v8077 = vld [vmem:[#allocation3 + $0x288] sm:$0xff]
        %v8078 = vld [vmem:[#allocation3 + $0x290] sm:$0xff]
        %v8079 = vld [vmem:[#allocation3 + $0x298] sm:$0xff]
        %v8080 = vld [vmem:[#allocation3 + $0x2a0] sm:$0xff]
        %v8081 = vld [vmem:[#allocation3 + $0x2a8] sm:$0xf]
        %v8082 = vld [vmem:[#allocation3 + $0x2ac] sm:$0xff]
        %v8083 = vld [vmem:[#allocation3 + $0x2b4] sm:$0xff]
        %v8084 = vld [vmem:[#allocation3 + $0x2bc] sm:$0xff]
        %v8085 = vld [vmem:[#allocation3 + $0x2c4] sm:$0xff]
        %v8086 = vld [vmem:[#allocation3 + $0x2cc] sm:$0xf]
        %v8087 = vld [vmem:[#allocation3 + $0x2d0] sm:$0xff]
        %v8088 = vld [vmem:[#allocation3 + $0x2d8] sm:$0xff]
        %v8089 = vld [vmem:[#allocation3 + $0x2e0] sm:$0xff]
        %v8090 = vld [vmem:[#allocation3 + $0x2e8] sm:$0xff]
        %v8091 = vld [vmem:[#allocation3 + $0x2f0] sm:$0xf]
        %v8092 = vld [vmem:[#allocation3 + $0x2f4] sm:$0xff]
        %v8093 = vld [vmem:[#allocation3 + $0x2fc] sm:$0xff]
        %v8094 = vld [vmem:[#allocation3 + $0x304] sm:$0xff]
        %v8095 = vld [vmem:[#allocation3 + $0x30c] sm:$0xff]
        %v8096 = vld [vmem:[#allocation3 + $0x314] sm:$0xf]
        %v8097 = vld [vmem:[#allocation3 + $0x318] sm:$0xff]
        %v8098 = vld [vmem:[#allocation3 + $0x320] sm:$0xff]
        %v8099 = vld [vmem:[#allocation3 + $0x328] sm:$0xff]
        %v8100 = vld [vmem:[#allocation3 + $0x330] sm:$0xff]
        %v8101 = vld [vmem:[#allocation3 + $0x338] sm:$0xf]
        %v8102 = vld [vmem:[#allocation3 + $0x33c] sm:$0xff]
        %v8103 = vld [vmem:[#allocation3 + $0x344] sm:$0xff]
        %v8104 = vld [vmem:[#allocation3 + $0x34c] sm:$0xff]
        %v8105 = vld [vmem:[#allocation3 + $0x354] sm:$0xff]
        %v8106 = vld [vmem:[#allocation3 + $0x35c] sm:$0xf]
        %v8107 = vld [vmem:[#allocation3 + $0x360] sm:$0xff]
        %v8108 = vld [vmem:[#allocation3 + $0x368] sm:$0xff]
        %v8109 = vld [vmem:[#allocation3 + $0x370] sm:$0xff]
        %v8110 = vld [vmem:[#allocation3 + $0x378] sm:$0xff]
        %v8111 = vld [vmem:[#allocation3 + $0x380] sm:$0xf]
        %v8112 = vld [vmem:[#allocation3 + $0x384] sm:$0xff]
        %v8113 = vld [vmem:[#allocation3 + $0x38c] sm:$0xff]
        %v8114 = vld [vmem:[#allocation3 + $0x394] sm:$0xff]
        %v8115 = vld [vmem:[#allocation3 + $0x39c] sm:$0xff]
        %v8116 = vld [vmem:[#allocation3 + $0x3a4] sm:$0xf]
        %v8117 = vld [vmem:[#allocation3 + $0x3a8] sm:$0xff]
        %v8118 = vld [vmem:[#allocation3 + $0x3b0] sm:$0xff]
        %v8119 = vld [vmem:[#allocation3 + $0x3b8] sm:$0xff]
        %v8120 = vld [vmem:[#allocation3 + $0x3c0] sm:$0xff]
        %v8121 = vld [vmem:[#allocation3 + $0x3c8] sm:$0xf]
        %v8122 = vld [vmem:[#allocation3 + $0x3cc] sm:$0xff]
        %v8123 = vld [vmem:[#allocation3 + $0x3d4] sm:$0xff]
        %v8124 = vld [vmem:[#allocation3 + $0x3dc] sm:$0xff]
        %v8125 = vld [vmem:[#allocation3 + $0x3e4] sm:$0xff]
        %v8126 = vld [vmem:[#allocation3 + $0x3ec] sm:$0xf]
        %v8127 = vld [vmem:[#allocation3 + $0x3f0] sm:$0xff]
        %v8128 = vld [vmem:[#allocation3 + $0x3f8] sm:$0xff]
        %v8129 = vld [vmem:[#allocation3 + $0x400] sm:$0xff]
        %v8130 = vld [vmem:[#allocation3 + $0x408] sm:$0xff]
        %v8131 = vld [vmem:[#allocation3 + $0x410] sm:$0xf]
        %v8132 = vld [vmem:[#allocation3 + $0x414] sm:$0xff]
        %v8133 = vld [vmem:[#allocation3 + $0x41c] sm:$0xff]
        %v8134 = vld [vmem:[#allocation3 + $0x424] sm:$0xff]
        %v8135 = vld [vmem:[#allocation3 + $0x42c] sm:$0xff]
        %v8136 = vld [vmem:[#allocation3 + $0x434] sm:$0xf]
        %v8137 = vld [vmem:[#allocation3 + $0x438] sm:$0xff]
        %v8138 = vld [vmem:[#allocation3 + $0x440] sm:$0xff]
        %v8139 = vld [vmem:[#allocation3 + $0x448] sm:$0xff]
        %v8140 = vld [vmem:[#allocation3 + $0x450] sm:$0xff]
        %v8141 = vld [vmem:[#allocation3 + $0x458] sm:$0xf]
        %v8142 = vld [vmem:[#allocation3 + $0x45c] sm:$0xff]
        %v8143 = vld [vmem:[#allocation3 + $0x464] sm:$0xff]
        %v8144 = vld [vmem:[#allocation3 + $0x46c] sm:$0xff]
        %v8145 = vld [vmem:[#allocation3 + $0x474] sm:$0xff]
        %v8146 = vld [vmem:[#allocation3 + $0x47c] sm:$0xf]
        %v8147 = vld [vmem:[#allocation10] sm:$0xff]
        %v8148 = vld [vmem:[#allocation10 + $0x8] sm:$0xff]
        %v8149 = vld [vmem:[#allocation10 + $0x10] sm:$0xff]
        %v8150 = vld [vmem:[#allocation10 + $0x18] sm:$0xff]
        %v8151 = vld [vmem:[#allocation10 + $0x20] sm:$0xff]
        %v8152 = vld [vmem:[#allocation10 + $0x28] sm:$0xff]
        %v8153 = vld [vmem:[#allocation10 + $0x30] sm:$0xff]
        %v8154 = vld [vmem:[#allocation10 + $0x38] sm:$0xff]
        %v8155 = vld [vmem:[#allocation10 + $0x40] sm:$0xff]
        %v8156 = vld [vmem:[#allocation10 + $0x48] sm:$0xff]
        %v8157 = vld [vmem:[#allocation10 + $0x50] sm:$0xff]
        %v8158 = vld [vmem:[#allocation10 + $0x58] sm:$0xff]
        %v8159 = vld [vmem:[#allocation10 + $0x60] sm:$0xff]
        %v8160 = vld [vmem:[#allocation10 + $0x68] sm:$0xff]
        %v8161 = vld [vmem:[#allocation10 + $0x70] sm:$0xff]
        %v8162 = vld [vmem:[#allocation10 + $0x78] sm:$0xff]
        %v8163 = vld [vmem:[#allocation10 + $0x80] sm:$0xff]
        %v8164 = vld [vmem:[#allocation10 + $0x88] sm:$0xff]
        %v8165 = vld [vmem:[#allocation10 + $0x90] sm:$0xff]
        %v8166 = vld [vmem:[#allocation10 + $0x98] sm:$0xff]
        %v8167 = vld [vmem:[#allocation10 + $0xa0] sm:$0xff]
        %v8168 = vld [vmem:[#allocation10 + $0xa8] sm:$0xff]
        %v8169 = vld [vmem:[#allocation10 + $0xb0] sm:$0xff]
        %v8170 = vld [vmem:[#allocation10 + $0xb8] sm:$0xff]
        %v8171 = vld [vmem:[#allocation10 + $0xc0] sm:$0xff]
        %v8172 = vld [vmem:[#allocation10 + $0xc8] sm:$0xff]
        %v8173 = vld [vmem:[#allocation10 + $0xd0] sm:$0xff]
        %v8174 = vld [vmem:[#allocation10 + $0xd8] sm:$0xff]
        %v8175 = vld [vmem:[#allocation10 + $0xe0] sm:$0xff]
        %v8176 = vld [vmem:[#allocation10 + $0xe8] sm:$0xff]
        %v8177 = vld [vmem:[#allocation10 + $0xf0] sm:$0xff]
        %v8178 = vld [vmem:[#allocation10 + $0xf8] sm:$0xff]
        %v8179 = vld [vmem:[#allocation10 + $0x100] sm:$0xff]
        %v8180 = vld [vmem:[#allocation10 + $0x108] sm:$0xff]
        %v8181 = vld [vmem:[#allocation10 + $0x110] sm:$0xff]
        %v8182 = vld [vmem:[#allocation10 + $0x118] sm:$0xff]
        %v8183 = vld [vmem:[#allocation10 + $0x120] sm:$0xff]
        %v8184 = vld [vmem:[#allocation10 + $0x128] sm:$0xff]
        %v8185 = vld [vmem:[#allocation10 + $0x130] sm:$0xff]
        %v8186 = vld [vmem:[#allocation10 + $0x138] sm:$0xff]
        %v8187 = vld [vmem:[#allocation10 + $0x140] sm:$0xff]
        %v8188 = vld [vmem:[#allocation10 + $0x148] sm:$0xff]
        %v8189 = vld [vmem:[#allocation10 + $0x150] sm:$0xff]
        %v8190 = vld [vmem:[#allocation10 + $0x158] sm:$0xff]
        %v8191 = vld [vmem:[#allocation10 + $0x160] sm:$0xff]
        %v8192 = vld [vmem:[#allocation10 + $0x168] sm:$0xff]
        %v8193 = vld [vmem:[#allocation10 + $0x170] sm:$0xff]
        %v8194 = vld [vmem:[#allocation10 + $0x178] sm:$0xff]
        %v8195 = vld [vmem:[#allocation10 + $0x180] sm:$0xff]
        %v8196 = vld [vmem:[#allocation10 + $0x188] sm:$0xff]
        %v8197 = vld [vmem:[#allocation10 + $0x190] sm:$0xff]
        %v8198 = vld [vmem:[#allocation10 + $0x198] sm:$0xff]
        %v8199 = vld [vmem:[#allocation10 + $0x1a0] sm:$0xff]
        %v8200 = vld [vmem:[#allocation10 + $0x1a8] sm:$0xff]
        %v8201 = vld [vmem:[#allocation10 + $0x1b0] sm:$0xff]
        %v8202 = vld [vmem:[#allocation10 + $0x1b8] sm:$0xff]
        %v8203 = vld [vmem:[#allocation10 + $0x1c0] sm:$0xff]
        %v8204 = vld [vmem:[#allocation10 + $0x1c8] sm:$0xff]
        %v8205 = vld [vmem:[#allocation10 + $0x1d0] sm:$0xff]
        %v8206 = vld [vmem:[#allocation10 + $0x1d8] sm:$0xff]
        %v8207 = vld [vmem:[#allocation10 + $0x1e0] sm:$0xff]
        %v8208 = vld [vmem:[#allocation10 + $0x1e8] sm:$0xff]
        %v8209 = vld [vmem:[#allocation10 + $0x1f0] sm:$0xff]
        %v8210 = vld [vmem:[#allocation10 + $0x1f8] sm:$0xff]
        %v8211 = vld [vmem:[#allocation10 + $0x200] sm:$0xff]
        %v8212 = vld [vmem:[#allocation10 + $0x208] sm:$0xff]
        %v8213 = vld [vmem:[#allocation10 + $0x210] sm:$0xff]
        %v8214 = vld [vmem:[#allocation10 + $0x218] sm:$0xff]
        %v8215 = vld [vmem:[#allocation10 + $0x220] sm:$0xff]
        %v8216 = vld [vmem:[#allocation10 + $0x228] sm:$0xff]
        %v8217 = vld [vmem:[#allocation10 + $0x230] sm:$0xff]
        %v8218 = vld [vmem:[#allocation10 + $0x238] sm:$0xff]
        %v8219 = vld [vmem:[#allocation10 + $0x240] sm:$0xff]
        %v8220 = vld [vmem:[#allocation10 + $0x248] sm:$0xff]
        %v8221 = vld [vmem:[#allocation10 + $0x250] sm:$0xff]
        %v8222 = vld [vmem:[#allocation10 + $0x258] sm:$0xff]
        %v8223 = vld [vmem:[#allocation10 + $0x260] sm:$0xff]
        %v8224 = vld [vmem:[#allocation10 + $0x268] sm:$0xff]
        %v8225 = vld [vmem:[#allocation10 + $0x270] sm:$0xff]
        %v8226 = vld [vmem:[#allocation10 + $0x278] sm:$0xff]
        %v8227 = vld [vmem:[#allocation10 + $0x280] sm:$0xff]
        %v8228 = vld [vmem:[#allocation10 + $0x288] sm:$0xff]
        %v8229 = vld [vmem:[#allocation10 + $0x290] sm:$0xff]
        %v8230 = vld [vmem:[#allocation10 + $0x298] sm:$0xff]
        %v8231 = vld [vmem:[#allocation10 + $0x2a0] sm:$0xff]
        %v8232 = vld [vmem:[#allocation10 + $0x2a8] sm:$0xff]
        %v8233 = vld [vmem:[#allocation10 + $0x2b0] sm:$0xff]
        %v8234 = vld [vmem:[#allocation10 + $0x2b8] sm:$0xff]
        %v8235 = vld [vmem:[#allocation10 + $0x2c0] sm:$0xff]
        %v8236 = vld [vmem:[#allocation10 + $0x2c8] sm:$0xff]
        %v8237 = vld [vmem:[#allocation10 + $0x2d0] sm:$0xff]
        %v8238 = vld [vmem:[#allocation10 + $0x2d8] sm:$0xff]
        %v8239 = vld [vmem:[#allocation10 + $0x2e0] sm:$0xff]
        %v8240 = vld [vmem:[#allocation10 + $0x2e8] sm:$0xff]
        %v8241 = vld [vmem:[#allocation10 + $0x2f0] sm:$0xff]
        %v8242 = vld [vmem:[#allocation10 + $0x2f8] sm:$0xff]
        %v8243 = vld [vmem:[#allocation10 + $0x300] sm:$0xff]
        %v8244 = vld [vmem:[#allocation10 + $0x308] sm:$0xff]
        %v8245 = vld [vmem:[#allocation10 + $0x310] sm:$0xff]
        %v8246 = vld [vmem:[#allocation10 + $0x318] sm:$0xff]
        %v8247 = vld [vmem:[#allocation10 + $0x320] sm:$0xff]
        %v8248 = vld [vmem:[#allocation10 + $0x328] sm:$0xff]
        %v8249 = vld [vmem:[#allocation10 + $0x330] sm:$0xff]
        %v8250 = vld [vmem:[#allocation10 + $0x338] sm:$0xff]
        %v8251 = vld [vmem:[#allocation10 + $0x340] sm:$0xff]
        %v8252 = vld [vmem:[#allocation10 + $0x348] sm:$0xff]
        %v8253 = vld [vmem:[#allocation10 + $0x350] sm:$0xff]
        %v8254 = vld [vmem:[#allocation10 + $0x358] sm:$0xff]
        %v8255 = vld [vmem:[#allocation10 + $0x360] sm:$0xff]
        %v8256 = vld [vmem:[#allocation10 + $0x368] sm:$0xff]
        %v8257 = vld [vmem:[#allocation10 + $0x370] sm:$0xff]
        %v8258 = vld [vmem:[#allocation10 + $0x378] sm:$0xff]
        %v8259 = vld [vmem:[#allocation10 + $0x380] sm:$0xff]
        %v8260 = vld [vmem:[#allocation10 + $0x388] sm:$0xff]
        %v8261 = vld [vmem:[#allocation10 + $0x390] sm:$0xff]
        %v8262 = vld [vmem:[#allocation10 + $0x398] sm:$0xff]
        %v8263 = vld [vmem:[#allocation10 + $0x3a0] sm:$0xff]
        %v8264 = vld [vmem:[#allocation10 + $0x3a8] sm:$0xff]
        %v8265 = vld [vmem:[#allocation10 + $0x3b0] sm:$0xff]
        %v8266 = vld [vmem:[#allocation10 + $0x3b8] sm:$0xff]
        %v8267 = vld [vmem:[#allocation10 + $0x3c0] sm:$0xff]
        %v8268 = vld [vmem:[#allocation10 + $0x3c8] sm:$0xff]
        %v8269 = vld [vmem:[#allocation10 + $0x3d0] sm:$0xff]
        %v8270 = vld [vmem:[#allocation10 + $0x3d8] sm:$0xff]
        %v8271 = vld [vmem:[#allocation10 + $0x3e0] sm:$0xff]
        %v8272 = vld [vmem:[#allocation10 + $0x3e8] sm:$0xff]
        %v8273 = vld [vmem:[#allocation10 + $0x3f0] sm:$0xff]
        %v8274 = vld [vmem:[#allocation10 + $0x3f8] sm:$0xff]
        %v8275 = vld [vmem:[#allocation10 + $0x400] sm:$0xff]
        %v8276 = vld [vmem:[#allocation10 + $0x408] sm:$0xff]
        %v8277 = vld [vmem:[#allocation10 + $0x410] sm:$0xff]
        %v8278 = vld [vmem:[#allocation10 + $0x418] sm:$0xff]
        %v8279 = vld [vmem:[#allocation10 + $0x420] sm:$0xff]
        %v8280 = vld [vmem:[#allocation10 + $0x428] sm:$0xff]
        %v8281 = vld [vmem:[#allocation10 + $0x430] sm:$0xff]
        %v8282 = vld [vmem:[#allocation10 + $0x438] sm:$0xff]
        %v8283 = vld [vmem:[#allocation10 + $0x440] sm:$0xff]
        %v8284 = vld [vmem:[#allocation10 + $0x448] sm:$0xff]
        %v8285 = vld [vmem:[#allocation10 + $0x450] sm:$0xff]
        %v8286 = vld [vmem:[#allocation10 + $0x458] sm:$0xff]
        %v8287 = vld [vmem:[#allocation10 + $0x460] sm:$0xff]
        %v8288 = vld [vmem:[#allocation10 + $0x468] sm:$0xff]
        %v8289 = vld [vmem:[#allocation10 + $0x470] sm:$0xff]
        %v8290 = vld [vmem:[#allocation10 + $0x478] sm:$0xff]
        %v8451 = vunpack.c.l.b16 %v7987
        %v8452 = vunpack.c.h.b16 %v7987
        %v8453 = vunpack.c.l.b16 %v7988
        %v8454 = vunpack.c.h.b16 %v7988
        %v8455 = vunpack.c.l.b16 %v7989
        %v8456 = vunpack.c.h.b16 %v7989
        %v8457 = vunpack.c.l.b16 %v7990
        %v8458 = vunpack.c.h.b16 %v7990
        %v8459 = vunpack.c.l.b16 %v7991
        %v8460 = vunpack.c.l.b16 %v7992
        %v8461 = vunpack.c.h.b16 %v7992
        %v8462 = vunpack.c.l.b16 %v7993
        %v8463 = vunpack.c.h.b16 %v7993
        %v8464 = vunpack.c.l.b16 %v7994
        %v8465 = vunpack.c.h.b16 %v7994
        %v8466 = vunpack.c.l.b16 %v7995
        %v8467 = vunpack.c.h.b16 %v7995
        %v8468 = vunpack.c.l.b16 %v7996
        %v8469 = vunpack.c.l.b16 %v7997
        %v8470 = vunpack.c.h.b16 %v7997
        %v8471 = vunpack.c.l.b16 %v7998
        %v8472 = vunpack.c.h.b16 %v7998
        %v8473 = vunpack.c.l.b16 %v7999
        %v8474 = vunpack.c.h.b16 %v7999
        %v8475 = vunpack.c.l.b16 %v8000
        %v8476 = vunpack.c.h.b16 %v8000
        %v8477 = vunpack.c.l.b16 %v8001
        %v8478 = vunpack.c.l.b16 %v8002
        %v8479 = vunpack.c.h.b16 %v8002
        %v8480 = vunpack.c.l.b16 %v8003
        %v8481 = vunpack.c.h.b16 %v8003
        %v8482 = vunpack.c.l.b16 %v8004
        %v8483 = vunpack.c.h.b16 %v8004
        %v8484 = vunpack.c.l.b16 %v8005
        %v8485 = vunpack.c.h.b16 %v8005
        %v8486 = vunpack.c.l.b16 %v8006
        %v8487 = vunpack.c.l.b16 %v8007
        %v8488 = vunpack.c.h.b16 %v8007
        %v8489 = vunpack.c.l.b16 %v8008
        %v8490 = vunpack.c.h.b16 %v8008
        %v8491 = vunpack.c.l.b16 %v8009
        %v8492 = vunpack.c.h.b16 %v8009
        %v8493 = vunpack.c.l.b16 %v8010
        %v8494 = vunpack.c.h.b16 %v8010
        %v8495 = vunpack.c.l.b16 %v8011
        %v8496 = vunpack.c.l.b16 %v8012
        %v8497 = vunpack.c.h.b16 %v8012
        %v8498 = vunpack.c.l.b16 %v8013
        %v8499 = vunpack.c.h.b16 %v8013
        %v8500 = vunpack.c.l.b16 %v8014
        %v8501 = vunpack.c.h.b16 %v8014
        %v8502 = vunpack.c.l.b16 %v8015
        %v8503 = vunpack.c.h.b16 %v8015
        %v8504 = vunpack.c.l.b16 %v8016
        %v8505 = vunpack.c.l.b16 %v8017
        %v8506 = vunpack.c.h.b16 %v8017
        %v8507 = vunpack.c.l.b16 %v8018
        %v8508 = vunpack.c.h.b16 %v8018
        %v8509 = vunpack.c.l.b16 %v8019
        %v8510 = vunpack.c.h.b16 %v8019
        %v8511 = vunpack.c.l.b16 %v8020
        %v8512 = vunpack.c.h.b16 %v8020
        %v8513 = vunpack.c.l.b16 %v8021
        %v8514 = vunpack.c.l.b16 %v8022
        %v8515 = vunpack.c.h.b16 %v8022
        %v8516 = vunpack.c.l.b16 %v8023
        %v8517 = vunpack.c.h.b16 %v8023
        %v8518 = vunpack.c.l.b16 %v8024
        %v8519 = vunpack.c.h.b16 %v8024
        %v8520 = vunpack.c.l.b16 %v8025
        %v8521 = vunpack.c.h.b16 %v8025
        %v8522 = vunpack.c.l.b16 %v8026
        %v8523 = vunpack.c.l.b16 %v8027
        %v8524 = vunpack.c.h.b16 %v8027
        %v8525 = vunpack.c.l.b16 %v8028
        %v8526 = vunpack.c.h.b16 %v8028
        %v8527 = vunpack.c.l.b16 %v8029
        %v8528 = vunpack.c.h.b16 %v8029
        %v8529 = vunpack.c.l.b16 %v8030
        %v8530 = vunpack.c.h.b16 %v8030
        %v8531 = vunpack.c.l.b16 %v8031
        %v8532 = vunpack.c.l.b16 %v8032
        %v8533 = vunpack.c.h.b16 %v8032
        %v8534 = vunpack.c.l.b16 %v8033
        %v8535 = vunpack.c.h.b16 %v8033
        %v8536 = vunpack.c.l.b16 %v8034
        %v8537 = vunpack.c.h.b16 %v8034
        %v8538 = vunpack.c.l.b16 %v8035
        %v8539 = vunpack.c.h.b16 %v8035
        %v8540 = vunpack.c.l.b16 %v8036
        %v8541 = vunpack.c.l.b16 %v8037
        %v8542 = vunpack.c.h.b16 %v8037
        %v8543 = vunpack.c.l.b16 %v8038
        %v8544 = vunpack.c.h.b16 %v8038
        %v8545 = vunpack.c.l.b16 %v8039
        %v8546 = vunpack.c.h.b16 %v8039
        %v8547 = vunpack.c.l.b16 %v8040
        %v8548 = vunpack.c.h.b16 %v8040
        %v8549 = vunpack.c.l.b16 %v8041
        %v8550 = vunpack.c.l.b16 %v8042
        %v8551 = vunpack.c.h.b16 %v8042
        %v8552 = vunpack.c.l.b16 %v8043
        %v8553 = vunpack.c.h.b16 %v8043
        %v8554 = vunpack.c.l.b16 %v8044
        %v8555 = vunpack.c.h.b16 %v8044
        %v8556 = vunpack.c.l.b16 %v8045
        %v8557 = vunpack.c.h.b16 %v8045
        %v8558 = vunpack.c.l.b16 %v8046
        %v8559 = vunpack.c.l.b16 %v8047
        %v8560 = vunpack.c.h.b16 %v8047
        %v8561 = vunpack.c.l.b16 %v8048
        %v8562 = vunpack.c.h.b16 %v8048
        %v8563 = vunpack.c.l.b16 %v8049
        %v8564 = vunpack.c.h.b16 %v8049
        %v8565 = vunpack.c.l.b16 %v8050
        %v8566 = vunpack.c.h.b16 %v8050
        %v8567 = vunpack.c.l.b16 %v8051
        %v8568 = vunpack.c.l.b16 %v8052
        %v8569 = vunpack.c.h.b16 %v8052
        %v8570 = vunpack.c.l.b16 %v8053
        %v8571 = vunpack.c.h.b16 %v8053
        %v8572 = vunpack.c.l.b16 %v8054
        %v8573 = vunpack.c.h.b16 %v8054
        %v8574 = vunpack.c.l.b16 %v8055
        %v8575 = vunpack.c.h.b16 %v8055
        %v8576 = vunpack.c.l.b16 %v8056
        %v8577 = vunpack.c.l.b16 %v8057
        %v8578 = vunpack.c.h.b16 %v8057
        %v8579 = vunpack.c.l.b16 %v8058
        %v8580 = vunpack.c.h.b16 %v8058
        %v8581 = vunpack.c.l.b16 %v8059
        %v8582 = vunpack.c.h.b16 %v8059
        %v8583 = vunpack.c.l.b16 %v8060
        %v8584 = vunpack.c.h.b16 %v8060
        %v8585 = vunpack.c.l.b16 %v8061
        %v8586 = vunpack.c.l.b16 %v8062
        %v8587 = vunpack.c.h.b16 %v8062
        %v8588 = vunpack.c.l.b16 %v8063
        %v8589 = vunpack.c.h.b16 %v8063
        %v8590 = vunpack.c.l.b16 %v8064
        %v8591 = vunpack.c.h.b16 %v8064
        %v8592 = vunpack.c.l.b16 %v8065
        %v8593 = vunpack.c.h.b16 %v8065
        %v8594 = vunpack.c.l.b16 %v8066
        %v8595 = vunpack.c.l.b16 %v8067
        %v8596 = vunpack.c.h.b16 %v8067
        %v8597 = vunpack.c.l.b16 %v8068
        %v8598 = vunpack.c.h.b16 %v8068
        %v8599 = vunpack.c.l.b16 %v8069
        %v8600 = vunpack.c.h.b16 %v8069
        %v8601 = vunpack.c.l.b16 %v8070
        %v8602 = vunpack.c.h.b16 %v8070
        %v8603 = vunpack.c.l.b16 %v8071
        %v8604 = vunpack.c.l.b16 %v8072
        %v8605 = vunpack.c.h.b16 %v8072
        %v8606 = vunpack.c.l.b16 %v8073
        %v8607 = vunpack.c.h.b16 %v8073
        %v8608 = vunpack.c.l.b16 %v8074
        %v8609 = vunpack.c.h.b16 %v8074
        %v8610 = vunpack.c.l.b16 %v8075
        %v8611 = vunpack.c.h.b16 %v8075
        %v8612 = vunpack.c.l.b16 %v8076
        %v8613 = vunpack.c.l.b16 %v8077
        %v8614 = vunpack.c.h.b16 %v8077
        %v8615 = vunpack.c.l.b16 %v8078
        %v8616 = vunpack.c.h.b16 %v8078
        %v8617 = vunpack.c.l.b16 %v8079
        %v8618 = vunpack.c.h.b16 %v8079
        %v8619 = vunpack.c.l.b16 %v8080
        %v8620 = vunpack.c.h.b16 %v8080
        %v8621 = vunpack.c.l.b16 %v8081
        %v8622 = vunpack.c.l.b16 %v8082
        %v8623 = vunpack.c.h.b16 %v8082
        %v8624 = vunpack.c.l.b16 %v8083
        %v8625 = vunpack.c.h.b16 %v8083
        %v8626 = vunpack.c.l.b16 %v8084
        %v8627 = vunpack.c.h.b16 %v8084
        %v8628 = vunpack.c.l.b16 %v8085
        %v8629 = vunpack.c.h.b16 %v8085
        %v8630 = vunpack.c.l.b16 %v8086
        %v8631 = vunpack.c.l.b16 %v8087
        %v8632 = vunpack.c.h.b16 %v8087
        %v8633 = vunpack.c.l.b16 %v8088
        %v8634 = vunpack.c.h.b16 %v8088
        %v8635 = vunpack.c.l.b16 %v8089
        %v8636 = vunpack.c.h.b16 %v8089
        %v8637 = vunpack.c.l.b16 %v8090
        %v8638 = vunpack.c.h.b16 %v8090
        %v8639 = vunpack.c.l.b16 %v8091
        %v8640 = vunpack.c.l.b16 %v8092
        %v8641 = vunpack.c.h.b16 %v8092
        %v8642 = vunpack.c.l.b16 %v8093
        %v8643 = vunpack.c.h.b16 %v8093
        %v8644 = vunpack.c.l.b16 %v8094
        %v8645 = vunpack.c.h.b16 %v8094
        %v8646 = vunpack.c.l.b16 %v8095
        %v8647 = vunpack.c.h.b16 %v8095
        %v8648 = vunpack.c.l.b16 %v8096
        %v8649 = vunpack.c.l.b16 %v8097
        %v8650 = vunpack.c.h.b16 %v8097
        %v8651 = vunpack.c.l.b16 %v8098
        %v8652 = vunpack.c.h.b16 %v8098
        %v8653 = vunpack.c.l.b16 %v8099
        %v8654 = vunpack.c.h.b16 %v8099
        %v8655 = vunpack.c.l.b16 %v8100
        %v8656 = vunpack.c.h.b16 %v8100
        %v8657 = vunpack.c.l.b16 %v8101
        %v8658 = vunpack.c.l.b16 %v8102
        %v8659 = vunpack.c.h.b16 %v8102
        %v8660 = vunpack.c.l.b16 %v8103
        %v8661 = vunpack.c.h.b16 %v8103
        %v8662 = vunpack.c.l.b16 %v8104
        %v8663 = vunpack.c.h.b16 %v8104
        %v8664 = vunpack.c.l.b16 %v8105
        %v8665 = vunpack.c.h.b16 %v8105
        %v8666 = vunpack.c.l.b16 %v8106
        %v8667 = vunpack.c.l.b16 %v8107
        %v8668 = vunpack.c.h.b16 %v8107
        %v8669 = vunpack.c.l.b16 %v8108
        %v8670 = vunpack.c.h.b16 %v8108
        %v8671 = vunpack.c.l.b16 %v8109
        %v8672 = vunpack.c.h.b16 %v8109
        %v8673 = vunpack.c.l.b16 %v8110
        %v8674 = vunpack.c.h.b16 %v8110
        %v8675 = vunpack.c.l.b16 %v8111
        %v8676 = vunpack.c.l.b16 %v8112
        %v8677 = vunpack.c.h.b16 %v8112
        %v8678 = vunpack.c.l.b16 %v8113
        %v8679 = vunpack.c.h.b16 %v8113
        %v8680 = vunpack.c.l.b16 %v8114
        %v8681 = vunpack.c.h.b16 %v8114
        %v8682 = vunpack.c.l.b16 %v8115
        %v8683 = vunpack.c.h.b16 %v8115
        %v8684 = vunpack.c.l.b16 %v8116
        %v8685 = vunpack.c.l.b16 %v8117
        %v8686 = vunpack.c.h.b16 %v8117
        %v8687 = vunpack.c.l.b16 %v8118
        %v8688 = vunpack.c.h.b16 %v8118
        %v8689 = vunpack.c.l.b16 %v8119
        %v8690 = vunpack.c.h.b16 %v8119
        %v8691 = vunpack.c.l.b16 %v8120
        %v8692 = vunpack.c.h.b16 %v8120
        %v8693 = vunpack.c.l.b16 %v8121
        %v8694 = vunpack.c.l.b16 %v8122
        %v8695 = vunpack.c.h.b16 %v8122
        %v8696 = vunpack.c.l.b16 %v8123
        %v8697 = vunpack.c.h.b16 %v8123
        %v8698 = vunpack.c.l.b16 %v8124
        %v8699 = vunpack.c.h.b16 %v8124
        %v8700 = vunpack.c.l.b16 %v8125
        %v8701 = vunpack.c.h.b16 %v8125
        %v8702 = vunpack.c.l.b16 %v8126
        %v8703 = vunpack.c.l.b16 %v8127
        %v8704 = vunpack.c.h.b16 %v8127
        %v8705 = vunpack.c.l.b16 %v8128
        %v8706 = vunpack.c.h.b16 %v8128
        %v8707 = vunpack.c.l.b16 %v8129
        %v8708 = vunpack.c.h.b16 %v8129
        %v8709 = vunpack.c.l.b16 %v8130
        %v8710 = vunpack.c.h.b16 %v8130
        %v8711 = vunpack.c.l.b16 %v8131
        %v8712 = vunpack.c.l.b16 %v8132
        %v8713 = vunpack.c.h.b16 %v8132
        %v8714 = vunpack.c.l.b16 %v8133
        %v8715 = vunpack.c.h.b16 %v8133
        %v8716 = vunpack.c.l.b16 %v8134
        %v8717 = vunpack.c.h.b16 %v8134
        %v8718 = vunpack.c.l.b16 %v8135
        %v8719 = vunpack.c.h.b16 %v8135
        %v8720 = vunpack.c.l.b16 %v8136
        %v8721 = vunpack.c.l.b16 %v8137
        %v8722 = vunpack.c.h.b16 %v8137
        %v8723 = vunpack.c.l.b16 %v8138
        %v8724 = vunpack.c.h.b16 %v8138
        %v8725 = vunpack.c.l.b16 %v8139
        %v8726 = vunpack.c.h.b16 %v8139
        %v8727 = vunpack.c.l.b16 %v8140
        %v8728 = vunpack.c.h.b16 %v8140
        %v8729 = vunpack.c.l.b16 %v8141
        %v8730 = vunpack.c.l.b16 %v8142
        %v8731 = vunpack.c.h.b16 %v8142
        %v8732 = vunpack.c.l.b16 %v8143
        %v8733 = vunpack.c.h.b16 %v8143
        %v8734 = vunpack.c.l.b16 %v8144
        %v8735 = vunpack.c.h.b16 %v8144
        %v8736 = vunpack.c.l.b16 %v8145
        %v8737 = vunpack.c.h.b16 %v8145
        %v8738 = vunpack.c.l.b16 %v8146
        %v8739 = vpack.c.b16 %v8460, %v8451
        %v8740 = vpack.c.b16 %v8461, %v8452
        %v8741 = vpack.c.b16 %v8462, %v8453
        %v8742 = vpack.c.b16 %v8463, %v8454
        %v8743 = vpack.c.b16 %v8464, %v8455
        %v8744 = vpack.c.b16 %v8465, %v8456
        %v8745 = vpack.c.b16 %v8466, %v8457
        %v8746 = vpack.c.b16 %v8467, %v8458
        %v8747 = vpack.c.b16 %v8468, %v8459
        %v8748 = vpack.c.b16 %v8478, %v8469
        %v8749 = vpack.c.b16 %v8479, %v8470
        %v8750 = vpack.c.b16 %v8480, %v8471
        %v8751 = vpack.c.b16 %v8481, %v8472
        %v8752 = vpack.c.b16 %v8482, %v8473
        %v8753 = vpack.c.b16 %v8483, %v8474
        %v8754 = vpack.c.b16 %v8484, %v8475
        %v8755 = vpack.c.b16 %v8485, %v8476
        %v8756 = vpack.c.b16 %v8486, %v8477
        %v8757 = vpack.c.b16 %v8496, %v8487
        %v8758 = vpack.c.b16 %v8497, %v8488
        %v8759 = vpack.c.b16 %v8498, %v8489
        %v8760 = vpack.c.b16 %v8499, %v8490
        %v8761 = vpack.c.b16 %v8500, %v8491
        %v8762 = vpack.c.b16 %v8501, %v8492
        %v8763 = vpack.c.b16 %v8502, %v8493
        %v8764 = vpack.c.b16 %v8503, %v8494
        %v8765 = vpack.c.b16 %v8504, %v8495
        %v8766 = vpack.c.b16 %v8514, %v8505
        %v8767 = vpack.c.b16 %v8515, %v8506
        %v8768 = vpack.c.b16 %v8516, %v8507
        %v8769 = vpack.c.b16 %v8517, %v8508
        %v8770 = vpack.c.b16 %v8518, %v8509
        %v8771 = vpack.c.b16 %v8519, %v8510
        %v8772 = vpack.c.b16 %v8520, %v8511
        %v8773 = vpack.c.b16 %v8521, %v8512
        %v8774 = vpack.c.b16 %v8522, %v8513
        %v8775 = vpack.c.b16 %v8532, %v8523
        %v8776 = vpack.c.b16 %v8533, %v8524
        %v8777 = vpack.c.b16 %v8534, %v8525
        %v8778 = vpack.c.b16 %v8535, %v8526
        %v8779 = vpack.c.b16 %v8536, %v8527
        %v8780 = vpack.c.b16 %v8537, %v8528
        %v8781 = vpack.c.b16 %v8538, %v8529
        %v8782 = vpack.c.b16 %v8539, %v8530
        %v8783 = vpack.c.b16 %v8540, %v8531
        %v8784 = vpack.c.b16 %v8550, %v8541
        %v8785 = vpack.c.b16 %v8551, %v8542
        %v8786 = vpack.c.b16 %v8552, %v8543
        %v8787 = vpack.c.b16 %v8553, %v8544
        %v8788 = vpack.c.b16 %v8554, %v8545
        %v8789 = vpack.c.b16 %v8555, %v8546
        %v8790 = vpack.c.b16 %v8556, %v8547
        %v8791 = vpack.c.b16 %v8557, %v8548
        %v8792 = vpack.c.b16 %v8558, %v8549
        %v8793 = vpack.c.b16 %v8568, %v8559
        %v8794 = vpack.c.b16 %v8569, %v8560
        %v8795 = vpack.c.b16 %v8570, %v8561
        %v8796 = vpack.c.b16 %v8571, %v8562
        %v8797 = vpack.c.b16 %v8572, %v8563
        %v8798 = vpack.c.b16 %v8573, %v8564
        %v8799 = vpack.c.b16 %v8574, %v8565
        %v8800 = vpack.c.b16 %v8575, %v8566
        %v8801 = vpack.c.b16 %v8576, %v8567
        %v8802 = vpack.c.b16 %v8586, %v8577
        %v8803 = vpack.c.b16 %v8587, %v8578
        %v8804 = vpack.c.b16 %v8588, %v8579
        %v8805 = vpack.c.b16 %v8589, %v8580
        %v8806 = vpack.c.b16 %v8590, %v8581
        %v8807 = vpack.c.b16 %v8591, %v8582
        %v8808 = vpack.c.b16 %v8592, %v8583
        %v8809 = vpack.c.b16 %v8593, %v8584
        %v8810 = vpack.c.b16 %v8594, %v8585
        %v8811 = vpack.c.b16 %v8604, %v8595
        %v8812 = vpack.c.b16 %v8605, %v8596
        %v8813 = vpack.c.b16 %v8606, %v8597
        %v8814 = vpack.c.b16 %v8607, %v8598
        %v8815 = vpack.c.b16 %v8608, %v8599
        %v8816 = vpack.c.b16 %v8609, %v8600
        %v8817 = vpack.c.b16 %v8610, %v8601
        %v8818 = vpack.c.b16 %v8611, %v8602
        %v8819 = vpack.c.b16 %v8612, %v8603
        %v8820 = vpack.c.b16 %v8622, %v8613
        %v8821 = vpack.c.b16 %v8623, %v8614
        %v8822 = vpack.c.b16 %v8624, %v8615
        %v8823 = vpack.c.b16 %v8625, %v8616
        %v8824 = vpack.c.b16 %v8626, %v8617
        %v8825 = vpack.c.b16 %v8627, %v8618
        %v8826 = vpack.c.b16 %v8628, %v8619
        %v8827 = vpack.c.b16 %v8629, %v8620
        %v8828 = vpack.c.b16 %v8630, %v8621
        %v8829 = vpack.c.b16 %v8640, %v8631
        %v8830 = vpack.c.b16 %v8641, %v8632
        %v8831 = vpack.c.b16 %v8642, %v8633
        %v8832 = vpack.c.b16 %v8643, %v8634
        %v8833 = vpack.c.b16 %v8644, %v8635
        %v8834 = vpack.c.b16 %v8645, %v8636
        %v8835 = vpack.c.b16 %v8646, %v8637
        %v8836 = vpack.c.b16 %v8647, %v8638
        %v8837 = vpack.c.b16 %v8648, %v8639
        %v8838 = vpack.c.b16 %v8658, %v8649
        %v8839 = vpack.c.b16 %v8659, %v8650
        %v8840 = vpack.c.b16 %v8660, %v8651
        %v8841 = vpack.c.b16 %v8661, %v8652
        %v8842 = vpack.c.b16 %v8662, %v8653
        %v8843 = vpack.c.b16 %v8663, %v8654
        %v8844 = vpack.c.b16 %v8664, %v8655
        %v8845 = vpack.c.b16 %v8665, %v8656
        %v8846 = vpack.c.b16 %v8666, %v8657
        %v8847 = vpack.c.b16 %v8676, %v8667
        %v8848 = vpack.c.b16 %v8677, %v8668
        %v8849 = vpack.c.b16 %v8678, %v8669
        %v8850 = vpack.c.b16 %v8679, %v8670
        %v8851 = vpack.c.b16 %v8680, %v8671
        %v8852 = vpack.c.b16 %v8681, %v8672
        %v8853 = vpack.c.b16 %v8682, %v8673
        %v8854 = vpack.c.b16 %v8683, %v8674
        %v8855 = vpack.c.b16 %v8684, %v8675
        %v8856 = vpack.c.b16 %v8694, %v8685
        %v8857 = vpack.c.b16 %v8695, %v8686
        %v8858 = vpack.c.b16 %v8696, %v8687
        %v8859 = vpack.c.b16 %v8697, %v8688
        %v8860 = vpack.c.b16 %v8698, %v8689
        %v8861 = vpack.c.b16 %v8699, %v8690
        %v8862 = vpack.c.b16 %v8700, %v8691
        %v8863 = vpack.c.b16 %v8701, %v8692
        %v8864 = vpack.c.b16 %v8702, %v8693
        %v8865 = vpack.c.b16 %v8712, %v8703
        %v8866 = vpack.c.b16 %v8713, %v8704
        %v8867 = vpack.c.b16 %v8714, %v8705
        %v8868 = vpack.c.b16 %v8715, %v8706
        %v8869 = vpack.c.b16 %v8716, %v8707
        %v8870 = vpack.c.b16 %v8717, %v8708
        %v8871 = vpack.c.b16 %v8718, %v8709
        %v8872 = vpack.c.b16 %v8719, %v8710
        %v8873 = vpack.c.b16 %v8720, %v8711
        %v8874 = vpack.c.b16 %v8730, %v8721
        %v8875 = vpack.c.b16 %v8731, %v8722
        %v8876 = vpack.c.b16 %v8732, %v8723
        %v8877 = vpack.c.b16 %v8733, %v8724
        %v8878 = vpack.c.b16 %v8734, %v8725
        %v8879 = vpack.c.b16 %v8735, %v8726
        %v8880 = vpack.c.b16 %v8736, %v8727
        %v8881 = vpack.c.b16 %v8737, %v8728
        %v8882 = vpack.c.b16 %v8738, %v8729
        %v9171 = vunpack.c.l.b16 %v8147
        %v9172 = vunpack.c.h.b16 %v8147
        %v9173 = vunpack.c.l.b16 %v8148
        %v9174 = vunpack.c.h.b16 %v8148
        %v9175 = vunpack.c.l.b16 %v8149
        %v9176 = vunpack.c.h.b16 %v8149
        %v9177 = vunpack.c.l.b16 %v8150
        %v9178 = vunpack.c.h.b16 %v8150
        %v9179 = vunpack.c.l.b16 %v8151
        %v9180 = vunpack.c.h.b16 %v8151
        %v9181 = vunpack.c.l.b16 %v8152
        %v9182 = vunpack.c.h.b16 %v8152
        %v9183 = vunpack.c.l.b16 %v8153
        %v9184 = vunpack.c.h.b16 %v8153
        %v9185 = vunpack.c.l.b16 %v8154
        %v9186 = vunpack.c.h.b16 %v8154
        %v9187 = vunpack.c.l.b16 %v8155
        %v9188 = vunpack.c.h.b16 %v8155
        %v9189 = vunpack.c.l.b16 %v8156
        %v9190 = vunpack.c.h.b16 %v8156
        %v9191 = vunpack.c.l.b16 %v8157
        %v9192 = vunpack.c.h.b16 %v8157
        %v9193 = vunpack.c.l.b16 %v8158
        %v9194 = vunpack.c.h.b16 %v8158
        %v9195 = vunpack.c.l.b16 %v8159
        %v9196 = vunpack.c.h.b16 %v8159
        %v9197 = vunpack.c.l.b16 %v8160
        %v9198 = vunpack.c.h.b16 %v8160
        %v9199 = vunpack.c.l.b16 %v8161
        %v9200 = vunpack.c.h.b16 %v8161
        %v9201 = vunpack.c.l.b16 %v8162
        %v9202 = vunpack.c.h.b16 %v8162
        %v9203 = vunpack.c.l.b16 %v8163
        %v9204 = vunpack.c.h.b16 %v8163
        %v9205 = vunpack.c.l.b16 %v8164
        %v9206 = vunpack.c.h.b16 %v8164
        %v9207 = vunpack.c.l.b16 %v8165
        %v9208 = vunpack.c.h.b16 %v8165
        %v9209 = vunpack.c.l.b16 %v8166
        %v9210 = vunpack.c.h.b16 %v8166
        %v9211 = vunpack.c.l.b16 %v8167
        %v9212 = vunpack.c.h.b16 %v8167
        %v9213 = vunpack.c.l.b16 %v8168
        %v9214 = vunpack.c.h.b16 %v8168
        %v9215 = vunpack.c.l.b16 %v8169
        %v9216 = vunpack.c.h.b16 %v8169
        %v9217 = vunpack.c.l.b16 %v8170
        %v9218 = vunpack.c.h.b16 %v8170
        %v9219 = vunpack.c.l.b16 %v8171
        %v9220 = vunpack.c.h.b16 %v8171
        %v9221 = vunpack.c.l.b16 %v8172
        %v9222 = vunpack.c.h.b16 %v8172
        %v9223 = vunpack.c.l.b16 %v8173
        %v9224 = vunpack.c.h.b16 %v8173
        %v9225 = vunpack.c.l.b16 %v8174
        %v9226 = vunpack.c.h.b16 %v8174
        %v9227 = vunpack.c.l.b16 %v8175
        %v9228 = vunpack.c.h.b16 %v8175
        %v9229 = vunpack.c.l.b16 %v8176
        %v9230 = vunpack.c.h.b16 %v8176
        %v9231 = vunpack.c.l.b16 %v8177
        %v9232 = vunpack.c.h.b16 %v8177
        %v9233 = vunpack.c.l.b16 %v8178
        %v9234 = vunpack.c.h.b16 %v8178
        %v9235 = vunpack.c.l.b16 %v8179
        %v9236 = vunpack.c.h.b16 %v8179
        %v9237 = vunpack.c.l.b16 %v8180
        %v9238 = vunpack.c.h.b16 %v8180
        %v9239 = vunpack.c.l.b16 %v8181
        %v9240 = vunpack.c.h.b16 %v8181
        %v9241 = vunpack.c.l.b16 %v8182
        %v9242 = vunpack.c.h.b16 %v8182
        %v9243 = vunpack.c.l.b16 %v8183
        %v9244 = vunpack.c.h.b16 %v8183
        %v9245 = vunpack.c.l.b16 %v8184
        %v9246 = vunpack.c.h.b16 %v8184
        %v9247 = vunpack.c.l.b16 %v8185
        %v9248 = vunpack.c.h.b16 %v8185
        %v9249 = vunpack.c.l.b16 %v8186
        %v9250 = vunpack.c.h.b16 %v8186
        %v9251 = vunpack.c.l.b16 %v8187
        %v9252 = vunpack.c.h.b16 %v8187
        %v9253 = vunpack.c.l.b16 %v8188
        %v9254 = vunpack.c.h.b16 %v8188
        %v9255 = vunpack.c.l.b16 %v8189
        %v9256 = vunpack.c.h.b16 %v8189
        %v9257 = vunpack.c.l.b16 %v8190
        %v9258 = vunpack.c.h.b16 %v8190
        %v9259 = vunpack.c.l.b16 %v8191
        %v9260 = vunpack.c.h.b16 %v8191
        %v9261 = vunpack.c.l.b16 %v8192
        %v9262 = vunpack.c.h.b16 %v8192
        %v9263 = vunpack.c.l.b16 %v8193
        %v9264 = vunpack.c.h.b16 %v8193
        %v9265 = vunpack.c.l.b16 %v8194
        %v9266 = vunpack.c.h.b16 %v8194
        %v9267 = vunpack.c.l.b16 %v8195
        %v9268 = vunpack.c.h.b16 %v8195
        %v9269 = vunpack.c.l.b16 %v8196
        %v9270 = vunpack.c.h.b16 %v8196
        %v9271 = vunpack.c.l.b16 %v8197
        %v9272 = vunpack.c.h.b16 %v8197
        %v9273 = vunpack.c.l.b16 %v8198
        %v9274 = vunpack.c.h.b16 %v8198
        %v9275 = vunpack.c.l.b16 %v8199
        %v9276 = vunpack.c.h.b16 %v8199
        %v9277 = vunpack.c.l.b16 %v8200
        %v9278 = vunpack.c.h.b16 %v8200
        %v9279 = vunpack.c.l.b16 %v8201
        %v9280 = vunpack.c.h.b16 %v8201
        %v9281 = vunpack.c.l.b16 %v8202
        %v9282 = vunpack.c.h.b16 %v8202
        %v9283 = vunpack.c.l.b16 %v8203
        %v9284 = vunpack.c.h.b16 %v8203
        %v9285 = vunpack.c.l.b16 %v8204
        %v9286 = vunpack.c.h.b16 %v8204
        %v9287 = vunpack.c.l.b16 %v8205
        %v9288 = vunpack.c.h.b16 %v8205
        %v9289 = vunpack.c.l.b16 %v8206
        %v9290 = vunpack.c.h.b16 %v8206
        %v9291 = vunpack.c.l.b16 %v8207
        %v9292 = vunpack.c.h.b16 %v8207
        %v9293 = vunpack.c.l.b16 %v8208
        %v9294 = vunpack.c.h.b16 %v8208
        %v9295 = vunpack.c.l.b16 %v8209
        %v9296 = vunpack.c.h.b16 %v8209
        %v9297 = vunpack.c.l.b16 %v8210
        %v9298 = vunpack.c.h.b16 %v8210
        %v9299 = vunpack.c.l.b16 %v8211
        %v9300 = vunpack.c.h.b16 %v8211
        %v9301 = vunpack.c.l.b16 %v8212
        %v9302 = vunpack.c.h.b16 %v8212
        %v9303 = vunpack.c.l.b16 %v8213
        %v9304 = vunpack.c.h.b16 %v8213
        %v9305 = vunpack.c.l.b16 %v8214
        %v9306 = vunpack.c.h.b16 %v8214
        %v9307 = vunpack.c.l.b16 %v8215
        %v9308 = vunpack.c.h.b16 %v8215
        %v9309 = vunpack.c.l.b16 %v8216
        %v9310 = vunpack.c.h.b16 %v8216
        %v9311 = vunpack.c.l.b16 %v8217
        %v9312 = vunpack.c.h.b16 %v8217
        %v9313 = vunpack.c.l.b16 %v8218
        %v9314 = vunpack.c.h.b16 %v8218
        %v9315 = vunpack.c.l.b16 %v8219
        %v9316 = vunpack.c.h.b16 %v8219
        %v9317 = vunpack.c.l.b16 %v8220
        %v9318 = vunpack.c.h.b16 %v8220
        %v9319 = vunpack.c.l.b16 %v8221
        %v9320 = vunpack.c.h.b16 %v8221
        %v9321 = vunpack.c.l.b16 %v8222
        %v9322 = vunpack.c.h.b16 %v8222
        %v9323 = vunpack.c.l.b16 %v8223
        %v9324 = vunpack.c.h.b16 %v8223
        %v9325 = vunpack.c.l.b16 %v8224
        %v9326 = vunpack.c.h.b16 %v8224
        %v9327 = vunpack.c.l.b16 %v8225
        %v9328 = vunpack.c.h.b16 %v8225
        %v9329 = vunpack.c.l.b16 %v8226
        %v9330 = vunpack.c.h.b16 %v8226
        %v9331 = vunpack.c.l.b16 %v8227
        %v9332 = vunpack.c.h.b16 %v8227
        %v9333 = vunpack.c.l.b16 %v8228
        %v9334 = vunpack.c.h.b16 %v8228
        %v9335 = vunpack.c.l.b16 %v8229
        %v9336 = vunpack.c.h.b16 %v8229
        %v9337 = vunpack.c.l.b16 %v8230
        %v9338 = vunpack.c.h.b16 %v8230
        %v9339 = vunpack.c.l.b16 %v8231
        %v9340 = vunpack.c.h.b16 %v8231
        %v9341 = vunpack.c.l.b16 %v8232
        %v9342 = vunpack.c.h.b16 %v8232
        %v9343 = vunpack.c.l.b16 %v8233
        %v9344 = vunpack.c.h.b16 %v8233
        %v9345 = vunpack.c.l.b16 %v8234
        %v9346 = vunpack.c.h.b16 %v8234
        %v9347 = vunpack.c.l.b16 %v8235
        %v9348 = vunpack.c.h.b16 %v8235
        %v9349 = vunpack.c.l.b16 %v8236
        %v9350 = vunpack.c.h.b16 %v8236
        %v9351 = vunpack.c.l.b16 %v8237
        %v9352 = vunpack.c.h.b16 %v8237
        %v9353 = vunpack.c.l.b16 %v8238
        %v9354 = vunpack.c.h.b16 %v8238
        %v9355 = vunpack.c.l.b16 %v8239
        %v9356 = vunpack.c.h.b16 %v8239
        %v9357 = vunpack.c.l.b16 %v8240
        %v9358 = vunpack.c.h.b16 %v8240
        %v9359 = vunpack.c.l.b16 %v8241
        %v9360 = vunpack.c.h.b16 %v8241
        %v9361 = vunpack.c.l.b16 %v8242
        %v9362 = vunpack.c.h.b16 %v8242
        %v9363 = vunpack.c.l.b16 %v8243
        %v9364 = vunpack.c.h.b16 %v8243
        %v9365 = vunpack.c.l.b16 %v8244
        %v9366 = vunpack.c.h.b16 %v8244
        %v9367 = vunpack.c.l.b16 %v8245
        %v9368 = vunpack.c.h.b16 %v8245
        %v9369 = vunpack.c.l.b16 %v8246
        %v9370 = vunpack.c.h.b16 %v8246
        %v9371 = vunpack.c.l.b16 %v8247
        %v9372 = vunpack.c.h.b16 %v8247
        %v9373 = vunpack.c.l.b16 %v8248
        %v9374 = vunpack.c.h.b16 %v8248
        %v9375 = vunpack.c.l.b16 %v8249
        %v9376 = vunpack.c.h.b16 %v8249
        %v9377 = vunpack.c.l.b16 %v8250
        %v9378 = vunpack.c.h.b16 %v8250
        %v9379 = vunpack.c.l.b16 %v8251
        %v9380 = vunpack.c.h.b16 %v8251
        %v9381 = vunpack.c.l.b16 %v8252
        %v9382 = vunpack.c.h.b16 %v8252
        %v9383 = vunpack.c.l.b16 %v8253
        %v9384 = vunpack.c.h.b16 %v8253
        %v9385 = vunpack.c.l.b16 %v8254
        %v9386 = vunpack.c.h.b16 %v8254
        %v9387 = vunpack.c.l.b16 %v8255
        %v9388 = vunpack.c.h.b16 %v8255
        %v9389 = vunpack.c.l.b16 %v8256
        %v9390 = vunpack.c.h.b16 %v8256
        %v9391 = vunpack.c.l.b16 %v8257
        %v9392 = vunpack.c.h.b16 %v8257
        %v9393 = vunpack.c.l.b16 %v8258
        %v9394 = vunpack.c.h.b16 %v8258
        %v9395 = vunpack.c.l.b16 %v8259
        %v9396 = vunpack.c.h.b16 %v8259
        %v9397 = vunpack.c.l.b16 %v8260
        %v9398 = vunpack.c.h.b16 %v8260
        %v9399 = vunpack.c.l.b16 %v8261
        %v9400 = vunpack.c.h.b16 %v8261
        %v9401 = vunpack.c.l.b16 %v8262
        %v9402 = vunpack.c.h.b16 %v8262
        %v9403 = vunpack.c.l.b16 %v8263
        %v9404 = vunpack.c.h.b16 %v8263
        %v9405 = vunpack.c.l.b16 %v8264
        %v9406 = vunpack.c.h.b16 %v8264
        %v9407 = vunpack.c.l.b16 %v8265
        %v9408 = vunpack.c.h.b16 %v8265
        %v9409 = vunpack.c.l.b16 %v8266
        %v9410 = vunpack.c.h.b16 %v8266
        %v9411 = vunpack.c.l.b16 %v8267
        %v9412 = vunpack.c.h.b16 %v8267
        %v9413 = vunpack.c.l.b16 %v8268
        %v9414 = vunpack.c.h.b16 %v8268
        %v9415 = vunpack.c.l.b16 %v8269
        %v9416 = vunpack.c.h.b16 %v8269
        %v9417 = vunpack.c.l.b16 %v8270
        %v9418 = vunpack.c.h.b16 %v8270
        %v9419 = vunpack.c.l.b16 %v8271
        %v9420 = vunpack.c.h.b16 %v8271
        %v9421 = vunpack.c.l.b16 %v8272
        %v9422 = vunpack.c.h.b16 %v8272
        %v9423 = vunpack.c.l.b16 %v8273
        %v9424 = vunpack.c.h.b16 %v8273
        %v9425 = vunpack.c.l.b16 %v8274
        %v9426 = vunpack.c.h.b16 %v8274
        %v9427 = vunpack.c.l.b16 %v8275
        %v9428 = vunpack.c.h.b16 %v8275
        %v9429 = vunpack.c.l.b16 %v8276
        %v9430 = vunpack.c.h.b16 %v8276
        %v9431 = vunpack.c.l.b16 %v8277
        %v9432 = vunpack.c.h.b16 %v8277
        %v9433 = vunpack.c.l.b16 %v8278
        %v9434 = vunpack.c.h.b16 %v8278
        %v9435 = vunpack.c.l.b16 %v8279
        %v9436 = vunpack.c.h.b16 %v8279
        %v9437 = vunpack.c.l.b16 %v8280
        %v9438 = vunpack.c.h.b16 %v8280
        %v9439 = vunpack.c.l.b16 %v8281
        %v9440 = vunpack.c.h.b16 %v8281
        %v9441 = vunpack.c.l.b16 %v8282
        %v9442 = vunpack.c.h.b16 %v8282
        %v9443 = vunpack.c.l.b16 %v8283
        %v9444 = vunpack.c.h.b16 %v8283
        %v9445 = vunpack.c.l.b16 %v8284
        %v9446 = vunpack.c.h.b16 %v8284
        %v9447 = vunpack.c.l.b16 %v8285
        %v9448 = vunpack.c.h.b16 %v8285
        %v9449 = vunpack.c.l.b16 %v8286
        %v9450 = vunpack.c.h.b16 %v8286
        %v9451 = vunpack.c.l.b16 %v8287
        %v9452 = vunpack.c.h.b16 %v8287
        %v9453 = vunpack.c.l.b16 %v8288
        %v9454 = vunpack.c.h.b16 %v8288
        %v9455 = vunpack.c.l.b16 %v8289
        %v9456 = vunpack.c.h.b16 %v8289
        %v9457 = vunpack.c.l.b16 %v8290
        %v9458 = vunpack.c.h.b16 %v8290
        %v9459 = vpack.c.b16 %v9173, %v9171
        %v9460 = vpack.c.b16 %v9174, %v9172
        %v9461 = vpack.c.b16 %v9177, %v9175
        %v9462 = vpack.c.b16 %v9178, %v9176
        %v9463 = vpack.c.b16 %v9181, %v9179
        %v9464 = vpack.c.b16 %v9182, %v9180
        %v9465 = vpack.c.b16 %v9185, %v9183
        %v9466 = vpack.c.b16 %v9186, %v9184
        %v9467 = vpack.c.b16 %v9189, %v9187
        %v9468 = vpack.c.b16 %v9190, %v9188
        %v9469 = vpack.c.b16 %v9193, %v9191
        %v9470 = vpack.c.b16 %v9194, %v9192
        %v9471 = vpack.c.b16 %v9197, %v9195
        %v9472 = vpack.c.b16 %v9198, %v9196
        %v9473 = vpack.c.b16 %v9201, %v9199
        %v9474 = vpack.c.b16 %v9202, %v9200
        %v9475 = vpack.c.b16 %v9205, %v9203
        %v9476 = vpack.c.b16 %v9206, %v9204
        %v9477 = vpack.c.b16 %v9209, %v9207
        %v9478 = vpack.c.b16 %v9210, %v9208
        %v9479 = vpack.c.b16 %v9213, %v9211
        %v9480 = vpack.c.b16 %v9214, %v9212
        %v9481 = vpack.c.b16 %v9217, %v9215
        %v9482 = vpack.c.b16 %v9218, %v9216
        %v9483 = vpack.c.b16 %v9221, %v9219
        %v9484 = vpack.c.b16 %v9222, %v9220
        %v9485 = vpack.c.b16 %v9225, %v9223
        %v9486 = vpack.c.b16 %v9226, %v9224
        %v9487 = vpack.c.b16 %v9229, %v9227
        %v9488 = vpack.c.b16 %v9230, %v9228
        %v9489 = vpack.c.b16 %v9233, %v9231
        %v9490 = vpack.c.b16 %v9234, %v9232
        %v9491 = vpack.c.b16 %v9237, %v9235
        %v9492 = vpack.c.b16 %v9238, %v9236
        %v9493 = vpack.c.b16 %v9241, %v9239
        %v9494 = vpack.c.b16 %v9242, %v9240
        %v9495 = vpack.c.b16 %v9245, %v9243
        %v9496 = vpack.c.b16 %v9246, %v9244
        %v9497 = vpack.c.b16 %v9249, %v9247
        %v9498 = vpack.c.b16 %v9250, %v9248
        %v9499 = vpack.c.b16 %v9253, %v9251
        %v9500 = vpack.c.b16 %v9254, %v9252
        %v9501 = vpack.c.b16 %v9257, %v9255
        %v9502 = vpack.c.b16 %v9258, %v9256
        %v9503 = vpack.c.b16 %v9261, %v9259
        %v9504 = vpack.c.b16 %v9262, %v9260
        %v9505 = vpack.c.b16 %v9265, %v9263
        %v9506 = vpack.c.b16 %v9266, %v9264
        %v9507 = vpack.c.b16 %v9269, %v9267
        %v9508 = vpack.c.b16 %v9270, %v9268
        %v9509 = vpack.c.b16 %v9273, %v9271
        %v9510 = vpack.c.b16 %v9274, %v9272
        %v9511 = vpack.c.b16 %v9277, %v9275
        %v9512 = vpack.c.b16 %v9278, %v9276
        %v9513 = vpack.c.b16 %v9281, %v9279
        %v9514 = vpack.c.b16 %v9282, %v9280
        %v9515 = vpack.c.b16 %v9285, %v9283
        %v9516 = vpack.c.b16 %v9286, %v9284
        %v9517 = vpack.c.b16 %v9289, %v9287
        %v9518 = vpack.c.b16 %v9290, %v9288
        %v9519 = vpack.c.b16 %v9293, %v9291
        %v9520 = vpack.c.b16 %v9294, %v9292
        %v9521 = vpack.c.b16 %v9297, %v9295
        %v9522 = vpack.c.b16 %v9298, %v9296
        %v9523 = vpack.c.b16 %v9301, %v9299
        %v9524 = vpack.c.b16 %v9302, %v9300
        %v9525 = vpack.c.b16 %v9305, %v9303
        %v9526 = vpack.c.b16 %v9306, %v9304
        %v9527 = vpack.c.b16 %v9309, %v9307
        %v9528 = vpack.c.b16 %v9310, %v9308
        %v9529 = vpack.c.b16 %v9313, %v9311
        %v9530 = vpack.c.b16 %v9314, %v9312
        %v9531 = vpack.c.b16 %v9317, %v9315
        %v9532 = vpack.c.b16 %v9318, %v9316
        %v9533 = vpack.c.b16 %v9321, %v9319
        %v9534 = vpack.c.b16 %v9322, %v9320
        %v9535 = vpack.c.b16 %v9325, %v9323
        %v9536 = vpack.c.b16 %v9326, %v9324
        %v9537 = vpack.c.b16 %v9329, %v9327
        %v9538 = vpack.c.b16 %v9330, %v9328
        %v9539 = vpack.c.b16 %v9333, %v9331
        %v9540 = vpack.c.b16 %v9334, %v9332
        %v9541 = vpack.c.b16 %v9337, %v9335
        %v9542 = vpack.c.b16 %v9338, %v9336
        %v9543 = vpack.c.b16 %v9341, %v9339
        %v9544 = vpack.c.b16 %v9342, %v9340
        %v9545 = vpack.c.b16 %v9345, %v9343
        %v9546 = vpack.c.b16 %v9346, %v9344
        %v9547 = vpack.c.b16 %v9349, %v9347
        %v9548 = vpack.c.b16 %v9350, %v9348
        %v9549 = vpack.c.b16 %v9353, %v9351
        %v9550 = vpack.c.b16 %v9354, %v9352
        %v9551 = vpack.c.b16 %v9357, %v9355
        %v9552 = vpack.c.b16 %v9358, %v9356
        %v9553 = vpack.c.b16 %v9361, %v9359
        %v9554 = vpack.c.b16 %v9362, %v9360
        %v9555 = vpack.c.b16 %v9365, %v9363
        %v9556 = vpack.c.b16 %v9366, %v9364
        %v9557 = vpack.c.b16 %v9369, %v9367
        %v9558 = vpack.c.b16 %v9370, %v9368
        %v9559 = vpack.c.b16 %v9373, %v9371
        %v9560 = vpack.c.b16 %v9374, %v9372
        %v9561 = vpack.c.b16 %v9377, %v9375
        %v9562 = vpack.c.b16 %v9378, %v9376
        %v9563 = vpack.c.b16 %v9381, %v9379
        %v9564 = vpack.c.b16 %v9382, %v9380
        %v9565 = vpack.c.b16 %v9385, %v9383
        %v9566 = vpack.c.b16 %v9386, %v9384
        %v9567 = vpack.c.b16 %v9389, %v9387
        %v9568 = vpack.c.b16 %v9390, %v9388
        %v9569 = vpack.c.b16 %v9393, %v9391
        %v9570 = vpack.c.b16 %v9394, %v9392
        %v9571 = vpack.c.b16 %v9397, %v9395
        %v9572 = vpack.c.b16 %v9398, %v9396
        %v9573 = vpack.c.b16 %v9401, %v9399
        %v9574 = vpack.c.b16 %v9402, %v9400
        %v9575 = vpack.c.b16 %v9405, %v9403
        %v9576 = vpack.c.b16 %v9406, %v9404
        %v9577 = vpack.c.b16 %v9409, %v9407
        %v9578 = vpack.c.b16 %v9410, %v9408
        %v9579 = vpack.c.b16 %v9413, %v9411
        %v9580 = vpack.c.b16 %v9414, %v9412
        %v9581 = vpack.c.b16 %v9417, %v9415
        %v9582 = vpack.c.b16 %v9418, %v9416
        %v9583 = vpack.c.b16 %v9421, %v9419
        %v9584 = vpack.c.b16 %v9422, %v9420
        %v9585 = vpack.c.b16 %v9425, %v9423
        %v9586 = vpack.c.b16 %v9426, %v9424
        %v9587 = vpack.c.b16 %v9429, %v9427
        %v9588 = vpack.c.b16 %v9430, %v9428
        %v9589 = vpack.c.b16 %v9433, %v9431
        %v9590 = vpack.c.b16 %v9434, %v9432
        %v9591 = vpack.c.b16 %v9437, %v9435
        %v9592 = vpack.c.b16 %v9438, %v9436
        %v9593 = vpack.c.b16 %v9441, %v9439
        %v9594 = vpack.c.b16 %v9442, %v9440
        %v9595 = vpack.c.b16 %v9445, %v9443
        %v9596 = vpack.c.b16 %v9446, %v9444
        %v9597 = vpack.c.b16 %v9449, %v9447
        %v9598 = vpack.c.b16 %v9450, %v9448
        %v9599 = vpack.c.b16 %v9453, %v9451
        %v9600 = vpack.c.b16 %v9454, %v9452
        %v9601 = vpack.c.b16 %v9457, %v9455
        %v9602 = vpack.c.b16 %v9458, %v9456
        %9747 = vmatprep.subr.bf16.mxu0 %v9474
        %9748 = vmatpush1.bf16.msra.mxu0 %v9473
        %9749 = vmatprep.subr.bf16.mxu0 %v9472
        %9750 = vmatpush1.bf16.msra.mxu0 %v9471
        %9751 = vmatprep.subr.bf16.mxu0 %v9470
        %9752 = vmatpush1.bf16.msra.mxu0 %v9469
        %9753 = vmatprep.subr.bf16.mxu0 %v9468
        %9754 = vmatpush1.bf16.msra.mxu0 %v9467
        %9755 = vmatprep.subr.bf16.mxu0 %v9466
        %9756 = vmatpush1.bf16.msra.mxu0 %v9465
        %9757 = vmatprep.subr.bf16.mxu0 %v9464
        %9758 = vmatpush1.bf16.msra.mxu0 %v9463
        %9759 = vmatprep.subr.bf16.mxu0 %v9462
        %9760 = vmatpush1.bf16.msra.mxu0 %v9461
        %9761 = vmatprep.subr.bf16.mxu0 %v9460
        %9762 = vmatpush1.bf16.msra.mxu0 %v9459
        %9763 = vmatprep.subr.bf16.mxu0 %v9490
        %9764 = vmatpush2.bf16.msra.mxu0 %v9489
        %9765 = vmatprep.subr.bf16.mxu0 %v9488
        %9766 = vmatpush2.bf16.msra.mxu0 %v9487
        %9767 = vmatprep.subr.bf16.mxu0 %v9486
        %9768 = vmatpush2.bf16.msra.mxu0 %v9485
        %9769 = vmatprep.subr.bf16.mxu0 %v9484
        %9770 = vmatpush2.bf16.msra.mxu0 %v9483
        %9771 = vmatprep.subr.bf16.mxu0 %v9482
        %9772 = vmatpush2.bf16.msra.mxu0 %v9481
        %9773 = vmatprep.subr.bf16.mxu0 %v9480
        %9774 = vmatpush2.bf16.msra.mxu0 %v9479
        %9775 = vmatprep.subr.bf16.mxu0 %v9478
        %9776 = vmatpush2.bf16.msra.mxu0 %v9477
        %9777 = vmatprep.subr.bf16.mxu0 %v9476
        %9778 = vmatpush2.bf16.msra.mxu0 %v9475
        %9779 = vmatprep.mubr.bf16.mxu0 %v8740
        %9780 = vmatmul.mubr.bf16.gmra.mxu0 %v8739
        %v9781 = vpop.f32.mrf.mxu0
        %v9782 = vadd.f32 0.0, %v9781
        %v9783 = vpop.f32.mrf.mxu0
        %v9784 = vadd.f32 0.0, %v9783
        %v9785 = vpop.f32.mrf.mxu0
        %v9786 = vadd.f32 0.0, %v9785
        %v9787 = vpop.f32.mrf.mxu0
        %v9788 = vadd.f32 0.0, %v9787
        %9789 = vmatprep.mubr.bf16.mxu0 %v8749
        %9790 = vmatmul.mubr.bf16.gmra.mxu0 %v8748
        %v9791 = vpop.f32.mrf.mxu0
        %v9792 = vadd.f32 0.0, %v9791
        %v9793 = vpop.f32.mrf.mxu0
        %v9794 = vadd.f32 0.0, %v9793
        %v9795 = vpop.f32.mrf.mxu0
        %v9796 = vadd.f32 0.0, %v9795
        %v9797 = vpop.f32.mrf.mxu0
        %v9798 = vadd.f32 0.0, %v9797
        %9799 = vmatprep.mubr.bf16.mxu0 %v8758
        %9800 = vmatmul.mubr.bf16.gmra.mxu0 %v8757
        %v9801 = vpop.f32.mrf.mxu0
        %v9802 = vadd.f32 0.0, %v9801
        %v9803 = vpop.f32.mrf.mxu0
        %v9804 = vadd.f32 0.0, %v9803
        %v9805 = vpop.f32.mrf.mxu0
        %v9806 = vadd.f32 0.0, %v9805
        %v9807 = vpop.f32.mrf.mxu0
        %v9808 = vadd.f32 0.0, %v9807
        %9809 = vmatprep.mubr.bf16.mxu0 %v8767
        %9810 = vmatmul.mubr.bf16.gmra.mxu0 %v8766
        %v9811 = vpop.f32.mrf.mxu0
        %v9812 = vadd.f32 0.0, %v9811
        %v9813 = vpop.f32.mrf.mxu0
        %v9814 = vadd.f32 0.0, %v9813
        %v9815 = vpop.f32.mrf.mxu0
        %v9816 = vadd.f32 0.0, %v9815
        %v9817 = vpop.f32.mrf.mxu0
        %v9818 = vadd.f32 0.0, %v9817
        %9819 = vmatprep.mubr.bf16.mxu0 %v8776
        %9820 = vmatmul.mubr.bf16.gmra.mxu0 %v8775
        %v9821 = vpop.f32.mrf.mxu0
        %v9822 = vadd.f32 0.0, %v9821
        %v9823 = vpop.f32.mrf.mxu0
        %v9824 = vadd.f32 0.0, %v9823
        %v9825 = vpop.f32.mrf.mxu0
        %v9826 = vadd.f32 0.0, %v9825
        %v9827 = vpop.f32.mrf.mxu0
        %v9828 = vadd.f32 0.0, %v9827
        %9829 = vmatprep.mubr.bf16.mxu0 %v8785
        %9830 = vmatmul.mubr.bf16.gmra.mxu0 %v8784
        %v9831 = vpop.f32.mrf.mxu0
        %v9832 = vadd.f32 0.0, %v9831
        %v9833 = vpop.f32.mrf.mxu0
        %v9834 = vadd.f32 0.0, %v9833
        %v9835 = vpop.f32.mrf.mxu0
        %v9836 = vadd.f32 0.0, %v9835
        %v9837 = vpop.f32.mrf.mxu0
        %v9838 = vadd.f32 0.0, %v9837
        %9839 = vmatprep.mubr.bf16.mxu0 %v8794
        %9840 = vmatmul.mubr.bf16.gmra.mxu0 %v8793
        %v9841 = vpop.f32.mrf.mxu0
        %v9842 = vadd.f32 0.0, %v9841
        %v9843 = vpop.f32.mrf.mxu0
        %v9844 = vadd.f32 0.0, %v9843
        %v9845 = vpop.f32.mrf.mxu0
        %v9846 = vadd.f32 0.0, %v9845
        %v9847 = vpop.f32.mrf.mxu0
        %v9848 = vadd.f32 0.0, %v9847
        %9849 = vmatprep.mubr.bf16.mxu0 %v8803
        %9850 = vmatmul.mubr.bf16.gmra.mxu0 %v8802
        %v9851 = vpop.f32.mrf.mxu0
        %v9852 = vadd.f32 0.0, %v9851
        %v9853 = vpop.f32.mrf.mxu0
        %v9854 = vadd.f32 0.0, %v9853
        %v9855 = vpop.f32.mrf.mxu0
        %v9856 = vadd.f32 0.0, %v9855
        %v9857 = vpop.f32.mrf.mxu0
        %v9858 = vadd.f32 0.0, %v9857
        %9859 = vmatprep.mubr.bf16.mxu0 %v8812
        %9860 = vmatmul.mubr.bf16.gmra.mxu0 %v8811
        %v9861 = vpop.f32.mrf.mxu0
        %v9862 = vadd.f32 0.0, %v9861
        %v9863 = vpop.f32.mrf.mxu0
        %v9864 = vadd.f32 0.0, %v9863
        %v9865 = vpop.f32.mrf.mxu0
        %v9866 = vadd.f32 0.0, %v9865
        %v9867 = vpop.f32.mrf.mxu0
        %v9868 = vadd.f32 0.0, %v9867
        %9869 = vmatprep.mubr.bf16.mxu0 %v8821
        %9870 = vmatmul.mubr.bf16.gmra.mxu0 %v8820
        %v9871 = vpop.f32.mrf.mxu0
        %v9872 = vadd.f32 0.0, %v9871
        %v9873 = vpop.f32.mrf.mxu0
        %v9874 = vadd.f32 0.0, %v9873
        %v9875 = vpop.f32.mrf.mxu0
        %v9876 = vadd.f32 0.0, %v9875
        %v9877 = vpop.f32.mrf.mxu0
        %v9878 = vadd.f32 0.0, %v9877
        %9879 = vmatprep.mubr.bf16.mxu0 %v8830
        %9880 = vmatmul.mubr.bf16.gmra.mxu0 %v8829
        %v9881 = vpop.f32.mrf.mxu0
        %v9882 = vadd.f32 0.0, %v9881
        %v9883 = vpop.f32.mrf.mxu0
        %v9884 = vadd.f32 0.0, %v9883
        %v9885 = vpop.f32.mrf.mxu0
        %v9886 = vadd.f32 0.0, %v9885
        %v9887 = vpop.f32.mrf.mxu0
        %v9888 = vadd.f32 0.0, %v9887
        %9889 = vmatprep.mubr.bf16.mxu0 %v8839
        %9890 = vmatmul.mubr.bf16.gmra.mxu0 %v8838
        %v9891 = vpop.f32.mrf.mxu0
        %v9892 = vadd.f32 0.0, %v9891
        %v9893 = vpop.f32.mrf.mxu0
        %v9894 = vadd.f32 0.0, %v9893
        %v9895 = vpop.f32.mrf.mxu0
        %v9896 = vadd.f32 0.0, %v9895
        %v9897 = vpop.f32.mrf.mxu0
        %v9898 = vadd.f32 0.0, %v9897
        %9899 = vmatprep.mubr.bf16.mxu0 %v8848
        %9900 = vmatmul.mubr.bf16.gmra.mxu0 %v8847
        %v9901 = vpop.f32.mrf.mxu0
        %v9902 = vadd.f32 0.0, %v9901
        %v9903 = vpop.f32.mrf.mxu0
        %v9904 = vadd.f32 0.0, %v9903
        %v9905 = vpop.f32.mrf.mxu0
        %v9906 = vadd.f32 0.0, %v9905
        %v9907 = vpop.f32.mrf.mxu0
        %v9908 = vadd.f32 0.0, %v9907
        %9909 = vmatprep.mubr.bf16.mxu0 %v8857
        %9910 = vmatmul.mubr.bf16.gmra.mxu0 %v8856
        %v9911 = vpop.f32.mrf.mxu0
        %v9912 = vadd.f32 0.0, %v9911
        %v9913 = vpop.f32.mrf.mxu0
        %v9914 = vadd.f32 0.0, %v9913
        %v9915 = vpop.f32.mrf.mxu0
        %v9916 = vadd.f32 0.0, %v9915
        %v9917 = vpop.f32.mrf.mxu0
        %v9918 = vadd.f32 0.0, %v9917
        %9919 = vmatprep.mubr.bf16.mxu0 %v8866
        %9920 = vmatmul.mubr.bf16.gmra.mxu0 %v8865
        %v9921 = vpop.f32.mrf.mxu0
        %v9922 = vadd.f32 0.0, %v9921
        %v9923 = vpop.f32.mrf.mxu0
        %v9924 = vadd.f32 0.0, %v9923
        %v9925 = vpop.f32.mrf.mxu0
        %v9926 = vadd.f32 0.0, %v9925
        %v9927 = vpop.f32.mrf.mxu0
        %v9928 = vadd.f32 0.0, %v9927
        %9929 = vmatprep.mubr.bf16.mxu0 %v8875
        %9930 = vmatmul.mubr.bf16.gmra.mxu0 %v8874
        %v9931 = vpop.f32.mrf.mxu0
        %v9932 = vadd.f32 0.0, %v9931
        %v9933 = vpop.f32.mrf.mxu0
        %v9934 = vadd.f32 0.0, %v9933
        %v9935 = vpop.f32.mrf.mxu0
        %v9936 = vadd.f32 0.0, %v9935
        %v9937 = vpop.f32.mrf.mxu0
        %v9938 = vadd.f32 0.0, %v9937
        %9939 = vdwg.mxu0
        %9940 = vmatprep.subr.bf16.mxu0 %v9506
        %9941 = vmatpush1.bf16.msra.mxu0 %v9505
        %9942 = vmatprep.subr.bf16.mxu0 %v9504
        %9943 = vmatpush1.bf16.msra.mxu0 %v9503
        %9944 = vmatprep.subr.bf16.mxu0 %v9502
        %9945 = vmatpush1.bf16.msra.mxu0 %v9501
        %9946 = vmatprep.subr.bf16.mxu0 %v9500
        %9947 = vmatpush1.bf16.msra.mxu0 %v9499
        %9948 = vmatprep.subr.bf16.mxu0 %v9498
        %9949 = vmatpush1.bf16.msra.mxu0 %v9497
        %9950 = vmatprep.subr.bf16.mxu0 %v9496
        %9951 = vmatpush1.bf16.msra.mxu0 %v9495
        %9952 = vmatprep.subr.bf16.mxu0 %v9494
        %9953 = vmatpush1.bf16.msra.mxu0 %v9493
        %9954 = vmatprep.subr.bf16.mxu0 %v9492
        %9955 = vmatpush1.bf16.msra.mxu0 %v9491
        %9956 = vmatprep.subr.bf16.mxu0 %v9522
        %9957 = vmatpush2.bf16.msra.mxu0 %v9521
        %9958 = vmatprep.subr.bf16.mxu0 %v9520
        %9959 = vmatpush2.bf16.msra.mxu0 %v9519
        %9960 = vmatprep.subr.bf16.mxu0 %v9518
        %9961 = vmatpush2.bf16.msra.mxu0 %v9517
        %9962 = vmatprep.subr.bf16.mxu0 %v9516
        %9963 = vmatpush2.bf16.msra.mxu0 %v9515
        %9964 = vmatprep.subr.bf16.mxu0 %v9514
        %9965 = vmatpush2.bf16.msra.mxu0 %v9513
        %9966 = vmatprep.subr.bf16.mxu0 %v9512
        %9967 = vmatpush2.bf16.msra.mxu0 %v9511
        %9968 = vmatprep.subr.bf16.mxu0 %v9510
        %9969 = vmatpush2.bf16.msra.mxu0 %v9509
        %9970 = vmatprep.subr.bf16.mxu0 %v9508
        %9971 = vmatpush2.bf16.msra.mxu0 %v9507
        %9972 = vmatprep.mubr.bf16.mxu0 %v8742
        %9973 = vmatmul.mubr.bf16.gmra.mxu0 %v8741
        %v9974 = vpop.f32.mrf.mxu0
        %v9975 = vadd.f32 %v9782, %v9974
        %v9976 = vpop.f32.mrf.mxu0
        %v9977 = vadd.f32 %v9784, %v9976
        %v9978 = vpop.f32.mrf.mxu0
        %v9979 = vadd.f32 %v9786, %v9978
        %v9980 = vpop.f32.mrf.mxu0
        %v9981 = vadd.f32 %v9788, %v9980
        %9982 = vmatprep.mubr.bf16.mxu0 %v8751
        %9983 = vmatmul.mubr.bf16.gmra.mxu0 %v8750
        %v9984 = vpop.f32.mrf.mxu0
        %v9985 = vadd.f32 %v9792, %v9984
        %v9986 = vpop.f32.mrf.mxu0
        %v9987 = vadd.f32 %v9794, %v9986
        %v9988 = vpop.f32.mrf.mxu0
        %v9989 = vadd.f32 %v9796, %v9988
        %v9990 = vpop.f32.mrf.mxu0
        %v9991 = vadd.f32 %v9798, %v9990
        %9992 = vmatprep.mubr.bf16.mxu0 %v8760
        %9993 = vmatmul.mubr.bf16.gmra.mxu0 %v8759
        %v9994 = vpop.f32.mrf.mxu0
        %v9995 = vadd.f32 %v9802, %v9994
        %v9996 = vpop.f32.mrf.mxu0
        %v9997 = vadd.f32 %v9804, %v9996
        %v9998 = vpop.f32.mrf.mxu0
        %v9999 = vadd.f32 %v9806, %v9998
        %v10000 = vpop.f32.mrf.mxu0
        %v10001 = vadd.f32 %v9808, %v10000
        %10002 = vmatprep.mubr.bf16.mxu0 %v8769
        %10003 = vmatmul.mubr.bf16.gmra.mxu0 %v8768
        %v10004 = vpop.f32.mrf.mxu0
        %v10005 = vadd.f32 %v9812, %v10004
        %v10006 = vpop.f32.mrf.mxu0
        %v10007 = vadd.f32 %v9814, %v10006
        %v10008 = vpop.f32.mrf.mxu0
        %v10009 = vadd.f32 %v9816, %v10008
        %v10010 = vpop.f32.mrf.mxu0
        %v10011 = vadd.f32 %v9818, %v10010
        %10012 = vmatprep.mubr.bf16.mxu0 %v8778
        %10013 = vmatmul.mubr.bf16.gmra.mxu0 %v8777
        %v10014 = vpop.f32.mrf.mxu0
        %v10015 = vadd.f32 %v9822, %v10014
        %v10016 = vpop.f32.mrf.mxu0
        %v10017 = vadd.f32 %v9824, %v10016
        %v10018 = vpop.f32.mrf.mxu0
        %v10019 = vadd.f32 %v9826, %v10018
        %v10020 = vpop.f32.mrf.mxu0
        %v10021 = vadd.f32 %v9828, %v10020
        %10022 = vmatprep.mubr.bf16.mxu0 %v8787
        %10023 = vmatmul.mubr.bf16.gmra.mxu0 %v8786
        %v10024 = vpop.f32.mrf.mxu0
        %v10025 = vadd.f32 %v9832, %v10024
        %v10026 = vpop.f32.mrf.mxu0
        %v10027 = vadd.f32 %v9834, %v10026
        %v10028 = vpop.f32.mrf.mxu0
        %v10029 = vadd.f32 %v9836, %v10028
        %v10030 = vpop.f32.mrf.mxu0
        %v10031 = vadd.f32 %v9838, %v10030
        %10032 = vmatprep.mubr.bf16.mxu0 %v8796
        %10033 = vmatmul.mubr.bf16.gmra.mxu0 %v8795
        %v10034 = vpop.f32.mrf.mxu0
        %v10035 = vadd.f32 %v9842, %v10034
        %v10036 = vpop.f32.mrf.mxu0
        %v10037 = vadd.f32 %v9844, %v10036
        %v10038 = vpop.f32.mrf.mxu0
        %v10039 = vadd.f32 %v9846, %v10038
        %v10040 = vpop.f32.mrf.mxu0
        %v10041 = vadd.f32 %v9848, %v10040
        %10042 = vmatprep.mubr.bf16.mxu0 %v8805
        %10043 = vmatmul.mubr.bf16.gmra.mxu0 %v8804
        %v10044 = vpop.f32.mrf.mxu0
        %v10045 = vadd.f32 %v9852, %v10044
        %v10046 = vpop.f32.mrf.mxu0
        %v10047 = vadd.f32 %v9854, %v10046
        %v10048 = vpop.f32.mrf.mxu0
        %v10049 = vadd.f32 %v9856, %v10048
        %v10050 = vpop.f32.mrf.mxu0
        %v10051 = vadd.f32 %v9858, %v10050
        %10052 = vmatprep.mubr.bf16.mxu0 %v8814
        %10053 = vmatmul.mubr.bf16.gmra.mxu0 %v8813
        %v10054 = vpop.f32.mrf.mxu0
        %v10055 = vadd.f32 %v9862, %v10054
        %v10056 = vpop.f32.mrf.mxu0
        %v10057 = vadd.f32 %v9864, %v10056
        %v10058 = vpop.f32.mrf.mxu0
        %v10059 = vadd.f32 %v9866, %v10058
        %v10060 = vpop.f32.mrf.mxu0
        %v10061 = vadd.f32 %v9868, %v10060
        %10062 = vmatprep.mubr.bf16.mxu0 %v8823
        %10063 = vmatmul.mubr.bf16.gmra.mxu0 %v8822
        %v10064 = vpop.f32.mrf.mxu0
        %v10065 = vadd.f32 %v9872, %v10064
        %v10066 = vpop.f32.mrf.mxu0
        %v10067 = vadd.f32 %v9874, %v10066
        %v10068 = vpop.f32.mrf.mxu0
        %v10069 = vadd.f32 %v9876, %v10068
        %v10070 = vpop.f32.mrf.mxu0
        %v10071 = vadd.f32 %v9878, %v10070
        %10072 = vmatprep.mubr.bf16.mxu0 %v8832
        %10073 = vmatmul.mubr.bf16.gmra.mxu0 %v8831
        %v10074 = vpop.f32.mrf.mxu0
        %v10075 = vadd.f32 %v9882, %v10074
        %v10076 = vpop.f32.mrf.mxu0
        %v10077 = vadd.f32 %v9884, %v10076
        %v10078 = vpop.f32.mrf.mxu0
        %v10079 = vadd.f32 %v9886, %v10078
        %v10080 = vpop.f32.mrf.mxu0
        %v10081 = vadd.f32 %v9888, %v10080
        %10082 = vmatprep.mubr.bf16.mxu0 %v8841
        %10083 = vmatmul.mubr.bf16.gmra.mxu0 %v8840
        %v10084 = vpop.f32.mrf.mxu0
        %v10085 = vadd.f32 %v9892, %v10084
        %v10086 = vpop.f32.mrf.mxu0
        %v10087 = vadd.f32 %v9894, %v10086
        %v10088 = vpop.f32.mrf.mxu0
        %v10089 = vadd.f32 %v9896, %v10088
        %v10090 = vpop.f32.mrf.mxu0
        %v10091 = vadd.f32 %v9898, %v10090
        %10092 = vmatprep.mubr.bf16.mxu0 %v8850
        %10093 = vmatmul.mubr.bf16.gmra.mxu0 %v8849
        %v10094 = vpop.f32.mrf.mxu0
        %v10095 = vadd.f32 %v9902, %v10094
        %v10096 = vpop.f32.mrf.mxu0
        %v10097 = vadd.f32 %v9904, %v10096
        %v10098 = vpop.f32.mrf.mxu0
        %v10099 = vadd.f32 %v9906, %v10098
        %v10100 = vpop.f32.mrf.mxu0
        %v10101 = vadd.f32 %v9908, %v10100
        %10102 = vmatprep.mubr.bf16.mxu0 %v8859
        %10103 = vmatmul.mubr.bf16.gmra.mxu0 %v8858
        %v10104 = vpop.f32.mrf.mxu0
        %v10105 = vadd.f32 %v9912, %v10104
        %v10106 = vpop.f32.mrf.mxu0
        %v10107 = vadd.f32 %v9914, %v10106
        %v10108 = vpop.f32.mrf.mxu0
        %v10109 = vadd.f32 %v9916, %v10108
        %v10110 = vpop.f32.mrf.mxu0
        %v10111 = vadd.f32 %v9918, %v10110
        %10112 = vmatprep.mubr.bf16.mxu0 %v8868
        %10113 = vmatmul.mubr.bf16.gmra.mxu0 %v8867
        %v10114 = vpop.f32.mrf.mxu0
        %v10115 = vadd.f32 %v9922, %v10114
        %v10116 = vpop.f32.mrf.mxu0
        %v10117 = vadd.f32 %v9924, %v10116
        %v10118 = vpop.f32.mrf.mxu0
        %v10119 = vadd.f32 %v9926, %v10118
        %v10120 = vpop.f32.mrf.mxu0
        %v10121 = vadd.f32 %v9928, %v10120
        %10122 = vmatprep.mubr.bf16.mxu0 %v8877
        %10123 = vmatmul.mubr.bf16.gmra.mxu0 %v8876
        %v10124 = vpop.f32.mrf.mxu0
        %v10125 = vadd.f32 %v9932, %v10124
        %v10126 = vpop.f32.mrf.mxu0
        %v10127 = vadd.f32 %v9934, %v10126
        %v10128 = vpop.f32.mrf.mxu0
        %v10129 = vadd.f32 %v9936, %v10128
        %v10130 = vpop.f32.mrf.mxu0
        %v10131 = vadd.f32 %v9938, %v10130
        %10132 = vdwg.mxu0
        %10133 = vmatprep.subr.bf16.mxu0 %v9538
        %10134 = vmatpush1.bf16.msra.mxu0 %v9537
        %10135 = vmatprep.subr.bf16.mxu0 %v9536
        %10136 = vmatpush1.bf16.msra.mxu0 %v9535
        %10137 = vmatprep.subr.bf16.mxu0 %v9534
        %10138 = vmatpush1.bf16.msra.mxu0 %v9533
        %10139 = vmatprep.subr.bf16.mxu0 %v9532
        %10140 = vmatpush1.bf16.msra.mxu0 %v9531
        %10141 = vmatprep.subr.bf16.mxu0 %v9530
        %10142 = vmatpush1.bf16.msra.mxu0 %v9529
        %10143 = vmatprep.subr.bf16.mxu0 %v9528
        %10144 = vmatpush1.bf16.msra.mxu0 %v9527
        %10145 = vmatprep.subr.bf16.mxu0 %v9526
        %10146 = vmatpush1.bf16.msra.mxu0 %v9525
        %10147 = vmatprep.subr.bf16.mxu0 %v9524
        %10148 = vmatpush1.bf16.msra.mxu0 %v9523
        %10149 = vmatprep.subr.bf16.mxu0 %v9554
        %10150 = vmatpush2.bf16.msra.mxu0 %v9553
        %10151 = vmatprep.subr.bf16.mxu0 %v9552
        %10152 = vmatpush2.bf16.msra.mxu0 %v9551
        %10153 = vmatprep.subr.bf16.mxu0 %v9550
        %10154 = vmatpush2.bf16.msra.mxu0 %v9549
        %10155 = vmatprep.subr.bf16.mxu0 %v9548
        %10156 = vmatpush2.bf16.msra.mxu0 %v9547
        %10157 = vmatprep.subr.bf16.mxu0 %v9546
        %10158 = vmatpush2.bf16.msra.mxu0 %v9545
        %10159 = vmatprep.subr.bf16.mxu0 %v9544
        %10160 = vmatpush2.bf16.msra.mxu0 %v9543
        %10161 = vmatprep.subr.bf16.mxu0 %v9542
        %10162 = vmatpush2.bf16.msra.mxu0 %v9541
        %10163 = vmatprep.subr.bf16.mxu0 %v9540
        %10164 = vmatpush2.bf16.msra.mxu0 %v9539
        %10165 = vmatprep.mubr.bf16.mxu0 %v8744
        %10166 = vmatmul.mubr.bf16.gmra.mxu0 %v8743
        %v10167 = vpop.f32.mrf.mxu0
        %v10168 = vadd.f32 %v9975, %v10167
        %v10169 = vpop.f32.mrf.mxu0
        %v10170 = vadd.f32 %v9977, %v10169
        %v10171 = vpop.f32.mrf.mxu0
        %v10172 = vadd.f32 %v9979, %v10171
        %v10173 = vpop.f32.mrf.mxu0
        %v10174 = vadd.f32 %v9981, %v10173
        %10175 = vmatprep.mubr.bf16.mxu0 %v8753
        %10176 = vmatmul.mubr.bf16.gmra.mxu0 %v8752
        %v10177 = vpop.f32.mrf.mxu0
        %v10178 = vadd.f32 %v9985, %v10177
        %v10179 = vpop.f32.mrf.mxu0
        %v10180 = vadd.f32 %v9987, %v10179
        %v10181 = vpop.f32.mrf.mxu0
        %v10182 = vadd.f32 %v9989, %v10181
        %v10183 = vpop.f32.mrf.mxu0
        %v10184 = vadd.f32 %v9991, %v10183
        %10185 = vmatprep.mubr.bf16.mxu0 %v8762
        %10186 = vmatmul.mubr.bf16.gmra.mxu0 %v8761
        %v10187 = vpop.f32.mrf.mxu0
        %v10188 = vadd.f32 %v9995, %v10187
        %v10189 = vpop.f32.mrf.mxu0
        %v10190 = vadd.f32 %v9997, %v10189
        %v10191 = vpop.f32.mrf.mxu0
        %v10192 = vadd.f32 %v9999, %v10191
        %v10193 = vpop.f32.mrf.mxu0
        %v10194 = vadd.f32 %v10001, %v10193
        %10195 = vmatprep.mubr.bf16.mxu0 %v8771
        %10196 = vmatmul.mubr.bf16.gmra.mxu0 %v8770
        %v10197 = vpop.f32.mrf.mxu0
        %v10198 = vadd.f32 %v10005, %v10197
        %v10199 = vpop.f32.mrf.mxu0
        %v10200 = vadd.f32 %v10007, %v10199
        %v10201 = vpop.f32.mrf.mxu0
        %v10202 = vadd.f32 %v10009, %v10201
        %v10203 = vpop.f32.mrf.mxu0
        %v10204 = vadd.f32 %v10011, %v10203
        %10205 = vmatprep.mubr.bf16.mxu0 %v8780
        %10206 = vmatmul.mubr.bf16.gmra.mxu0 %v8779
        %v10207 = vpop.f32.mrf.mxu0
        %v10208 = vadd.f32 %v10015, %v10207
        %v10209 = vpop.f32.mrf.mxu0
        %v10210 = vadd.f32 %v10017, %v10209
        %v10211 = vpop.f32.mrf.mxu0
        %v10212 = vadd.f32 %v10019, %v10211
        %v10213 = vpop.f32.mrf.mxu0
        %v10214 = vadd.f32 %v10021, %v10213
        %10215 = vmatprep.mubr.bf16.mxu0 %v8789
        %10216 = vmatmul.mubr.bf16.gmra.mxu0 %v8788
        %v10217 = vpop.f32.mrf.mxu0
        %v10218 = vadd.f32 %v10025, %v10217
        %v10219 = vpop.f32.mrf.mxu0
        %v10220 = vadd.f32 %v10027, %v10219
        %v10221 = vpop.f32.mrf.mxu0
        %v10222 = vadd.f32 %v10029, %v10221
        %v10223 = vpop.f32.mrf.mxu0
        %v10224 = vadd.f32 %v10031, %v10223
        %10225 = vmatprep.mubr.bf16.mxu0 %v8798
        %10226 = vmatmul.mubr.bf16.gmra.mxu0 %v8797
        %v10227 = vpop.f32.mrf.mxu0
        %v10228 = vadd.f32 %v10035, %v10227
        %v10229 = vpop.f32.mrf.mxu0
        %v10230 = vadd.f32 %v10037, %v10229
        %v10231 = vpop.f32.mrf.mxu0
        %v10232 = vadd.f32 %v10039, %v10231
        %v10233 = vpop.f32.mrf.mxu0
        %v10234 = vadd.f32 %v10041, %v10233
        %10235 = vmatprep.mubr.bf16.mxu0 %v8807
        %10236 = vmatmul.mubr.bf16.gmra.mxu0 %v8806
        %v10237 = vpop.f32.mrf.mxu0
        %v10238 = vadd.f32 %v10045, %v10237
        %v10239 = vpop.f32.mrf.mxu0
        %v10240 = vadd.f32 %v10047, %v10239
        %v10241 = vpop.f32.mrf.mxu0
        %v10242 = vadd.f32 %v10049, %v10241
        %v10243 = vpop.f32.mrf.mxu0
        %v10244 = vadd.f32 %v10051, %v10243
        %10245 = vmatprep.mubr.bf16.mxu0 %v8816
        %10246 = vmatmul.mubr.bf16.gmra.mxu0 %v8815
        %v10247 = vpop.f32.mrf.mxu0
        %v10248 = vadd.f32 %v10055, %v10247
        %v10249 = vpop.f32.mrf.mxu0
        %v10250 = vadd.f32 %v10057, %v10249
        %v10251 = vpop.f32.mrf.mxu0
        %v10252 = vadd.f32 %v10059, %v10251
        %v10253 = vpop.f32.mrf.mxu0
        %v10254 = vadd.f32 %v10061, %v10253
        %10255 = vmatprep.mubr.bf16.mxu0 %v8825
        %10256 = vmatmul.mubr.bf16.gmra.mxu0 %v8824
        %v10257 = vpop.f32.mrf.mxu0
        %v10258 = vadd.f32 %v10065, %v10257
        %v10259 = vpop.f32.mrf.mxu0
        %v10260 = vadd.f32 %v10067, %v10259
        %v10261 = vpop.f32.mrf.mxu0
        %v10262 = vadd.f32 %v10069, %v10261
        %v10263 = vpop.f32.mrf.mxu0
        %v10264 = vadd.f32 %v10071, %v10263
        %10265 = vmatprep.mubr.bf16.mxu0 %v8834
        %10266 = vmatmul.mubr.bf16.gmra.mxu0 %v8833
        %v10267 = vpop.f32.mrf.mxu0
        %v10268 = vadd.f32 %v10075, %v10267
        %v10269 = vpop.f32.mrf.mxu0
        %v10270 = vadd.f32 %v10077, %v10269
        %v10271 = vpop.f32.mrf.mxu0
        %v10272 = vadd.f32 %v10079, %v10271
        %v10273 = vpop.f32.mrf.mxu0
        %v10274 = vadd.f32 %v10081, %v10273
        %10275 = vmatprep.mubr.bf16.mxu0 %v8843
        %10276 = vmatmul.mubr.bf16.gmra.mxu0 %v8842
        %v10277 = vpop.f32.mrf.mxu0
        %v10278 = vadd.f32 %v10085, %v10277
        %v10279 = vpop.f32.mrf.mxu0
        %v10280 = vadd.f32 %v10087, %v10279
        %v10281 = vpop.f32.mrf.mxu0
        %v10282 = vadd.f32 %v10089, %v10281
        %v10283 = vpop.f32.mrf.mxu0
        %v10284 = vadd.f32 %v10091, %v10283
        %10285 = vmatprep.mubr.bf16.mxu0 %v8852
        %10286 = vmatmul.mubr.bf16.gmra.mxu0 %v8851
        %v10287 = vpop.f32.mrf.mxu0
        %v10288 = vadd.f32 %v10095, %v10287
        %v10289 = vpop.f32.mrf.mxu0
        %v10290 = vadd.f32 %v10097, %v10289
        %v10291 = vpop.f32.mrf.mxu0
        %v10292 = vadd.f32 %v10099, %v10291
        %v10293 = vpop.f32.mrf.mxu0
        %v10294 = vadd.f32 %v10101, %v10293
        %10295 = vmatprep.mubr.bf16.mxu0 %v8861
        %10296 = vmatmul.mubr.bf16.gmra.mxu0 %v8860
        %v10297 = vpop.f32.mrf.mxu0
        %v10298 = vadd.f32 %v10105, %v10297
        %v10299 = vpop.f32.mrf.mxu0
        %v10300 = vadd.f32 %v10107, %v10299
        %v10301 = vpop.f32.mrf.mxu0
        %v10302 = vadd.f32 %v10109, %v10301
        %v10303 = vpop.f32.mrf.mxu0
        %v10304 = vadd.f32 %v10111, %v10303
        %10305 = vmatprep.mubr.bf16.mxu0 %v8870
        %10306 = vmatmul.mubr.bf16.gmra.mxu0 %v8869
        %v10307 = vpop.f32.mrf.mxu0
        %v10308 = vadd.f32 %v10115, %v10307
        %v10309 = vpop.f32.mrf.mxu0
        %v10310 = vadd.f32 %v10117, %v10309
        %v10311 = vpop.f32.mrf.mxu0
        %v10312 = vadd.f32 %v10119, %v10311
        %v10313 = vpop.f32.mrf.mxu0
        %v10314 = vadd.f32 %v10121, %v10313
        %10315 = vmatprep.mubr.bf16.mxu0 %v8879
        %10316 = vmatmul.mubr.bf16.gmra.mxu0 %v8878
        %v10317 = vpop.f32.mrf.mxu0
        %v10318 = vadd.f32 %v10125, %v10317
        %v10319 = vpop.f32.mrf.mxu0
        %v10320 = vadd.f32 %v10127, %v10319
        %v10321 = vpop.f32.mrf.mxu0
        %v10322 = vadd.f32 %v10129, %v10321
        %v10323 = vpop.f32.mrf.mxu0
        %v10324 = vadd.f32 %v10131, %v10323
        %10325 = vdwg.mxu0
        %10326 = vmatprep.subr.bf16.mxu0 %v9570
        %10327 = vmatpush1.bf16.msra.mxu0 %v9569
        %10328 = vmatprep.subr.bf16.mxu0 %v9568
        %10329 = vmatpush1.bf16.msra.mxu0 %v9567
        %10330 = vmatprep.subr.bf16.mxu0 %v9566
        %10331 = vmatpush1.bf16.msra.mxu0 %v9565
        %10332 = vmatprep.subr.bf16.mxu0 %v9564
        %10333 = vmatpush1.bf16.msra.mxu0 %v9563
        %10334 = vmatprep.subr.bf16.mxu0 %v9562
        %10335 = vmatpush1.bf16.msra.mxu0 %v9561
        %10336 = vmatprep.subr.bf16.mxu0 %v9560
        %10337 = vmatpush1.bf16.msra.mxu0 %v9559
        %10338 = vmatprep.subr.bf16.mxu0 %v9558
        %10339 = vmatpush1.bf16.msra.mxu0 %v9557
        %10340 = vmatprep.subr.bf16.mxu0 %v9556
        %10341 = vmatpush1.bf16.msra.mxu0 %v9555
        %10342 = vmatprep.subr.bf16.mxu0 %v9586
        %10343 = vmatpush2.bf16.msra.mxu0 %v9585
        %10344 = vmatprep.subr.bf16.mxu0 %v9584
        %10345 = vmatpush2.bf16.msra.mxu0 %v9583
        %10346 = vmatprep.subr.bf16.mxu0 %v9582
        %10347 = vmatpush2.bf16.msra.mxu0 %v9581
        %10348 = vmatprep.subr.bf16.mxu0 %v9580
        %10349 = vmatpush2.bf16.msra.mxu0 %v9579
        %10350 = vmatprep.subr.bf16.mxu0 %v9578
        %10351 = vmatpush2.bf16.msra.mxu0 %v9577
        %10352 = vmatprep.subr.bf16.mxu0 %v9576
        %10353 = vmatpush2.bf16.msra.mxu0 %v9575
        %10354 = vmatprep.subr.bf16.mxu0 %v9574
        %10355 = vmatpush2.bf16.msra.mxu0 %v9573
        %10356 = vmatprep.subr.bf16.mxu0 %v9572
        %10357 = vmatpush2.bf16.msra.mxu0 %v9571
        %10358 = vmatprep.mubr.bf16.mxu0 %v8746
        %10359 = vmatmul.mubr.bf16.gmra.mxu0 %v8745
        %v10360 = vpop.f32.mrf.mxu0
        %v10361 = vadd.f32 %v10168, %v10360
        %v10362 = vpop.f32.mrf.mxu0
        %v10363 = vadd.f32 %v10170, %v10362
        %v10364 = vpop.f32.mrf.mxu0
        %v10365 = vadd.f32 %v10172, %v10364
        %v10366 = vpop.f32.mrf.mxu0
        %v10367 = vadd.f32 %v10174, %v10366
        %10368 = vmatprep.mubr.bf16.mxu0 %v8755
        %10369 = vmatmul.mubr.bf16.gmra.mxu0 %v8754
        %v10370 = vpop.f32.mrf.mxu0
        %v10371 = vadd.f32 %v10178, %v10370
        %v10372 = vpop.f32.mrf.mxu0
        %v10373 = vadd.f32 %v10180, %v10372
        %v10374 = vpop.f32.mrf.mxu0
        %v10375 = vadd.f32 %v10182, %v10374
        %v10376 = vpop.f32.mrf.mxu0
        %v10377 = vadd.f32 %v10184, %v10376
        %10378 = vmatprep.mubr.bf16.mxu0 %v8764
        %10379 = vmatmul.mubr.bf16.gmra.mxu0 %v8763
        %v10380 = vpop.f32.mrf.mxu0
        %v10381 = vadd.f32 %v10188, %v10380
        %v10382 = vpop.f32.mrf.mxu0
        %v10383 = vadd.f32 %v10190, %v10382
        %v10384 = vpop.f32.mrf.mxu0
        %v10385 = vadd.f32 %v10192, %v10384
        %v10386 = vpop.f32.mrf.mxu0
        %v10387 = vadd.f32 %v10194, %v10386
        %10388 = vmatprep.mubr.bf16.mxu0 %v8773
        %10389 = vmatmul.mubr.bf16.gmra.mxu0 %v8772
        %v10390 = vpop.f32.mrf.mxu0
        %v10391 = vadd.f32 %v10198, %v10390
        %v10392 = vpop.f32.mrf.mxu0
        %v10393 = vadd.f32 %v10200, %v10392
        %v10394 = vpop.f32.mrf.mxu0
        %v10395 = vadd.f32 %v10202, %v10394
        %v10396 = vpop.f32.mrf.mxu0
        %v10397 = vadd.f32 %v10204, %v10396
        %10398 = vmatprep.mubr.bf16.mxu0 %v8782
        %10399 = vmatmul.mubr.bf16.gmra.mxu0 %v8781
        %v10400 = vpop.f32.mrf.mxu0
        %v10401 = vadd.f32 %v10208, %v10400
        %v10402 = vpop.f32.mrf.mxu0
        %v10403 = vadd.f32 %v10210, %v10402
        %v10404 = vpop.f32.mrf.mxu0
        %v10405 = vadd.f32 %v10212, %v10404
        %v10406 = vpop.f32.mrf.mxu0
        %v10407 = vadd.f32 %v10214, %v10406
        %10408 = vmatprep.mubr.bf16.mxu0 %v8791
        %10409 = vmatmul.mubr.bf16.gmra.mxu0 %v8790
        %v10410 = vpop.f32.mrf.mxu0
        %v10411 = vadd.f32 %v10218, %v10410
        %v10412 = vpop.f32.mrf.mxu0
        %v10413 = vadd.f32 %v10220, %v10412
        %v10414 = vpop.f32.mrf.mxu0
        %v10415 = vadd.f32 %v10222, %v10414
        %v10416 = vpop.f32.mrf.mxu0
        %v10417 = vadd.f32 %v10224, %v10416
        %10418 = vmatprep.mubr.bf16.mxu0 %v8800
        %10419 = vmatmul.mubr.bf16.gmra.mxu0 %v8799
        %v10420 = vpop.f32.mrf.mxu0
        %v10421 = vadd.f32 %v10228, %v10420
        %v10422 = vpop.f32.mrf.mxu0
        %v10423 = vadd.f32 %v10230, %v10422
        %v10424 = vpop.f32.mrf.mxu0
        %v10425 = vadd.f32 %v10232, %v10424
        %v10426 = vpop.f32.mrf.mxu0
        %v10427 = vadd.f32 %v10234, %v10426
        %10428 = vmatprep.mubr.bf16.mxu0 %v8809
        %10429 = vmatmul.mubr.bf16.gmra.mxu0 %v8808
        %v10430 = vpop.f32.mrf.mxu0
        %v10431 = vadd.f32 %v10238, %v10430
        %v10432 = vpop.f32.mrf.mxu0
        %v10433 = vadd.f32 %v10240, %v10432
        %v10434 = vpop.f32.mrf.mxu0
        %v10435 = vadd.f32 %v10242, %v10434
        %v10436 = vpop.f32.mrf.mxu0
        %v10437 = vadd.f32 %v10244, %v10436
        %10438 = vmatprep.mubr.bf16.mxu0 %v8818
        %10439 = vmatmul.mubr.bf16.gmra.mxu0 %v8817
        %v10440 = vpop.f32.mrf.mxu0
        %v10441 = vadd.f32 %v10248, %v10440
        %v10442 = vpop.f32.mrf.mxu0
        %v10443 = vadd.f32 %v10250, %v10442
        %v10444 = vpop.f32.mrf.mxu0
        %v10445 = vadd.f32 %v10252, %v10444
        %v10446 = vpop.f32.mrf.mxu0
        %v10447 = vadd.f32 %v10254, %v10446
        %10448 = vmatprep.mubr.bf16.mxu0 %v8827
        %10449 = vmatmul.mubr.bf16.gmra.mxu0 %v8826
        %v10450 = vpop.f32.mrf.mxu0
        %v10451 = vadd.f32 %v10258, %v10450
        %v10452 = vpop.f32.mrf.mxu0
        %v10453 = vadd.f32 %v10260, %v10452
        %v10454 = vpop.f32.mrf.mxu0
        %v10455 = vadd.f32 %v10262, %v10454
        %v10456 = vpop.f32.mrf.mxu0
        %v10457 = vadd.f32 %v10264, %v10456
        %10458 = vmatprep.mubr.bf16.mxu0 %v8836
        %10459 = vmatmul.mubr.bf16.gmra.mxu0 %v8835
        %v10460 = vpop.f32.mrf.mxu0
        %v10461 = vadd.f32 %v10268, %v10460
        %v10462 = vpop.f32.mrf.mxu0
        %v10463 = vadd.f32 %v10270, %v10462
        %v10464 = vpop.f32.mrf.mxu0
        %v10465 = vadd.f32 %v10272, %v10464
        %v10466 = vpop.f32.mrf.mxu0
        %v10467 = vadd.f32 %v10274, %v10466
        %10468 = vmatprep.mubr.bf16.mxu0 %v8845
        %10469 = vmatmul.mubr.bf16.gmra.mxu0 %v8844
        %v10470 = vpop.f32.mrf.mxu0
        %v10471 = vadd.f32 %v10278, %v10470
        %v10472 = vpop.f32.mrf.mxu0
        %v10473 = vadd.f32 %v10280, %v10472
        %v10474 = vpop.f32.mrf.mxu0
        %v10475 = vadd.f32 %v10282, %v10474
        %v10476 = vpop.f32.mrf.mxu0
        %v10477 = vadd.f32 %v10284, %v10476
        %10478 = vmatprep.mubr.bf16.mxu0 %v8854
        %10479 = vmatmul.mubr.bf16.gmra.mxu0 %v8853
        %v10480 = vpop.f32.mrf.mxu0
        %v10481 = vadd.f32 %v10288, %v10480
        %v10482 = vpop.f32.mrf.mxu0
        %v10483 = vadd.f32 %v10290, %v10482
        %v10484 = vpop.f32.mrf.mxu0
        %v10485 = vadd.f32 %v10292, %v10484
        %v10486 = vpop.f32.mrf.mxu0
        %v10487 = vadd.f32 %v10294, %v10486
        %10488 = vmatprep.mubr.bf16.mxu0 %v8863
        %10489 = vmatmul.mubr.bf16.gmra.mxu0 %v8862
        %v10490 = vpop.f32.mrf.mxu0
        %v10491 = vadd.f32 %v10298, %v10490
        %v10492 = vpop.f32.mrf.mxu0
        %v10493 = vadd.f32 %v10300, %v10492
        %v10494 = vpop.f32.mrf.mxu0
        %v10495 = vadd.f32 %v10302, %v10494
        %v10496 = vpop.f32.mrf.mxu0
        %v10497 = vadd.f32 %v10304, %v10496
        %10498 = vmatprep.mubr.bf16.mxu0 %v8872
        %10499 = vmatmul.mubr.bf16.gmra.mxu0 %v8871
        %v10500 = vpop.f32.mrf.mxu0
        %v10501 = vadd.f32 %v10308, %v10500
        %v10502 = vpop.f32.mrf.mxu0
        %v10503 = vadd.f32 %v10310, %v10502
        %v10504 = vpop.f32.mrf.mxu0
        %v10505 = vadd.f32 %v10312, %v10504
        %v10506 = vpop.f32.mrf.mxu0
        %v10507 = vadd.f32 %v10314, %v10506
        %10508 = vmatprep.mubr.bf16.mxu0 %v8881
        %10509 = vmatmul.mubr.bf16.gmra.mxu0 %v8880
        %v10510 = vpop.f32.mrf.mxu0
        %v10511 = vadd.f32 %v10318, %v10510
        %v10512 = vpop.f32.mrf.mxu0
        %v10513 = vadd.f32 %v10320, %v10512
        %v10514 = vpop.f32.mrf.mxu0
        %v10515 = vadd.f32 %v10322, %v10514
        %v10516 = vpop.f32.mrf.mxu0
        %v10517 = vadd.f32 %v10324, %v10516
        %10518 = vdwg.mxu0
        %10519 = vmatprep.subr.bf16.mxu0 %v9602
        %10520 = vmatpush1.bf16.msra.mxu0 %v9601
        %10521 = vmatprep.subr.bf16.mxu0 %v9600
        %10522 = vmatpush1.bf16.msra.mxu0 %v9599
        %10523 = vmatprep.subr.bf16.mxu0 %v9598
        %10524 = vmatpush1.bf16.msra.mxu0 %v9597
        %10525 = vmatprep.subr.bf16.mxu0 %v9596
        %10526 = vmatpush1.bf16.msra.mxu0 %v9595
        %10527 = vmatprep.subr.bf16.mxu0 %v9594
        %10528 = vmatpush1.bf16.msra.mxu0 %v9593
        %10529 = vmatprep.subr.bf16.mxu0 %v9592
        %10530 = vmatpush1.bf16.msra.mxu0 %v9591
        %10531 = vmatprep.subr.bf16.mxu0 %v9590
        %10532 = vmatpush1.bf16.msra.mxu0 %v9589
        %10533 = vmatprep.subr.bf16.mxu0 %v9588
        %10534 = vmatpush1.bf16.msra.mxu0 %v9587
        %10535 = vmatprep.subr.bf16.mxu0 0
        %10536 = vmatpush2.bf16.msra.mxu0 0
        %10537 = vmatprep.subr.bf16.mxu0 0
        %10538 = vmatpush2.bf16.msra.mxu0 0
        %10539 = vmatprep.subr.bf16.mxu0 0
        %10540 = vmatpush2.bf16.msra.mxu0 0
        %10541 = vmatprep.subr.bf16.mxu0 0
        %10542 = vmatpush2.bf16.msra.mxu0 0
        %10543 = vmatprep.subr.bf16.mxu0 0
        %10544 = vmatpush2.bf16.msra.mxu0 0
        %10545 = vmatprep.subr.bf16.mxu0 0
        %10546 = vmatpush2.bf16.msra.mxu0 0
        %10547 = vmatprep.subr.bf16.mxu0 0
        %10548 = vmatpush2.bf16.msra.mxu0 0
        %10549 = vmatprep.subr.bf16.mxu0 0
        %10550 = vmatpush2.bf16.msra.mxu0 0
        %10551 = vmatprep.mubr.bf16.mxu0 0
        %10552 = vmatmul.mubr.bf16.gmra.mxu0 %v8747
        %v10553 = vpop.f32.mrf.mxu0
        %v10554 = vadd.f32 %v10361, %v10553
        %v10555 = vpop.f32.mrf.mxu0
        %v10556 = vadd.f32 %v10363, %v10555
        %v10557 = vpop.f32.mrf.mxu0
        %v10558 = vadd.f32 %v10365, %v10557
        %v10559 = vpop.f32.mrf.mxu0
        %v10560 = vadd.f32 %v10367, %v10559
        %10561 = vmatprep.mubr.bf16.mxu0 0
        %10562 = vmatmul.mubr.bf16.gmra.mxu0 %v8756
        %v10563 = vpop.f32.mrf.mxu0
        %v10564 = vadd.f32 %v10371, %v10563
        %v10565 = vpop.f32.mrf.mxu0
        %v10566 = vadd.f32 %v10373, %v10565
        %v10567 = vpop.f32.mrf.mxu0
        %v10568 = vadd.f32 %v10375, %v10567
        %v10569 = vpop.f32.mrf.mxu0
        %v10570 = vadd.f32 %v10377, %v10569
        %10571 = vmatprep.mubr.bf16.mxu0 0
        %10572 = vmatmul.mubr.bf16.gmra.mxu0 %v8765
        %v10573 = vpop.f32.mrf.mxu0
        %v10574 = vadd.f32 %v10381, %v10573
        %v10575 = vpop.f32.mrf.mxu0
        %v10576 = vadd.f32 %v10383, %v10575
        %v10577 = vpop.f32.mrf.mxu0
        %v10578 = vadd.f32 %v10385, %v10577
        %v10579 = vpop.f32.mrf.mxu0
        %v10580 = vadd.f32 %v10387, %v10579
        %10581 = vmatprep.mubr.bf16.mxu0 0
        %10582 = vmatmul.mubr.bf16.gmra.mxu0 %v8774
        %v10583 = vpop.f32.mrf.mxu0
        %v10584 = vadd.f32 %v10391, %v10583
        %v10585 = vpop.f32.mrf.mxu0
        %v10586 = vadd.f32 %v10393, %v10585
        %v10587 = vpop.f32.mrf.mxu0
        %v10588 = vadd.f32 %v10395, %v10587
        %v10589 = vpop.f32.mrf.mxu0
        %v10590 = vadd.f32 %v10397, %v10589
        %10591 = vmatprep.mubr.bf16.mxu0 0
        %10592 = vmatmul.mubr.bf16.gmra.mxu0 %v8783
        %v10593 = vpop.f32.mrf.mxu0
        %v10594 = vadd.f32 %v10401, %v10593
        %v10595 = vpop.f32.mrf.mxu0
        %v10596 = vadd.f32 %v10403, %v10595
        %v10597 = vpop.f32.mrf.mxu0
        %v10598 = vadd.f32 %v10405, %v10597
        %v10599 = vpop.f32.mrf.mxu0
        %v10600 = vadd.f32 %v10407, %v10599
        %10601 = vmatprep.mubr.bf16.mxu0 0
        %10602 = vmatmul.mubr.bf16.gmra.mxu0 %v8792
        %v10603 = vpop.f32.mrf.mxu0
        %v10604 = vadd.f32 %v10411, %v10603
        %v10605 = vpop.f32.mrf.mxu0
        %v10606 = vadd.f32 %v10413, %v10605
        %v10607 = vpop.f32.mrf.mxu0
        %v10608 = vadd.f32 %v10415, %v10607
        %v10609 = vpop.f32.mrf.mxu0
        %v10610 = vadd.f32 %v10417, %v10609
        %10611 = vmatprep.mubr.bf16.mxu0 0
        %10612 = vmatmul.mubr.bf16.gmra.mxu0 %v8801
        %v10613 = vpop.f32.mrf.mxu0
        %v10614 = vadd.f32 %v10421, %v10613
        %v10615 = vpop.f32.mrf.mxu0
        %v10616 = vadd.f32 %v10423, %v10615
        %v10617 = vpop.f32.mrf.mxu0
        %v10618 = vadd.f32 %v10425, %v10617
        %v10619 = vpop.f32.mrf.mxu0
        %v10620 = vadd.f32 %v10427, %v10619
        %10621 = vmatprep.mubr.bf16.mxu0 0
        %10622 = vmatmul.mubr.bf16.gmra.mxu0 %v8810
        %v10623 = vpop.f32.mrf.mxu0
        %v10624 = vadd.f32 %v10431, %v10623
        %v10625 = vpop.f32.mrf.mxu0
        %v10626 = vadd.f32 %v10433, %v10625
        %v10627 = vpop.f32.mrf.mxu0
        %v10628 = vadd.f32 %v10435, %v10627
        %v10629 = vpop.f32.mrf.mxu0
        %v10630 = vadd.f32 %v10437, %v10629
        %10631 = vmatprep.mubr.bf16.mxu0 0
        %10632 = vmatmul.mubr.bf16.gmra.mxu0 %v8819
        %v10633 = vpop.f32.mrf.mxu0
        %v10634 = vadd.f32 %v10441, %v10633
        %v10635 = vpop.f32.mrf.mxu0
        %v10636 = vadd.f32 %v10443, %v10635
        %v10637 = vpop.f32.mrf.mxu0
        %v10638 = vadd.f32 %v10445, %v10637
        %v10639 = vpop.f32.mrf.mxu0
        %v10640 = vadd.f32 %v10447, %v10639
        %10641 = vmatprep.mubr.bf16.mxu0 0
        %10642 = vmatmul.mubr.bf16.gmra.mxu0 %v8828
        %v10643 = vpop.f32.mrf.mxu0
        %v10644 = vadd.f32 %v10451, %v10643
        %v10645 = vpop.f32.mrf.mxu0
        %v10646 = vadd.f32 %v10453, %v10645
        %v10647 = vpop.f32.mrf.mxu0
        %v10648 = vadd.f32 %v10455, %v10647
        %v10649 = vpop.f32.mrf.mxu0
        %v10650 = vadd.f32 %v10457, %v10649
        %10651 = vmatprep.mubr.bf16.mxu0 0
        %10652 = vmatmul.mubr.bf16.gmra.mxu0 %v8837
        %v10653 = vpop.f32.mrf.mxu0
        %v10654 = vadd.f32 %v10461, %v10653
        %v10655 = vpop.f32.mrf.mxu0
        %v10656 = vadd.f32 %v10463, %v10655
        %v10657 = vpop.f32.mrf.mxu0
        %v10658 = vadd.f32 %v10465, %v10657
        %v10659 = vpop.f32.mrf.mxu0
        %v10660 = vadd.f32 %v10467, %v10659
        %10661 = vmatprep.mubr.bf16.mxu0 0
        %10662 = vmatmul.mubr.bf16.gmra.mxu0 %v8846
        %v10663 = vpop.f32.mrf.mxu0
        %v10664 = vadd.f32 %v10471, %v10663
        %v10665 = vpop.f32.mrf.mxu0
        %v10666 = vadd.f32 %v10473, %v10665
        %v10667 = vpop.f32.mrf.mxu0
        %v10668 = vadd.f32 %v10475, %v10667
        %v10669 = vpop.f32.mrf.mxu0
        %v10670 = vadd.f32 %v10477, %v10669
        %10671 = vmatprep.mubr.bf16.mxu0 0
        %10672 = vmatmul.mubr.bf16.gmra.mxu0 %v8855
        %v10673 = vpop.f32.mrf.mxu0
        %v10674 = vadd.f32 %v10481, %v10673
        %v10675 = vpop.f32.mrf.mxu0
        %v10676 = vadd.f32 %v10483, %v10675
        %v10677 = vpop.f32.mrf.mxu0
        %v10678 = vadd.f32 %v10485, %v10677
        %v10679 = vpop.f32.mrf.mxu0
        %v10680 = vadd.f32 %v10487, %v10679
        %10681 = vmatprep.mubr.bf16.mxu0 0
        %10682 = vmatmul.mubr.bf16.gmra.mxu0 %v8864
        %v10683 = vpop.f32.mrf.mxu0
        %v10684 = vadd.f32 %v10491, %v10683
        %v10685 = vpop.f32.mrf.mxu0
        %v10686 = vadd.f32 %v10493, %v10685
        %v10687 = vpop.f32.mrf.mxu0
        %v10688 = vadd.f32 %v10495, %v10687
        %v10689 = vpop.f32.mrf.mxu0
        %v10690 = vadd.f32 %v10497, %v10689
        %10691 = vmatprep.mubr.bf16.mxu0 0
        %10692 = vmatmul.mubr.bf16.gmra.mxu0 %v8873
        %v10693 = vpop.f32.mrf.mxu0
        %v10694 = vadd.f32 %v10501, %v10693
        %v10695 = vpop.f32.mrf.mxu0
        %v10696 = vadd.f32 %v10503, %v10695
        %v10697 = vpop.f32.mrf.mxu0
        %v10698 = vadd.f32 %v10505, %v10697
        %v10699 = vpop.f32.mrf.mxu0
        %v10700 = vadd.f32 %v10507, %v10699
        %10701 = vmatprep.mubr.bf16.mxu0 0
        %10702 = vmatmul.mubr.bf16.gmra.mxu0 %v8882
        %v10703 = vpop.f32.mrf.mxu0
        %v10704 = vadd.f32 %v10511, %v10703
        %v10705 = vpop.f32.mrf.mxu0
        %v10706 = vadd.f32 %v10513, %v10705
        %v10707 = vpop.f32.mrf.mxu0
        %v10708 = vadd.f32 %v10515, %v10707
        %v10709 = vpop.f32.mrf.mxu0
        %v10710 = vadd.f32 %v10517, %v10709
        %10711 = vdwg.mxu0
        %s10712 = scalar_lea.vmem [#allocation13], 3
        %v10713 = vld [vmem:[%s10712] ss:$8 sm:$0x3]
        %s10714 = scalar_lea.vmem [#allocation15], 3
        %v10715 = vld [vmem:[%s10714] ss:$8 sm:$0x3]
        %v10717 = vlaneseq
        %v10718 = vshrl.u32 %v10717, 7
        %v10719 = vsub.s32 0, %v10718
        %v10720 = vrot.slane %v10713, %v10719
        %v10721 = vlaneseq
        %v10722 = vshrl.u32 %v10721, 7
        %v10723 = vsub.s32 1, %v10722
        %v10724 = vrot.slane %v10713, %v10723
        %v10727 = vmul.f32 %v10554, %v10720
        %v10728 = vmul.f32 %v10556, %v10724
        %v10729 = vmul.f32 %v10558, %v10720
        %v10730 = vmul.f32 %v10560, %v10724
        %v10731 = vmul.f32 %v10564, %v10720
        %v10732 = vmul.f32 %v10566, %v10724
        %v10733 = vmul.f32 %v10568, %v10720
        %v10734 = vmul.f32 %v10570, %v10724
        %v10735 = vmul.f32 %v10574, %v10720
        %v10736 = vmul.f32 %v10576, %v10724
        %v10737 = vmul.f32 %v10578, %v10720
        %v10738 = vmul.f32 %v10580, %v10724
        %v10739 = vmul.f32 %v10584, %v10720
        %v10740 = vmul.f32 %v10586, %v10724
        %v10741 = vmul.f32 %v10588, %v10720
        %v10742 = vmul.f32 %v10590, %v10724
        %v10743 = vmul.f32 %v10594, %v10720
        %v10744 = vmul.f32 %v10596, %v10724
        %v10745 = vmul.f32 %v10598, %v10720
        %v10746 = vmul.f32 %v10600, %v10724
        %v10747 = vmul.f32 %v10604, %v10720
        %v10748 = vmul.f32 %v10606, %v10724
        %v10749 = vmul.f32 %v10608, %v10720
        %v10750 = vmul.f32 %v10610, %v10724
        %v10751 = vmul.f32 %v10614, %v10720
        %v10752 = vmul.f32 %v10616, %v10724
        %v10753 = vmul.f32 %v10618, %v10720
        %v10754 = vmul.f32 %v10620, %v10724
        %v10755 = vmul.f32 %v10624, %v10720
        %v10756 = vmul.f32 %v10626, %v10724
        %v10757 = vmul.f32 %v10628, %v10720
        %v10758 = vmul.f32 %v10630, %v10724
        %v10759 = vmul.f32 %v10634, %v10720
        %v10760 = vmul.f32 %v10636, %v10724
        %v10761 = vmul.f32 %v10638, %v10720
        %v10762 = vmul.f32 %v10640, %v10724
        %v10763 = vmul.f32 %v10644, %v10720
        %v10764 = vmul.f32 %v10646, %v10724
        %v10765 = vmul.f32 %v10648, %v10720
        %v10766 = vmul.f32 %v10650, %v10724
        %v10767 = vmul.f32 %v10654, %v10720
        %v10768 = vmul.f32 %v10656, %v10724
        %v10769 = vmul.f32 %v10658, %v10720
        %v10770 = vmul.f32 %v10660, %v10724
        %v10771 = vmul.f32 %v10664, %v10720
        %v10772 = vmul.f32 %v10666, %v10724
        %v10773 = vmul.f32 %v10668, %v10720
        %v10774 = vmul.f32 %v10670, %v10724
        %v10775 = vmul.f32 %v10674, %v10720
        %v10776 = vmul.f32 %v10676, %v10724
        %v10777 = vmul.f32 %v10678, %v10720
        %v10778 = vmul.f32 %v10680, %v10724
        %v10779 = vmul.f32 %v10684, %v10720
        %v10780 = vmul.f32 %v10686, %v10724
        %v10781 = vmul.f32 %v10688, %v10720
        %v10782 = vmul.f32 %v10690, %v10724
        %v10783 = vmul.f32 %v10694, %v10720
        %v10784 = vmul.f32 %v10696, %v10724
        %v10785 = vmul.f32 %v10698, %v10720
        %v10786 = vmul.f32 %v10700, %v10724
        %v10787 = vmul.f32 %v10704, %v10720
        %v10788 = vmul.f32 %v10706, %v10724
        %v10789 = vmul.f32 %v10708, %v10720
        %v10790 = vmul.f32 %v10710, %v10724
        %v10792 = vlaneseq
        %v10793 = vshrl.u32 %v10792, 7
        %v10794 = vsub.s32 0, %v10793
        %v10795 = vrot.slane %v10715, %v10794
        %v10796 = vlaneseq
        %v10797 = vshrl.u32 %v10796, 7
        %v10798 = vsub.s32 1, %v10797
        %v10799 = vrot.slane %v10715, %v10798
        %v10802 = vadd.f32 %v10727, %v10795
        %v10803 = vadd.f32 %v10728, %v10799
        %v10804 = vadd.f32 %v10729, %v10795
        %v10805 = vadd.f32 %v10730, %v10799
        %v10806 = vadd.f32 %v10731, %v10795
        %v10807 = vadd.f32 %v10732, %v10799
        %v10808 = vadd.f32 %v10733, %v10795
        %v10809 = vadd.f32 %v10734, %v10799
        %v10810 = vadd.f32 %v10735, %v10795
        %v10811 = vadd.f32 %v10736, %v10799
        %v10812 = vadd.f32 %v10737, %v10795
        %v10813 = vadd.f32 %v10738, %v10799
        %v10814 = vadd.f32 %v10739, %v10795
        %v10815 = vadd.f32 %v10740, %v10799
        %v10816 = vadd.f32 %v10741, %v10795
        %v10817 = vadd.f32 %v10742, %v10799
        %v10818 = vadd.f32 %v10743, %v10795
        %v10819 = vadd.f32 %v10744, %v10799
        %v10820 = vadd.f32 %v10745, %v10795
        %v10821 = vadd.f32 %v10746, %v10799
        %v10822 = vadd.f32 %v10747, %v10795
        %v10823 = vadd.f32 %v10748, %v10799
        %v10824 = vadd.f32 %v10749, %v10795
        %v10825 = vadd.f32 %v10750, %v10799
        %v10826 = vadd.f32 %v10751, %v10795
        %v10827 = vadd.f32 %v10752, %v10799
        %v10828 = vadd.f32 %v10753, %v10795
        %v10829 = vadd.f32 %v10754, %v10799
        %v10830 = vadd.f32 %v10755, %v10795
        %v10831 = vadd.f32 %v10756, %v10799
        %v10832 = vadd.f32 %v10757, %v10795
        %v10833 = vadd.f32 %v10758, %v10799
        %v10834 = vadd.f32 %v10759, %v10795
        %v10835 = vadd.f32 %v10760, %v10799
        %v10836 = vadd.f32 %v10761, %v10795
        %v10837 = vadd.f32 %v10762, %v10799
        %v10838 = vadd.f32 %v10763, %v10795
        %v10839 = vadd.f32 %v10764, %v10799
        %v10840 = vadd.f32 %v10765, %v10795
        %v10841 = vadd.f32 %v10766, %v10799
        %v10842 = vadd.f32 %v10767, %v10795
        %v10843 = vadd.f32 %v10768, %v10799
        %v10844 = vadd.f32 %v10769, %v10795
        %v10845 = vadd.f32 %v10770, %v10799
        %v10846 = vadd.f32 %v10771, %v10795
        %v10847 = vadd.f32 %v10772, %v10799
        %v10848 = vadd.f32 %v10773, %v10795
        %v10849 = vadd.f32 %v10774, %v10799
        %v10850 = vadd.f32 %v10775, %v10795
        %v10851 = vadd.f32 %v10776, %v10799
        %v10852 = vadd.f32 %v10777, %v10795
        %v10853 = vadd.f32 %v10778, %v10799
        %v10854 = vadd.f32 %v10779, %v10795
        %v10855 = vadd.f32 %v10780, %v10799
        %v10856 = vadd.f32 %v10781, %v10795
        %v10857 = vadd.f32 %v10782, %v10799
        %v10858 = vadd.f32 %v10783, %v10795
        %v10859 = vadd.f32 %v10784, %v10799
        %v10860 = vadd.f32 %v10785, %v10795
        %v10861 = vadd.f32 %v10786, %v10799
        %v10862 = vadd.f32 %v10787, %v10795
        %v10863 = vadd.f32 %v10788, %v10799
        %v10864 = vadd.f32 %v10789, %v10795
        %v10865 = vadd.f32 %v10790, %v10799
        %v10866 = vmax.f32 %v10802, 0.0
        %v10867 = vmax.f32 %v10803, 0.0
        %v10868 = vmax.f32 %v10804, 0.0
        %v10869 = vmax.f32 %v10805, 0.0
        %v10870 = vmax.f32 %v10806, 0.0
        %v10871 = vmax.f32 %v10807, 0.0
        %v10872 = vmax.f32 %v10808, 0.0
        %v10873 = vmax.f32 %v10809, 0.0
        %v10874 = vmax.f32 %v10810, 0.0
        %v10875 = vmax.f32 %v10811, 0.0
        %v10876 = vmax.f32 %v10812, 0.0
        %v10877 = vmax.f32 %v10813, 0.0
        %v10878 = vmax.f32 %v10814, 0.0
        %v10879 = vmax.f32 %v10815, 0.0
        %v10880 = vmax.f32 %v10816, 0.0
        %v10881 = vmax.f32 %v10817, 0.0
        %v10882 = vmax.f32 %v10818, 0.0
        %v10883 = vmax.f32 %v10819, 0.0
        %v10884 = vmax.f32 %v10820, 0.0
        %v10885 = vmax.f32 %v10821, 0.0
        %v10886 = vmax.f32 %v10822, 0.0
        %v10887 = vmax.f32 %v10823, 0.0
        %v10888 = vmax.f32 %v10824, 0.0
        %v10889 = vmax.f32 %v10825, 0.0
        %v10890 = vmax.f32 %v10826, 0.0
        %v10891 = vmax.f32 %v10827, 0.0
        %v10892 = vmax.f32 %v10828, 0.0
        %v10893 = vmax.f32 %v10829, 0.0
        %v10894 = vmax.f32 %v10830, 0.0
        %v10895 = vmax.f32 %v10831, 0.0
        %v10896 = vmax.f32 %v10832, 0.0
        %v10897 = vmax.f32 %v10833, 0.0
        %v10898 = vmax.f32 %v10834, 0.0
        %v10899 = vmax.f32 %v10835, 0.0
        %v10900 = vmax.f32 %v10836, 0.0
        %v10901 = vmax.f32 %v10837, 0.0
        %v10902 = vmax.f32 %v10838, 0.0
        %v10903 = vmax.f32 %v10839, 0.0
        %v10904 = vmax.f32 %v10840, 0.0
        %v10905 = vmax.f32 %v10841, 0.0
        %v10906 = vmax.f32 %v10842, 0.0
        %v10907 = vmax.f32 %v10843, 0.0
        %v10908 = vmax.f32 %v10844, 0.0
        %v10909 = vmax.f32 %v10845, 0.0
        %v10910 = vmax.f32 %v10846, 0.0
        %v10911 = vmax.f32 %v10847, 0.0
        %v10912 = vmax.f32 %v10848, 0.0
        %v10913 = vmax.f32 %v10849, 0.0
        %v10914 = vmax.f32 %v10850, 0.0
        %v10915 = vmax.f32 %v10851, 0.0
        %v10916 = vmax.f32 %v10852, 0.0
        %v10917 = vmax.f32 %v10853, 0.0
        %v10918 = vmax.f32 %v10854, 0.0
        %v10919 = vmax.f32 %v10855, 0.0
        %v10920 = vmax.f32 %v10856, 0.0
        %v10921 = vmax.f32 %v10857, 0.0
        %v10922 = vmax.f32 %v10858, 0.0
        %v10923 = vmax.f32 %v10859, 0.0
        %v10924 = vmax.f32 %v10860, 0.0
        %v10925 = vmax.f32 %v10861, 0.0
        %v10926 = vmax.f32 %v10862, 0.0
        %v10927 = vmax.f32 %v10863, 0.0
        %v10928 = vmax.f32 %v10864, 0.0
        %v10929 = vmax.f32 %v10865, 0.0
        %v10930 = vpack.c.bf16 %v10868, %v10866
        %v10931 = vpack.c.bf16 %v10869, %v10867
        %v10932 = vpack.c.bf16 %v10872, %v10870
        %v10933 = vpack.c.bf16 %v10873, %v10871
        %v10934 = vpack.c.bf16 %v10876, %v10874
        %v10935 = vpack.c.bf16 %v10877, %v10875
        %v10936 = vpack.c.bf16 %v10880, %v10878
        %v10937 = vpack.c.bf16 %v10881, %v10879
        %v10938 = vpack.c.bf16 %v10884, %v10882
        %v10939 = vpack.c.bf16 %v10885, %v10883
        %v10940 = vpack.c.bf16 %v10888, %v10886
        %v10941 = vpack.c.bf16 %v10889, %v10887
        %v10942 = vpack.c.bf16 %v10892, %v10890
        %v10943 = vpack.c.bf16 %v10893, %v10891
        %v10944 = vpack.c.bf16 %v10896, %v10894
        %v10945 = vpack.c.bf16 %v10897, %v10895
        %v10946 = vpack.c.bf16 %v10900, %v10898
        %v10947 = vpack.c.bf16 %v10901, %v10899
        %v10948 = vpack.c.bf16 %v10904, %v10902
        %v10949 = vpack.c.bf16 %v10905, %v10903
        %v10950 = vpack.c.bf16 %v10908, %v10906
        %v10951 = vpack.c.bf16 %v10909, %v10907
        %v10952 = vpack.c.bf16 %v10912, %v10910
        %v10953 = vpack.c.bf16 %v10913, %v10911
        %v10954 = vpack.c.bf16 %v10916, %v10914
        %v10955 = vpack.c.bf16 %v10917, %v10915
        %v10956 = vpack.c.bf16 %v10920, %v10918
        %v10957 = vpack.c.bf16 %v10921, %v10919
        %v10958 = vpack.c.bf16 %v10924, %v10922
        %v10959 = vpack.c.bf16 %v10925, %v10923
        %v10960 = vpack.c.bf16 %v10928, %v10926
        %v10961 = vpack.c.bf16 %v10929, %v10927
        %v10994 = vunpack.c.l.b16 %v10930
        %v10995 = vunpack.c.l.b16 %v10931
        %v10996 = vunpack.c.h.b16 %v10930
        %v10997 = vunpack.c.h.b16 %v10931
        %v10998 = vunpack.c.l.b16 %v10932
        %v10999 = vunpack.c.l.b16 %v10933
        %v11000 = vunpack.c.h.b16 %v10932
        %v11001 = vunpack.c.h.b16 %v10933
        %v11002 = vunpack.c.l.b16 %v10934
        %v11003 = vunpack.c.l.b16 %v10935
        %v11004 = vunpack.c.h.b16 %v10934
        %v11005 = vunpack.c.h.b16 %v10935
        %v11006 = vunpack.c.l.b16 %v10936
        %v11007 = vunpack.c.l.b16 %v10937
        %v11008 = vunpack.c.h.b16 %v10936
        %v11009 = vunpack.c.h.b16 %v10937
        %v11010 = vunpack.c.l.b16 %v10938
        %v11011 = vunpack.c.l.b16 %v10939
        %v11012 = vunpack.c.h.b16 %v10938
        %v11013 = vunpack.c.h.b16 %v10939
        %v11014 = vunpack.c.l.b16 %v10940
        %v11015 = vunpack.c.l.b16 %v10941
        %v11016 = vunpack.c.h.b16 %v10940
        %v11017 = vunpack.c.h.b16 %v10941
        %v11018 = vunpack.c.l.b16 %v10942
        %v11019 = vunpack.c.l.b16 %v10943
        %v11020 = vunpack.c.h.b16 %v10942
        %v11021 = vunpack.c.h.b16 %v10943
        %v11022 = vunpack.c.l.b16 %v10944
        %v11023 = vunpack.c.l.b16 %v10945
        %v11024 = vunpack.c.h.b16 %v10944
        %v11025 = vunpack.c.h.b16 %v10945
        %v11026 = vunpack.c.l.b16 %v10946
        %v11027 = vunpack.c.l.b16 %v10947
        %v11028 = vunpack.c.h.b16 %v10946
        %v11029 = vunpack.c.h.b16 %v10947
        %v11030 = vunpack.c.l.b16 %v10948
        %v11031 = vunpack.c.l.b16 %v10949
        %v11032 = vunpack.c.h.b16 %v10948
        %v11033 = vunpack.c.h.b16 %v10949
        %v11034 = vunpack.c.l.b16 %v10950
        %v11035 = vunpack.c.l.b16 %v10951
        %v11036 = vunpack.c.h.b16 %v10950
        %v11037 = vunpack.c.h.b16 %v10951
        %v11038 = vunpack.c.l.b16 %v10952
        %v11039 = vunpack.c.l.b16 %v10953
        %v11040 = vunpack.c.h.b16 %v10952
        %v11041 = vunpack.c.h.b16 %v10953
        %v11042 = vunpack.c.l.b16 %v10954
        %v11043 = vunpack.c.l.b16 %v10955
        %v11044 = vunpack.c.h.b16 %v10954
        %v11045 = vunpack.c.h.b16 %v10955
        %v11046 = vunpack.c.l.b16 %v10956
        %v11047 = vunpack.c.l.b16 %v10957
        %v11048 = vunpack.c.h.b16 %v10956
        %v11049 = vunpack.c.h.b16 %v10957
        %v11050 = vunpack.c.l.b16 %v10958
        %v11051 = vunpack.c.l.b16 %v10959
        %v11052 = vunpack.c.h.b16 %v10958
        %v11053 = vunpack.c.h.b16 %v10959
        %v11054 = vunpack.c.l.b16 %v10960
        %v11055 = vunpack.c.l.b16 %v10961
        %v11056 = vunpack.c.h.b16 %v10960
        %v11057 = vunpack.c.h.b16 %v10961
        %v11058 = vpack.c.b16 %v10995, %v10994
        %v11059 = vpack.c.b16 %v10997, %v10996
        %v11060 = vpack.c.b16 %v10999, %v10998
        %v11061 = vpack.c.b16 %v11001, %v11000
        %v11062 = vpack.c.b16 %v11003, %v11002
        %v11063 = vpack.c.b16 %v11005, %v11004
        %v11064 = vpack.c.b16 %v11007, %v11006
        %v11065 = vpack.c.b16 %v11009, %v11008
        %v11066 = vpack.c.b16 %v11011, %v11010
        %v11067 = vpack.c.b16 %v11013, %v11012
        %v11068 = vpack.c.b16 %v11015, %v11014
        %v11069 = vpack.c.b16 %v11017, %v11016
        %v11070 = vpack.c.b16 %v11019, %v11018
        %v11071 = vpack.c.b16 %v11021, %v11020
        %v11072 = vpack.c.b16 %v11023, %v11022
        %v11073 = vpack.c.b16 %v11025, %v11024
        %v11074 = vpack.c.b16 %v11027, %v11026
        %v11075 = vpack.c.b16 %v11029, %v11028
        %v11076 = vpack.c.b16 %v11031, %v11030
        %v11077 = vpack.c.b16 %v11033, %v11032
        %v11078 = vpack.c.b16 %v11035, %v11034
        %v11079 = vpack.c.b16 %v11037, %v11036
        %v11080 = vpack.c.b16 %v11039, %v11038
        %v11081 = vpack.c.b16 %v11041, %v11040
        %v11082 = vpack.c.b16 %v11043, %v11042
        %v11083 = vpack.c.b16 %v11045, %v11044
        %v11084 = vpack.c.b16 %v11047, %v11046
        %v11085 = vpack.c.b16 %v11049, %v11048
        %v11086 = vpack.c.b16 %v11051, %v11050
        %v11087 = vpack.c.b16 %v11053, %v11052
        %v11088 = vpack.c.b16 %v11055, %v11054
        %v11089 = vpack.c.b16 %v11057, %v11056
        %11122 = vst [vmem:[%s379 + $0x18] sm:$0xff] %v11058
        %11123 = vst [vmem:[%s379 + $0x40] sm:$0xff] %v11059
        %11124 = vst [vmem:[%s379 + $0x68] sm:$0xff] %v11060
        %11125 = vst [vmem:[%s379 + $0x90] sm:$0xff] %v11061
        %11126 = vst [vmem:[%s379 + $0xb8] sm:$0xff] %v11062
        %11127 = vst [vmem:[%s379 + $0xe0] sm:$0xff] %v11063
        %11128 = vst [vmem:[%s379 + $0x108] sm:$0xff] %v11064
        %11129 = vst [vmem:[%s379 + $0x130] sm:$0xff] %v11065
        %11130 = vst [vmem:[%s379 + $0x158] sm:$0xff] %v11066
        %11131 = vst [vmem:[%s379 + $0x180] sm:$0xff] %v11067
        %11132 = vst [vmem:[%s379 + $0x1a8] sm:$0xff] %v11068
        %11133 = vst [vmem:[%s379 + $0x1d0] sm:$0xff] %v11069
        %11134 = vst [vmem:[%s379 + $0x1f8] sm:$0xff] %v11070
        %11135 = vst [vmem:[%s379 + $0x220] sm:$0xff] %v11071
        %11136 = vst [vmem:[%s379 + $0x248] sm:$0xff] %v11072
        %11137 = vst [vmem:[%s379 + $0x270] sm:$0xff] %v11073
        %11138 = vst [vmem:[%s379 + $0x298] sm:$0xff] %v11074
        %11139 = vst [vmem:[%s379 + $0x2c0] sm:$0xff] %v11075
        %11140 = vst [vmem:[%s379 + $0x2e8] sm:$0xff] %v11076
        %11141 = vst [vmem:[%s379 + $0x310] sm:$0xff] %v11077
        %11142 = vst [vmem:[%s379 + $0x338] sm:$0xff] %v11078
        %11143 = vst [vmem:[%s379 + $0x360] sm:$0xff] %v11079
        %11144 = vst [vmem:[%s379 + $0x388] sm:$0xff] %v11080
        %11145 = vst [vmem:[%s379 + $0x3b0] sm:$0xff] %v11081
        %11146 = vst [vmem:[%s379 + $0x3d8] sm:$0xff] %v11082
        %11147 = vst [vmem:[%s379 + $0x400] sm:$0xff] %v11083
        %11148 = vst [vmem:[%s379 + $0x428] sm:$0xff] %v11084
        %11149 = vst [vmem:[%s379 + $0x450] sm:$0xff] %v11085
        %11150 = vst [vmem:[%s379 + $0x478] sm:$0xff] %v11086
        %11151 = vst [vmem:[%s379 + $0x4a0] sm:$0xff] %v11087
        %11152 = vst [vmem:[%s379 + $0x4c8] sm:$0xff] %v11088
        %11153 = vst [vmem:[%s379 + $0x4f0] sm:$0xff] %v11089
        %s11154 = scalar_lea.vmem [#allocation13], 4
        %v11155 = vld [vmem:[%s11154] ss:$8 sm:$0x3]
        %s11156 = scalar_lea.vmem [#allocation15], 4
        %v11157 = vld [vmem:[%s11156] ss:$8 sm:$0x3]
        %v11159 = vlaneseq
        %v11160 = vshrl.u32 %v11159, 7
        %v11161 = vsub.s32 0, %v11160
        %v11162 = vrot.slane %v11155, %v11161
        %v11163 = vlaneseq
        %v11164 = vshrl.u32 %v11163, 7
        %v11165 = vsub.s32 1, %v11164
        %v11166 = vrot.slane %v11155, %v11165
        %v11169 = vmul.f32 %v1458, %v11162
        %v11170 = vmul.f32 %v1460, %v11166
        %v11171 = vmul.f32 %v1462, %v11162
        %v11172 = vmul.f32 %v1464, %v11166
        %v11173 = vmul.f32 %v1468, %v11162
        %v11174 = vmul.f32 %v1470, %v11166
        %v11175 = vmul.f32 %v1472, %v11162
        %v11176 = vmul.f32 %v1474, %v11166
        %v11177 = vmul.f32 %v1478, %v11162
        %v11178 = vmul.f32 %v1480, %v11166
        %v11179 = vmul.f32 %v1482, %v11162
        %v11180 = vmul.f32 %v1484, %v11166
        %v11181 = vmul.f32 %v1488, %v11162
        %v11182 = vmul.f32 %v1490, %v11166
        %v11183 = vmul.f32 %v1492, %v11162
        %v11184 = vmul.f32 %v1494, %v11166
        %v11185 = vmul.f32 %v1498, %v11162
        %v11186 = vmul.f32 %v1500, %v11166
        %v11187 = vmul.f32 %v1502, %v11162
        %v11188 = vmul.f32 %v1504, %v11166
        %v11189 = vmul.f32 %v1508, %v11162
        %v11190 = vmul.f32 %v1510, %v11166
        %v11191 = vmul.f32 %v1512, %v11162
        %v11192 = vmul.f32 %v1514, %v11166
        %v11193 = vmul.f32 %v1518, %v11162
        %v11194 = vmul.f32 %v1520, %v11166
        %v11195 = vmul.f32 %v1522, %v11162
        %v11196 = vmul.f32 %v1524, %v11166
        %v11197 = vmul.f32 %v1528, %v11162
        %v11198 = vmul.f32 %v1530, %v11166
        %v11199 = vmul.f32 %v1532, %v11162
        %v11200 = vmul.f32 %v1534, %v11166
        %v11201 = vmul.f32 %v1538, %v11162
        %v11202 = vmul.f32 %v1540, %v11166
        %v11203 = vmul.f32 %v1542, %v11162
        %v11204 = vmul.f32 %v1544, %v11166
        %v11205 = vmul.f32 %v1548, %v11162
        %v11206 = vmul.f32 %v1550, %v11166
        %v11207 = vmul.f32 %v1552, %v11162
        %v11208 = vmul.f32 %v1554, %v11166
        %v11209 = vmul.f32 %v1558, %v11162
        %v11210 = vmul.f32 %v1560, %v11166
        %v11211 = vmul.f32 %v1562, %v11162
        %v11212 = vmul.f32 %v1564, %v11166
        %v11213 = vmul.f32 %v1568, %v11162
        %v11214 = vmul.f32 %v1570, %v11166
        %v11215 = vmul.f32 %v1572, %v11162
        %v11216 = vmul.f32 %v1574, %v11166
        %v11217 = vmul.f32 %v1578, %v11162
        %v11218 = vmul.f32 %v1580, %v11166
        %v11219 = vmul.f32 %v1582, %v11162
        %v11220 = vmul.f32 %v1584, %v11166
        %v11221 = vmul.f32 %v1588, %v11162
        %v11222 = vmul.f32 %v1590, %v11166
        %v11223 = vmul.f32 %v1592, %v11162
        %v11224 = vmul.f32 %v1594, %v11166
        %v11225 = vmul.f32 %v1598, %v11162
        %v11226 = vmul.f32 %v1600, %v11166
        %v11227 = vmul.f32 %v1602, %v11162
        %v11228 = vmul.f32 %v1604, %v11166
        %v11229 = vmul.f32 %v1608, %v11162
        %v11230 = vmul.f32 %v1610, %v11166
        %v11231 = vmul.f32 %v1612, %v11162
        %v11232 = vmul.f32 %v1614, %v11166
        %v11234 = vlaneseq
        %v11235 = vshrl.u32 %v11234, 7
        %v11236 = vsub.s32 0, %v11235
        %v11237 = vrot.slane %v11157, %v11236
        %v11238 = vlaneseq
        %v11239 = vshrl.u32 %v11238, 7
        %v11240 = vsub.s32 1, %v11239
        %v11241 = vrot.slane %v11157, %v11240
        %v11244 = vadd.f32 %v11169, %v11237
        %v11245 = vadd.f32 %v11170, %v11241
        %v11246 = vadd.f32 %v11171, %v11237
        %v11247 = vadd.f32 %v11172, %v11241
        %v11248 = vadd.f32 %v11173, %v11237
        %v11249 = vadd.f32 %v11174, %v11241
        %v11250 = vadd.f32 %v11175, %v11237
        %v11251 = vadd.f32 %v11176, %v11241
        %v11252 = vadd.f32 %v11177, %v11237
        %v11253 = vadd.f32 %v11178, %v11241
        %v11254 = vadd.f32 %v11179, %v11237
        %v11255 = vadd.f32 %v11180, %v11241
        %v11256 = vadd.f32 %v11181, %v11237
        %v11257 = vadd.f32 %v11182, %v11241
        %v11258 = vadd.f32 %v11183, %v11237
        %v11259 = vadd.f32 %v11184, %v11241
        %v11260 = vadd.f32 %v11185, %v11237
        %v11261 = vadd.f32 %v11186, %v11241
        %v11262 = vadd.f32 %v11187, %v11237
        %v11263 = vadd.f32 %v11188, %v11241
        %v11264 = vadd.f32 %v11189, %v11237
        %v11265 = vadd.f32 %v11190, %v11241
        %v11266 = vadd.f32 %v11191, %v11237
        %v11267 = vadd.f32 %v11192, %v11241
        %v11268 = vadd.f32 %v11193, %v11237
        %v11269 = vadd.f32 %v11194, %v11241
        %v11270 = vadd.f32 %v11195, %v11237
        %v11271 = vadd.f32 %v11196, %v11241
        %v11272 = vadd.f32 %v11197, %v11237
        %v11273 = vadd.f32 %v11198, %v11241
        %v11274 = vadd.f32 %v11199, %v11237
        %v11275 = vadd.f32 %v11200, %v11241
        %v11276 = vadd.f32 %v11201, %v11237
        %v11277 = vadd.f32 %v11202, %v11241
        %v11278 = vadd.f32 %v11203, %v11237
        %v11279 = vadd.f32 %v11204, %v11241
        %v11280 = vadd.f32 %v11205, %v11237
        %v11281 = vadd.f32 %v11206, %v11241
        %v11282 = vadd.f32 %v11207, %v11237
        %v11283 = vadd.f32 %v11208, %v11241
        %v11284 = vadd.f32 %v11209, %v11237
        %v11285 = vadd.f32 %v11210, %v11241
        %v11286 = vadd.f32 %v11211, %v11237
        %v11287 = vadd.f32 %v11212, %v11241
        %v11288 = vadd.f32 %v11213, %v11237
        %v11289 = vadd.f32 %v11214, %v11241
        %v11290 = vadd.f32 %v11215, %v11237
        %v11291 = vadd.f32 %v11216, %v11241
        %v11292 = vadd.f32 %v11217, %v11237
        %v11293 = vadd.f32 %v11218, %v11241
        %v11294 = vadd.f32 %v11219, %v11237
        %v11295 = vadd.f32 %v11220, %v11241
        %v11296 = vadd.f32 %v11221, %v11237
        %v11297 = vadd.f32 %v11222, %v11241
        %v11298 = vadd.f32 %v11223, %v11237
        %v11299 = vadd.f32 %v11224, %v11241
        %v11300 = vadd.f32 %v11225, %v11237
        %v11301 = vadd.f32 %v11226, %v11241
        %v11302 = vadd.f32 %v11227, %v11237
        %v11303 = vadd.f32 %v11228, %v11241
        %v11304 = vadd.f32 %v11229, %v11237
        %v11305 = vadd.f32 %v11230, %v11241
        %v11306 = vadd.f32 %v11231, %v11237
        %v11307 = vadd.f32 %v11232, %v11241
        %v11308 = vmax.f32 %v11244, 0.0
        %v11309 = vmax.f32 %v11245, 0.0
        %v11310 = vmax.f32 %v11246, 0.0
        %v11311 = vmax.f32 %v11247, 0.0
        %v11312 = vmax.f32 %v11248, 0.0
        %v11313 = vmax.f32 %v11249, 0.0
        %v11314 = vmax.f32 %v11250, 0.0
        %v11315 = vmax.f32 %v11251, 0.0
        %v11316 = vmax.f32 %v11252, 0.0
        %v11317 = vmax.f32 %v11253, 0.0
        %v11318 = vmax.f32 %v11254, 0.0
        %v11319 = vmax.f32 %v11255, 0.0
        %v11320 = vmax.f32 %v11256, 0.0
        %v11321 = vmax.f32 %v11257, 0.0
        %v11322 = vmax.f32 %v11258, 0.0
        %v11323 = vmax.f32 %v11259, 0.0
        %v11324 = vmax.f32 %v11260, 0.0
        %v11325 = vmax.f32 %v11261, 0.0
        %v11326 = vmax.f32 %v11262, 0.0
        %v11327 = vmax.f32 %v11263, 0.0
        %v11328 = vmax.f32 %v11264, 0.0
        %v11329 = vmax.f32 %v11265, 0.0
        %v11330 = vmax.f32 %v11266, 0.0
        %v11331 = vmax.f32 %v11267, 0.0
        %v11332 = vmax.f32 %v11268, 0.0
        %v11333 = vmax.f32 %v11269, 0.0
        %v11334 = vmax.f32 %v11270, 0.0
        %v11335 = vmax.f32 %v11271, 0.0
        %v11336 = vmax.f32 %v11272, 0.0
        %v11337 = vmax.f32 %v11273, 0.0
        %v11338 = vmax.f32 %v11274, 0.0
        %v11339 = vmax.f32 %v11275, 0.0
        %v11340 = vmax.f32 %v11276, 0.0
        %v11341 = vmax.f32 %v11277, 0.0
        %v11342 = vmax.f32 %v11278, 0.0
        %v11343 = vmax.f32 %v11279, 0.0
        %v11344 = vmax.f32 %v11280, 0.0
        %v11345 = vmax.f32 %v11281, 0.0
        %v11346 = vmax.f32 %v11282, 0.0
        %v11347 = vmax.f32 %v11283, 0.0
        %v11348 = vmax.f32 %v11284, 0.0
        %v11349 = vmax.f32 %v11285, 0.0
        %v11350 = vmax.f32 %v11286, 0.0
        %v11351 = vmax.f32 %v11287, 0.0
        %v11352 = vmax.f32 %v11288, 0.0
        %v11353 = vmax.f32 %v11289, 0.0
        %v11354 = vmax.f32 %v11290, 0.0
        %v11355 = vmax.f32 %v11291, 0.0
        %v11356 = vmax.f32 %v11292, 0.0
        %v11357 = vmax.f32 %v11293, 0.0
        %v11358 = vmax.f32 %v11294, 0.0
        %v11359 = vmax.f32 %v11295, 0.0
        %v11360 = vmax.f32 %v11296, 0.0
        %v11361 = vmax.f32 %v11297, 0.0
        %v11362 = vmax.f32 %v11298, 0.0
        %v11363 = vmax.f32 %v11299, 0.0
        %v11364 = vmax.f32 %v11300, 0.0
        %v11365 = vmax.f32 %v11301, 0.0
        %v11366 = vmax.f32 %v11302, 0.0
        %v11367 = vmax.f32 %v11303, 0.0
        %v11368 = vmax.f32 %v11304, 0.0
        %v11369 = vmax.f32 %v11305, 0.0
        %v11370 = vmax.f32 %v11306, 0.0
        %v11371 = vmax.f32 %v11307, 0.0
        %v11372 = vpack.c.bf16 %v11310, %v11308
        %v11373 = vpack.c.bf16 %v11311, %v11309
        %v11374 = vpack.c.bf16 %v11314, %v11312
        %v11375 = vpack.c.bf16 %v11315, %v11313
        %v11376 = vpack.c.bf16 %v11318, %v11316
        %v11377 = vpack.c.bf16 %v11319, %v11317
        %v11378 = vpack.c.bf16 %v11322, %v11320
        %v11379 = vpack.c.bf16 %v11323, %v11321
        %v11380 = vpack.c.bf16 %v11326, %v11324
        %v11381 = vpack.c.bf16 %v11327, %v11325
        %v11382 = vpack.c.bf16 %v11330, %v11328
        %v11383 = vpack.c.bf16 %v11331, %v11329
        %v11384 = vpack.c.bf16 %v11334, %v11332
        %v11385 = vpack.c.bf16 %v11335, %v11333
        %v11386 = vpack.c.bf16 %v11338, %v11336
        %v11387 = vpack.c.bf16 %v11339, %v11337
        %v11388 = vpack.c.bf16 %v11342, %v11340
        %v11389 = vpack.c.bf16 %v11343, %v11341
        %v11390 = vpack.c.bf16 %v11346, %v11344
        %v11391 = vpack.c.bf16 %v11347, %v11345
        %v11392 = vpack.c.bf16 %v11350, %v11348
        %v11393 = vpack.c.bf16 %v11351, %v11349
        %v11394 = vpack.c.bf16 %v11354, %v11352
        %v11395 = vpack.c.bf16 %v11355, %v11353
        %v11396 = vpack.c.bf16 %v11358, %v11356
        %v11397 = vpack.c.bf16 %v11359, %v11357
        %v11398 = vpack.c.bf16 %v11362, %v11360
        %v11399 = vpack.c.bf16 %v11363, %v11361
        %v11400 = vpack.c.bf16 %v11366, %v11364
        %v11401 = vpack.c.bf16 %v11367, %v11365
        %v11402 = vpack.c.bf16 %v11370, %v11368
        %v11403 = vpack.c.bf16 %v11371, %v11369
        %v11436 = vunpack.c.l.b16 %v11372
        %v11437 = vunpack.c.l.b16 %v11373
        %v11438 = vunpack.c.h.b16 %v11372
        %v11439 = vunpack.c.h.b16 %v11373
        %v11440 = vunpack.c.l.b16 %v11374
        %v11441 = vunpack.c.l.b16 %v11375
        %v11442 = vunpack.c.h.b16 %v11374
        %v11443 = vunpack.c.h.b16 %v11375
        %v11444 = vunpack.c.l.b16 %v11376
        %v11445 = vunpack.c.l.b16 %v11377
        %v11446 = vunpack.c.h.b16 %v11376
        %v11447 = vunpack.c.h.b16 %v11377
        %v11448 = vunpack.c.l.b16 %v11378
        %v11449 = vunpack.c.l.b16 %v11379
        %v11450 = vunpack.c.h.b16 %v11378
        %v11451 = vunpack.c.h.b16 %v11379
        %v11452 = vunpack.c.l.b16 %v11380
        %v11453 = vunpack.c.l.b16 %v11381
        %v11454 = vunpack.c.h.b16 %v11380
        %v11455 = vunpack.c.h.b16 %v11381
        %v11456 = vunpack.c.l.b16 %v11382
        %v11457 = vunpack.c.l.b16 %v11383
        %v11458 = vunpack.c.h.b16 %v11382
        %v11459 = vunpack.c.h.b16 %v11383
        %v11460 = vunpack.c.l.b16 %v11384
        %v11461 = vunpack.c.l.b16 %v11385
        %v11462 = vunpack.c.h.b16 %v11384
        %v11463 = vunpack.c.h.b16 %v11385
        %v11464 = vunpack.c.l.b16 %v11386
        %v11465 = vunpack.c.l.b16 %v11387
        %v11466 = vunpack.c.h.b16 %v11386
        %v11467 = vunpack.c.h.b16 %v11387
        %v11468 = vunpack.c.l.b16 %v11388
        %v11469 = vunpack.c.l.b16 %v11389
        %v11470 = vunpack.c.h.b16 %v11388
        %v11471 = vunpack.c.h.b16 %v11389
        %v11472 = vunpack.c.l.b16 %v11390
        %v11473 = vunpack.c.l.b16 %v11391
        %v11474 = vunpack.c.h.b16 %v11390
        %v11475 = vunpack.c.h.b16 %v11391
        %v11476 = vunpack.c.l.b16 %v11392
        %v11477 = vunpack.c.l.b16 %v11393
        %v11478 = vunpack.c.h.b16 %v11392
        %v11479 = vunpack.c.h.b16 %v11393
        %v11480 = vunpack.c.l.b16 %v11394
        %v11481 = vunpack.c.l.b16 %v11395
        %v11482 = vunpack.c.h.b16 %v11394
        %v11483 = vunpack.c.h.b16 %v11395
        %v11484 = vunpack.c.l.b16 %v11396
        %v11485 = vunpack.c.l.b16 %v11397
        %v11486 = vunpack.c.h.b16 %v11396
        %v11487 = vunpack.c.h.b16 %v11397
        %v11488 = vunpack.c.l.b16 %v11398
        %v11489 = vunpack.c.l.b16 %v11399
        %v11490 = vunpack.c.h.b16 %v11398
        %v11491 = vunpack.c.h.b16 %v11399
        %v11492 = vunpack.c.l.b16 %v11400
        %v11493 = vunpack.c.l.b16 %v11401
        %v11494 = vunpack.c.h.b16 %v11400
        %v11495 = vunpack.c.h.b16 %v11401
        %v11496 = vunpack.c.l.b16 %v11402
        %v11497 = vunpack.c.l.b16 %v11403
        %v11498 = vunpack.c.h.b16 %v11402
        %v11499 = vunpack.c.h.b16 %v11403
        %v11500 = vpack.c.b16 %v11437, %v11436
        %v11501 = vpack.c.b16 %v11439, %v11438
        %v11502 = vpack.c.b16 %v11441, %v11440
        %v11503 = vpack.c.b16 %v11443, %v11442
        %v11504 = vpack.c.b16 %v11445, %v11444
        %v11505 = vpack.c.b16 %v11447, %v11446
        %v11506 = vpack.c.b16 %v11449, %v11448
        %v11507 = vpack.c.b16 %v11451, %v11450
        %v11508 = vpack.c.b16 %v11453, %v11452
        %v11509 = vpack.c.b16 %v11455, %v11454
        %v11510 = vpack.c.b16 %v11457, %v11456
        %v11511 = vpack.c.b16 %v11459, %v11458
        %v11512 = vpack.c.b16 %v11461, %v11460
        %v11513 = vpack.c.b16 %v11463, %v11462
        %v11514 = vpack.c.b16 %v11465, %v11464
        %v11515 = vpack.c.b16 %v11467, %v11466
        %v11516 = vpack.c.b16 %v11469, %v11468
        %v11517 = vpack.c.b16 %v11471, %v11470
        %v11518 = vpack.c.b16 %v11473, %v11472
        %v11519 = vpack.c.b16 %v11475, %v11474
        %v11520 = vpack.c.b16 %v11477, %v11476
        %v11521 = vpack.c.b16 %v11479, %v11478
        %v11522 = vpack.c.b16 %v11481, %v11480
        %v11523 = vpack.c.b16 %v11483, %v11482
        %v11524 = vpack.c.b16 %v11485, %v11484
        %v11525 = vpack.c.b16 %v11487, %v11486
        %v11526 = vpack.c.b16 %v11489, %v11488
        %v11527 = vpack.c.b16 %v11491, %v11490
        %v11528 = vpack.c.b16 %v11493, %v11492
        %v11529 = vpack.c.b16 %v11495, %v11494
        %v11530 = vpack.c.b16 %v11497, %v11496
        %v11531 = vpack.c.b16 %v11499, %v11498
        %11564 = vst [vmem:[%s379 + $0x20] sm:$0xff] %v11500
        %11565 = vst [vmem:[%s379 + $0x48] sm:$0xff] %v11501
        %11566 = vst [vmem:[%s379 + $0x70] sm:$0xff] %v11502
        %11567 = vst [vmem:[%s379 + $0x98] sm:$0xff] %v11503
        %11568 = vst [vmem:[%s379 + $0xc0] sm:$0xff] %v11504
        %11569 = vst [vmem:[%s379 + $0xe8] sm:$0xff] %v11505
        %11570 = vst [vmem:[%s379 + $0x110] sm:$0xff] %v11506
        %11571 = vst [vmem:[%s379 + $0x138] sm:$0xff] %v11507
        %11572 = vst [vmem:[%s379 + $0x160] sm:$0xff] %v11508
        %11573 = vst [vmem:[%s379 + $0x188] sm:$0xff] %v11509
        %11574 = vst [vmem:[%s379 + $0x1b0] sm:$0xff] %v11510
        %11575 = vst [vmem:[%s379 + $0x1d8] sm:$0xff] %v11511
        %11576 = vst [vmem:[%s379 + $0x200] sm:$0xff] %v11512
        %11577 = vst [vmem:[%s379 + $0x228] sm:$0xff] %v11513
        %11578 = vst [vmem:[%s379 + $0x250] sm:$0xff] %v11514
        %11579 = vst [vmem:[%s379 + $0x278] sm:$0xff] %v11515
        %11580 = vst [vmem:[%s379 + $0x2a0] sm:$0xff] %v11516
        %11581 = vst [vmem:[%s379 + $0x2c8] sm:$0xff] %v11517
        %11582 = vst [vmem:[%s379 + $0x2f0] sm:$0xff] %v11518
        %11583 = vst [vmem:[%s379 + $0x318] sm:$0xff] %v11519
        %11584 = vst [vmem:[%s379 + $0x340] sm:$0xff] %v11520
        %11585 = vst [vmem:[%s379 + $0x368] sm:$0xff] %v11521
        %11586 = vst [vmem:[%s379 + $0x390] sm:$0xff] %v11522
        %11587 = vst [vmem:[%s379 + $0x3b8] sm:$0xff] %v11523
        %11588 = vst [vmem:[%s379 + $0x3e0] sm:$0xff] %v11524
        %11589 = vst [vmem:[%s379 + $0x408] sm:$0xff] %v11525
        %11590 = vst [vmem:[%s379 + $0x430] sm:$0xff] %v11526
        %11591 = vst [vmem:[%s379 + $0x458] sm:$0xff] %v11527
        %11592 = vst [vmem:[%s379 + $0x480] sm:$0xff] %v11528
        %11593 = vst [vmem:[%s379 + $0x4a8] sm:$0xff] %v11529
        %11594 = vst [vmem:[%s379 + $0x4d0] sm:$0xff] %v11530
        %11595 = vst [vmem:[%s379 + $0x4f8] sm:$0xff] %v11531
        %s11596 = sand.u32 %s187, 1
        %s11597 = scalar_lea.sflag [#allocation6], %s11596
        %s11598 = sand.u32 %s187, 1
        %s11599 = smul.addr %s11598, 1280
        %s11600 = scalar_lea.vmem [#allocation16], %s11599
        // Predicated region
        $region77: #{tpu_custom_call.1} parent=47 // pred_check
          %p11601 = pneg %p197
        $region78: #{tpu_custom_call.1} parent=47 // pred_check_branch
          %11603 = sbr.rel (%p11601) target = $region80
        $region79: #{tpu_custom_call.1} parent=47 // pred_region
          %s11605 = ssub.s32 20480, 20480
          %11606 = vsyncadd %s11597, %s11605
          %s11607 = smul.addr %s27, 320
          %s11608 = smul.addr %s11607, 64
          %s11609 = scalar_lea.hbm %s7, %s11608
          %s11610 = sshll.u32 %s11600, 4
          %s11611 = int_to_ptr.vmem [resolvable:$true] %s11610
          %11616 = dma.vmem_to_hbm [thread:$0]  %s11611, 20480, %s11609, %s11597, 640, 640, 40
        $region80: #{tpu_custom_call.1} parent=47 // pred_fallthru
          _
      $region48: #{tpu_custom_call.1} parent=5 // pred_fallthru
        _
      %p11617 = scmp.le.s32.totalorder 2, %s22
      // Predicated region
      $region81: #{tpu_custom_call.1} parent=5 // pred_check
        %p11618 = pneg %p11617
      $region82: #{tpu_custom_call.1} parent=5 // pred_check_branch
        %11620 = sbr.rel (%p11618) target = $region84
      $region83: #{tpu_custom_call.1} parent=5 // pred_region
        %s11621 = ssub.s32 %s22, 2
        // Predicated region
        $region85: #{tpu_custom_call.1} parent=83 // pred_check
          %p11622 = pneg %p203
        $region86: #{tpu_custom_call.1} parent=83 // pred_check_branch
          %11624 = sbr.rel (%p11622) target = $region88
        $region87: #{tpu_custom_call.1} parent=83 // pred_region
          %s11625 = sand.u32 %s188, 1
          %s11626 = scalar_lea.sflag [#allocation6], %s11625
          %s11627 = sand.u32 %s188, 1
          %s11628 = smul.addr %s11627, 1280
          %s11629 = scalar_lea.vmem [#allocation16], %s11628
          %11630 = dma.done %s11626, 20480
        $region88: #{tpu_custom_call.1} parent=83 // pred_fallthru
          _
      $region84: #{tpu_custom_call.1} parent=5 // pred_fallthru
        _
    $region6: #{tpu_custom_call.1} parent=1 // loop_footer
      %s26 = sadd.s32 1, %s22
    $region7: #{tpu_custom_call.1} parent=1 // loop_footer_branch
      %21 = sbr.rel target = $region3
    $region8: #{tpu_custom_call.1} parent=1 // loop_exit
      _
    %11631 = vsyncpa [#allocation5], 1
    %s11632 = scalar_lea.sflag [#allocation5], 1
    %11633 = vsyncpa %s11632, 1
    %11634 = vsyncpa [#allocation8], 1
    %11635 = vsyncpa [#allocation11], 1
    %11636 = vsyncpa [#allocation14], 1
    %11637 = vsyncpa [#allocation6], 1
    %s11638 = scalar_lea.sflag [#allocation6], 1
    %11639 = vsyncpa %s11638, 1

</llo_original>
